<compile_context>
chip_gen: v6e
topology: v6e:2x2x1
jax: 0.10.0
libtpu: 0.0.40
codegen_flags: <defaults>
</compile_context>

<pallas_src>
import functools

import jax
import jax.numpy as jnp
from jax import lax
from jax.experimental import pallas as pl
from jax.experimental.pallas import tpu as pltpu


def _round_up(x, m):
  return (x + m - 1) // m * m


def _basic_block_kernel(x_ref, w1_ref, s1_ref, b1_ref, w2_ref, s2_ref,
                        b2_ref, mask_ref, out_ref, *, offs, margin, a1, a2):
  """Fused conv3x3+BN+ReLU -> conv3x3+BN -> +identity -> ReLU for ONE sample.

  Layout: flat-padded pixels on the sublane axis, channels on the lane axis.
  Every 3x3 tap is a constant shift `off = dy*(W+2)+dx` along the flat axis,
  realised as a statically-offset slice -- no padded VMEM scratch round-trip.

  x_ref   : (1, E, Cin)    f32  flat-padded input + `margin` guard rows
  w1_ref  : (9, Cin, Cout) bf16 conv1 weights, one (Cin, Cout) matrix per tap
  w2_ref  : (9, Cout, Cout) bf16 conv2 weights
  s*_ref, b*_ref : (1, Cout) f32 folded inference BatchNorm scale / bias
  mask_ref: (a1, 1) f32    1.0 on true interior pixels of the padded grid
  out_ref : (1, a2, Cout)  f32  rows j correspond to pixels (j // (W+2), j % (W+2))
  """

  def x_tap(off, width):
    s = margin + off
    # Per-tap ref load keeps live ranges short (no large resident x value).
    return x_ref[0, s:s + width, :].astype(jnp.bfloat16)

  # ---- conv1: 9 taps, bf16 MXU, f32 accumulation, acc seeded by tap 0 ----
  acc1 = jnp.dot(x_tap(offs[0], a1), w1_ref[0],
                 preferred_element_type=jnp.float32)
  for t in range(1, 9):
    acc1 = acc1 + jnp.dot(x_tap(offs[t], a1), w1_ref[t],
                          preferred_element_type=jnp.float32)

  # ---- bn1 + relu (f32 epilogue); zero everything outside the true interior
  # so conv2 sees the correct zero padding (replaces pad_scratch) ----
  out1 = jnp.maximum(acc1 * s1_ref[...] + b1_ref[...], 0.0)
  out1 = (out1 * mask_ref[...]).astype(jnp.bfloat16)

  # ---- conv2: 9 taps over the masked intermediate ----
  def o1_tap(off):
    s = margin + off
    return out1[s:s + a2, :]

  acc2 = jnp.dot(o1_tap(offs[0]), w2_ref[0],
                 preferred_element_type=jnp.float32)
  for t in range(1, 9):
    acc2 = acc2 + jnp.dot(o1_tap(offs[t]), w2_ref[t],
                          preferred_element_type=jnp.float32)

  # ---- bn2 + residual add + relu (identity read from the SAME block) ----
  out2 = acc2 * s2_ref[...] + b2_ref[...]
  ident = x_ref[0, 2 * margin:2 * margin + a2, :]
  out_ref[0, :, :] = jnp.maximum(out2 + ident, 0.0)


def basic_block_pallas(x_nchw, w1, bn1, w2, bn2, eps=1e-5):
  """BasicBlock forward with a single fused Pallas kernel, gridded over batch.

  x_nchw : (N, Cin, H, W)     float32, PyTorch layout
  w1     : (Cout, Cin, 3, 3)  conv1 weight (PyTorch OIHW)
  w2     : (Cout, Cout, 3, 3) conv2 weight
  bn1/bn2: dicts with 'gamma', 'beta', 'mean', 'var' of shape (Cout,)
  Returns (N, Cout, H, W) float32.
  """
  N, Cin, H, W = x_nchw.shape
  Cout = w1.shape[0]
  assert Cin == Cout, "identity path requires inplanes == planes (no downsample)"

  Hp, Wp = H + 2, W + 2
  Q = Hp * Wp                            # flat length of the zero-padded image
  margin = Wp + 1                        # largest |tap shift| = 1*Wp + 1
  a2 = H * Wp                            # output rows per sample (covers all pixels)
  a1 = _round_up(Q + 2, 8)               # conv1 rows (covers every row conv2 touches)
  ext = _round_up(a1 + 2 * margin, 8)    # input rows incl. guard margins
  offs = tuple(dy * Wp + dx for dy in (-1, 0, 1) for dx in (-1, 0, 1))

  # --- host-side layout prep (cheap XLA ops) ---
  x_nhwc = jnp.transpose(x_nchw, (0, 2, 3, 1)).astype(jnp.float32)
  x_pad = jnp.pad(x_nhwc, ((0, 0), (1, 1), (1, 1), (0, 0)))      # (N,Hp,Wp,C)
  x_flat = x_pad.reshape(N, Q, Cin)
  x_ext = jnp.pad(x_flat, ((0, 0), (margin, ext - Q - margin), (0, 0)))

  def taps(w):   # (Cout, Cin, 3, 3) -> (9, Cin, Cout), bf16 for the MXU
    return jnp.transpose(w, (2, 3, 1, 0)).reshape(
        9, w.shape[1], w.shape[0]).astype(jnp.bfloat16)

  w1_t, w2_t = taps(w1), taps(w2)

  def fold(bn):  # inference-mode BN folded to per-channel scale / bias (f32)
    scale = bn['gamma'] / jnp.sqrt(bn['var'] + eps)
    bias = bn['beta'] - bn['mean'] * scale
    return (scale.reshape(1, Cout).astype(jnp.float32),
            bias.reshape(1, Cout).astype(jnp.float32))

  s1, b1 = fold(bn1)
  s2, b2 = fold(bn2)

  # Interior mask over conv1's output rows (flat-padded coordinates).
  q = jnp.arange(a1)
  hq, wq = q // Wp, q % Wp
  interior = (q < Q) & (hq >= 1) & (hq <= H) & (wq >= 1) & (wq <= W)
  mask = interior.astype(jnp.float32).reshape(a1, 1)

  kernel = functools.partial(_basic_block_kernel, offs=offs, margin=margin,
                             a1=a1, a2=a2)

  grid_spec = pltpu.PrefetchScalarGridSpec(
      num_scalar_prefetch=0,
      grid=(N,),   # one sample per step -> pipelined DMA, megacore-shardable
      in_specs=[
          pl.BlockSpec((1, ext, Cin), lambda n: (n, 0, 0)),
          pl.BlockSpec((9, Cin, Cout), lambda n: (0, 0, 0)),
          pl.BlockSpec((1, Cout), lambda n: (0, 0)),
          pl.BlockSpec((1, Cout), lambda n: (0, 0)),
          pl.BlockSpec((9, Cout, Cout), lambda n: (0, 0, 0)),
          pl.BlockSpec((1, Cout), lambda n: (0, 0)),
          pl.BlockSpec((1, Cout), lambda n: (0, 0)),
          pl.BlockSpec((a1, 1), lambda n: (0, 0)),
      ],
      out_specs=pl.BlockSpec((1, a2, Cout), lambda n: (n, 0, 0)),
  )

  out_k = pl.pallas_call(
      kernel,
      out_shape=jax.ShapeDtypeStruct((N, a2, Cout), jnp.float32),
      grid_spec=grid_spec,
      compiler_params=pltpu.CompilerParams(
          dimension_semantics=("parallel",),
          vmem_limit_bytes=32 * 1024 * 1024),
  )(x_ext, w1_t, s1, b1, w2_t, s2, b2, mask)

  # Row j of sample n corresponds to output pixel (j // Wp, j % Wp).
  out_nhwc = out_k.reshape(N, H, Wp, Cout)[:, :, :W, :]
  return jnp.transpose(out_nhwc, (0, 3, 1, 2))


def basic_block_reference(x_nchw, w1, bn1, w2, bn2, eps=1e-5):
  """Pure-JAX reference (lax conv, f32) for correctness checking."""
  def conv(x, w):
    return lax.conv_general_dilated(
        x, w, window_strides=(1, 1), padding=((1, 1), (1, 1)),
        dimension_numbers=('NCHW', 'OIHW', 'NCHW'))

  def bn(x, p):
    scale = p['gamma'] / jnp.sqrt(p['var'] + eps)
    bias = p['beta'] - p['mean'] * scale
    return x * scale[None, :, None, None] + bias[None, :, None, None]

  out = jax.nn.relu(bn(conv(x_nchw, w1), bn1))
  out = bn(conv(out, w2), bn2)
  return jax.nn.relu(out + x_nchw)


if __name__ == "__main__":
  # Small shapes consistent with BasicBlock(inplanes=4, planes=4, stride=1).
  N, C, H, W = 2, 4, 16, 16
  key = jax.random.PRNGKey(0)
  k_x, k_w1, k_w2, k_g1, k_b1, k_g2, k_b2, k_m1, k_v1, k_m2, k_v2 = \
      jax.random.split(key, 11)

  x = jax.random.normal(k_x, (N, C, H, W), jnp.float32)
  w1 = 0.1 * jax.random.normal(k_w1, (C, C, 3, 3), jnp.float32)
  w2 = 0.1 * jax.random.normal(k_w2, (C, C, 3, 3), jnp.float32)

  bn1 = dict(gamma=1.0 + 0.1 * jax.random.normal(k_g1, (C,), jnp.float32),
             beta=0.1 * jax.random.normal(k_b1, (C,), jnp.float32),
             mean=0.1 * jax.random.normal(k_m1, (C,), jnp.float32),
             var=jnp.abs(1.0 + 0.1 * jax.random.normal(k_v1, (C,),
                                                       jnp.float32)))
  bn2 = dict(gamma=1.0 + 0.1 * jax.random.normal(k_g2, (C,), jnp.float32),
             beta=0.1 * jax.random.normal(k_b2, (C,), jnp.float32),
             mean=0.1 * jax.random.normal(k_m2, (C,), jnp.float32),
             var=jnp.abs(1.0 + 0.1 * jax.random.normal(k_v2, (C,),
                                                       jnp.float32)))

  out = basic_block_pallas(x, w1, bn1, w2, bn2)
  out = jax.block_until_ready(out)

  ref = jax.block_until_ready(basic_block_reference(x, w1, bn1, w2, bn2))
  assert out.shape == (N, C, H, W)
  max_err = float(jnp.max(jnp.abs(out - ref)))
  # bf16 matmul operands with f32 accumulation -> small numeric difference
  # vs the pure-f32 reference.
  assert max_err < 5e-2, f"mismatch vs JAX reference: {max_err}"

  print("KERNEL_OK")
</pallas_src>

<mosaic_0001>
module attributes {stable_mosaic.version = 11 : i64} {
  func.func @_basic_block_kernel(%arg0: i32, %arg1: memref<1x368x4xf32, #tpu.memory_space<vmem>>, %arg2: memref<9x4x4xbf16, #tpu.memory_space<vmem>>, %arg3: memref<1x4xf32, #tpu.memory_space<vmem>>, %arg4: memref<1x4xf32, #tpu.memory_space<vmem>>, %arg5: memref<9x4x4xbf16, #tpu.memory_space<vmem>>, %arg6: memref<1x4xf32, #tpu.memory_space<vmem>>, %arg7: memref<1x4xf32, #tpu.memory_space<vmem>>, %arg8: memref<328x1xf32, #tpu.memory_space<vmem>>, %arg9: memref<1x288x4xf32, #tpu.memory_space<vmem>>) attributes {dimension_semantics = [#tpu.dimension_semantics<parallel>], iteration_bounds = array<i64: 2>, scalar_prefetch = 0 : i64, scratch_operands = 0 : i64, tpu.core_type = #tpu.core_type<tc>, window_params = [{transform_indices = @transform_0, window_bounds = array<i64: 1, 368, 4>}, {pipeline_mode = #tpu.pipeline_mode<synchronous>, transform_indices = @transform_1, window_bounds = array<i64: 9, 4, 4>}, {pipeline_mode = #tpu.pipeline_mode<synchronous>, transform_indices = @transform_2, window_bounds = array<i64: 1, 4>}, {pipeline_mode = #tpu.pipeline_mode<synchronous>, transform_indices = @transform_3, window_bounds = array<i64: 1, 4>}, {pipeline_mode = #tpu.pipeline_mode<synchronous>, transform_indices = @transform_4, window_bounds = array<i64: 9, 4, 4>}, {pipeline_mode = #tpu.pipeline_mode<synchronous>, transform_indices = @transform_5, window_bounds = array<i64: 1, 4>}, {pipeline_mode = #tpu.pipeline_mode<synchronous>, transform_indices = @transform_6, window_bounds = array<i64: 1, 4>}, {pipeline_mode = #tpu.pipeline_mode<synchronous>, transform_indices = @transform_7, window_bounds = array<i64: 328, 1>}, {transform_indices = @transform_8, window_bounds = array<i64: 1, 288, 4>}]} {
    %c0 = arith.constant 0 : index
    %c0_0 = arith.constant 0 : index
    %c0_1 = arith.constant 0 : index
    %0 = vector.load %arg1[%c0, %c0_0, %c0_1] : memref<1x368x4xf32, #tpu.memory_space<vmem>>, vector<1x328x4xf32>
    %1 = vector.shape_cast %0 : vector<1x328x4xf32> to vector<328x4xf32>
    %2 = arith.truncf %1 : vector<328x4xf32> to vector<328x4xbf16>
    %c0_2 = arith.constant 0 : index
    %c0_3 = arith.constant 0 : index
    %c0_4 = arith.constant 0 : index
    %3 = vector.load %arg2[%c0_2, %c0_3, %c0_4] : memref<9x4x4xbf16, #tpu.memory_space<vmem>>, vector<1x4x4xbf16>
    %4 = vector.shape_cast %3 : vector<1x4x4xbf16> to vector<4x4xbf16>
    %cst = arith.constant dense<0.000000e+00> : vector<328x4xf32>
    %5 = tpu.matmul %2, %4, %cst {dimension_numbers = #tpu.dot_dimension_numbers<[1], [0], [0], [1], [0, 0, 1, 1], [], []>} : vector<328x4xbf16>, vector<4x4xbf16>, vector<328x4xf32> -> vector<328x4xf32>
    %c0_5 = arith.constant 0 : index
    %c1 = arith.constant 1 : index
    %c0_6 = arith.constant 0 : index
    %6 = vector.load %arg1[%c0_5, %c1, %c0_6] : memref<1x368x4xf32, #tpu.memory_space<vmem>>, vector<1x328x4xf32>
    %7 = vector.shape_cast %6 : vector<1x328x4xf32> to vector<328x4xf32>
    %8 = arith.truncf %7 : vector<328x4xf32> to vector<328x4xbf16>
    %c1_7 = arith.constant 1 : index
    %c0_8 = arith.constant 0 : index
    %c0_9 = arith.constant 0 : index
    %9 = vector.load %arg2[%c1_7, %c0_8, %c0_9] : memref<9x4x4xbf16, #tpu.memory_space<vmem>>, vector<1x4x4xbf16>
    %10 = vector.shape_cast %9 : vector<1x4x4xbf16> to vector<4x4xbf16>
    %cst_10 = arith.constant dense<0.000000e+00> : vector<328x4xf32>
    %11 = tpu.matmul %8, %10, %cst_10 {dimension_numbers = #tpu.dot_dimension_numbers<[1], [0], [0], [1], [0, 0, 1, 1], [], []>} : vector<328x4xbf16>, vector<4x4xbf16>, vector<328x4xf32> -> vector<328x4xf32>
    %12 = arith.addf %5, %11 : vector<328x4xf32>
    %c0_11 = arith.constant 0 : index
    %c2 = arith.constant 2 : index
    %c0_12 = arith.constant 0 : index
    %13 = vector.load %arg1[%c0_11, %c2, %c0_12] : memref<1x368x4xf32, #tpu.memory_space<vmem>>, vector<1x328x4xf32>
    %14 = vector.shape_cast %13 : vector<1x328x4xf32> to vector<328x4xf32>
    %15 = arith.truncf %14 : vector<328x4xf32> to vector<328x4xbf16>
    %c2_13 = arith.constant 2 : index
    %c0_14 = arith.constant 0 : index
    %c0_15 = arith.constant 0 : index
    %16 = vector.load %arg2[%c2_13, %c0_14, %c0_15] : memref<9x4x4xbf16, #tpu.memory_space<vmem>>, vector<1x4x4xbf16>
    %17 = vector.shape_cast %16 : vector<1x4x4xbf16> to vector<4x4xbf16>
    %cst_16 = arith.constant dense<0.000000e+00> : vector<328x4xf32>
    %18 = tpu.matmul %15, %17, %cst_16 {dimension_numbers = #tpu.dot_dimension_numbers<[1], [0], [0], [1], [0, 0, 1, 1], [], []>} : vector<328x4xbf16>, vector<4x4xbf16>, vector<328x4xf32> -> vector<328x4xf32>
    %19 = arith.addf %12, %18 : vector<328x4xf32>
    %c0_17 = arith.constant 0 : index
    %c18 = arith.constant 18 : index
    %c0_18 = arith.constant 0 : index
    %20 = vector.load %arg1[%c0_17, %c18, %c0_18] : memref<1x368x4xf32, #tpu.memory_space<vmem>>, vector<1x328x4xf32>
    %21 = vector.shape_cast %20 : vector<1x328x4xf32> to vector<328x4xf32>
    %22 = arith.truncf %21 : vector<328x4xf32> to vector<328x4xbf16>
    %c3 = arith.constant 3 : index
    %c0_19 = arith.constant 0 : index
    %c0_20 = arith.constant 0 : index
    %23 = vector.load %arg2[%c3, %c0_19, %c0_20] : memref<9x4x4xbf16, #tpu.memory_space<vmem>>, vector<1x4x4xbf16>
    %24 = vector.shape_cast %23 : vector<1x4x4xbf16> to vector<4x4xbf16>
    %cst_21 = arith.constant dense<0.000000e+00> : vector<328x4xf32>
    %25 = tpu.matmul %22, %24, %cst_21 {dimension_numbers = #tpu.dot_dimension_numbers<[1], [0], [0], [1], [0, 0, 1, 1], [], []>} : vector<328x4xbf16>, vector<4x4xbf16>, vector<328x4xf32> -> vector<328x4xf32>
    %26 = arith.addf %19, %25 : vector<328x4xf32>
    %c0_22 = arith.constant 0 : index
    %c19 = arith.constant 19 : index
    %c0_23 = arith.constant 0 : index
    %27 = vector.load %arg1[%c0_22, %c19, %c0_23] : memref<1x368x4xf32, #tpu.memory_space<vmem>>, vector<1x328x4xf32>
    %28 = vector.shape_cast %27 : vector<1x328x4xf32> to vector<328x4xf32>
    %29 = arith.truncf %28 : vector<328x4xf32> to vector<328x4xbf16>
    %c4 = arith.constant 4 : index
    %c0_24 = arith.constant 0 : index
    %c0_25 = arith.constant 0 : index
    %30 = vector.load %arg2[%c4, %c0_24, %c0_25] : memref<9x4x4xbf16, #tpu.memory_space<vmem>>, vector<1x4x4xbf16>
    %31 = vector.shape_cast %30 : vector<1x4x4xbf16> to vector<4x4xbf16>
    %cst_26 = arith.constant dense<0.000000e+00> : vector<328x4xf32>
    %32 = tpu.matmul %29, %31, %cst_26 {dimension_numbers = #tpu.dot_dimension_numbers<[1], [0], [0], [1], [0, 0, 1, 1], [], []>} : vector<328x4xbf16>, vector<4x4xbf16>, vector<328x4xf32> -> vector<328x4xf32>
    %33 = arith.addf %26, %32 : vector<328x4xf32>
    %c0_27 = arith.constant 0 : index
    %c20 = arith.constant 20 : index
    %c0_28 = arith.constant 0 : index
    %34 = vector.load %arg1[%c0_27, %c20, %c0_28] : memref<1x368x4xf32, #tpu.memory_space<vmem>>, vector<1x328x4xf32>
    %35 = vector.shape_cast %34 : vector<1x328x4xf32> to vector<328x4xf32>
    %36 = arith.truncf %35 : vector<328x4xf32> to vector<328x4xbf16>
    %c5 = arith.constant 5 : index
    %c0_29 = arith.constant 0 : index
    %c0_30 = arith.constant 0 : index
    %37 = vector.load %arg2[%c5, %c0_29, %c0_30] : memref<9x4x4xbf16, #tpu.memory_space<vmem>>, vector<1x4x4xbf16>
    %38 = vector.shape_cast %37 : vector<1x4x4xbf16> to vector<4x4xbf16>
    %cst_31 = arith.constant dense<0.000000e+00> : vector<328x4xf32>
    %39 = tpu.matmul %36, %38, %cst_31 {dimension_numbers = #tpu.dot_dimension_numbers<[1], [0], [0], [1], [0, 0, 1, 1], [], []>} : vector<328x4xbf16>, vector<4x4xbf16>, vector<328x4xf32> -> vector<328x4xf32>
    %40 = arith.addf %33, %39 : vector<328x4xf32>
    %c0_32 = arith.constant 0 : index
    %c36 = arith.constant 36 : index
    %c0_33 = arith.constant 0 : index
    %41 = vector.load %arg1[%c0_32, %c36, %c0_33] : memref<1x368x4xf32, #tpu.memory_space<vmem>>, vector<1x328x4xf32>
    %42 = vector.shape_cast %41 : vector<1x328x4xf32> to vector<328x4xf32>
    %43 = arith.truncf %42 : vector<328x4xf32> to vector<328x4xbf16>
    %c6 = arith.constant 6 : index
    %c0_34 = arith.constant 0 : index
    %c0_35 = arith.constant 0 : index
    %44 = vector.load %arg2[%c6, %c0_34, %c0_35] : memref<9x4x4xbf16, #tpu.memory_space<vmem>>, vector<1x4x4xbf16>
    %45 = vector.shape_cast %44 : vector<1x4x4xbf16> to vector<4x4xbf16>
    %cst_36 = arith.constant dense<0.000000e+00> : vector<328x4xf32>
    %46 = tpu.matmul %43, %45, %cst_36 {dimension_numbers = #tpu.dot_dimension_numbers<[1], [0], [0], [1], [0, 0, 1, 1], [], []>} : vector<328x4xbf16>, vector<4x4xbf16>, vector<328x4xf32> -> vector<328x4xf32>
    %47 = arith.addf %40, %46 : vector<328x4xf32>
    %c0_37 = arith.constant 0 : index
    %c37 = arith.constant 37 : index
    %c0_38 = arith.constant 0 : index
    %48 = vector.load %arg1[%c0_37, %c37, %c0_38] : memref<1x368x4xf32, #tpu.memory_space<vmem>>, vector<1x328x4xf32>
    %49 = vector.shape_cast %48 : vector<1x328x4xf32> to vector<328x4xf32>
    %50 = arith.truncf %49 : vector<328x4xf32> to vector<328x4xbf16>
    %c7 = arith.constant 7 : index
    %c0_39 = arith.constant 0 : index
    %c0_40 = arith.constant 0 : index
    %51 = vector.load %arg2[%c7, %c0_39, %c0_40] : memref<9x4x4xbf16, #tpu.memory_space<vmem>>, vector<1x4x4xbf16>
    %52 = vector.shape_cast %51 : vector<1x4x4xbf16> to vector<4x4xbf16>
    %cst_41 = arith.constant dense<0.000000e+00> : vector<328x4xf32>
    %53 = tpu.matmul %50, %52, %cst_41 {dimension_numbers = #tpu.dot_dimension_numbers<[1], [0], [0], [1], [0, 0, 1, 1], [], []>} : vector<328x4xbf16>, vector<4x4xbf16>, vector<328x4xf32> -> vector<328x4xf32>
    %54 = arith.addf %47, %53 : vector<328x4xf32>
    %c0_42 = arith.constant 0 : index
    %c38 = arith.constant 38 : index
    %c0_43 = arith.constant 0 : index
    %55 = vector.load %arg1[%c0_42, %c38, %c0_43] : memref<1x368x4xf32, #tpu.memory_space<vmem>>, vector<1x328x4xf32>
    %56 = vector.shape_cast %55 : vector<1x328x4xf32> to vector<328x4xf32>
    %57 = arith.truncf %56 : vector<328x4xf32> to vector<328x4xbf16>
    %c8 = arith.constant 8 : index
    %c0_44 = arith.constant 0 : index
    %c0_45 = arith.constant 0 : index
    %58 = vector.load %arg2[%c8, %c0_44, %c0_45] : memref<9x4x4xbf16, #tpu.memory_space<vmem>>, vector<1x4x4xbf16>
    %59 = vector.shape_cast %58 : vector<1x4x4xbf16> to vector<4x4xbf16>
    %cst_46 = arith.constant dense<0.000000e+00> : vector<328x4xf32>
    %60 = tpu.matmul %57, %59, %cst_46 {dimension_numbers = #tpu.dot_dimension_numbers<[1], [0], [0], [1], [0, 0, 1, 1], [], []>} : vector<328x4xbf16>, vector<4x4xbf16>, vector<328x4xf32> -> vector<328x4xf32>
    %61 = arith.addf %54, %60 : vector<328x4xf32>
    %c0_47 = arith.constant 0 : index
    %c0_48 = arith.constant 0 : index
    %62 = vector.load %arg3[%c0_47, %c0_48] : memref<1x4xf32, #tpu.memory_space<vmem>>, vector<1x4xf32>
    %63 = vector.broadcast %62 : vector<1x4xf32> to vector<328x4xf32>
    %64 = arith.mulf %61, %63 : vector<328x4xf32>
    %c0_49 = arith.constant 0 : index
    %c0_50 = arith.constant 0 : index
    %65 = vector.load %arg4[%c0_49, %c0_50] : memref<1x4xf32, #tpu.memory_space<vmem>>, vector<1x4xf32>
    %66 = vector.broadcast %65 : vector<1x4xf32> to vector<328x4xf32>
    %67 = arith.addf %64, %66 : vector<328x4xf32>
    %cst_51 = arith.constant 0.000000e+00 : f32
    %68 = vector.broadcast %cst_51 : f32 to vector<328x4xf32>
    %69 = arith.maximumf %67, %68 : vector<328x4xf32>
    %c0_52 = arith.constant 0 : index
    %c0_53 = arith.constant 0 : index
    %70 = vector.load %arg8[%c0_52, %c0_53] : memref<328x1xf32, #tpu.memory_space<vmem>>, vector<328x1xf32>
    %71 = vector.broadcast %70 : vector<328x1xf32> to vector<328x4xf32>
    %72 = arith.mulf %69, %71 : vector<328x4xf32>
    %73 = arith.truncf %72 : vector<328x4xf32> to vector<328x4xbf16>
    %74 = vector.extract_strided_slice %73 {offsets = [0, 0], sizes = [288, 4], strides = [1, 1]} : vector<328x4xbf16> to vector<288x4xbf16>
    %c0_54 = arith.constant 0 : index
    %c0_55 = arith.constant 0 : index
    %c0_56 = arith.constant 0 : index
    %75 = vector.load %arg5[%c0_54, %c0_55, %c0_56] : memref<9x4x4xbf16, #tpu.memory_space<vmem>>, vector<1x4x4xbf16>
    %76 = vector.shape_cast %75 : vector<1x4x4xbf16> to vector<4x4xbf16>
    %cst_57 = arith.constant dense<0.000000e+00> : vector<288x4xf32>
    %77 = tpu.matmul %74, %76, %cst_57 {dimension_numbers = #tpu.dot_dimension_numbers<[1], [0], [0], [1], [0, 0, 1, 1], [], []>} : vector<288x4xbf16>, vector<4x4xbf16>, vector<288x4xf32> -> vector<288x4xf32>
    %78 = vector.extract_strided_slice %73 {offsets = [1, 0], sizes = [288, 4], strides = [1, 1]} : vector<328x4xbf16> to vector<288x4xbf16>
    %c1_58 = arith.constant 1 : index
    %c0_59 = arith.constant 0 : index
    %c0_60 = arith.constant 0 : index
    %79 = vector.load %arg5[%c1_58, %c0_59, %c0_60] : memref<9x4x4xbf16, #tpu.memory_space<vmem>>, vector<1x4x4xbf16>
    %80 = vector.shape_cast %79 : vector<1x4x4xbf16> to vector<4x4xbf16>
    %cst_61 = arith.constant dense<0.000000e+00> : vector<288x4xf32>
    %81 = tpu.matmul %78, %80, %cst_61 {dimension_numbers = #tpu.dot_dimension_numbers<[1], [0], [0], [1], [0, 0, 1, 1], [], []>} : vector<288x4xbf16>, vector<4x4xbf16>, vector<288x4xf32> -> vector<288x4xf32>
    %82 = arith.addf %77, %81 : vector<288x4xf32>
    %83 = vector.extract_strided_slice %73 {offsets = [2, 0], sizes = [288, 4], strides = [1, 1]} : vector<328x4xbf16> to vector<288x4xbf16>
    %c2_62 = arith.constant 2 : index
    %c0_63 = arith.constant 0 : index
    %c0_64 = arith.constant 0 : index
    %84 = vector.load %arg5[%c2_62, %c0_63, %c0_64] : memref<9x4x4xbf16, #tpu.memory_space<vmem>>, vector<1x4x4xbf16>
    %85 = vector.shape_cast %84 : vector<1x4x4xbf16> to vector<4x4xbf16>
    %cst_65 = arith.constant dense<0.000000e+00> : vector<288x4xf32>
    %86 = tpu.matmul %83, %85, %cst_65 {dimension_numbers = #tpu.dot_dimension_numbers<[1], [0], [0], [1], [0, 0, 1, 1], [], []>} : vector<288x4xbf16>, vector<4x4xbf16>, vector<288x4xf32> -> vector<288x4xf32>
    %87 = arith.addf %82, %86 : vector<288x4xf32>
    %88 = vector.extract_strided_slice %73 {offsets = [18, 0], sizes = [288, 4], strides = [1, 1]} : vector<328x4xbf16> to vector<288x4xbf16>
    %c3_66 = arith.constant 3 : index
    %c0_67 = arith.constant 0 : index
    %c0_68 = arith.constant 0 : index
    %89 = vector.load %arg5[%c3_66, %c0_67, %c0_68] : memref<9x4x4xbf16, #tpu.memory_space<vmem>>, vector<1x4x4xbf16>
    %90 = vector.shape_cast %89 : vector<1x4x4xbf16> to vector<4x4xbf16>
    %cst_69 = arith.constant dense<0.000000e+00> : vector<288x4xf32>
    %91 = tpu.matmul %88, %90, %cst_69 {dimension_numbers = #tpu.dot_dimension_numbers<[1], [0], [0], [1], [0, 0, 1, 1], [], []>} : vector<288x4xbf16>, vector<4x4xbf16>, vector<288x4xf32> -> vector<288x4xf32>
    %92 = arith.addf %87, %91 : vector<288x4xf32>
    %93 = vector.extract_strided_slice %73 {offsets = [19, 0], sizes = [288, 4], strides = [1, 1]} : vector<328x4xbf16> to vector<288x4xbf16>
    %c4_70 = arith.constant 4 : index
    %c0_71 = arith.constant 0 : index
    %c0_72 = arith.constant 0 : index
    %94 = vector.load %arg5[%c4_70, %c0_71, %c0_72] : memref<9x4x4xbf16, #tpu.memory_space<vmem>>, vector<1x4x4xbf16>
    %95 = vector.shape_cast %94 : vector<1x4x4xbf16> to vector<4x4xbf16>
    %cst_73 = arith.constant dense<0.000000e+00> : vector<288x4xf32>
    %96 = tpu.matmul %93, %95, %cst_73 {dimension_numbers = #tpu.dot_dimension_numbers<[1], [0], [0], [1], [0, 0, 1, 1], [], []>} : vector<288x4xbf16>, vector<4x4xbf16>, vector<288x4xf32> -> vector<288x4xf32>
    %97 = arith.addf %92, %96 : vector<288x4xf32>
    %98 = vector.extract_strided_slice %73 {offsets = [20, 0], sizes = [288, 4], strides = [1, 1]} : vector<328x4xbf16> to vector<288x4xbf16>
    %c5_74 = arith.constant 5 : index
    %c0_75 = arith.constant 0 : index
    %c0_76 = arith.constant 0 : index
    %99 = vector.load %arg5[%c5_74, %c0_75, %c0_76] : memref<9x4x4xbf16, #tpu.memory_space<vmem>>, vector<1x4x4xbf16>
    %100 = vector.shape_cast %99 : vector<1x4x4xbf16> to vector<4x4xbf16>
    %cst_77 = arith.constant dense<0.000000e+00> : vector<288x4xf32>
    %101 = tpu.matmul %98, %100, %cst_77 {dimension_numbers = #tpu.dot_dimension_numbers<[1], [0], [0], [1], [0, 0, 1, 1], [], []>} : vector<288x4xbf16>, vector<4x4xbf16>, vector<288x4xf32> -> vector<288x4xf32>
    %102 = arith.addf %97, %101 : vector<288x4xf32>
    %103 = vector.extract_strided_slice %73 {offsets = [36, 0], sizes = [288, 4], strides = [1, 1]} : vector<328x4xbf16> to vector<288x4xbf16>
    %c6_78 = arith.constant 6 : index
    %c0_79 = arith.constant 0 : index
    %c0_80 = arith.constant 0 : index
    %104 = vector.load %arg5[%c6_78, %c0_79, %c0_80] : memref<9x4x4xbf16, #tpu.memory_space<vmem>>, vector<1x4x4xbf16>
    %105 = vector.shape_cast %104 : vector<1x4x4xbf16> to vector<4x4xbf16>
    %cst_81 = arith.constant dense<0.000000e+00> : vector<288x4xf32>
    %106 = tpu.matmul %103, %105, %cst_81 {dimension_numbers = #tpu.dot_dimension_numbers<[1], [0], [0], [1], [0, 0, 1, 1], [], []>} : vector<288x4xbf16>, vector<4x4xbf16>, vector<288x4xf32> -> vector<288x4xf32>
    %107 = arith.addf %102, %106 : vector<288x4xf32>
    %108 = vector.extract_strided_slice %73 {offsets = [37, 0], sizes = [288, 4], strides = [1, 1]} : vector<328x4xbf16> to vector<288x4xbf16>
    %c7_82 = arith.constant 7 : index
    %c0_83 = arith.constant 0 : index
    %c0_84 = arith.constant 0 : index
    %109 = vector.load %arg5[%c7_82, %c0_83, %c0_84] : memref<9x4x4xbf16, #tpu.memory_space<vmem>>, vector<1x4x4xbf16>
    %110 = vector.shape_cast %109 : vector<1x4x4xbf16> to vector<4x4xbf16>
    %cst_85 = arith.constant dense<0.000000e+00> : vector<288x4xf32>
    %111 = tpu.matmul %108, %110, %cst_85 {dimension_numbers = #tpu.dot_dimension_numbers<[1], [0], [0], [1], [0, 0, 1, 1], [], []>} : vector<288x4xbf16>, vector<4x4xbf16>, vector<288x4xf32> -> vector<288x4xf32>
    %112 = arith.addf %107, %111 : vector<288x4xf32>
    %113 = vector.extract_strided_slice %73 {offsets = [38, 0], sizes = [288, 4], strides = [1, 1]} : vector<328x4xbf16> to vector<288x4xbf16>
    %c8_86 = arith.constant 8 : index
    %c0_87 = arith.constant 0 : index
    %c0_88 = arith.constant 0 : index
    %114 = vector.load %arg5[%c8_86, %c0_87, %c0_88] : memref<9x4x4xbf16, #tpu.memory_space<vmem>>, vector<1x4x4xbf16>
    %115 = vector.shape_cast %114 : vector<1x4x4xbf16> to vector<4x4xbf16>
    %cst_89 = arith.constant dense<0.000000e+00> : vector<288x4xf32>
    %116 = tpu.matmul %113, %115, %cst_89 {dimension_numbers = #tpu.dot_dimension_numbers<[1], [0], [0], [1], [0, 0, 1, 1], [], []>} : vector<288x4xbf16>, vector<4x4xbf16>, vector<288x4xf32> -> vector<288x4xf32>
    %117 = arith.addf %112, %116 : vector<288x4xf32>
    %c0_90 = arith.constant 0 : index
    %c0_91 = arith.constant 0 : index
    %118 = vector.load %arg6[%c0_90, %c0_91] : memref<1x4xf32, #tpu.memory_space<vmem>>, vector<1x4xf32>
    %119 = vector.broadcast %118 : vector<1x4xf32> to vector<288x4xf32>
    %120 = arith.mulf %117, %119 : vector<288x4xf32>
    %c0_92 = arith.constant 0 : index
    %c0_93 = arith.constant 0 : index
    %121 = vector.load %arg7[%c0_92, %c0_93] : memref<1x4xf32, #tpu.memory_space<vmem>>, vector<1x4xf32>
    %122 = vector.broadcast %121 : vector<1x4xf32> to vector<288x4xf32>
    %123 = arith.addf %120, %122 : vector<288x4xf32>
    %c0_94 = arith.constant 0 : index
    %c38_95 = arith.constant 38 : index
    %c0_96 = arith.constant 0 : index
    %124 = vector.load %arg1[%c0_94, %c38_95, %c0_96] : memref<1x368x4xf32, #tpu.memory_space<vmem>>, vector<1x288x4xf32>
    %125 = vector.shape_cast %124 : vector<1x288x4xf32> to vector<288x4xf32>
    %126 = arith.addf %123, %125 : vector<288x4xf32>
    %cst_97 = arith.constant 0.000000e+00 : f32
    %127 = vector.broadcast %cst_97 : f32 to vector<288x4xf32>
    %128 = arith.maximumf %126, %127 : vector<288x4xf32>
    %c0_98 = arith.constant 0 : index
    %c0_99 = arith.constant 0 : index
    %c0_100 = arith.constant 0 : index
    %129 = vector.load %arg9[%c0_98, %c0_99, %c0_100] : memref<1x288x4xf32, #tpu.memory_space<vmem>>, vector<1x288x4xf32>
    %130 = vector.shape_cast %129 : vector<1x288x4xf32> to vector<288x4xf32>
    %131 = vector.shape_cast %128 : vector<288x4xf32> to vector<1x288x4xf32>
    tpu.vector_store %arg9[%c0_98, %c0_99, %c0_100], %131 {strides = array<i32>} : memref<1x288x4xf32, #tpu.memory_space<vmem>>, vector<1x288x4xf32>,
    return
  }
  func.func @transform_0(%arg0: i32) -> (i32, i32, i32) {
    %c0_i32 = arith.constant 0 : i32
    %c0_i32_0 = arith.constant 0 : i32
    %c0_i32_1 = arith.constant 0 : i32
    return %arg0, %c0_i32, %c0_i32_0 : i32, i32, i32
  }
  func.func @transform_1(%arg0: i32) -> (i32, i32, i32) {
    %c0_i32 = arith.constant 0 : i32
    %c0_i32_0 = arith.constant 0 : i32
    %c0_i32_1 = arith.constant 0 : i32
    %c0_i32_2 = arith.constant 0 : i32
    return %c0_i32, %c0_i32_0, %c0_i32_1 : i32, i32, i32
  }
  func.func @transform_2(%arg0: i32) -> (i32, i32) {
    %c0_i32 = arith.constant 0 : i32
    %c0_i32_0 = arith.constant 0 : i32
    %c0_i32_1 = arith.constant 0 : i32
    return %c0_i32, %c0_i32_0 : i32, i32
  }
  func.func @transform_3(%arg0: i32) -> (i32, i32) {
    %c0_i32 = arith.constant 0 : i32
    %c0_i32_0 = arith.constant 0 : i32
    %c0_i32_1 = arith.constant 0 : i32
    return %c0_i32, %c0_i32_0 : i32, i32
  }
  func.func @transform_4(%arg0: i32) -> (i32, i32, i32) {
    %c0_i32 = arith.constant 0 : i32
    %c0_i32_0 = arith.constant 0 : i32
    %c0_i32_1 = arith.constant 0 : i32
    %c0_i32_2 = arith.constant 0 : i32
    return %c0_i32, %c0_i32_0, %c0_i32_1 : i32, i32, i32
  }
  func.func @transform_5(%arg0: i32) -> (i32, i32) {
    %c0_i32 = arith.constant 0 : i32
    %c0_i32_0 = arith.constant 0 : i32
    %c0_i32_1 = arith.constant 0 : i32
    return %c0_i32, %c0_i32_0 : i32, i32
  }
  func.func @transform_6(%arg0: i32) -> (i32, i32) {
    %c0_i32 = arith.constant 0 : i32
    %c0_i32_0 = arith.constant 0 : i32
    %c0_i32_1 = arith.constant 0 : i32
    return %c0_i32, %c0_i32_0 : i32, i32
  }
  func.func @transform_7(%arg0: i32) -> (i32, i32) {
    %c0_i32 = arith.constant 0 : i32
    %c0_i32_0 = arith.constant 0 : i32
    %c0_i32_1 = arith.constant 0 : i32
    return %c0_i32, %c0_i32_0 : i32, i32
  }
  func.func @transform_8(%arg0: i32) -> (i32, i32, i32) {
    %c0_i32 = arith.constant 0 : i32
    %c0_i32_0 = arith.constant 0 : i32
    %c0_i32_1 = arith.constant 0 : i32
    return %arg0, %c0_i32, %c0_i32_0 : i32, i32, i32
  }
}

</mosaic_0001>

<llo_original>
// kernel: tpu_custom_call.1
$region0: #{tpu_custom_call.1}
  #allocation0 [shape = 'u32[]', space=smem, size = 0x4, offset = 0x4, fixed_abs, tag = 'smem constant byte address 0x4 - core index']
  #allocation1 [shape = 'u32[144,128]{1,0:T(1,128)}', space=vmem, size = 0x12000, scoped, tag = 'internal scratch']
  %s0 = inlined_call_operand.vmem [shape: f32[2,368,4], index: 0, kind: input, shape index: {}]
  %s1 = inlined_call_operand.vmem [shape: bf16[9,4,4], index: 1, kind: input, shape index: {}]
  %s2 = inlined_call_operand.vmem [shape: f32[1,4], index: 2, kind: input, shape index: {}]
  %s3 = inlined_call_operand.vmem [shape: f32[1,4], index: 3, kind: input, shape index: {}]
  %s4 = inlined_call_operand.vmem [shape: bf16[9,4,4], index: 4, kind: input, shape index: {}]
  %s5 = inlined_call_operand.vmem [shape: f32[1,4], index: 5, kind: input, shape index: {}]
  %s6 = inlined_call_operand.vmem [shape: f32[1,4], index: 6, kind: input, shape index: {}]
  %s7 = inlined_call_operand.vmem [shape: f32[328,1], index: 7, kind: input, shape index: {}]
  %s8 = inlined_call_operand.vmem [shape: f32[2,288,4], index: 8, kind: output, shape index: {}]
  %s9 = sld [smem:[#allocation0]]
  $region65: #{tpu_custom_call.1} parent=0
    _
  %s11 = ssub.s32 1, %s9
  %s12 = scalar_select 0, %s11, %s9
  loop: start=0, step=1, limit=4
  $region2: #{tpu_custom_call.1} parent=0 // loop_pre_header
    _
  $region3: #{tpu_custom_call.1} parent=0 // loop_header
    %s14 = sphi 0, %s18
    %p15 = scmp.ge.s32.totalorder %s14, 4
    %s24 = sphi 0, %s26
    %s27 = sphi 0, %s24
    %s28 = sphi 0, %s27
    %s44 = sphi 0, %s28
    %s48 = sphi 0, %s48
    %s50 = sphi 0, %s48
    %s51 = sphi 0, %s50
    %s65 = sphi 0, %s51
    %s69 = sphi 0, %s69
    %s71 = sphi 0, %s69
    %s72 = sphi 0, %s71
    %s86 = sphi 0, %s72
    %s90 = sphi 0, %s90
    %s92 = sphi 0, %s90
    %s93 = sphi 0, %s92
    %s107 = sphi 0, %s93
    %s111 = sphi 0, %s111
    %s113 = sphi 0, %s111
    %s114 = sphi 0, %s113
    %s128 = sphi 0, %s114
    %s132 = sphi 0, %s132
    %s134 = sphi 0, %s132
    %s135 = sphi 0, %s134
    %s149 = sphi 0, %s135
    %s153 = sphi 0, %s153
    %s155 = sphi 0, %s153
    %s156 = sphi 0, %s155
    %s170 = sphi 0, %s156
    %s174 = sphi 0, %s174
    %s176 = sphi 0, %s174
    %s177 = sphi 0, %s176
    %s191 = sphi 0, %s177
    %s197 = sphi 0, %s199
    %s200 = sphi 0, %s197
    %s201 = sphi 0, %s200
    %s217 = sphi 0, %s201
  $region4: #{tpu_custom_call.1} parent=0 // loop_header_branch
    %17 = sbr.rel (%p15) target = $region8
  $region5: #{tpu_custom_call.1} parent=0 // loop_body
    %s19 = ssub.s32 %s14, 1
    %s20 = ssub.s32 %s14, 2
    %s21 = sadd.s32 %s14, 1
    %s22 = ssub.s32 %s14, %s21
    %p23 = scmp.eq.s32.totalorder %s22, 0
    %s25 = sadd.s32 %s24, 1
    %s26 = scalar_select %p23, %s24, %s25
    %p29 = pneg %p23
    %p30 = scmp.eq.s32.totalorder %s14, 1
    %p31 = por %p29, %p30
    %p32 = scmp.ne.s32.totalorder %s24, %s27
    %p33 = scmp.eq.s32.totalorder %s14, 0
    %p34 = por %p32, %p33
    %p35 = scmp.ne.s32.totalorder %s24, %s27
    %p36 = scmp.eq.s32.totalorder %s19, 1
    %p37 = por %p35, %p36
    %p38 = scmp.ne.s32.totalorder %s27, %s28
    %p39 = scmp.eq.s32.totalorder %s19, 0
    %p40 = por %p38, %p39
    %p41 = scmp.ne.s32.totalorder %s27, %s28
    %p42 = scmp.eq.s32.totalorder %s20, 1
    %p43 = por %p41, %p42
    %p45 = scmp.ne.s32.totalorder %s28, %s44
    %p46 = scmp.eq.s32.totalorder %s20, 0
    %p47 = por %p45, %p46
    %s49 = sadd.s32 %s48, 1
    %p52 = scmp.eq.s32.totalorder %s14, 1
    %p53 = scmp.ne.s32.totalorder %s48, %s50
    %p54 = scmp.eq.s32.totalorder %s14, 0
    %p55 = por %p53, %p54
    %p56 = scmp.ne.s32.totalorder %s48, %s50
    %p57 = scmp.eq.s32.totalorder %s19, 1
    %p58 = por %p56, %p57
    %p59 = scmp.ne.s32.totalorder %s50, %s51
    %p60 = scmp.eq.s32.totalorder %s19, 0
    %p61 = por %p59, %p60
    %p62 = scmp.ne.s32.totalorder %s50, %s51
    %p63 = scmp.eq.s32.totalorder %s20, 1
    %p64 = por %p62, %p63
    %p66 = scmp.ne.s32.totalorder %s51, %s65
    %p67 = scmp.eq.s32.totalorder %s20, 0
    %p68 = por %p66, %p67
    %s70 = sadd.s32 %s69, 1
    %p73 = scmp.eq.s32.totalorder %s14, 1
    %p74 = scmp.ne.s32.totalorder %s69, %s71
    %p75 = scmp.eq.s32.totalorder %s14, 0
    %p76 = por %p74, %p75
    %p77 = scmp.ne.s32.totalorder %s69, %s71
    %p78 = scmp.eq.s32.totalorder %s19, 1
    %p79 = por %p77, %p78
    %p80 = scmp.ne.s32.totalorder %s71, %s72
    %p81 = scmp.eq.s32.totalorder %s19, 0
    %p82 = por %p80, %p81
    %p83 = scmp.ne.s32.totalorder %s71, %s72
    %p84 = scmp.eq.s32.totalorder %s20, 1
    %p85 = por %p83, %p84
    %p87 = scmp.ne.s32.totalorder %s72, %s86
    %p88 = scmp.eq.s32.totalorder %s20, 0
    %p89 = por %p87, %p88
    %s91 = sadd.s32 %s90, 1
    %p94 = scmp.eq.s32.totalorder %s14, 1
    %p95 = scmp.ne.s32.totalorder %s90, %s92
    %p96 = scmp.eq.s32.totalorder %s14, 0
    %p97 = por %p95, %p96
    %p98 = scmp.ne.s32.totalorder %s90, %s92
    %p99 = scmp.eq.s32.totalorder %s19, 1
    %p100 = por %p98, %p99
    %p101 = scmp.ne.s32.totalorder %s92, %s93
    %p102 = scmp.eq.s32.totalorder %s19, 0
    %p103 = por %p101, %p102
    %p104 = scmp.ne.s32.totalorder %s92, %s93
    %p105 = scmp.eq.s32.totalorder %s20, 1
    %p106 = por %p104, %p105
    %p108 = scmp.ne.s32.totalorder %s93, %s107
    %p109 = scmp.eq.s32.totalorder %s20, 0
    %p110 = por %p108, %p109
    %s112 = sadd.s32 %s111, 1
    %p115 = scmp.eq.s32.totalorder %s14, 1
    %p116 = scmp.ne.s32.totalorder %s111, %s113
    %p117 = scmp.eq.s32.totalorder %s14, 0
    %p118 = por %p116, %p117
    %p119 = scmp.ne.s32.totalorder %s111, %s113
    %p120 = scmp.eq.s32.totalorder %s19, 1
    %p121 = por %p119, %p120
    %p122 = scmp.ne.s32.totalorder %s113, %s114
    %p123 = scmp.eq.s32.totalorder %s19, 0
    %p124 = por %p122, %p123
    %p125 = scmp.ne.s32.totalorder %s113, %s114
    %p126 = scmp.eq.s32.totalorder %s20, 1
    %p127 = por %p125, %p126
    %p129 = scmp.ne.s32.totalorder %s114, %s128
    %p130 = scmp.eq.s32.totalorder %s20, 0
    %p131 = por %p129, %p130
    %s133 = sadd.s32 %s132, 1
    %p136 = scmp.eq.s32.totalorder %s14, 1
    %p137 = scmp.ne.s32.totalorder %s132, %s134
    %p138 = scmp.eq.s32.totalorder %s14, 0
    %p139 = por %p137, %p138
    %p140 = scmp.ne.s32.totalorder %s132, %s134
    %p141 = scmp.eq.s32.totalorder %s19, 1
    %p142 = por %p140, %p141
    %p143 = scmp.ne.s32.totalorder %s134, %s135
    %p144 = scmp.eq.s32.totalorder %s19, 0
    %p145 = por %p143, %p144
    %p146 = scmp.ne.s32.totalorder %s134, %s135
    %p147 = scmp.eq.s32.totalorder %s20, 1
    %p148 = por %p146, %p147
    %p150 = scmp.ne.s32.totalorder %s135, %s149
    %p151 = scmp.eq.s32.totalorder %s20, 0
    %p152 = por %p150, %p151
    %s154 = sadd.s32 %s153, 1
    %p157 = scmp.eq.s32.totalorder %s14, 1
    %p158 = scmp.ne.s32.totalorder %s153, %s155
    %p159 = scmp.eq.s32.totalorder %s14, 0
    %p160 = por %p158, %p159
    %p161 = scmp.ne.s32.totalorder %s153, %s155
    %p162 = scmp.eq.s32.totalorder %s19, 1
    %p163 = por %p161, %p162
    %p164 = scmp.ne.s32.totalorder %s155, %s156
    %p165 = scmp.eq.s32.totalorder %s19, 0
    %p166 = por %p164, %p165
    %p167 = scmp.ne.s32.totalorder %s155, %s156
    %p168 = scmp.eq.s32.totalorder %s20, 1
    %p169 = por %p167, %p168
    %p171 = scmp.ne.s32.totalorder %s156, %s170
    %p172 = scmp.eq.s32.totalorder %s20, 0
    %p173 = por %p171, %p172
    %s175 = sadd.s32 %s174, 1
    %p178 = scmp.eq.s32.totalorder %s14, 1
    %p179 = scmp.ne.s32.totalorder %s174, %s176
    %p180 = scmp.eq.s32.totalorder %s14, 0
    %p181 = por %p179, %p180
    %p182 = scmp.ne.s32.totalorder %s174, %s176
    %p183 = scmp.eq.s32.totalorder %s19, 1
    %p184 = por %p182, %p183
    %p185 = scmp.ne.s32.totalorder %s176, %s177
    %p186 = scmp.eq.s32.totalorder %s19, 0
    %p187 = por %p185, %p186
    %p188 = scmp.ne.s32.totalorder %s176, %s177
    %p189 = scmp.eq.s32.totalorder %s20, 1
    %p190 = por %p188, %p189
    %p192 = scmp.ne.s32.totalorder %s177, %s191
    %p193 = scmp.eq.s32.totalorder %s20, 0
    %p194 = por %p192, %p193
    %s195 = ssub.s32 %s14, %s21
    %p196 = scmp.eq.s32.totalorder %s195, 0
    %s198 = sadd.s32 %s197, 1
    %s199 = scalar_select %p196, %s197, %s198
    %p202 = pneg %p196
    %p203 = scmp.eq.s32.totalorder %s14, 1
    %p204 = por %p202, %p203
    %p205 = scmp.ne.s32.totalorder %s197, %s200
    %p206 = scmp.eq.s32.totalorder %s14, 0
    %p207 = por %p205, %p206
    %p208 = scmp.ne.s32.totalorder %s197, %s200
    %p209 = scmp.eq.s32.totalorder %s19, 1
    %p210 = por %p208, %p209
    %p211 = scmp.ne.s32.totalorder %s200, %s201
    %p212 = scmp.eq.s32.totalorder %s19, 0
    %p213 = por %p211, %p212
    %p214 = scmp.ne.s32.totalorder %s200, %s201
    %p215 = scmp.eq.s32.totalorder %s20, 1
    %p216 = por %p214, %p215
    %p218 = scmp.ne.s32.totalorder %s201, %s217
    %p219 = scmp.eq.s32.totalorder %s20, 0
    %p220 = por %p218, %p219
    %p221 = scmp.le.s32.totalorder 1, %s14
    %p222 = scmp.lt.s32.totalorder %s14, 3
    %p223 = pnand %p221, %p222
    %p224 = pneg %p223
    // Predicated region
    $region9: #{tpu_custom_call.1} parent=5 // pred_check
      _
    $region10: #{tpu_custom_call.1} parent=5 // pred_check_branch
      %226 = sbr.rel (%p223) target = $region12
    $region11: #{tpu_custom_call.1} parent=5 // pred_region
      %s227 = ssub.s32 %s14, 1
      // Predicated region
      $region13: #{tpu_custom_call.1} parent=11 // pred_check
        %p228 = pneg %p61
      $region14: #{tpu_custom_call.1} parent=11 // pred_check_branch
        %230 = sbr.rel (%p228) target = $region16
      $region15: #{tpu_custom_call.1} parent=11 // pred_region
        _
      $region16: #{tpu_custom_call.1} parent=11 // pred_fallthru
        _
      // Predicated region
      $region17: #{tpu_custom_call.1} parent=11 // pred_check
        %p231 = pneg %p82
      $region18: #{tpu_custom_call.1} parent=11 // pred_check_branch
        %233 = sbr.rel (%p231) target = $region20
      $region19: #{tpu_custom_call.1} parent=11 // pred_region
        _
      $region20: #{tpu_custom_call.1} parent=11 // pred_fallthru
        _
      // Predicated region
      $region21: #{tpu_custom_call.1} parent=11 // pred_check
        %p234 = pneg %p103
      $region22: #{tpu_custom_call.1} parent=11 // pred_check_branch
        %236 = sbr.rel (%p234) target = $region24
      $region23: #{tpu_custom_call.1} parent=11 // pred_region
        _
      $region24: #{tpu_custom_call.1} parent=11 // pred_fallthru
        _
      // Predicated region
      $region25: #{tpu_custom_call.1} parent=11 // pred_check
        %p237 = pneg %p124
      $region26: #{tpu_custom_call.1} parent=11 // pred_check_branch
        %239 = sbr.rel (%p237) target = $region28
      $region27: #{tpu_custom_call.1} parent=11 // pred_region
        _
      $region28: #{tpu_custom_call.1} parent=11 // pred_fallthru
        _
      // Predicated region
      $region29: #{tpu_custom_call.1} parent=11 // pred_check
        %p240 = pneg %p145
      $region30: #{tpu_custom_call.1} parent=11 // pred_check_branch
        %242 = sbr.rel (%p240) target = $region32
      $region31: #{tpu_custom_call.1} parent=11 // pred_region
        _
      $region32: #{tpu_custom_call.1} parent=11 // pred_fallthru
        _
      // Predicated region
      $region33: #{tpu_custom_call.1} parent=11 // pred_check
        %p243 = pneg %p166
      $region34: #{tpu_custom_call.1} parent=11 // pred_check_branch
        %245 = sbr.rel (%p243) target = $region36
      $region35: #{tpu_custom_call.1} parent=11 // pred_region
        _
      $region36: #{tpu_custom_call.1} parent=11 // pred_fallthru
        _
      // Predicated region
      $region37: #{tpu_custom_call.1} parent=11 // pred_check
        %p246 = pneg %p187
      $region38: #{tpu_custom_call.1} parent=11 // pred_check_branch
        %248 = sbr.rel (%p246) target = $region40
      $region39: #{tpu_custom_call.1} parent=11 // pred_region
        _
      $region40: #{tpu_custom_call.1} parent=11 // pred_fallthru
        _
    $region12: #{tpu_custom_call.1} parent=5 // pred_fallthru
      _
    %p249 = scmp.lt.s32.totalorder %s14, 2
    // Predicated region
    $region41: #{tpu_custom_call.1} parent=5 // pred_check
      %p250 = pneg %p249
    $region42: #{tpu_custom_call.1} parent=5 // pred_check_branch
      %252 = sbr.rel (%p250) target = $region44
    $region43: #{tpu_custom_call.1} parent=5 // pred_region
      // Predicated region
      $region45: #{tpu_custom_call.1} parent=43 // pred_check
        %p253 = pneg %p34
      $region46: #{tpu_custom_call.1} parent=43 // pred_check_branch
        %255 = sbr.rel (%p253) target = $region48
      $region47: #{tpu_custom_call.1} parent=43 // pred_region
        %p256 = scmp.lt.s32.totalorder %s14, 1
        %s257 = scalar_select %p256, %s14, 1
        %s258 = smul.addr %s257, 46
        %s259 = smul.addr %s258, 8
        %s260 = scalar_lea.vmem %s0, %s259
      $region48: #{tpu_custom_call.1} parent=43 // pred_fallthru
        _
    $region44: #{tpu_custom_call.1} parent=5 // pred_fallthru
      _
    %p261 = scmp.le.s32.totalorder 1, %s14
    %p262 = scmp.lt.s32.totalorder %s14, 3
    %p263 = pnand %p261, %p262
    %p264 = pneg %p263
    // Predicated region
    $region49: #{tpu_custom_call.1} parent=5 // pred_check
      _
    $region50: #{tpu_custom_call.1} parent=5 // pred_check_branch
      %266 = sbr.rel (%p263) target = $region52
    $region51: #{tpu_custom_call.1} parent=5 // pred_region
      %s267 = ssub.s32 %s14, 1
      %p268 = scmp.lt.s32.totalorder %s19, 1
      %s269 = scalar_select %p268, %s19, 1
      %s270 = smul.addr %s269, 46
      %s271 = smul.addr %s270, 8
      %s272 = scalar_lea.vmem %s0, %s271
      %p273 = pneg %p40
      %p274 = pneg %p37
      %p275 = pneg %p61
      %p276 = pneg %p58
      %p277 = pneg %p82
      %p278 = pneg %p79
      %p279 = pneg %p103
      %p280 = pneg %p100
      %p281 = pneg %p124
      %p282 = pneg %p121
      %p283 = pneg %p145
      %p284 = pneg %p142
      %p285 = pneg %p166
      %p286 = pneg %p163
      %p287 = pneg %p187
      %p288 = pneg %p184
      %p289 = pneg %p213
      %p290 = pneg %p210
      %p291 = scmp.lt.s32.totalorder %s19, 1
      %s292 = scalar_select %p291, %s19, 1
      %s293 = smul.addr %s292, 36
      %s294 = smul.addr %s293, 8
      %s295 = scalar_lea.vmem %s8, %s294
      %p296 = scmp.lt.s32.totalorder %s19, 1
      %s297 = scalar_select %p296, %s19, 1
      %s298 = smul.addr %s297, 46
      %s299 = smul.addr %s298, 8
      %s300 = scalar_lea.vmem %s0, %s299
      %p301 = scmp.lt.s32.totalorder %s19, 1
      %s302 = scalar_select %p301, %s19, 1
      %s303 = smul.addr %s302, 36
      %s304 = smul.addr %s303, 8
      %s305 = scalar_lea.vmem %s8, %s304
      %v307 = vld [vmem:[%s300] sm:$0xff]
      %v308 = vld [vmem:[%s300 + $0x8] sm:$0xff]
      %v309 = vld [vmem:[%s300 + $0x10] sm:$0xff]
      %v310 = vld [vmem:[%s300 + $0x18] sm:$0xff]
      %v311 = vld [vmem:[%s300 + $0x20] sm:$0xff]
      %v312 = vld [vmem:[%s300 + $0x28] sm:$0xff]
      %v313 = vld [vmem:[%s300 + $0x30] sm:$0xff]
      %v314 = vld [vmem:[%s300 + $0x38] sm:$0xff]
      %v315 = vld [vmem:[%s300 + $0x40] sm:$0xff]
      %v316 = vld [vmem:[%s300 + $0x48] sm:$0xff]
      %v317 = vld [vmem:[%s300 + $0x50] sm:$0xff]
      %v318 = vld [vmem:[%s300 + $0x58] sm:$0xff]
      %v319 = vld [vmem:[%s300 + $0x60] sm:$0xff]
      %v320 = vld [vmem:[%s300 + $0x68] sm:$0xff]
      %v321 = vld [vmem:[%s300 + $0x70] sm:$0xff]
      %v322 = vld [vmem:[%s300 + $0x78] sm:$0xff]
      %v323 = vld [vmem:[%s300 + $0x80] sm:$0xff]
      %v324 = vld [vmem:[%s300 + $0x88] sm:$0xff]
      %v325 = vld [vmem:[%s300 + $0x90] sm:$0xff]
      %v326 = vld [vmem:[%s300 + $0x98] sm:$0xff]
      %v327 = vld [vmem:[%s300 + $0xa0] sm:$0xff]
      %v328 = vld [vmem:[%s300 + $0xa8] sm:$0xff]
      %v329 = vld [vmem:[%s300 + $0xb0] sm:$0xff]
      %v330 = vld [vmem:[%s300 + $0xb8] sm:$0xff]
      %v331 = vld [vmem:[%s300 + $0xc0] sm:$0xff]
      %v332 = vld [vmem:[%s300 + $0xc8] sm:$0xff]
      %v333 = vld [vmem:[%s300 + $0xd0] sm:$0xff]
      %v334 = vld [vmem:[%s300 + $0xd8] sm:$0xff]
      %v335 = vld [vmem:[%s300 + $0xe0] sm:$0xff]
      %v336 = vld [vmem:[%s300 + $0xe8] sm:$0xff]
      %v337 = vld [vmem:[%s300 + $0xf0] sm:$0xff]
      %v338 = vld [vmem:[%s300 + $0xf8] sm:$0xff]
      %v339 = vld [vmem:[%s300 + $0x100] sm:$0xff]
      %v340 = vld [vmem:[%s300 + $0x108] sm:$0xff]
      %v341 = vld [vmem:[%s300 + $0x110] sm:$0xff]
      %v342 = vld [vmem:[%s300 + $0x118] sm:$0xff]
      %v343 = vld [vmem:[%s300 + $0x120] sm:$0xff]
      %v344 = vld [vmem:[%s300 + $0x128] sm:$0xff]
      %v345 = vld [vmem:[%s300 + $0x130] sm:$0xff]
      %v346 = vld [vmem:[%s300 + $0x138] sm:$0xff]
      %v347 = vld [vmem:[%s300 + $0x140] sm:$0xff]
      %v348 = vpack.c.bf16 %v308, %v307
      %v349 = vpack.c.bf16 %v310, %v309
      %v350 = vpack.c.bf16 %v312, %v311
      %v351 = vpack.c.bf16 %v314, %v313
      %v352 = vpack.c.bf16 %v316, %v315
      %v353 = vpack.c.bf16 %v318, %v317
      %v354 = vpack.c.bf16 %v320, %v319
      %v355 = vpack.c.bf16 %v322, %v321
      %v356 = vpack.c.bf16 %v324, %v323
      %v357 = vpack.c.bf16 %v326, %v325
      %v358 = vpack.c.bf16 %v328, %v327
      %v359 = vpack.c.bf16 %v330, %v329
      %v360 = vpack.c.bf16 %v332, %v331
      %v361 = vpack.c.bf16 %v334, %v333
      %v362 = vpack.c.bf16 %v336, %v335
      %v363 = vpack.c.bf16 %v338, %v337
      %v364 = vpack.c.bf16 %v340, %v339
      %v365 = vpack.c.bf16 %v342, %v341
      %v366 = vpack.c.bf16 %v344, %v343
      %v367 = vpack.c.bf16 %v346, %v345
      %v368 = vpack.c.bf16 %v347, %v347
      %v369 = vld [vmem:[%s1] sm:$0x3]
      %v370 = vld [vmem:[%s300 + $0x1] sm:$0xff]
      %v371 = vld [vmem:[%s300 + $0x9] sm:$0xff]
      %v372 = vld [vmem:[%s300 + $0x11] sm:$0xff]
      %v373 = vld [vmem:[%s300 + $0x19] sm:$0xff]
      %v374 = vld [vmem:[%s300 + $0x21] sm:$0xff]
      %v375 = vld [vmem:[%s300 + $0x29] sm:$0xff]
      %v376 = vld [vmem:[%s300 + $0x31] sm:$0xff]
      %v377 = vld [vmem:[%s300 + $0x39] sm:$0xff]
      %v378 = vld [vmem:[%s300 + $0x41] sm:$0xff]
      %v379 = vld [vmem:[%s300 + $0x49] sm:$0xff]
      %v380 = vld [vmem:[%s300 + $0x51] sm:$0xff]
      %v381 = vld [vmem:[%s300 + $0x59] sm:$0xff]
      %v382 = vld [vmem:[%s300 + $0x61] sm:$0xff]
      %v383 = vld [vmem:[%s300 + $0x69] sm:$0xff]
      %v384 = vld [vmem:[%s300 + $0x71] sm:$0xff]
      %v385 = vld [vmem:[%s300 + $0x79] sm:$0xff]
      %v386 = vld [vmem:[%s300 + $0x81] sm:$0xff]
      %v387 = vld [vmem:[%s300 + $0x89] sm:$0xff]
      %v388 = vld [vmem:[%s300 + $0x91] sm:$0xff]
      %v389 = vld [vmem:[%s300 + $0x99] sm:$0xff]
      %v390 = vld [vmem:[%s300 + $0xa1] sm:$0xff]
      %v391 = vld [vmem:[%s300 + $0xa9] sm:$0xff]
      %v392 = vld [vmem:[%s300 + $0xb1] sm:$0xff]
      %v393 = vld [vmem:[%s300 + $0xb9] sm:$0xff]
      %v394 = vld [vmem:[%s300 + $0xc1] sm:$0xff]
      %v395 = vld [vmem:[%s300 + $0xc9] sm:$0xff]
      %v396 = vld [vmem:[%s300 + $0xd1] sm:$0xff]
      %v397 = vld [vmem:[%s300 + $0xd9] sm:$0xff]
      %v398 = vld [vmem:[%s300 + $0xe1] sm:$0xff]
      %v399 = vld [vmem:[%s300 + $0xe9] sm:$0xff]
      %v400 = vld [vmem:[%s300 + $0xf1] sm:$0xff]
      %v401 = vld [vmem:[%s300 + $0xf9] sm:$0xff]
      %v402 = vld [vmem:[%s300 + $0x101] sm:$0xff]
      %v403 = vld [vmem:[%s300 + $0x109] sm:$0xff]
      %v404 = vld [vmem:[%s300 + $0x111] sm:$0xff]
      %v405 = vld [vmem:[%s300 + $0x119] sm:$0xff]
      %v406 = vld [vmem:[%s300 + $0x121] sm:$0xff]
      %v407 = vld [vmem:[%s300 + $0x129] sm:$0xff]
      %v408 = vld [vmem:[%s300 + $0x131] sm:$0xff]
      %v409 = vld [vmem:[%s300 + $0x139] sm:$0xff]
      %v410 = vld [vmem:[%s300 + $0x141] sm:$0xff]
      %v411 = vpack.c.bf16 %v371, %v370
      %v412 = vpack.c.bf16 %v373, %v372
      %v413 = vpack.c.bf16 %v375, %v374
      %v414 = vpack.c.bf16 %v377, %v376
      %v415 = vpack.c.bf16 %v379, %v378
      %v416 = vpack.c.bf16 %v381, %v380
      %v417 = vpack.c.bf16 %v383, %v382
      %v418 = vpack.c.bf16 %v385, %v384
      %v419 = vpack.c.bf16 %v387, %v386
      %v420 = vpack.c.bf16 %v389, %v388
      %v421 = vpack.c.bf16 %v391, %v390
      %v422 = vpack.c.bf16 %v393, %v392
      %v423 = vpack.c.bf16 %v395, %v394
      %v424 = vpack.c.bf16 %v397, %v396
      %v425 = vpack.c.bf16 %v399, %v398
      %v426 = vpack.c.bf16 %v401, %v400
      %v427 = vpack.c.bf16 %v403, %v402
      %v428 = vpack.c.bf16 %v405, %v404
      %v429 = vpack.c.bf16 %v407, %v406
      %v430 = vpack.c.bf16 %v409, %v408
      %v431 = vpack.c.bf16 %v410, %v410
      %s432 = scalar_lea.vmem %s1, 2
      %v433 = vld [vmem:[%s432] sm:$0x3]
      %vm434 = vcmask 31744
      %v436 = vsel %vm434, %v411, 0
      %v439 = vsel %vm434, %v412, 0
      %v442 = vsel %vm434, %v413, 0
      %v445 = vsel %vm434, %v414, 0
      %v448 = vsel %vm434, %v415, 0
      %v451 = vsel %vm434, %v416, 0
      %v454 = vsel %vm434, %v417, 0
      %v457 = vsel %vm434, %v418, 0
      %v460 = vsel %vm434, %v419, 0
      %v463 = vsel %vm434, %v420, 0
      %v466 = vsel %vm434, %v421, 0
      %v469 = vsel %vm434, %v422, 0
      %v472 = vsel %vm434, %v423, 0
      %v475 = vsel %vm434, %v424, 0
      %v478 = vsel %vm434, %v425, 0
      %v481 = vsel %vm434, %v426, 0
      %v484 = vsel %vm434, %v427, 0
      %v487 = vsel %vm434, %v428, 0
      %v490 = vsel %vm434, %v429, 0
      %v493 = vsel %vm434, %v430, 0
      %v496 = vsel %vm434, %v431, 0
      %vm498 = vcmask 1041408
      %v500 = vsel %vm498, %v433, 0
      %502 = vmatprep.subr.bf16.mxu0 0
      %503 = vmatpush1.bf16.msra.mxu0 0
      %504 = vmatprep.subr.bf16.mxu0 0
      %505 = vmatpush1.bf16.msra.mxu0 0
      %506 = vmatprep.subr.bf16.mxu0 0
      %507 = vmatpush1.bf16.msra.mxu0 0
      %508 = vmatprep.subr.bf16.mxu0 0
      %509 = vmatpush1.bf16.msra.mxu0 0
      %510 = vmatprep.subr.bf16.mxu0 0
      %511 = vmatpush1.bf16.msra.mxu0 0
      %512 = vmatprep.subr.bf16.mxu0 0
      %513 = vmatpush1.bf16.msra.mxu0 0
      %514 = vmatprep.subr.bf16.mxu0 0
      %515 = vmatpush1.bf16.msra.mxu0 0
      %516 = vmatprep.subr.bf16.mxu0 0
      %517 = vmatpush1.bf16.msra.mxu0 %v500
      %518 = vmatprep.subr.bf16.mxu0 0
      %519 = vmatpush2.bf16.msra.mxu0 0
      %520 = vmatprep.subr.bf16.mxu0 0
      %521 = vmatpush2.bf16.msra.mxu0 0
      %522 = vmatprep.subr.bf16.mxu0 0
      %523 = vmatpush2.bf16.msra.mxu0 0
      %524 = vmatprep.subr.bf16.mxu0 0
      %525 = vmatpush2.bf16.msra.mxu0 0
      %526 = vmatprep.subr.bf16.mxu0 0
      %527 = vmatpush2.bf16.msra.mxu0 0
      %528 = vmatprep.subr.bf16.mxu0 0
      %529 = vmatpush2.bf16.msra.mxu0 0
      %530 = vmatprep.subr.bf16.mxu0 0
      %531 = vmatpush2.bf16.msra.mxu0 0
      %532 = vmatprep.subr.bf16.mxu0 0
      %533 = vmatpush2.bf16.msra.mxu0 0
      %534 = vmatprep.mubr.bf16.mxu0 0
      %535 = vmatmul.mubr.bf16.gmra.mxu0 %v436
      %v536 = vpop.f32.mrf.mxu0
      %v537 = vadd.f32 0.0, %v536
      %v538 = vpop.f32.mrf.mxu0
      %v539 = vpop.f32.mrf.mxu0
      %v540 = vadd.f32 0.0, %v539
      %v541 = vpop.f32.mrf.mxu0
      %542 = vmatprep.mubr.bf16.mxu0 0
      %543 = vmatmul.mubr.bf16.gmra.mxu0 %v439
      %v544 = vpop.f32.mrf.mxu0
      %v545 = vadd.f32 0.0, %v544
      %v546 = vpop.f32.mrf.mxu0
      %v547 = vpop.f32.mrf.mxu0
      %v548 = vadd.f32 0.0, %v547
      %v549 = vpop.f32.mrf.mxu0
      %550 = vmatprep.mubr.bf16.mxu0 0
      %551 = vmatmul.mubr.bf16.gmra.mxu0 %v442
      %v552 = vpop.f32.mrf.mxu0
      %v553 = vadd.f32 0.0, %v552
      %v554 = vpop.f32.mrf.mxu0
      %v555 = vpop.f32.mrf.mxu0
      %v556 = vadd.f32 0.0, %v555
      %v557 = vpop.f32.mrf.mxu0
      %558 = vmatprep.mubr.bf16.mxu0 0
      %559 = vmatmul.mubr.bf16.gmra.mxu0 %v445
      %v560 = vpop.f32.mrf.mxu0
      %v561 = vadd.f32 0.0, %v560
      %v562 = vpop.f32.mrf.mxu0
      %v563 = vpop.f32.mrf.mxu0
      %v564 = vadd.f32 0.0, %v563
      %v565 = vpop.f32.mrf.mxu0
      %566 = vmatprep.mubr.bf16.mxu0 0
      %567 = vmatmul.mubr.bf16.gmra.mxu0 %v448
      %v568 = vpop.f32.mrf.mxu0
      %v569 = vadd.f32 0.0, %v568
      %v570 = vpop.f32.mrf.mxu0
      %v571 = vpop.f32.mrf.mxu0
      %v572 = vadd.f32 0.0, %v571
      %v573 = vpop.f32.mrf.mxu0
      %574 = vmatprep.mubr.bf16.mxu0 0
      %575 = vmatmul.mubr.bf16.gmra.mxu0 %v451
      %v576 = vpop.f32.mrf.mxu0
      %v577 = vadd.f32 0.0, %v576
      %v578 = vpop.f32.mrf.mxu0
      %v579 = vpop.f32.mrf.mxu0
      %v580 = vadd.f32 0.0, %v579
      %v581 = vpop.f32.mrf.mxu0
      %582 = vmatprep.mubr.bf16.mxu0 0
      %583 = vmatmul.mubr.bf16.gmra.mxu0 %v454
      %v584 = vpop.f32.mrf.mxu0
      %v585 = vadd.f32 0.0, %v584
      %v586 = vpop.f32.mrf.mxu0
      %v587 = vpop.f32.mrf.mxu0
      %v588 = vadd.f32 0.0, %v587
      %v589 = vpop.f32.mrf.mxu0
      %590 = vmatprep.mubr.bf16.mxu0 0
      %591 = vmatmul.mubr.bf16.gmra.mxu0 %v457
      %v592 = vpop.f32.mrf.mxu0
      %v593 = vadd.f32 0.0, %v592
      %v594 = vpop.f32.mrf.mxu0
      %v595 = vpop.f32.mrf.mxu0
      %v596 = vadd.f32 0.0, %v595
      %v597 = vpop.f32.mrf.mxu0
      %598 = vmatprep.mubr.bf16.mxu0 0
      %599 = vmatmul.mubr.bf16.gmra.mxu0 %v460
      %v600 = vpop.f32.mrf.mxu0
      %v601 = vadd.f32 0.0, %v600
      %v602 = vpop.f32.mrf.mxu0
      %v603 = vpop.f32.mrf.mxu0
      %v604 = vadd.f32 0.0, %v603
      %v605 = vpop.f32.mrf.mxu0
      %606 = vmatprep.mubr.bf16.mxu0 0
      %607 = vmatmul.mubr.bf16.gmra.mxu0 %v463
      %v608 = vpop.f32.mrf.mxu0
      %v609 = vadd.f32 0.0, %v608
      %v610 = vpop.f32.mrf.mxu0
      %v611 = vpop.f32.mrf.mxu0
      %v612 = vadd.f32 0.0, %v611
      %v613 = vpop.f32.mrf.mxu0
      %614 = vmatprep.mubr.bf16.mxu0 0
      %615 = vmatmul.mubr.bf16.gmra.mxu0 %v466
      %v616 = vpop.f32.mrf.mxu0
      %v617 = vadd.f32 0.0, %v616
      %v618 = vpop.f32.mrf.mxu0
      %v619 = vpop.f32.mrf.mxu0
      %v620 = vadd.f32 0.0, %v619
      %v621 = vpop.f32.mrf.mxu0
      %622 = vmatprep.mubr.bf16.mxu0 0
      %623 = vmatmul.mubr.bf16.gmra.mxu0 %v469
      %v624 = vpop.f32.mrf.mxu0
      %v625 = vadd.f32 0.0, %v624
      %v626 = vpop.f32.mrf.mxu0
      %v627 = vpop.f32.mrf.mxu0
      %v628 = vadd.f32 0.0, %v627
      %v629 = vpop.f32.mrf.mxu0
      %630 = vmatprep.mubr.bf16.mxu0 0
      %631 = vmatmul.mubr.bf16.gmra.mxu0 %v472
      %v632 = vpop.f32.mrf.mxu0
      %v633 = vadd.f32 0.0, %v632
      %v634 = vpop.f32.mrf.mxu0
      %v635 = vpop.f32.mrf.mxu0
      %v636 = vadd.f32 0.0, %v635
      %v637 = vpop.f32.mrf.mxu0
      %638 = vmatprep.mubr.bf16.mxu0 0
      %639 = vmatmul.mubr.bf16.gmra.mxu0 %v475
      %v640 = vpop.f32.mrf.mxu0
      %v641 = vadd.f32 0.0, %v640
      %v642 = vpop.f32.mrf.mxu0
      %v643 = vpop.f32.mrf.mxu0
      %v644 = vadd.f32 0.0, %v643
      %v645 = vpop.f32.mrf.mxu0
      %646 = vmatprep.mubr.bf16.mxu0 0
      %647 = vmatmul.mubr.bf16.gmra.mxu0 %v478
      %v648 = vpop.f32.mrf.mxu0
      %v649 = vadd.f32 0.0, %v648
      %v650 = vpop.f32.mrf.mxu0
      %v651 = vpop.f32.mrf.mxu0
      %v652 = vadd.f32 0.0, %v651
      %v653 = vpop.f32.mrf.mxu0
      %654 = vmatprep.mubr.bf16.mxu0 0
      %655 = vmatmul.mubr.bf16.gmra.mxu0 %v481
      %v656 = vpop.f32.mrf.mxu0
      %v657 = vadd.f32 0.0, %v656
      %v658 = vpop.f32.mrf.mxu0
      %v659 = vpop.f32.mrf.mxu0
      %v660 = vadd.f32 0.0, %v659
      %v661 = vpop.f32.mrf.mxu0
      %662 = vmatprep.mubr.bf16.mxu0 0
      %663 = vmatmul.mubr.bf16.gmra.mxu0 %v484
      %v664 = vpop.f32.mrf.mxu0
      %v665 = vadd.f32 0.0, %v664
      %v666 = vpop.f32.mrf.mxu0
      %v667 = vpop.f32.mrf.mxu0
      %v668 = vadd.f32 0.0, %v667
      %v669 = vpop.f32.mrf.mxu0
      %670 = vmatprep.mubr.bf16.mxu0 0
      %671 = vmatmul.mubr.bf16.gmra.mxu0 %v487
      %v672 = vpop.f32.mrf.mxu0
      %v673 = vadd.f32 0.0, %v672
      %v674 = vpop.f32.mrf.mxu0
      %v675 = vpop.f32.mrf.mxu0
      %v676 = vadd.f32 0.0, %v675
      %v677 = vpop.f32.mrf.mxu0
      %678 = vmatprep.mubr.bf16.mxu0 0
      %679 = vmatmul.mubr.bf16.gmra.mxu0 %v490
      %v680 = vpop.f32.mrf.mxu0
      %v681 = vadd.f32 0.0, %v680
      %v682 = vpop.f32.mrf.mxu0
      %v683 = vpop.f32.mrf.mxu0
      %v684 = vadd.f32 0.0, %v683
      %v685 = vpop.f32.mrf.mxu0
      %686 = vmatprep.mubr.bf16.mxu0 0
      %687 = vmatmul.mubr.bf16.gmra.mxu0 %v493
      %v688 = vpop.f32.mrf.mxu0
      %v689 = vadd.f32 0.0, %v688
      %v690 = vpop.f32.mrf.mxu0
      %v691 = vpop.f32.mrf.mxu0
      %v692 = vadd.f32 0.0, %v691
      %v693 = vpop.f32.mrf.mxu0
      %694 = vmatprep.mubr.bf16.mxu0 0
      %695 = vmatmul.mubr.bf16.gmra.mxu0 %v496
      %v696 = vpop.f32.mrf.mxu0
      %v697 = vadd.f32 0.0, %v696
      %v698 = vpop.f32.mrf.mxu0
      %v699 = vpop.f32.mrf.mxu0
      %v700 = vpop.f32.mrf.mxu0
      %701 = vdwg.mxu0
      %v703 = vsel %vm434, %v348, 0
      %v706 = vsel %vm434, %v349, 0
      %v709 = vsel %vm434, %v350, 0
      %v712 = vsel %vm434, %v351, 0
      %v715 = vsel %vm434, %v352, 0
      %v718 = vsel %vm434, %v353, 0
      %v721 = vsel %vm434, %v354, 0
      %v724 = vsel %vm434, %v355, 0
      %v727 = vsel %vm434, %v356, 0
      %v730 = vsel %vm434, %v357, 0
      %v733 = vsel %vm434, %v358, 0
      %v736 = vsel %vm434, %v359, 0
      %v739 = vsel %vm434, %v360, 0
      %v742 = vsel %vm434, %v361, 0
      %v745 = vsel %vm434, %v362, 0
      %v748 = vsel %vm434, %v363, 0
      %v751 = vsel %vm434, %v364, 0
      %v754 = vsel %vm434, %v365, 0
      %v757 = vsel %vm434, %v366, 0
      %v760 = vsel %vm434, %v367, 0
      %v763 = vsel %vm434, %v368, 0
      %v766 = vsel %vm498, %v369, 0
      %768 = vmatprep.subr.bf16.mxu0 0
      %769 = vmatpush1.bf16.msra.mxu0 0
      %770 = vmatprep.subr.bf16.mxu0 0
      %771 = vmatpush1.bf16.msra.mxu0 0
      %772 = vmatprep.subr.bf16.mxu0 0
      %773 = vmatpush1.bf16.msra.mxu0 0
      %774 = vmatprep.subr.bf16.mxu0 0
      %775 = vmatpush1.bf16.msra.mxu0 0
      %776 = vmatprep.subr.bf16.mxu0 0
      %777 = vmatpush1.bf16.msra.mxu0 0
      %778 = vmatprep.subr.bf16.mxu0 0
      %779 = vmatpush1.bf16.msra.mxu0 0
      %780 = vmatprep.subr.bf16.mxu0 0
      %781 = vmatpush1.bf16.msra.mxu0 0
      %782 = vmatprep.subr.bf16.mxu0 0
      %783 = vmatpush1.bf16.msra.mxu0 %v766
      %784 = vmatprep.subr.bf16.mxu0 0
      %785 = vmatpush2.bf16.msra.mxu0 0
      %786 = vmatprep.subr.bf16.mxu0 0
      %787 = vmatpush2.bf16.msra.mxu0 0
      %788 = vmatprep.subr.bf16.mxu0 0
      %789 = vmatpush2.bf16.msra.mxu0 0
      %790 = vmatprep.subr.bf16.mxu0 0
      %791 = vmatpush2.bf16.msra.mxu0 0
      %792 = vmatprep.subr.bf16.mxu0 0
      %793 = vmatpush2.bf16.msra.mxu0 0
      %794 = vmatprep.subr.bf16.mxu0 0
      %795 = vmatpush2.bf16.msra.mxu0 0
      %796 = vmatprep.subr.bf16.mxu0 0
      %797 = vmatpush2.bf16.msra.mxu0 0
      %798 = vmatprep.subr.bf16.mxu0 0
      %799 = vmatpush2.bf16.msra.mxu0 0
      %800 = vmatprep.mubr.bf16.mxu0 0
      %801 = vmatmul.mubr.bf16.gmra.mxu0 %v703
      %v802 = vpop.f32.mrf.mxu0
      %v803 = vadd.f32 %v537, %v802
      %v804 = vpop.f32.mrf.mxu0
      %v805 = vpop.f32.mrf.mxu0
      %v806 = vadd.f32 %v540, %v805
      %v807 = vpop.f32.mrf.mxu0
      %808 = vmatprep.mubr.bf16.mxu0 0
      %809 = vmatmul.mubr.bf16.gmra.mxu0 %v706
      %v810 = vpop.f32.mrf.mxu0
      %v811 = vadd.f32 %v545, %v810
      %v812 = vpop.f32.mrf.mxu0
      %v813 = vpop.f32.mrf.mxu0
      %v814 = vadd.f32 %v548, %v813
      %v815 = vpop.f32.mrf.mxu0
      %816 = vmatprep.mubr.bf16.mxu0 0
      %817 = vmatmul.mubr.bf16.gmra.mxu0 %v709
      %v818 = vpop.f32.mrf.mxu0
      %v819 = vadd.f32 %v553, %v818
      %v820 = vpop.f32.mrf.mxu0
      %v821 = vpop.f32.mrf.mxu0
      %v822 = vadd.f32 %v556, %v821
      %v823 = vpop.f32.mrf.mxu0
      %824 = vmatprep.mubr.bf16.mxu0 0
      %825 = vmatmul.mubr.bf16.gmra.mxu0 %v712
      %v826 = vpop.f32.mrf.mxu0
      %v827 = vadd.f32 %v561, %v826
      %v828 = vpop.f32.mrf.mxu0
      %v829 = vpop.f32.mrf.mxu0
      %v830 = vadd.f32 %v564, %v829
      %v831 = vpop.f32.mrf.mxu0
      %832 = vmatprep.mubr.bf16.mxu0 0
      %833 = vmatmul.mubr.bf16.gmra.mxu0 %v715
      %v834 = vpop.f32.mrf.mxu0
      %v835 = vadd.f32 %v569, %v834
      %v836 = vpop.f32.mrf.mxu0
      %v837 = vpop.f32.mrf.mxu0
      %v838 = vadd.f32 %v572, %v837
      %v839 = vpop.f32.mrf.mxu0
      %840 = vmatprep.mubr.bf16.mxu0 0
      %841 = vmatmul.mubr.bf16.gmra.mxu0 %v718
      %v842 = vpop.f32.mrf.mxu0
      %v843 = vadd.f32 %v577, %v842
      %v844 = vpop.f32.mrf.mxu0
      %v845 = vpop.f32.mrf.mxu0
      %v846 = vadd.f32 %v580, %v845
      %v847 = vpop.f32.mrf.mxu0
      %848 = vmatprep.mubr.bf16.mxu0 0
      %849 = vmatmul.mubr.bf16.gmra.mxu0 %v721
      %v850 = vpop.f32.mrf.mxu0
      %v851 = vadd.f32 %v585, %v850
      %v852 = vpop.f32.mrf.mxu0
      %v853 = vpop.f32.mrf.mxu0
      %v854 = vadd.f32 %v588, %v853
      %v855 = vpop.f32.mrf.mxu0
      %856 = vmatprep.mubr.bf16.mxu0 0
      %857 = vmatmul.mubr.bf16.gmra.mxu0 %v724
      %v858 = vpop.f32.mrf.mxu0
      %v859 = vadd.f32 %v593, %v858
      %v860 = vpop.f32.mrf.mxu0
      %v861 = vpop.f32.mrf.mxu0
      %v862 = vadd.f32 %v596, %v861
      %v863 = vpop.f32.mrf.mxu0
      %864 = vmatprep.mubr.bf16.mxu0 0
      %865 = vmatmul.mubr.bf16.gmra.mxu0 %v727
      %v866 = vpop.f32.mrf.mxu0
      %v867 = vadd.f32 %v601, %v866
      %v868 = vpop.f32.mrf.mxu0
      %v869 = vpop.f32.mrf.mxu0
      %v870 = vadd.f32 %v604, %v869
      %v871 = vpop.f32.mrf.mxu0
      %872 = vmatprep.mubr.bf16.mxu0 0
      %873 = vmatmul.mubr.bf16.gmra.mxu0 %v730
      %v874 = vpop.f32.mrf.mxu0
      %v875 = vadd.f32 %v609, %v874
      %v876 = vpop.f32.mrf.mxu0
      %v877 = vpop.f32.mrf.mxu0
      %v878 = vadd.f32 %v612, %v877
      %v879 = vpop.f32.mrf.mxu0
      %880 = vmatprep.mubr.bf16.mxu0 0
      %881 = vmatmul.mubr.bf16.gmra.mxu0 %v733
      %v882 = vpop.f32.mrf.mxu0
      %v883 = vadd.f32 %v617, %v882
      %v884 = vpop.f32.mrf.mxu0
      %v885 = vpop.f32.mrf.mxu0
      %v886 = vadd.f32 %v620, %v885
      %v887 = vpop.f32.mrf.mxu0
      %888 = vmatprep.mubr.bf16.mxu0 0
      %889 = vmatmul.mubr.bf16.gmra.mxu0 %v736
      %v890 = vpop.f32.mrf.mxu0
      %v891 = vadd.f32 %v625, %v890
      %v892 = vpop.f32.mrf.mxu0
      %v893 = vpop.f32.mrf.mxu0
      %v894 = vadd.f32 %v628, %v893
      %v895 = vpop.f32.mrf.mxu0
      %896 = vmatprep.mubr.bf16.mxu0 0
      %897 = vmatmul.mubr.bf16.gmra.mxu0 %v739
      %v898 = vpop.f32.mrf.mxu0
      %v899 = vadd.f32 %v633, %v898
      %v900 = vpop.f32.mrf.mxu0
      %v901 = vpop.f32.mrf.mxu0
      %v902 = vadd.f32 %v636, %v901
      %v903 = vpop.f32.mrf.mxu0
      %904 = vmatprep.mubr.bf16.mxu0 0
      %905 = vmatmul.mubr.bf16.gmra.mxu0 %v742
      %v906 = vpop.f32.mrf.mxu0
      %v907 = vadd.f32 %v641, %v906
      %v908 = vpop.f32.mrf.mxu0
      %v909 = vpop.f32.mrf.mxu0
      %v910 = vadd.f32 %v644, %v909
      %v911 = vpop.f32.mrf.mxu0
      %912 = vmatprep.mubr.bf16.mxu0 0
      %913 = vmatmul.mubr.bf16.gmra.mxu0 %v745
      %v914 = vpop.f32.mrf.mxu0
      %v915 = vadd.f32 %v649, %v914
      %v916 = vpop.f32.mrf.mxu0
      %v917 = vpop.f32.mrf.mxu0
      %v918 = vadd.f32 %v652, %v917
      %v919 = vpop.f32.mrf.mxu0
      %920 = vmatprep.mubr.bf16.mxu0 0
      %921 = vmatmul.mubr.bf16.gmra.mxu0 %v748
      %v922 = vpop.f32.mrf.mxu0
      %v923 = vadd.f32 %v657, %v922
      %v924 = vpop.f32.mrf.mxu0
      %v925 = vpop.f32.mrf.mxu0
      %v926 = vadd.f32 %v660, %v925
      %v927 = vpop.f32.mrf.mxu0
      %928 = vmatprep.mubr.bf16.mxu0 0
      %929 = vmatmul.mubr.bf16.gmra.mxu0 %v751
      %v930 = vpop.f32.mrf.mxu0
      %v931 = vadd.f32 %v665, %v930
      %v932 = vpop.f32.mrf.mxu0
      %v933 = vpop.f32.mrf.mxu0
      %v934 = vadd.f32 %v668, %v933
      %v935 = vpop.f32.mrf.mxu0
      %936 = vmatprep.mubr.bf16.mxu0 0
      %937 = vmatmul.mubr.bf16.gmra.mxu0 %v754
      %v938 = vpop.f32.mrf.mxu0
      %v939 = vadd.f32 %v673, %v938
      %v940 = vpop.f32.mrf.mxu0
      %v941 = vpop.f32.mrf.mxu0
      %v942 = vadd.f32 %v676, %v941
      %v943 = vpop.f32.mrf.mxu0
      %944 = vmatprep.mubr.bf16.mxu0 0
      %945 = vmatmul.mubr.bf16.gmra.mxu0 %v757
      %v946 = vpop.f32.mrf.mxu0
      %v947 = vadd.f32 %v681, %v946
      %v948 = vpop.f32.mrf.mxu0
      %v949 = vpop.f32.mrf.mxu0
      %v950 = vadd.f32 %v684, %v949
      %v951 = vpop.f32.mrf.mxu0
      %952 = vmatprep.mubr.bf16.mxu0 0
      %953 = vmatmul.mubr.bf16.gmra.mxu0 %v760
      %v954 = vpop.f32.mrf.mxu0
      %v955 = vadd.f32 %v689, %v954
      %v956 = vpop.f32.mrf.mxu0
      %v957 = vpop.f32.mrf.mxu0
      %v958 = vadd.f32 %v692, %v957
      %v959 = vpop.f32.mrf.mxu0
      %960 = vmatprep.mubr.bf16.mxu0 0
      %961 = vmatmul.mubr.bf16.gmra.mxu0 %v763
      %v962 = vpop.f32.mrf.mxu0
      %v963 = vadd.f32 %v697, %v962
      %v964 = vpop.f32.mrf.mxu0
      %v965 = vpop.f32.mrf.mxu0
      %v966 = vpop.f32.mrf.mxu0
      %967 = vdwg.mxu0
      %v968 = vld [vmem:[%s300 + $0x2] sm:$0xff]
      %v969 = vld [vmem:[%s300 + $0xa] sm:$0xff]
      %v970 = vld [vmem:[%s300 + $0x12] sm:$0xff]
      %v971 = vld [vmem:[%s300 + $0x1a] sm:$0xff]
      %v972 = vld [vmem:[%s300 + $0x22] sm:$0xff]
      %v973 = vld [vmem:[%s300 + $0x2a] sm:$0xff]
      %v974 = vld [vmem:[%s300 + $0x32] sm:$0xff]
      %v975 = vld [vmem:[%s300 + $0x3a] sm:$0xff]
      %v976 = vld [vmem:[%s300 + $0x42] sm:$0xff]
      %v977 = vld [vmem:[%s300 + $0x4a] sm:$0xff]
      %v978 = vld [vmem:[%s300 + $0x52] sm:$0xff]
      %v979 = vld [vmem:[%s300 + $0x5a] sm:$0xff]
      %v980 = vld [vmem:[%s300 + $0x62] sm:$0xff]
      %v981 = vld [vmem:[%s300 + $0x6a] sm:$0xff]
      %v982 = vld [vmem:[%s300 + $0x72] sm:$0xff]
      %v983 = vld [vmem:[%s300 + $0x7a] sm:$0xff]
      %v984 = vld [vmem:[%s300 + $0x82] sm:$0xff]
      %v985 = vld [vmem:[%s300 + $0x8a] sm:$0xff]
      %v986 = vld [vmem:[%s300 + $0x92] sm:$0xff]
      %v987 = vld [vmem:[%s300 + $0x9a] sm:$0xff]
      %v988 = vld [vmem:[%s300 + $0xa2] sm:$0xff]
      %v989 = vld [vmem:[%s300 + $0xaa] sm:$0xff]
      %v990 = vld [vmem:[%s300 + $0xb2] sm:$0xff]
      %v991 = vld [vmem:[%s300 + $0xba] sm:$0xff]
      %v992 = vld [vmem:[%s300 + $0xc2] sm:$0xff]
      %v993 = vld [vmem:[%s300 + $0xca] sm:$0xff]
      %v994 = vld [vmem:[%s300 + $0xd2] sm:$0xff]
      %v995 = vld [vmem:[%s300 + $0xda] sm:$0xff]
      %v996 = vld [vmem:[%s300 + $0xe2] sm:$0xff]
      %v997 = vld [vmem:[%s300 + $0xea] sm:$0xff]
      %v998 = vld [vmem:[%s300 + $0xf2] sm:$0xff]
      %v999 = vld [vmem:[%s300 + $0xfa] sm:$0xff]
      %v1000 = vld [vmem:[%s300 + $0x102] sm:$0xff]
      %v1001 = vld [vmem:[%s300 + $0x10a] sm:$0xff]
      %v1002 = vld [vmem:[%s300 + $0x112] sm:$0xff]
      %v1003 = vld [vmem:[%s300 + $0x11a] sm:$0xff]
      %v1004 = vld [vmem:[%s300 + $0x122] sm:$0xff]
      %v1005 = vld [vmem:[%s300 + $0x12a] sm:$0xff]
      %v1006 = vld [vmem:[%s300 + $0x132] sm:$0xff]
      %v1007 = vld [vmem:[%s300 + $0x13a] sm:$0xff]
      %v1008 = vld [vmem:[%s300 + $0x142] sm:$0xff]
      %v1009 = vpack.c.bf16 %v969, %v968
      %v1010 = vpack.c.bf16 %v971, %v970
      %v1011 = vpack.c.bf16 %v973, %v972
      %v1012 = vpack.c.bf16 %v975, %v974
      %v1013 = vpack.c.bf16 %v977, %v976
      %v1014 = vpack.c.bf16 %v979, %v978
      %v1015 = vpack.c.bf16 %v981, %v980
      %v1016 = vpack.c.bf16 %v983, %v982
      %v1017 = vpack.c.bf16 %v985, %v984
      %v1018 = vpack.c.bf16 %v987, %v986
      %v1019 = vpack.c.bf16 %v989, %v988
      %v1020 = vpack.c.bf16 %v991, %v990
      %v1021 = vpack.c.bf16 %v993, %v992
      %v1022 = vpack.c.bf16 %v995, %v994
      %v1023 = vpack.c.bf16 %v997, %v996
      %v1024 = vpack.c.bf16 %v999, %v998
      %v1025 = vpack.c.bf16 %v1001, %v1000
      %v1026 = vpack.c.bf16 %v1003, %v1002
      %v1027 = vpack.c.bf16 %v1005, %v1004
      %v1028 = vpack.c.bf16 %v1007, %v1006
      %v1029 = vpack.c.bf16 %v1008, %v1008
      %s1030 = scalar_lea.vmem %s1, 4
      %v1031 = vld [vmem:[%s1030] sm:$0x3]
      %v1033 = vsel %vm434, %v1009, 0
      %v1036 = vsel %vm434, %v1010, 0
      %v1039 = vsel %vm434, %v1011, 0
      %v1042 = vsel %vm434, %v1012, 0
      %v1045 = vsel %vm434, %v1013, 0
      %v1048 = vsel %vm434, %v1014, 0
      %v1051 = vsel %vm434, %v1015, 0
      %v1054 = vsel %vm434, %v1016, 0
      %v1057 = vsel %vm434, %v1017, 0
      %v1060 = vsel %vm434, %v1018, 0
      %v1063 = vsel %vm434, %v1019, 0
      %v1066 = vsel %vm434, %v1020, 0
      %v1069 = vsel %vm434, %v1021, 0
      %v1072 = vsel %vm434, %v1022, 0
      %v1075 = vsel %vm434, %v1023, 0
      %v1078 = vsel %vm434, %v1024, 0
      %v1081 = vsel %vm434, %v1025, 0
      %v1084 = vsel %vm434, %v1026, 0
      %v1087 = vsel %vm434, %v1027, 0
      %v1090 = vsel %vm434, %v1028, 0
      %v1093 = vsel %vm434, %v1029, 0
      %v1096 = vsel %vm498, %v1031, 0
      %1098 = vmatprep.subr.bf16.mxu0 0
      %1099 = vmatpush1.bf16.msra.mxu0 0
      %1100 = vmatprep.subr.bf16.mxu0 0
      %1101 = vmatpush1.bf16.msra.mxu0 0
      %1102 = vmatprep.subr.bf16.mxu0 0
      %1103 = vmatpush1.bf16.msra.mxu0 0
      %1104 = vmatprep.subr.bf16.mxu0 0
      %1105 = vmatpush1.bf16.msra.mxu0 0
      %1106 = vmatprep.subr.bf16.mxu0 0
      %1107 = vmatpush1.bf16.msra.mxu0 0
      %1108 = vmatprep.subr.bf16.mxu0 0
      %1109 = vmatpush1.bf16.msra.mxu0 0
      %1110 = vmatprep.subr.bf16.mxu0 0
      %1111 = vmatpush1.bf16.msra.mxu0 0
      %1112 = vmatprep.subr.bf16.mxu0 0
      %1113 = vmatpush1.bf16.msra.mxu0 %v1096
      %1114 = vmatprep.subr.bf16.mxu0 0
      %1115 = vmatpush2.bf16.msra.mxu0 0
      %1116 = vmatprep.subr.bf16.mxu0 0
      %1117 = vmatpush2.bf16.msra.mxu0 0
      %1118 = vmatprep.subr.bf16.mxu0 0
      %1119 = vmatpush2.bf16.msra.mxu0 0
      %1120 = vmatprep.subr.bf16.mxu0 0
      %1121 = vmatpush2.bf16.msra.mxu0 0
      %1122 = vmatprep.subr.bf16.mxu0 0
      %1123 = vmatpush2.bf16.msra.mxu0 0
      %1124 = vmatprep.subr.bf16.mxu0 0
      %1125 = vmatpush2.bf16.msra.mxu0 0
      %1126 = vmatprep.subr.bf16.mxu0 0
      %1127 = vmatpush2.bf16.msra.mxu0 0
      %1128 = vmatprep.subr.bf16.mxu0 0
      %1129 = vmatpush2.bf16.msra.mxu0 0
      %1130 = vmatprep.mubr.bf16.mxu0 0
      %1131 = vmatmul.mubr.bf16.gmra.mxu0 %v1033
      %v1132 = vpop.f32.mrf.mxu0
      %v1133 = vadd.f32 0.0, %v1132
      %v1134 = vpop.f32.mrf.mxu0
      %v1135 = vpop.f32.mrf.mxu0
      %v1136 = vadd.f32 0.0, %v1135
      %v1137 = vpop.f32.mrf.mxu0
      %1138 = vmatprep.mubr.bf16.mxu0 0
      %1139 = vmatmul.mubr.bf16.gmra.mxu0 %v1036
      %v1140 = vpop.f32.mrf.mxu0
      %v1141 = vadd.f32 0.0, %v1140
      %v1142 = vpop.f32.mrf.mxu0
      %v1143 = vpop.f32.mrf.mxu0
      %v1144 = vadd.f32 0.0, %v1143
      %v1145 = vpop.f32.mrf.mxu0
      %1146 = vmatprep.mubr.bf16.mxu0 0
      %1147 = vmatmul.mubr.bf16.gmra.mxu0 %v1039
      %v1148 = vpop.f32.mrf.mxu0
      %v1149 = vadd.f32 0.0, %v1148
      %v1150 = vpop.f32.mrf.mxu0
      %v1151 = vpop.f32.mrf.mxu0
      %v1152 = vadd.f32 0.0, %v1151
      %v1153 = vpop.f32.mrf.mxu0
      %1154 = vmatprep.mubr.bf16.mxu0 0
      %1155 = vmatmul.mubr.bf16.gmra.mxu0 %v1042
      %v1156 = vpop.f32.mrf.mxu0
      %v1157 = vadd.f32 0.0, %v1156
      %v1158 = vpop.f32.mrf.mxu0
      %v1159 = vpop.f32.mrf.mxu0
      %v1160 = vadd.f32 0.0, %v1159
      %v1161 = vpop.f32.mrf.mxu0
      %1162 = vmatprep.mubr.bf16.mxu0 0
      %1163 = vmatmul.mubr.bf16.gmra.mxu0 %v1045
      %v1164 = vpop.f32.mrf.mxu0
      %v1165 = vadd.f32 0.0, %v1164
      %v1166 = vpop.f32.mrf.mxu0
      %v1167 = vpop.f32.mrf.mxu0
      %v1168 = vadd.f32 0.0, %v1167
      %v1169 = vpop.f32.mrf.mxu0
      %1170 = vmatprep.mubr.bf16.mxu0 0
      %1171 = vmatmul.mubr.bf16.gmra.mxu0 %v1048
      %v1172 = vpop.f32.mrf.mxu0
      %v1173 = vadd.f32 0.0, %v1172
      %v1174 = vpop.f32.mrf.mxu0
      %v1175 = vpop.f32.mrf.mxu0
      %v1176 = vadd.f32 0.0, %v1175
      %v1177 = vpop.f32.mrf.mxu0
      %1178 = vmatprep.mubr.bf16.mxu0 0
      %1179 = vmatmul.mubr.bf16.gmra.mxu0 %v1051
      %v1180 = vpop.f32.mrf.mxu0
      %v1181 = vadd.f32 0.0, %v1180
      %v1182 = vpop.f32.mrf.mxu0
      %v1183 = vpop.f32.mrf.mxu0
      %v1184 = vadd.f32 0.0, %v1183
      %v1185 = vpop.f32.mrf.mxu0
      %1186 = vmatprep.mubr.bf16.mxu0 0
      %1187 = vmatmul.mubr.bf16.gmra.mxu0 %v1054
      %v1188 = vpop.f32.mrf.mxu0
      %v1189 = vadd.f32 0.0, %v1188
      %v1190 = vpop.f32.mrf.mxu0
      %v1191 = vpop.f32.mrf.mxu0
      %v1192 = vadd.f32 0.0, %v1191
      %v1193 = vpop.f32.mrf.mxu0
      %1194 = vmatprep.mubr.bf16.mxu0 0
      %1195 = vmatmul.mubr.bf16.gmra.mxu0 %v1057
      %v1196 = vpop.f32.mrf.mxu0
      %v1197 = vadd.f32 0.0, %v1196
      %v1198 = vpop.f32.mrf.mxu0
      %v1199 = vpop.f32.mrf.mxu0
      %v1200 = vadd.f32 0.0, %v1199
      %v1201 = vpop.f32.mrf.mxu0
      %1202 = vmatprep.mubr.bf16.mxu0 0
      %1203 = vmatmul.mubr.bf16.gmra.mxu0 %v1060
      %v1204 = vpop.f32.mrf.mxu0
      %v1205 = vadd.f32 0.0, %v1204
      %v1206 = vpop.f32.mrf.mxu0
      %v1207 = vpop.f32.mrf.mxu0
      %v1208 = vadd.f32 0.0, %v1207
      %v1209 = vpop.f32.mrf.mxu0
      %1210 = vmatprep.mubr.bf16.mxu0 0
      %1211 = vmatmul.mubr.bf16.gmra.mxu0 %v1063
      %v1212 = vpop.f32.mrf.mxu0
      %v1213 = vadd.f32 0.0, %v1212
      %v1214 = vpop.f32.mrf.mxu0
      %v1215 = vpop.f32.mrf.mxu0
      %v1216 = vadd.f32 0.0, %v1215
      %v1217 = vpop.f32.mrf.mxu0
      %1218 = vmatprep.mubr.bf16.mxu0 0
      %1219 = vmatmul.mubr.bf16.gmra.mxu0 %v1066
      %v1220 = vpop.f32.mrf.mxu0
      %v1221 = vadd.f32 0.0, %v1220
      %v1222 = vpop.f32.mrf.mxu0
      %v1223 = vpop.f32.mrf.mxu0
      %v1224 = vadd.f32 0.0, %v1223
      %v1225 = vpop.f32.mrf.mxu0
      %1226 = vmatprep.mubr.bf16.mxu0 0
      %1227 = vmatmul.mubr.bf16.gmra.mxu0 %v1069
      %v1228 = vpop.f32.mrf.mxu0
      %v1229 = vadd.f32 0.0, %v1228
      %v1230 = vpop.f32.mrf.mxu0
      %v1231 = vpop.f32.mrf.mxu0
      %v1232 = vadd.f32 0.0, %v1231
      %v1233 = vpop.f32.mrf.mxu0
      %1234 = vmatprep.mubr.bf16.mxu0 0
      %1235 = vmatmul.mubr.bf16.gmra.mxu0 %v1072
      %v1236 = vpop.f32.mrf.mxu0
      %v1237 = vadd.f32 0.0, %v1236
      %v1238 = vpop.f32.mrf.mxu0
      %v1239 = vpop.f32.mrf.mxu0
      %v1240 = vadd.f32 0.0, %v1239
      %v1241 = vpop.f32.mrf.mxu0
      %1242 = vmatprep.mubr.bf16.mxu0 0
      %1243 = vmatmul.mubr.bf16.gmra.mxu0 %v1075
      %v1244 = vpop.f32.mrf.mxu0
      %v1245 = vadd.f32 0.0, %v1244
      %v1246 = vpop.f32.mrf.mxu0
      %v1247 = vpop.f32.mrf.mxu0
      %v1248 = vadd.f32 0.0, %v1247
      %v1249 = vpop.f32.mrf.mxu0
      %1250 = vmatprep.mubr.bf16.mxu0 0
      %1251 = vmatmul.mubr.bf16.gmra.mxu0 %v1078
      %v1252 = vpop.f32.mrf.mxu0
      %v1253 = vadd.f32 0.0, %v1252
      %v1254 = vpop.f32.mrf.mxu0
      %v1255 = vpop.f32.mrf.mxu0
      %v1256 = vadd.f32 0.0, %v1255
      %v1257 = vpop.f32.mrf.mxu0
      %1258 = vmatprep.mubr.bf16.mxu0 0
      %1259 = vmatmul.mubr.bf16.gmra.mxu0 %v1081
      %v1260 = vpop.f32.mrf.mxu0
      %v1261 = vadd.f32 0.0, %v1260
      %v1262 = vpop.f32.mrf.mxu0
      %v1263 = vpop.f32.mrf.mxu0
      %v1264 = vadd.f32 0.0, %v1263
      %v1265 = vpop.f32.mrf.mxu0
      %1266 = vmatprep.mubr.bf16.mxu0 0
      %1267 = vmatmul.mubr.bf16.gmra.mxu0 %v1084
      %v1268 = vpop.f32.mrf.mxu0
      %v1269 = vadd.f32 0.0, %v1268
      %v1270 = vpop.f32.mrf.mxu0
      %v1271 = vpop.f32.mrf.mxu0
      %v1272 = vadd.f32 0.0, %v1271
      %v1273 = vpop.f32.mrf.mxu0
      %1274 = vmatprep.mubr.bf16.mxu0 0
      %1275 = vmatmul.mubr.bf16.gmra.mxu0 %v1087
      %v1276 = vpop.f32.mrf.mxu0
      %v1277 = vadd.f32 0.0, %v1276
      %v1278 = vpop.f32.mrf.mxu0
      %v1279 = vpop.f32.mrf.mxu0
      %v1280 = vadd.f32 0.0, %v1279
      %v1281 = vpop.f32.mrf.mxu0
      %1282 = vmatprep.mubr.bf16.mxu0 0
      %1283 = vmatmul.mubr.bf16.gmra.mxu0 %v1090
      %v1284 = vpop.f32.mrf.mxu0
      %v1285 = vadd.f32 0.0, %v1284
      %v1286 = vpop.f32.mrf.mxu0
      %v1287 = vpop.f32.mrf.mxu0
      %v1288 = vadd.f32 0.0, %v1287
      %v1289 = vpop.f32.mrf.mxu0
      %1290 = vmatprep.mubr.bf16.mxu0 0
      %1291 = vmatmul.mubr.bf16.gmra.mxu0 %v1093
      %v1292 = vpop.f32.mrf.mxu0
      %v1293 = vadd.f32 0.0, %v1292
      %v1294 = vpop.f32.mrf.mxu0
      %v1295 = vpop.f32.mrf.mxu0
      %v1296 = vpop.f32.mrf.mxu0
      %1297 = vdwg.mxu0
      %v1298 = vadd.f32 %v803, %v1133
      %v1299 = vadd.f32 %v806, %v1136
      %v1300 = vadd.f32 %v811, %v1141
      %v1301 = vadd.f32 %v814, %v1144
      %v1302 = vadd.f32 %v819, %v1149
      %v1303 = vadd.f32 %v822, %v1152
      %v1304 = vadd.f32 %v827, %v1157
      %v1305 = vadd.f32 %v830, %v1160
      %v1306 = vadd.f32 %v835, %v1165
      %v1307 = vadd.f32 %v838, %v1168
      %v1308 = vadd.f32 %v843, %v1173
      %v1309 = vadd.f32 %v846, %v1176
      %v1310 = vadd.f32 %v851, %v1181
      %v1311 = vadd.f32 %v854, %v1184
      %v1312 = vadd.f32 %v859, %v1189
      %v1313 = vadd.f32 %v862, %v1192
      %v1314 = vadd.f32 %v867, %v1197
      %v1315 = vadd.f32 %v870, %v1200
      %v1316 = vadd.f32 %v875, %v1205
      %v1317 = vadd.f32 %v878, %v1208
      %v1318 = vadd.f32 %v883, %v1213
      %v1319 = vadd.f32 %v886, %v1216
      %v1320 = vadd.f32 %v891, %v1221
      %v1321 = vadd.f32 %v894, %v1224
      %v1322 = vadd.f32 %v899, %v1229
      %v1323 = vadd.f32 %v902, %v1232
      %v1324 = vadd.f32 %v907, %v1237
      %v1325 = vadd.f32 %v910, %v1240
      %v1326 = vadd.f32 %v915, %v1245
      %v1327 = vadd.f32 %v918, %v1248
      %v1328 = vadd.f32 %v923, %v1253
      %v1329 = vadd.f32 %v926, %v1256
      %v1330 = vadd.f32 %v931, %v1261
      %v1331 = vadd.f32 %v934, %v1264
      %v1332 = vadd.f32 %v939, %v1269
      %v1333 = vadd.f32 %v942, %v1272
      %v1334 = vadd.f32 %v947, %v1277
      %v1335 = vadd.f32 %v950, %v1280
      %v1336 = vadd.f32 %v955, %v1285
      %v1337 = vadd.f32 %v958, %v1288
      %v1338 = vadd.f32 %v963, %v1293
      %v1339 = vld [vmem:[%s300 + $0x12] sm:$0xff]
      %v1340 = vld [vmem:[%s300 + $0x1a] sm:$0xff]
      %v1341 = vld [vmem:[%s300 + $0x22] sm:$0xff]
      %v1342 = vld [vmem:[%s300 + $0x2a] sm:$0xff]
      %v1343 = vld [vmem:[%s300 + $0x32] sm:$0xff]
      %v1344 = vld [vmem:[%s300 + $0x3a] sm:$0xff]
      %v1345 = vld [vmem:[%s300 + $0x42] sm:$0xff]
      %v1346 = vld [vmem:[%s300 + $0x4a] sm:$0xff]
      %v1347 = vld [vmem:[%s300 + $0x52] sm:$0xff]
      %v1348 = vld [vmem:[%s300 + $0x5a] sm:$0xff]
      %v1349 = vld [vmem:[%s300 + $0x62] sm:$0xff]
      %v1350 = vld [vmem:[%s300 + $0x6a] sm:$0xff]
      %v1351 = vld [vmem:[%s300 + $0x72] sm:$0xff]
      %v1352 = vld [vmem:[%s300 + $0x7a] sm:$0xff]
      %v1353 = vld [vmem:[%s300 + $0x82] sm:$0xff]
      %v1354 = vld [vmem:[%s300 + $0x8a] sm:$0xff]
      %v1355 = vld [vmem:[%s300 + $0x92] sm:$0xff]
      %v1356 = vld [vmem:[%s300 + $0x9a] sm:$0xff]
      %v1357 = vld [vmem:[%s300 + $0xa2] sm:$0xff]
      %v1358 = vld [vmem:[%s300 + $0xaa] sm:$0xff]
      %v1359 = vld [vmem:[%s300 + $0xb2] sm:$0xff]
      %v1360 = vld [vmem:[%s300 + $0xba] sm:$0xff]
      %v1361 = vld [vmem:[%s300 + $0xc2] sm:$0xff]
      %v1362 = vld [vmem:[%s300 + $0xca] sm:$0xff]
      %v1363 = vld [vmem:[%s300 + $0xd2] sm:$0xff]
      %v1364 = vld [vmem:[%s300 + $0xda] sm:$0xff]
      %v1365 = vld [vmem:[%s300 + $0xe2] sm:$0xff]
      %v1366 = vld [vmem:[%s300 + $0xea] sm:$0xff]
      %v1367 = vld [vmem:[%s300 + $0xf2] sm:$0xff]
      %v1368 = vld [vmem:[%s300 + $0xfa] sm:$0xff]
      %v1369 = vld [vmem:[%s300 + $0x102] sm:$0xff]
      %v1370 = vld [vmem:[%s300 + $0x10a] sm:$0xff]
      %v1371 = vld [vmem:[%s300 + $0x112] sm:$0xff]
      %v1372 = vld [vmem:[%s300 + $0x11a] sm:$0xff]
      %v1373 = vld [vmem:[%s300 + $0x122] sm:$0xff]
      %v1374 = vld [vmem:[%s300 + $0x12a] sm:$0xff]
      %v1375 = vld [vmem:[%s300 + $0x132] sm:$0xff]
      %v1376 = vld [vmem:[%s300 + $0x13a] sm:$0xff]
      %v1377 = vld [vmem:[%s300 + $0x142] sm:$0xff]
      %v1378 = vld [vmem:[%s300 + $0x14a] sm:$0xff]
      %v1379 = vld [vmem:[%s300 + $0x152] sm:$0xff]
      %v1380 = vpack.c.bf16 %v1340, %v1339
      %v1381 = vpack.c.bf16 %v1342, %v1341
      %v1382 = vpack.c.bf16 %v1344, %v1343
      %v1383 = vpack.c.bf16 %v1346, %v1345
      %v1384 = vpack.c.bf16 %v1348, %v1347
      %v1385 = vpack.c.bf16 %v1350, %v1349
      %v1386 = vpack.c.bf16 %v1352, %v1351
      %v1387 = vpack.c.bf16 %v1354, %v1353
      %v1388 = vpack.c.bf16 %v1356, %v1355
      %v1389 = vpack.c.bf16 %v1358, %v1357
      %v1390 = vpack.c.bf16 %v1360, %v1359
      %v1391 = vpack.c.bf16 %v1362, %v1361
      %v1392 = vpack.c.bf16 %v1364, %v1363
      %v1393 = vpack.c.bf16 %v1366, %v1365
      %v1394 = vpack.c.bf16 %v1368, %v1367
      %v1395 = vpack.c.bf16 %v1370, %v1369
      %v1396 = vpack.c.bf16 %v1372, %v1371
      %v1397 = vpack.c.bf16 %v1374, %v1373
      %v1398 = vpack.c.bf16 %v1376, %v1375
      %v1399 = vpack.c.bf16 %v1378, %v1377
      %v1400 = vpack.c.bf16 %v1379, %v1379
      %s1401 = scalar_lea.vmem %s1, 6
      %v1402 = vld [vmem:[%s1401] sm:$0x3]
      %v1404 = vsel %vm434, %v1380, 0
      %v1407 = vsel %vm434, %v1381, 0
      %v1410 = vsel %vm434, %v1382, 0
      %v1413 = vsel %vm434, %v1383, 0
      %v1416 = vsel %vm434, %v1384, 0
      %v1419 = vsel %vm434, %v1385, 0
      %v1422 = vsel %vm434, %v1386, 0
      %v1425 = vsel %vm434, %v1387, 0
      %v1428 = vsel %vm434, %v1388, 0
      %v1431 = vsel %vm434, %v1389, 0
      %v1434 = vsel %vm434, %v1390, 0
      %v1437 = vsel %vm434, %v1391, 0
      %v1440 = vsel %vm434, %v1392, 0
      %v1443 = vsel %vm434, %v1393, 0
      %v1446 = vsel %vm434, %v1394, 0
      %v1449 = vsel %vm434, %v1395, 0
      %v1452 = vsel %vm434, %v1396, 0
      %v1455 = vsel %vm434, %v1397, 0
      %v1458 = vsel %vm434, %v1398, 0
      %v1461 = vsel %vm434, %v1399, 0
      %v1464 = vsel %vm434, %v1400, 0
      %v1467 = vsel %vm498, %v1402, 0
      %1469 = vmatprep.subr.bf16.mxu0 0
      %1470 = vmatpush1.bf16.msra.mxu0 0
      %1471 = vmatprep.subr.bf16.mxu0 0
      %1472 = vmatpush1.bf16.msra.mxu0 0
      %1473 = vmatprep.subr.bf16.mxu0 0
      %1474 = vmatpush1.bf16.msra.mxu0 0
      %1475 = vmatprep.subr.bf16.mxu0 0
      %1476 = vmatpush1.bf16.msra.mxu0 0
      %1477 = vmatprep.subr.bf16.mxu0 0
      %1478 = vmatpush1.bf16.msra.mxu0 0
      %1479 = vmatprep.subr.bf16.mxu0 0
      %1480 = vmatpush1.bf16.msra.mxu0 0
      %1481 = vmatprep.subr.bf16.mxu0 0
      %1482 = vmatpush1.bf16.msra.mxu0 0
      %1483 = vmatprep.subr.bf16.mxu0 0
      %1484 = vmatpush1.bf16.msra.mxu0 %v1467
      %1485 = vmatprep.subr.bf16.mxu0 0
      %1486 = vmatpush2.bf16.msra.mxu0 0
      %1487 = vmatprep.subr.bf16.mxu0 0
      %1488 = vmatpush2.bf16.msra.mxu0 0
      %1489 = vmatprep.subr.bf16.mxu0 0
      %1490 = vmatpush2.bf16.msra.mxu0 0
      %1491 = vmatprep.subr.bf16.mxu0 0
      %1492 = vmatpush2.bf16.msra.mxu0 0
      %1493 = vmatprep.subr.bf16.mxu0 0
      %1494 = vmatpush2.bf16.msra.mxu0 0
      %1495 = vmatprep.subr.bf16.mxu0 0
      %1496 = vmatpush2.bf16.msra.mxu0 0
      %1497 = vmatprep.subr.bf16.mxu0 0
      %1498 = vmatpush2.bf16.msra.mxu0 0
      %1499 = vmatprep.subr.bf16.mxu0 0
      %1500 = vmatpush2.bf16.msra.mxu0 0
      %1501 = vmatprep.mubr.bf16.mxu0 0
      %1502 = vmatmul.mubr.bf16.gmra.mxu0 %v1404
      %v1503 = vpop.f32.mrf.mxu0
      %v1504 = vadd.f32 0.0, %v1503
      %v1505 = vpop.f32.mrf.mxu0
      %v1506 = vpop.f32.mrf.mxu0
      %v1507 = vadd.f32 0.0, %v1506
      %v1508 = vpop.f32.mrf.mxu0
      %1509 = vmatprep.mubr.bf16.mxu0 0
      %1510 = vmatmul.mubr.bf16.gmra.mxu0 %v1407
      %v1511 = vpop.f32.mrf.mxu0
      %v1512 = vadd.f32 0.0, %v1511
      %v1513 = vpop.f32.mrf.mxu0
      %v1514 = vpop.f32.mrf.mxu0
      %v1515 = vadd.f32 0.0, %v1514
      %v1516 = vpop.f32.mrf.mxu0
      %1517 = vmatprep.mubr.bf16.mxu0 0
      %1518 = vmatmul.mubr.bf16.gmra.mxu0 %v1410
      %v1519 = vpop.f32.mrf.mxu0
      %v1520 = vadd.f32 0.0, %v1519
      %v1521 = vpop.f32.mrf.mxu0
      %v1522 = vpop.f32.mrf.mxu0
      %v1523 = vadd.f32 0.0, %v1522
      %v1524 = vpop.f32.mrf.mxu0
      %1525 = vmatprep.mubr.bf16.mxu0 0
      %1526 = vmatmul.mubr.bf16.gmra.mxu0 %v1413
      %v1527 = vpop.f32.mrf.mxu0
      %v1528 = vadd.f32 0.0, %v1527
      %v1529 = vpop.f32.mrf.mxu0
      %v1530 = vpop.f32.mrf.mxu0
      %v1531 = vadd.f32 0.0, %v1530
      %v1532 = vpop.f32.mrf.mxu0
      %1533 = vmatprep.mubr.bf16.mxu0 0
      %1534 = vmatmul.mubr.bf16.gmra.mxu0 %v1416
      %v1535 = vpop.f32.mrf.mxu0
      %v1536 = vadd.f32 0.0, %v1535
      %v1537 = vpop.f32.mrf.mxu0
      %v1538 = vpop.f32.mrf.mxu0
      %v1539 = vadd.f32 0.0, %v1538
      %v1540 = vpop.f32.mrf.mxu0
      %1541 = vmatprep.mubr.bf16.mxu0 0
      %1542 = vmatmul.mubr.bf16.gmra.mxu0 %v1419
      %v1543 = vpop.f32.mrf.mxu0
      %v1544 = vadd.f32 0.0, %v1543
      %v1545 = vpop.f32.mrf.mxu0
      %v1546 = vpop.f32.mrf.mxu0
      %v1547 = vadd.f32 0.0, %v1546
      %v1548 = vpop.f32.mrf.mxu0
      %1549 = vmatprep.mubr.bf16.mxu0 0
      %1550 = vmatmul.mubr.bf16.gmra.mxu0 %v1422
      %v1551 = vpop.f32.mrf.mxu0
      %v1552 = vadd.f32 0.0, %v1551
      %v1553 = vpop.f32.mrf.mxu0
      %v1554 = vpop.f32.mrf.mxu0
      %v1555 = vadd.f32 0.0, %v1554
      %v1556 = vpop.f32.mrf.mxu0
      %1557 = vmatprep.mubr.bf16.mxu0 0
      %1558 = vmatmul.mubr.bf16.gmra.mxu0 %v1425
      %v1559 = vpop.f32.mrf.mxu0
      %v1560 = vadd.f32 0.0, %v1559
      %v1561 = vpop.f32.mrf.mxu0
      %v1562 = vpop.f32.mrf.mxu0
      %v1563 = vadd.f32 0.0, %v1562
      %v1564 = vpop.f32.mrf.mxu0
      %1565 = vmatprep.mubr.bf16.mxu0 0
      %1566 = vmatmul.mubr.bf16.gmra.mxu0 %v1428
      %v1567 = vpop.f32.mrf.mxu0
      %v1568 = vadd.f32 0.0, %v1567
      %v1569 = vpop.f32.mrf.mxu0
      %v1570 = vpop.f32.mrf.mxu0
      %v1571 = vadd.f32 0.0, %v1570
      %v1572 = vpop.f32.mrf.mxu0
      %1573 = vmatprep.mubr.bf16.mxu0 0
      %1574 = vmatmul.mubr.bf16.gmra.mxu0 %v1431
      %v1575 = vpop.f32.mrf.mxu0
      %v1576 = vadd.f32 0.0, %v1575
      %v1577 = vpop.f32.mrf.mxu0
      %v1578 = vpop.f32.mrf.mxu0
      %v1579 = vadd.f32 0.0, %v1578
      %v1580 = vpop.f32.mrf.mxu0
      %1581 = vmatprep.mubr.bf16.mxu0 0
      %1582 = vmatmul.mubr.bf16.gmra.mxu0 %v1434
      %v1583 = vpop.f32.mrf.mxu0
      %v1584 = vadd.f32 0.0, %v1583
      %v1585 = vpop.f32.mrf.mxu0
      %v1586 = vpop.f32.mrf.mxu0
      %v1587 = vadd.f32 0.0, %v1586
      %v1588 = vpop.f32.mrf.mxu0
      %1589 = vmatprep.mubr.bf16.mxu0 0
      %1590 = vmatmul.mubr.bf16.gmra.mxu0 %v1437
      %v1591 = vpop.f32.mrf.mxu0
      %v1592 = vadd.f32 0.0, %v1591
      %v1593 = vpop.f32.mrf.mxu0
      %v1594 = vpop.f32.mrf.mxu0
      %v1595 = vadd.f32 0.0, %v1594
      %v1596 = vpop.f32.mrf.mxu0
      %1597 = vmatprep.mubr.bf16.mxu0 0
      %1598 = vmatmul.mubr.bf16.gmra.mxu0 %v1440
      %v1599 = vpop.f32.mrf.mxu0
      %v1600 = vadd.f32 0.0, %v1599
      %v1601 = vpop.f32.mrf.mxu0
      %v1602 = vpop.f32.mrf.mxu0
      %v1603 = vadd.f32 0.0, %v1602
      %v1604 = vpop.f32.mrf.mxu0
      %1605 = vmatprep.mubr.bf16.mxu0 0
      %1606 = vmatmul.mubr.bf16.gmra.mxu0 %v1443
      %v1607 = vpop.f32.mrf.mxu0
      %v1608 = vadd.f32 0.0, %v1607
      %v1609 = vpop.f32.mrf.mxu0
      %v1610 = vpop.f32.mrf.mxu0
      %v1611 = vadd.f32 0.0, %v1610
      %v1612 = vpop.f32.mrf.mxu0
      %1613 = vmatprep.mubr.bf16.mxu0 0
      %1614 = vmatmul.mubr.bf16.gmra.mxu0 %v1446
      %v1615 = vpop.f32.mrf.mxu0
      %v1616 = vadd.f32 0.0, %v1615
      %v1617 = vpop.f32.mrf.mxu0
      %v1618 = vpop.f32.mrf.mxu0
      %v1619 = vadd.f32 0.0, %v1618
      %v1620 = vpop.f32.mrf.mxu0
      %1621 = vmatprep.mubr.bf16.mxu0 0
      %1622 = vmatmul.mubr.bf16.gmra.mxu0 %v1449
      %v1623 = vpop.f32.mrf.mxu0
      %v1624 = vadd.f32 0.0, %v1623
      %v1625 = vpop.f32.mrf.mxu0
      %v1626 = vpop.f32.mrf.mxu0
      %v1627 = vadd.f32 0.0, %v1626
      %v1628 = vpop.f32.mrf.mxu0
      %1629 = vmatprep.mubr.bf16.mxu0 0
      %1630 = vmatmul.mubr.bf16.gmra.mxu0 %v1452
      %v1631 = vpop.f32.mrf.mxu0
      %v1632 = vadd.f32 0.0, %v1631
      %v1633 = vpop.f32.mrf.mxu0
      %v1634 = vpop.f32.mrf.mxu0
      %v1635 = vadd.f32 0.0, %v1634
      %v1636 = vpop.f32.mrf.mxu0
      %1637 = vmatprep.mubr.bf16.mxu0 0
      %1638 = vmatmul.mubr.bf16.gmra.mxu0 %v1455
      %v1639 = vpop.f32.mrf.mxu0
      %v1640 = vadd.f32 0.0, %v1639
      %v1641 = vpop.f32.mrf.mxu0
      %v1642 = vpop.f32.mrf.mxu0
      %v1643 = vadd.f32 0.0, %v1642
      %v1644 = vpop.f32.mrf.mxu0
      %1645 = vmatprep.mubr.bf16.mxu0 0
      %1646 = vmatmul.mubr.bf16.gmra.mxu0 %v1458
      %v1647 = vpop.f32.mrf.mxu0
      %v1648 = vadd.f32 0.0, %v1647
      %v1649 = vpop.f32.mrf.mxu0
      %v1650 = vpop.f32.mrf.mxu0
      %v1651 = vadd.f32 0.0, %v1650
      %v1652 = vpop.f32.mrf.mxu0
      %1653 = vmatprep.mubr.bf16.mxu0 0
      %1654 = vmatmul.mubr.bf16.gmra.mxu0 %v1461
      %v1655 = vpop.f32.mrf.mxu0
      %v1656 = vadd.f32 0.0, %v1655
      %v1657 = vpop.f32.mrf.mxu0
      %v1658 = vpop.f32.mrf.mxu0
      %v1659 = vadd.f32 0.0, %v1658
      %v1660 = vpop.f32.mrf.mxu0
      %1661 = vmatprep.mubr.bf16.mxu0 0
      %1662 = vmatmul.mubr.bf16.gmra.mxu0 %v1464
      %v1663 = vpop.f32.mrf.mxu0
      %v1664 = vadd.f32 0.0, %v1663
      %v1665 = vpop.f32.mrf.mxu0
      %v1666 = vpop.f32.mrf.mxu0
      %v1667 = vpop.f32.mrf.mxu0
      %1668 = vdwg.mxu0
      %v1669 = vadd.f32 %v1298, %v1504
      %v1670 = vadd.f32 %v1299, %v1507
      %v1671 = vadd.f32 %v1300, %v1512
      %v1672 = vadd.f32 %v1301, %v1515
      %v1673 = vadd.f32 %v1302, %v1520
      %v1674 = vadd.f32 %v1303, %v1523
      %v1675 = vadd.f32 %v1304, %v1528
      %v1676 = vadd.f32 %v1305, %v1531
      %v1677 = vadd.f32 %v1306, %v1536
      %v1678 = vadd.f32 %v1307, %v1539
      %v1679 = vadd.f32 %v1308, %v1544
      %v1680 = vadd.f32 %v1309, %v1547
      %v1681 = vadd.f32 %v1310, %v1552
      %v1682 = vadd.f32 %v1311, %v1555
      %v1683 = vadd.f32 %v1312, %v1560
      %v1684 = vadd.f32 %v1313, %v1563
      %v1685 = vadd.f32 %v1314, %v1568
      %v1686 = vadd.f32 %v1315, %v1571
      %v1687 = vadd.f32 %v1316, %v1576
      %v1688 = vadd.f32 %v1317, %v1579
      %v1689 = vadd.f32 %v1318, %v1584
      %v1690 = vadd.f32 %v1319, %v1587
      %v1691 = vadd.f32 %v1320, %v1592
      %v1692 = vadd.f32 %v1321, %v1595
      %v1693 = vadd.f32 %v1322, %v1600
      %v1694 = vadd.f32 %v1323, %v1603
      %v1695 = vadd.f32 %v1324, %v1608
      %v1696 = vadd.f32 %v1325, %v1611
      %v1697 = vadd.f32 %v1326, %v1616
      %v1698 = vadd.f32 %v1327, %v1619
      %v1699 = vadd.f32 %v1328, %v1624
      %v1700 = vadd.f32 %v1329, %v1627
      %v1701 = vadd.f32 %v1330, %v1632
      %v1702 = vadd.f32 %v1331, %v1635
      %v1703 = vadd.f32 %v1332, %v1640
      %v1704 = vadd.f32 %v1333, %v1643
      %v1705 = vadd.f32 %v1334, %v1648
      %v1706 = vadd.f32 %v1335, %v1651
      %v1707 = vadd.f32 %v1336, %v1656
      %v1708 = vadd.f32 %v1337, %v1659
      %v1709 = vadd.f32 %v1338, %v1664
      %v1710 = vld [vmem:[%s300 + $0x13] sm:$0xff]
      %v1711 = vld [vmem:[%s300 + $0x1b] sm:$0xff]
      %v1712 = vld [vmem:[%s300 + $0x23] sm:$0xff]
      %v1713 = vld [vmem:[%s300 + $0x2b] sm:$0xff]
      %v1714 = vld [vmem:[%s300 + $0x33] sm:$0xff]
      %v1715 = vld [vmem:[%s300 + $0x3b] sm:$0xff]
      %v1716 = vld [vmem:[%s300 + $0x43] sm:$0xff]
      %v1717 = vld [vmem:[%s300 + $0x4b] sm:$0xff]
      %v1718 = vld [vmem:[%s300 + $0x53] sm:$0xff]
      %v1719 = vld [vmem:[%s300 + $0x5b] sm:$0xff]
      %v1720 = vld [vmem:[%s300 + $0x63] sm:$0xff]
      %v1721 = vld [vmem:[%s300 + $0x6b] sm:$0xff]
      %v1722 = vld [vmem:[%s300 + $0x73] sm:$0xff]
      %v1723 = vld [vmem:[%s300 + $0x7b] sm:$0xff]
      %v1724 = vld [vmem:[%s300 + $0x83] sm:$0xff]
      %v1725 = vld [vmem:[%s300 + $0x8b] sm:$0xff]
      %v1726 = vld [vmem:[%s300 + $0x93] sm:$0xff]
      %v1727 = vld [vmem:[%s300 + $0x9b] sm:$0xff]
      %v1728 = vld [vmem:[%s300 + $0xa3] sm:$0xff]
      %v1729 = vld [vmem:[%s300 + $0xab] sm:$0xff]
      %v1730 = vld [vmem:[%s300 + $0xb3] sm:$0xff]
      %v1731 = vld [vmem:[%s300 + $0xbb] sm:$0xff]
      %v1732 = vld [vmem:[%s300 + $0xc3] sm:$0xff]
      %v1733 = vld [vmem:[%s300 + $0xcb] sm:$0xff]
      %v1734 = vld [vmem:[%s300 + $0xd3] sm:$0xff]
      %v1735 = vld [vmem:[%s300 + $0xdb] sm:$0xff]
      %v1736 = vld [vmem:[%s300 + $0xe3] sm:$0xff]
      %v1737 = vld [vmem:[%s300 + $0xeb] sm:$0xff]
      %v1738 = vld [vmem:[%s300 + $0xf3] sm:$0xff]
      %v1739 = vld [vmem:[%s300 + $0xfb] sm:$0xff]
      %v1740 = vld [vmem:[%s300 + $0x103] sm:$0xff]
      %v1741 = vld [vmem:[%s300 + $0x10b] sm:$0xff]
      %v1742 = vld [vmem:[%s300 + $0x113] sm:$0xff]
      %v1743 = vld [vmem:[%s300 + $0x11b] sm:$0xff]
      %v1744 = vld [vmem:[%s300 + $0x123] sm:$0xff]
      %v1745 = vld [vmem:[%s300 + $0x12b] sm:$0xff]
      %v1746 = vld [vmem:[%s300 + $0x133] sm:$0xff]
      %v1747 = vld [vmem:[%s300 + $0x13b] sm:$0xff]
      %v1748 = vld [vmem:[%s300 + $0x143] sm:$0xff]
      %v1749 = vld [vmem:[%s300 + $0x14b] sm:$0xff]
      %v1750 = vld [vmem:[%s300 + $0x153] sm:$0xff]
      %v1751 = vpack.c.bf16 %v1711, %v1710
      %v1752 = vpack.c.bf16 %v1713, %v1712
      %v1753 = vpack.c.bf16 %v1715, %v1714
      %v1754 = vpack.c.bf16 %v1717, %v1716
      %v1755 = vpack.c.bf16 %v1719, %v1718
      %v1756 = vpack.c.bf16 %v1721, %v1720
      %v1757 = vpack.c.bf16 %v1723, %v1722
      %v1758 = vpack.c.bf16 %v1725, %v1724
      %v1759 = vpack.c.bf16 %v1727, %v1726
      %v1760 = vpack.c.bf16 %v1729, %v1728
      %v1761 = vpack.c.bf16 %v1731, %v1730
      %v1762 = vpack.c.bf16 %v1733, %v1732
      %v1763 = vpack.c.bf16 %v1735, %v1734
      %v1764 = vpack.c.bf16 %v1737, %v1736
      %v1765 = vpack.c.bf16 %v1739, %v1738
      %v1766 = vpack.c.bf16 %v1741, %v1740
      %v1767 = vpack.c.bf16 %v1743, %v1742
      %v1768 = vpack.c.bf16 %v1745, %v1744
      %v1769 = vpack.c.bf16 %v1747, %v1746
      %v1770 = vpack.c.bf16 %v1749, %v1748
      %v1771 = vpack.c.bf16 %v1750, %v1750
      %s1772 = scalar_lea.vmem %s1, 8
      %v1773 = vld [vmem:[%s1772] sm:$0x3]
      %v1775 = vsel %vm434, %v1751, 0
      %v1778 = vsel %vm434, %v1752, 0
      %v1781 = vsel %vm434, %v1753, 0
      %v1784 = vsel %vm434, %v1754, 0
      %v1787 = vsel %vm434, %v1755, 0
      %v1790 = vsel %vm434, %v1756, 0
      %v1793 = vsel %vm434, %v1757, 0
      %v1796 = vsel %vm434, %v1758, 0
      %v1799 = vsel %vm434, %v1759, 0
      %v1802 = vsel %vm434, %v1760, 0
      %v1805 = vsel %vm434, %v1761, 0
      %v1808 = vsel %vm434, %v1762, 0
      %v1811 = vsel %vm434, %v1763, 0
      %v1814 = vsel %vm434, %v1764, 0
      %v1817 = vsel %vm434, %v1765, 0
      %v1820 = vsel %vm434, %v1766, 0
      %v1823 = vsel %vm434, %v1767, 0
      %v1826 = vsel %vm434, %v1768, 0
      %v1829 = vsel %vm434, %v1769, 0
      %v1832 = vsel %vm434, %v1770, 0
      %v1835 = vsel %vm434, %v1771, 0
      %v1838 = vsel %vm498, %v1773, 0
      %1840 = vmatprep.subr.bf16.mxu0 0
      %1841 = vmatpush1.bf16.msra.mxu0 0
      %1842 = vmatprep.subr.bf16.mxu0 0
      %1843 = vmatpush1.bf16.msra.mxu0 0
      %1844 = vmatprep.subr.bf16.mxu0 0
      %1845 = vmatpush1.bf16.msra.mxu0 0
      %1846 = vmatprep.subr.bf16.mxu0 0
      %1847 = vmatpush1.bf16.msra.mxu0 0
      %1848 = vmatprep.subr.bf16.mxu0 0
      %1849 = vmatpush1.bf16.msra.mxu0 0
      %1850 = vmatprep.subr.bf16.mxu0 0
      %1851 = vmatpush1.bf16.msra.mxu0 0
      %1852 = vmatprep.subr.bf16.mxu0 0
      %1853 = vmatpush1.bf16.msra.mxu0 0
      %1854 = vmatprep.subr.bf16.mxu0 0
      %1855 = vmatpush1.bf16.msra.mxu0 %v1838
      %1856 = vmatprep.subr.bf16.mxu0 0
      %1857 = vmatpush2.bf16.msra.mxu0 0
      %1858 = vmatprep.subr.bf16.mxu0 0
      %1859 = vmatpush2.bf16.msra.mxu0 0
      %1860 = vmatprep.subr.bf16.mxu0 0
      %1861 = vmatpush2.bf16.msra.mxu0 0
      %1862 = vmatprep.subr.bf16.mxu0 0
      %1863 = vmatpush2.bf16.msra.mxu0 0
      %1864 = vmatprep.subr.bf16.mxu0 0
      %1865 = vmatpush2.bf16.msra.mxu0 0
      %1866 = vmatprep.subr.bf16.mxu0 0
      %1867 = vmatpush2.bf16.msra.mxu0 0
      %1868 = vmatprep.subr.bf16.mxu0 0
      %1869 = vmatpush2.bf16.msra.mxu0 0
      %1870 = vmatprep.subr.bf16.mxu0 0
      %1871 = vmatpush2.bf16.msra.mxu0 0
      %1872 = vmatprep.mubr.bf16.mxu0 0
      %1873 = vmatmul.mubr.bf16.gmra.mxu0 %v1775
      %v1874 = vpop.f32.mrf.mxu0
      %v1875 = vadd.f32 0.0, %v1874
      %v1876 = vpop.f32.mrf.mxu0
      %v1877 = vpop.f32.mrf.mxu0
      %v1878 = vadd.f32 0.0, %v1877
      %v1879 = vpop.f32.mrf.mxu0
      %1880 = vmatprep.mubr.bf16.mxu0 0
      %1881 = vmatmul.mubr.bf16.gmra.mxu0 %v1778
      %v1882 = vpop.f32.mrf.mxu0
      %v1883 = vadd.f32 0.0, %v1882
      %v1884 = vpop.f32.mrf.mxu0
      %v1885 = vpop.f32.mrf.mxu0
      %v1886 = vadd.f32 0.0, %v1885
      %v1887 = vpop.f32.mrf.mxu0
      %1888 = vmatprep.mubr.bf16.mxu0 0
      %1889 = vmatmul.mubr.bf16.gmra.mxu0 %v1781
      %v1890 = vpop.f32.mrf.mxu0
      %v1891 = vadd.f32 0.0, %v1890
      %v1892 = vpop.f32.mrf.mxu0
      %v1893 = vpop.f32.mrf.mxu0
      %v1894 = vadd.f32 0.0, %v1893
      %v1895 = vpop.f32.mrf.mxu0
      %1896 = vmatprep.mubr.bf16.mxu0 0
      %1897 = vmatmul.mubr.bf16.gmra.mxu0 %v1784
      %v1898 = vpop.f32.mrf.mxu0
      %v1899 = vadd.f32 0.0, %v1898
      %v1900 = vpop.f32.mrf.mxu0
      %v1901 = vpop.f32.mrf.mxu0
      %v1902 = vadd.f32 0.0, %v1901
      %v1903 = vpop.f32.mrf.mxu0
      %1904 = vmatprep.mubr.bf16.mxu0 0
      %1905 = vmatmul.mubr.bf16.gmra.mxu0 %v1787
      %v1906 = vpop.f32.mrf.mxu0
      %v1907 = vadd.f32 0.0, %v1906
      %v1908 = vpop.f32.mrf.mxu0
      %v1909 = vpop.f32.mrf.mxu0
      %v1910 = vadd.f32 0.0, %v1909
      %v1911 = vpop.f32.mrf.mxu0
      %1912 = vmatprep.mubr.bf16.mxu0 0
      %1913 = vmatmul.mubr.bf16.gmra.mxu0 %v1790
      %v1914 = vpop.f32.mrf.mxu0
      %v1915 = vadd.f32 0.0, %v1914
      %v1916 = vpop.f32.mrf.mxu0
      %v1917 = vpop.f32.mrf.mxu0
      %v1918 = vadd.f32 0.0, %v1917
      %v1919 = vpop.f32.mrf.mxu0
      %1920 = vmatprep.mubr.bf16.mxu0 0
      %1921 = vmatmul.mubr.bf16.gmra.mxu0 %v1793
      %v1922 = vpop.f32.mrf.mxu0
      %v1923 = vadd.f32 0.0, %v1922
      %v1924 = vpop.f32.mrf.mxu0
      %v1925 = vpop.f32.mrf.mxu0
      %v1926 = vadd.f32 0.0, %v1925
      %v1927 = vpop.f32.mrf.mxu0
      %1928 = vmatprep.mubr.bf16.mxu0 0
      %1929 = vmatmul.mubr.bf16.gmra.mxu0 %v1796
      %v1930 = vpop.f32.mrf.mxu0
      %v1931 = vadd.f32 0.0, %v1930
      %v1932 = vpop.f32.mrf.mxu0
      %v1933 = vpop.f32.mrf.mxu0
      %v1934 = vadd.f32 0.0, %v1933
      %v1935 = vpop.f32.mrf.mxu0
      %1936 = vmatprep.mubr.bf16.mxu0 0
      %1937 = vmatmul.mubr.bf16.gmra.mxu0 %v1799
      %v1938 = vpop.f32.mrf.mxu0
      %v1939 = vadd.f32 0.0, %v1938
      %v1940 = vpop.f32.mrf.mxu0
      %v1941 = vpop.f32.mrf.mxu0
      %v1942 = vadd.f32 0.0, %v1941
      %v1943 = vpop.f32.mrf.mxu0
      %1944 = vmatprep.mubr.bf16.mxu0 0
      %1945 = vmatmul.mubr.bf16.gmra.mxu0 %v1802
      %v1946 = vpop.f32.mrf.mxu0
      %v1947 = vadd.f32 0.0, %v1946
      %v1948 = vpop.f32.mrf.mxu0
      %v1949 = vpop.f32.mrf.mxu0
      %v1950 = vadd.f32 0.0, %v1949
      %v1951 = vpop.f32.mrf.mxu0
      %1952 = vmatprep.mubr.bf16.mxu0 0
      %1953 = vmatmul.mubr.bf16.gmra.mxu0 %v1805
      %v1954 = vpop.f32.mrf.mxu0
      %v1955 = vadd.f32 0.0, %v1954
      %v1956 = vpop.f32.mrf.mxu0
      %v1957 = vpop.f32.mrf.mxu0
      %v1958 = vadd.f32 0.0, %v1957
      %v1959 = vpop.f32.mrf.mxu0
      %1960 = vmatprep.mubr.bf16.mxu0 0
      %1961 = vmatmul.mubr.bf16.gmra.mxu0 %v1808
      %v1962 = vpop.f32.mrf.mxu0
      %v1963 = vadd.f32 0.0, %v1962
      %v1964 = vpop.f32.mrf.mxu0
      %v1965 = vpop.f32.mrf.mxu0
      %v1966 = vadd.f32 0.0, %v1965
      %v1967 = vpop.f32.mrf.mxu0
      %1968 = vmatprep.mubr.bf16.mxu0 0
      %1969 = vmatmul.mubr.bf16.gmra.mxu0 %v1811
      %v1970 = vpop.f32.mrf.mxu0
      %v1971 = vadd.f32 0.0, %v1970
      %v1972 = vpop.f32.mrf.mxu0
      %v1973 = vpop.f32.mrf.mxu0
      %v1974 = vadd.f32 0.0, %v1973
      %v1975 = vpop.f32.mrf.mxu0
      %1976 = vmatprep.mubr.bf16.mxu0 0
      %1977 = vmatmul.mubr.bf16.gmra.mxu0 %v1814
      %v1978 = vpop.f32.mrf.mxu0
      %v1979 = vadd.f32 0.0, %v1978
      %v1980 = vpop.f32.mrf.mxu0
      %v1981 = vpop.f32.mrf.mxu0
      %v1982 = vadd.f32 0.0, %v1981
      %v1983 = vpop.f32.mrf.mxu0
      %1984 = vmatprep.mubr.bf16.mxu0 0
      %1985 = vmatmul.mubr.bf16.gmra.mxu0 %v1817
      %v1986 = vpop.f32.mrf.mxu0
      %v1987 = vadd.f32 0.0, %v1986
      %v1988 = vpop.f32.mrf.mxu0
      %v1989 = vpop.f32.mrf.mxu0
      %v1990 = vadd.f32 0.0, %v1989
      %v1991 = vpop.f32.mrf.mxu0
      %1992 = vmatprep.mubr.bf16.mxu0 0
      %1993 = vmatmul.mubr.bf16.gmra.mxu0 %v1820
      %v1994 = vpop.f32.mrf.mxu0
      %v1995 = vadd.f32 0.0, %v1994
      %v1996 = vpop.f32.mrf.mxu0
      %v1997 = vpop.f32.mrf.mxu0
      %v1998 = vadd.f32 0.0, %v1997
      %v1999 = vpop.f32.mrf.mxu0
      %2000 = vmatprep.mubr.bf16.mxu0 0
      %2001 = vmatmul.mubr.bf16.gmra.mxu0 %v1823
      %v2002 = vpop.f32.mrf.mxu0
      %v2003 = vadd.f32 0.0, %v2002
      %v2004 = vpop.f32.mrf.mxu0
      %v2005 = vpop.f32.mrf.mxu0
      %v2006 = vadd.f32 0.0, %v2005
      %v2007 = vpop.f32.mrf.mxu0
      %2008 = vmatprep.mubr.bf16.mxu0 0
      %2009 = vmatmul.mubr.bf16.gmra.mxu0 %v1826
      %v2010 = vpop.f32.mrf.mxu0
      %v2011 = vadd.f32 0.0, %v2010
      %v2012 = vpop.f32.mrf.mxu0
      %v2013 = vpop.f32.mrf.mxu0
      %v2014 = vadd.f32 0.0, %v2013
      %v2015 = vpop.f32.mrf.mxu0
      %2016 = vmatprep.mubr.bf16.mxu0 0
      %2017 = vmatmul.mubr.bf16.gmra.mxu0 %v1829
      %v2018 = vpop.f32.mrf.mxu0
      %v2019 = vadd.f32 0.0, %v2018
      %v2020 = vpop.f32.mrf.mxu0
      %v2021 = vpop.f32.mrf.mxu0
      %v2022 = vadd.f32 0.0, %v2021
      %v2023 = vpop.f32.mrf.mxu0
      %2024 = vmatprep.mubr.bf16.mxu0 0
      %2025 = vmatmul.mubr.bf16.gmra.mxu0 %v1832
      %v2026 = vpop.f32.mrf.mxu0
      %v2027 = vadd.f32 0.0, %v2026
      %v2028 = vpop.f32.mrf.mxu0
      %v2029 = vpop.f32.mrf.mxu0
      %v2030 = vadd.f32 0.0, %v2029
      %v2031 = vpop.f32.mrf.mxu0
      %2032 = vmatprep.mubr.bf16.mxu0 0
      %2033 = vmatmul.mubr.bf16.gmra.mxu0 %v1835
      %v2034 = vpop.f32.mrf.mxu0
      %v2035 = vadd.f32 0.0, %v2034
      %v2036 = vpop.f32.mrf.mxu0
      %v2037 = vpop.f32.mrf.mxu0
      %v2038 = vpop.f32.mrf.mxu0
      %2039 = vdwg.mxu0
      %v2040 = vadd.f32 %v1669, %v1875
      %v2041 = vadd.f32 %v1670, %v1878
      %v2042 = vadd.f32 %v1671, %v1883
      %v2043 = vadd.f32 %v1672, %v1886
      %v2044 = vadd.f32 %v1673, %v1891
      %v2045 = vadd.f32 %v1674, %v1894
      %v2046 = vadd.f32 %v1675, %v1899
      %v2047 = vadd.f32 %v1676, %v1902
      %v2048 = vadd.f32 %v1677, %v1907
      %v2049 = vadd.f32 %v1678, %v1910
      %v2050 = vadd.f32 %v1679, %v1915
      %v2051 = vadd.f32 %v1680, %v1918
      %v2052 = vadd.f32 %v1681, %v1923
      %v2053 = vadd.f32 %v1682, %v1926
      %v2054 = vadd.f32 %v1683, %v1931
      %v2055 = vadd.f32 %v1684, %v1934
      %v2056 = vadd.f32 %v1685, %v1939
      %v2057 = vadd.f32 %v1686, %v1942
      %v2058 = vadd.f32 %v1687, %v1947
      %v2059 = vadd.f32 %v1688, %v1950
      %v2060 = vadd.f32 %v1689, %v1955
      %v2061 = vadd.f32 %v1690, %v1958
      %v2062 = vadd.f32 %v1691, %v1963
      %v2063 = vadd.f32 %v1692, %v1966
      %v2064 = vadd.f32 %v1693, %v1971
      %v2065 = vadd.f32 %v1694, %v1974
      %v2066 = vadd.f32 %v1695, %v1979
      %v2067 = vadd.f32 %v1696, %v1982
      %v2068 = vadd.f32 %v1697, %v1987
      %v2069 = vadd.f32 %v1698, %v1990
      %v2070 = vadd.f32 %v1699, %v1995
      %v2071 = vadd.f32 %v1700, %v1998
      %v2072 = vadd.f32 %v1701, %v2003
      %v2073 = vadd.f32 %v1702, %v2006
      %v2074 = vadd.f32 %v1703, %v2011
      %v2075 = vadd.f32 %v1704, %v2014
      %v2076 = vadd.f32 %v1705, %v2019
      %v2077 = vadd.f32 %v1706, %v2022
      %v2078 = vadd.f32 %v1707, %v2027
      %v2079 = vadd.f32 %v1708, %v2030
      %v2080 = vadd.f32 %v1709, %v2035
      %v2081 = vld [vmem:[%s300 + $0x14] sm:$0xff]
      %v2082 = vld [vmem:[%s300 + $0x1c] sm:$0xff]
      %v2083 = vld [vmem:[%s300 + $0x24] sm:$0xff]
      %v2084 = vld [vmem:[%s300 + $0x2c] sm:$0xff]
      %v2085 = vld [vmem:[%s300 + $0x34] sm:$0xff]
      %v2086 = vld [vmem:[%s300 + $0x3c] sm:$0xff]
      %v2087 = vld [vmem:[%s300 + $0x44] sm:$0xff]
      %v2088 = vld [vmem:[%s300 + $0x4c] sm:$0xff]
      %v2089 = vld [vmem:[%s300 + $0x54] sm:$0xff]
      %v2090 = vld [vmem:[%s300 + $0x5c] sm:$0xff]
      %v2091 = vld [vmem:[%s300 + $0x64] sm:$0xff]
      %v2092 = vld [vmem:[%s300 + $0x6c] sm:$0xff]
      %v2093 = vld [vmem:[%s300 + $0x74] sm:$0xff]
      %v2094 = vld [vmem:[%s300 + $0x7c] sm:$0xff]
      %v2095 = vld [vmem:[%s300 + $0x84] sm:$0xff]
      %v2096 = vld [vmem:[%s300 + $0x8c] sm:$0xff]
      %v2097 = vld [vmem:[%s300 + $0x94] sm:$0xff]
      %v2098 = vld [vmem:[%s300 + $0x9c] sm:$0xff]
      %v2099 = vld [vmem:[%s300 + $0xa4] sm:$0xff]
      %v2100 = vld [vmem:[%s300 + $0xac] sm:$0xff]
      %v2101 = vld [vmem:[%s300 + $0xb4] sm:$0xff]
      %v2102 = vld [vmem:[%s300 + $0xbc] sm:$0xff]
      %v2103 = vld [vmem:[%s300 + $0xc4] sm:$0xff]
      %v2104 = vld [vmem:[%s300 + $0xcc] sm:$0xff]
      %v2105 = vld [vmem:[%s300 + $0xd4] sm:$0xff]
      %v2106 = vld [vmem:[%s300 + $0xdc] sm:$0xff]
      %v2107 = vld [vmem:[%s300 + $0xe4] sm:$0xff]
      %v2108 = vld [vmem:[%s300 + $0xec] sm:$0xff]
      %v2109 = vld [vmem:[%s300 + $0xf4] sm:$0xff]
      %v2110 = vld [vmem:[%s300 + $0xfc] sm:$0xff]
      %v2111 = vld [vmem:[%s300 + $0x104] sm:$0xff]
      %v2112 = vld [vmem:[%s300 + $0x10c] sm:$0xff]
      %v2113 = vld [vmem:[%s300 + $0x114] sm:$0xff]
      %v2114 = vld [vmem:[%s300 + $0x11c] sm:$0xff]
      %v2115 = vld [vmem:[%s300 + $0x124] sm:$0xff]
      %v2116 = vld [vmem:[%s300 + $0x12c] sm:$0xff]
      %v2117 = vld [vmem:[%s300 + $0x134] sm:$0xff]
      %v2118 = vld [vmem:[%s300 + $0x13c] sm:$0xff]
      %v2119 = vld [vmem:[%s300 + $0x144] sm:$0xff]
      %v2120 = vld [vmem:[%s300 + $0x14c] sm:$0xff]
      %v2121 = vld [vmem:[%s300 + $0x154] sm:$0xff]
      %v2122 = vpack.c.bf16 %v2082, %v2081
      %v2123 = vpack.c.bf16 %v2084, %v2083
      %v2124 = vpack.c.bf16 %v2086, %v2085
      %v2125 = vpack.c.bf16 %v2088, %v2087
      %v2126 = vpack.c.bf16 %v2090, %v2089
      %v2127 = vpack.c.bf16 %v2092, %v2091
      %v2128 = vpack.c.bf16 %v2094, %v2093
      %v2129 = vpack.c.bf16 %v2096, %v2095
      %v2130 = vpack.c.bf16 %v2098, %v2097
      %v2131 = vpack.c.bf16 %v2100, %v2099
      %v2132 = vpack.c.bf16 %v2102, %v2101
      %v2133 = vpack.c.bf16 %v2104, %v2103
      %v2134 = vpack.c.bf16 %v2106, %v2105
      %v2135 = vpack.c.bf16 %v2108, %v2107
      %v2136 = vpack.c.bf16 %v2110, %v2109
      %v2137 = vpack.c.bf16 %v2112, %v2111
      %v2138 = vpack.c.bf16 %v2114, %v2113
      %v2139 = vpack.c.bf16 %v2116, %v2115
      %v2140 = vpack.c.bf16 %v2118, %v2117
      %v2141 = vpack.c.bf16 %v2120, %v2119
      %v2142 = vpack.c.bf16 %v2121, %v2121
      %s2143 = scalar_lea.vmem %s1, 10
      %v2144 = vld [vmem:[%s2143] sm:$0x3]
      %v2146 = vsel %vm434, %v2122, 0
      %v2149 = vsel %vm434, %v2123, 0
      %v2152 = vsel %vm434, %v2124, 0
      %v2155 = vsel %vm434, %v2125, 0
      %v2158 = vsel %vm434, %v2126, 0
      %v2161 = vsel %vm434, %v2127, 0
      %v2164 = vsel %vm434, %v2128, 0
      %v2167 = vsel %vm434, %v2129, 0
      %v2170 = vsel %vm434, %v2130, 0
      %v2173 = vsel %vm434, %v2131, 0
      %v2176 = vsel %vm434, %v2132, 0
      %v2179 = vsel %vm434, %v2133, 0
      %v2182 = vsel %vm434, %v2134, 0
      %v2185 = vsel %vm434, %v2135, 0
      %v2188 = vsel %vm434, %v2136, 0
      %v2191 = vsel %vm434, %v2137, 0
      %v2194 = vsel %vm434, %v2138, 0
      %v2197 = vsel %vm434, %v2139, 0
      %v2200 = vsel %vm434, %v2140, 0
      %v2203 = vsel %vm434, %v2141, 0
      %v2206 = vsel %vm434, %v2142, 0
      %v2209 = vsel %vm498, %v2144, 0
      %2211 = vmatprep.subr.bf16.mxu0 0
      %2212 = vmatpush1.bf16.msra.mxu0 0
      %2213 = vmatprep.subr.bf16.mxu0 0
      %2214 = vmatpush1.bf16.msra.mxu0 0
      %2215 = vmatprep.subr.bf16.mxu0 0
      %2216 = vmatpush1.bf16.msra.mxu0 0
      %2217 = vmatprep.subr.bf16.mxu0 0
      %2218 = vmatpush1.bf16.msra.mxu0 0
      %2219 = vmatprep.subr.bf16.mxu0 0
      %2220 = vmatpush1.bf16.msra.mxu0 0
      %2221 = vmatprep.subr.bf16.mxu0 0
      %2222 = vmatpush1.bf16.msra.mxu0 0
      %2223 = vmatprep.subr.bf16.mxu0 0
      %2224 = vmatpush1.bf16.msra.mxu0 0
      %2225 = vmatprep.subr.bf16.mxu0 0
      %2226 = vmatpush1.bf16.msra.mxu0 %v2209
      %2227 = vmatprep.subr.bf16.mxu0 0
      %2228 = vmatpush2.bf16.msra.mxu0 0
      %2229 = vmatprep.subr.bf16.mxu0 0
      %2230 = vmatpush2.bf16.msra.mxu0 0
      %2231 = vmatprep.subr.bf16.mxu0 0
      %2232 = vmatpush2.bf16.msra.mxu0 0
      %2233 = vmatprep.subr.bf16.mxu0 0
      %2234 = vmatpush2.bf16.msra.mxu0 0
      %2235 = vmatprep.subr.bf16.mxu0 0
      %2236 = vmatpush2.bf16.msra.mxu0 0
      %2237 = vmatprep.subr.bf16.mxu0 0
      %2238 = vmatpush2.bf16.msra.mxu0 0
      %2239 = vmatprep.subr.bf16.mxu0 0
      %2240 = vmatpush2.bf16.msra.mxu0 0
      %2241 = vmatprep.subr.bf16.mxu0 0
      %2242 = vmatpush2.bf16.msra.mxu0 0
      %2243 = vmatprep.mubr.bf16.mxu0 0
      %2244 = vmatmul.mubr.bf16.gmra.mxu0 %v2146
      %v2245 = vpop.f32.mrf.mxu0
      %v2246 = vadd.f32 0.0, %v2245
      %v2247 = vpop.f32.mrf.mxu0
      %v2248 = vpop.f32.mrf.mxu0
      %v2249 = vadd.f32 0.0, %v2248
      %v2250 = vpop.f32.mrf.mxu0
      %2251 = vmatprep.mubr.bf16.mxu0 0
      %2252 = vmatmul.mubr.bf16.gmra.mxu0 %v2149
      %v2253 = vpop.f32.mrf.mxu0
      %v2254 = vadd.f32 0.0, %v2253
      %v2255 = vpop.f32.mrf.mxu0
      %v2256 = vpop.f32.mrf.mxu0
      %v2257 = vadd.f32 0.0, %v2256
      %v2258 = vpop.f32.mrf.mxu0
      %2259 = vmatprep.mubr.bf16.mxu0 0
      %2260 = vmatmul.mubr.bf16.gmra.mxu0 %v2152
      %v2261 = vpop.f32.mrf.mxu0
      %v2262 = vadd.f32 0.0, %v2261
      %v2263 = vpop.f32.mrf.mxu0
      %v2264 = vpop.f32.mrf.mxu0
      %v2265 = vadd.f32 0.0, %v2264
      %v2266 = vpop.f32.mrf.mxu0
      %2267 = vmatprep.mubr.bf16.mxu0 0
      %2268 = vmatmul.mubr.bf16.gmra.mxu0 %v2155
      %v2269 = vpop.f32.mrf.mxu0
      %v2270 = vadd.f32 0.0, %v2269
      %v2271 = vpop.f32.mrf.mxu0
      %v2272 = vpop.f32.mrf.mxu0
      %v2273 = vadd.f32 0.0, %v2272
      %v2274 = vpop.f32.mrf.mxu0
      %2275 = vmatprep.mubr.bf16.mxu0 0
      %2276 = vmatmul.mubr.bf16.gmra.mxu0 %v2158
      %v2277 = vpop.f32.mrf.mxu0
      %v2278 = vadd.f32 0.0, %v2277
      %v2279 = vpop.f32.mrf.mxu0
      %v2280 = vpop.f32.mrf.mxu0
      %v2281 = vadd.f32 0.0, %v2280
      %v2282 = vpop.f32.mrf.mxu0
      %2283 = vmatprep.mubr.bf16.mxu0 0
      %2284 = vmatmul.mubr.bf16.gmra.mxu0 %v2161
      %v2285 = vpop.f32.mrf.mxu0
      %v2286 = vadd.f32 0.0, %v2285
      %v2287 = vpop.f32.mrf.mxu0
      %v2288 = vpop.f32.mrf.mxu0
      %v2289 = vadd.f32 0.0, %v2288
      %v2290 = vpop.f32.mrf.mxu0
      %2291 = vmatprep.mubr.bf16.mxu0 0
      %2292 = vmatmul.mubr.bf16.gmra.mxu0 %v2164
      %v2293 = vpop.f32.mrf.mxu0
      %v2294 = vadd.f32 0.0, %v2293
      %v2295 = vpop.f32.mrf.mxu0
      %v2296 = vpop.f32.mrf.mxu0
      %v2297 = vadd.f32 0.0, %v2296
      %v2298 = vpop.f32.mrf.mxu0
      %2299 = vmatprep.mubr.bf16.mxu0 0
      %2300 = vmatmul.mubr.bf16.gmra.mxu0 %v2167
      %v2301 = vpop.f32.mrf.mxu0
      %v2302 = vadd.f32 0.0, %v2301
      %v2303 = vpop.f32.mrf.mxu0
      %v2304 = vpop.f32.mrf.mxu0
      %v2305 = vadd.f32 0.0, %v2304
      %v2306 = vpop.f32.mrf.mxu0
      %2307 = vmatprep.mubr.bf16.mxu0 0
      %2308 = vmatmul.mubr.bf16.gmra.mxu0 %v2170
      %v2309 = vpop.f32.mrf.mxu0
      %v2310 = vadd.f32 0.0, %v2309
      %v2311 = vpop.f32.mrf.mxu0
      %v2312 = vpop.f32.mrf.mxu0
      %v2313 = vadd.f32 0.0, %v2312
      %v2314 = vpop.f32.mrf.mxu0
      %2315 = vmatprep.mubr.bf16.mxu0 0
      %2316 = vmatmul.mubr.bf16.gmra.mxu0 %v2173
      %v2317 = vpop.f32.mrf.mxu0
      %v2318 = vadd.f32 0.0, %v2317
      %v2319 = vpop.f32.mrf.mxu0
      %v2320 = vpop.f32.mrf.mxu0
      %v2321 = vadd.f32 0.0, %v2320
      %v2322 = vpop.f32.mrf.mxu0
      %2323 = vmatprep.mubr.bf16.mxu0 0
      %2324 = vmatmul.mubr.bf16.gmra.mxu0 %v2176
      %v2325 = vpop.f32.mrf.mxu0
      %v2326 = vadd.f32 0.0, %v2325
      %v2327 = vpop.f32.mrf.mxu0
      %v2328 = vpop.f32.mrf.mxu0
      %v2329 = vadd.f32 0.0, %v2328
      %v2330 = vpop.f32.mrf.mxu0
      %2331 = vmatprep.mubr.bf16.mxu0 0
      %2332 = vmatmul.mubr.bf16.gmra.mxu0 %v2179
      %v2333 = vpop.f32.mrf.mxu0
      %v2334 = vadd.f32 0.0, %v2333
      %v2335 = vpop.f32.mrf.mxu0
      %v2336 = vpop.f32.mrf.mxu0
      %v2337 = vadd.f32 0.0, %v2336
      %v2338 = vpop.f32.mrf.mxu0
      %2339 = vmatprep.mubr.bf16.mxu0 0
      %2340 = vmatmul.mubr.bf16.gmra.mxu0 %v2182
      %v2341 = vpop.f32.mrf.mxu0
      %v2342 = vadd.f32 0.0, %v2341
      %v2343 = vpop.f32.mrf.mxu0
      %v2344 = vpop.f32.mrf.mxu0
      %v2345 = vadd.f32 0.0, %v2344
      %v2346 = vpop.f32.mrf.mxu0
      %2347 = vmatprep.mubr.bf16.mxu0 0
      %2348 = vmatmul.mubr.bf16.gmra.mxu0 %v2185
      %v2349 = vpop.f32.mrf.mxu0
      %v2350 = vadd.f32 0.0, %v2349
      %v2351 = vpop.f32.mrf.mxu0
      %v2352 = vpop.f32.mrf.mxu0
      %v2353 = vadd.f32 0.0, %v2352
      %v2354 = vpop.f32.mrf.mxu0
      %2355 = vmatprep.mubr.bf16.mxu0 0
      %2356 = vmatmul.mubr.bf16.gmra.mxu0 %v2188
      %v2357 = vpop.f32.mrf.mxu0
      %v2358 = vadd.f32 0.0, %v2357
      %v2359 = vpop.f32.mrf.mxu0
      %v2360 = vpop.f32.mrf.mxu0
      %v2361 = vadd.f32 0.0, %v2360
      %v2362 = vpop.f32.mrf.mxu0
      %2363 = vmatprep.mubr.bf16.mxu0 0
      %2364 = vmatmul.mubr.bf16.gmra.mxu0 %v2191
      %v2365 = vpop.f32.mrf.mxu0
      %v2366 = vadd.f32 0.0, %v2365
      %v2367 = vpop.f32.mrf.mxu0
      %v2368 = vpop.f32.mrf.mxu0
      %v2369 = vadd.f32 0.0, %v2368
      %v2370 = vpop.f32.mrf.mxu0
      %2371 = vmatprep.mubr.bf16.mxu0 0
      %2372 = vmatmul.mubr.bf16.gmra.mxu0 %v2194
      %v2373 = vpop.f32.mrf.mxu0
      %v2374 = vadd.f32 0.0, %v2373
      %v2375 = vpop.f32.mrf.mxu0
      %v2376 = vpop.f32.mrf.mxu0
      %v2377 = vadd.f32 0.0, %v2376
      %v2378 = vpop.f32.mrf.mxu0
      %2379 = vmatprep.mubr.bf16.mxu0 0
      %2380 = vmatmul.mubr.bf16.gmra.mxu0 %v2197
      %v2381 = vpop.f32.mrf.mxu0
      %v2382 = vadd.f32 0.0, %v2381
      %v2383 = vpop.f32.mrf.mxu0
      %v2384 = vpop.f32.mrf.mxu0
      %v2385 = vadd.f32 0.0, %v2384
      %v2386 = vpop.f32.mrf.mxu0
      %2387 = vmatprep.mubr.bf16.mxu0 0
      %2388 = vmatmul.mubr.bf16.gmra.mxu0 %v2200
      %v2389 = vpop.f32.mrf.mxu0
      %v2390 = vadd.f32 0.0, %v2389
      %v2391 = vpop.f32.mrf.mxu0
      %v2392 = vpop.f32.mrf.mxu0
      %v2393 = vadd.f32 0.0, %v2392
      %v2394 = vpop.f32.mrf.mxu0
      %2395 = vmatprep.mubr.bf16.mxu0 0
      %2396 = vmatmul.mubr.bf16.gmra.mxu0 %v2203
      %v2397 = vpop.f32.mrf.mxu0
      %v2398 = vadd.f32 0.0, %v2397
      %v2399 = vpop.f32.mrf.mxu0
      %v2400 = vpop.f32.mrf.mxu0
      %v2401 = vadd.f32 0.0, %v2400
      %v2402 = vpop.f32.mrf.mxu0
      %2403 = vmatprep.mubr.bf16.mxu0 0
      %2404 = vmatmul.mubr.bf16.gmra.mxu0 %v2206
      %v2405 = vpop.f32.mrf.mxu0
      %v2406 = vadd.f32 0.0, %v2405
      %v2407 = vpop.f32.mrf.mxu0
      %v2408 = vpop.f32.mrf.mxu0
      %v2409 = vpop.f32.mrf.mxu0
      %2410 = vdwg.mxu0
      %v2411 = vadd.f32 %v2040, %v2246
      %v2412 = vadd.f32 %v2041, %v2249
      %v2413 = vadd.f32 %v2042, %v2254
      %v2414 = vadd.f32 %v2043, %v2257
      %v2415 = vadd.f32 %v2044, %v2262
      %v2416 = vadd.f32 %v2045, %v2265
      %v2417 = vadd.f32 %v2046, %v2270
      %v2418 = vadd.f32 %v2047, %v2273
      %v2419 = vadd.f32 %v2048, %v2278
      %v2420 = vadd.f32 %v2049, %v2281
      %v2421 = vadd.f32 %v2050, %v2286
      %v2422 = vadd.f32 %v2051, %v2289
      %v2423 = vadd.f32 %v2052, %v2294
      %v2424 = vadd.f32 %v2053, %v2297
      %v2425 = vadd.f32 %v2054, %v2302
      %v2426 = vadd.f32 %v2055, %v2305
      %v2427 = vadd.f32 %v2056, %v2310
      %v2428 = vadd.f32 %v2057, %v2313
      %v2429 = vadd.f32 %v2058, %v2318
      %v2430 = vadd.f32 %v2059, %v2321
      %v2431 = vadd.f32 %v2060, %v2326
      %v2432 = vadd.f32 %v2061, %v2329
      %v2433 = vadd.f32 %v2062, %v2334
      %v2434 = vadd.f32 %v2063, %v2337
      %v2435 = vadd.f32 %v2064, %v2342
      %v2436 = vadd.f32 %v2065, %v2345
      %v2437 = vadd.f32 %v2066, %v2350
      %v2438 = vadd.f32 %v2067, %v2353
      %v2439 = vadd.f32 %v2068, %v2358
      %v2440 = vadd.f32 %v2069, %v2361
      %v2441 = vadd.f32 %v2070, %v2366
      %v2442 = vadd.f32 %v2071, %v2369
      %v2443 = vadd.f32 %v2072, %v2374
      %v2444 = vadd.f32 %v2073, %v2377
      %v2445 = vadd.f32 %v2074, %v2382
      %v2446 = vadd.f32 %v2075, %v2385
      %v2447 = vadd.f32 %v2076, %v2390
      %v2448 = vadd.f32 %v2077, %v2393
      %v2449 = vadd.f32 %v2078, %v2398
      %v2450 = vadd.f32 %v2079, %v2401
      %v2451 = vadd.f32 %v2080, %v2406
      %v2452 = vld [vmem:[%s300 + $0x24] sm:$0xff]
      %v2453 = vld [vmem:[%s300 + $0x2c] sm:$0xff]
      %v2454 = vld [vmem:[%s300 + $0x34] sm:$0xff]
      %v2455 = vld [vmem:[%s300 + $0x3c] sm:$0xff]
      %v2456 = vld [vmem:[%s300 + $0x44] sm:$0xff]
      %v2457 = vld [vmem:[%s300 + $0x4c] sm:$0xff]
      %v2458 = vld [vmem:[%s300 + $0x54] sm:$0xff]
      %v2459 = vld [vmem:[%s300 + $0x5c] sm:$0xff]
      %v2460 = vld [vmem:[%s300 + $0x64] sm:$0xff]
      %v2461 = vld [vmem:[%s300 + $0x6c] sm:$0xff]
      %v2462 = vld [vmem:[%s300 + $0x74] sm:$0xff]
      %v2463 = vld [vmem:[%s300 + $0x7c] sm:$0xff]
      %v2464 = vld [vmem:[%s300 + $0x84] sm:$0xff]
      %v2465 = vld [vmem:[%s300 + $0x8c] sm:$0xff]
      %v2466 = vld [vmem:[%s300 + $0x94] sm:$0xff]
      %v2467 = vld [vmem:[%s300 + $0x9c] sm:$0xff]
      %v2468 = vld [vmem:[%s300 + $0xa4] sm:$0xff]
      %v2469 = vld [vmem:[%s300 + $0xac] sm:$0xff]
      %v2470 = vld [vmem:[%s300 + $0xb4] sm:$0xff]
      %v2471 = vld [vmem:[%s300 + $0xbc] sm:$0xff]
      %v2472 = vld [vmem:[%s300 + $0xc4] sm:$0xff]
      %v2473 = vld [vmem:[%s300 + $0xcc] sm:$0xff]
      %v2474 = vld [vmem:[%s300 + $0xd4] sm:$0xff]
      %v2475 = vld [vmem:[%s300 + $0xdc] sm:$0xff]
      %v2476 = vld [vmem:[%s300 + $0xe4] sm:$0xff]
      %v2477 = vld [vmem:[%s300 + $0xec] sm:$0xff]
      %v2478 = vld [vmem:[%s300 + $0xf4] sm:$0xff]
      %v2479 = vld [vmem:[%s300 + $0xfc] sm:$0xff]
      %v2480 = vld [vmem:[%s300 + $0x104] sm:$0xff]
      %v2481 = vld [vmem:[%s300 + $0x10c] sm:$0xff]
      %v2482 = vld [vmem:[%s300 + $0x114] sm:$0xff]
      %v2483 = vld [vmem:[%s300 + $0x11c] sm:$0xff]
      %v2484 = vld [vmem:[%s300 + $0x124] sm:$0xff]
      %v2485 = vld [vmem:[%s300 + $0x12c] sm:$0xff]
      %v2486 = vld [vmem:[%s300 + $0x134] sm:$0xff]
      %v2487 = vld [vmem:[%s300 + $0x13c] sm:$0xff]
      %v2488 = vld [vmem:[%s300 + $0x144] sm:$0xff]
      %v2489 = vld [vmem:[%s300 + $0x14c] sm:$0xff]
      %v2490 = vld [vmem:[%s300 + $0x154] sm:$0xff]
      %v2491 = vld [vmem:[%s300 + $0x15c] sm:$0xff]
      %v2492 = vld [vmem:[%s300 + $0x164] sm:$0xff]
      %v2493 = vpack.c.bf16 %v2453, %v2452
      %v2494 = vpack.c.bf16 %v2455, %v2454
      %v2495 = vpack.c.bf16 %v2457, %v2456
      %v2496 = vpack.c.bf16 %v2459, %v2458
      %v2497 = vpack.c.bf16 %v2461, %v2460
      %v2498 = vpack.c.bf16 %v2463, %v2462
      %v2499 = vpack.c.bf16 %v2465, %v2464
      %v2500 = vpack.c.bf16 %v2467, %v2466
      %v2501 = vpack.c.bf16 %v2469, %v2468
      %v2502 = vpack.c.bf16 %v2471, %v2470
      %v2503 = vpack.c.bf16 %v2473, %v2472
      %v2504 = vpack.c.bf16 %v2475, %v2474
      %v2505 = vpack.c.bf16 %v2477, %v2476
      %v2506 = vpack.c.bf16 %v2479, %v2478
      %v2507 = vpack.c.bf16 %v2481, %v2480
      %v2508 = vpack.c.bf16 %v2483, %v2482
      %v2509 = vpack.c.bf16 %v2485, %v2484
      %v2510 = vpack.c.bf16 %v2487, %v2486
      %v2511 = vpack.c.bf16 %v2489, %v2488
      %v2512 = vpack.c.bf16 %v2491, %v2490
      %v2513 = vpack.c.bf16 %v2492, %v2492
      %s2514 = scalar_lea.vmem %s1, 12
      %v2515 = vld [vmem:[%s2514] sm:$0x3]
      %v2517 = vsel %vm434, %v2493, 0
      %v2520 = vsel %vm434, %v2494, 0
      %v2523 = vsel %vm434, %v2495, 0
      %v2526 = vsel %vm434, %v2496, 0
      %v2529 = vsel %vm434, %v2497, 0
      %v2532 = vsel %vm434, %v2498, 0
      %v2535 = vsel %vm434, %v2499, 0
      %v2538 = vsel %vm434, %v2500, 0
      %v2541 = vsel %vm434, %v2501, 0
      %v2544 = vsel %vm434, %v2502, 0
      %v2547 = vsel %vm434, %v2503, 0
      %v2550 = vsel %vm434, %v2504, 0
      %v2553 = vsel %vm434, %v2505, 0
      %v2556 = vsel %vm434, %v2506, 0
      %v2559 = vsel %vm434, %v2507, 0
      %v2562 = vsel %vm434, %v2508, 0
      %v2565 = vsel %vm434, %v2509, 0
      %v2568 = vsel %vm434, %v2510, 0
      %v2571 = vsel %vm434, %v2511, 0
      %v2574 = vsel %vm434, %v2512, 0
      %v2577 = vsel %vm434, %v2513, 0
      %v2580 = vsel %vm498, %v2515, 0
      %2582 = vmatprep.subr.bf16.mxu0 0
      %2583 = vmatpush1.bf16.msra.mxu0 0
      %2584 = vmatprep.subr.bf16.mxu0 0
      %2585 = vmatpush1.bf16.msra.mxu0 0
      %2586 = vmatprep.subr.bf16.mxu0 0
      %2587 = vmatpush1.bf16.msra.mxu0 0
      %2588 = vmatprep.subr.bf16.mxu0 0
      %2589 = vmatpush1.bf16.msra.mxu0 0
      %2590 = vmatprep.subr.bf16.mxu0 0
      %2591 = vmatpush1.bf16.msra.mxu0 0
      %2592 = vmatprep.subr.bf16.mxu0 0
      %2593 = vmatpush1.bf16.msra.mxu0 0
      %2594 = vmatprep.subr.bf16.mxu0 0
      %2595 = vmatpush1.bf16.msra.mxu0 0
      %2596 = vmatprep.subr.bf16.mxu0 0
      %2597 = vmatpush1.bf16.msra.mxu0 %v2580
      %2598 = vmatprep.subr.bf16.mxu0 0
      %2599 = vmatpush2.bf16.msra.mxu0 0
      %2600 = vmatprep.subr.bf16.mxu0 0
      %2601 = vmatpush2.bf16.msra.mxu0 0
      %2602 = vmatprep.subr.bf16.mxu0 0
      %2603 = vmatpush2.bf16.msra.mxu0 0
      %2604 = vmatprep.subr.bf16.mxu0 0
      %2605 = vmatpush2.bf16.msra.mxu0 0
      %2606 = vmatprep.subr.bf16.mxu0 0
      %2607 = vmatpush2.bf16.msra.mxu0 0
      %2608 = vmatprep.subr.bf16.mxu0 0
      %2609 = vmatpush2.bf16.msra.mxu0 0
      %2610 = vmatprep.subr.bf16.mxu0 0
      %2611 = vmatpush2.bf16.msra.mxu0 0
      %2612 = vmatprep.subr.bf16.mxu0 0
      %2613 = vmatpush2.bf16.msra.mxu0 0
      %2614 = vmatprep.mubr.bf16.mxu0 0
      %2615 = vmatmul.mubr.bf16.gmra.mxu0 %v2517
      %v2616 = vpop.f32.mrf.mxu0
      %v2617 = vadd.f32 0.0, %v2616
      %v2618 = vpop.f32.mrf.mxu0
      %v2619 = vpop.f32.mrf.mxu0
      %v2620 = vadd.f32 0.0, %v2619
      %v2621 = vpop.f32.mrf.mxu0
      %2622 = vmatprep.mubr.bf16.mxu0 0
      %2623 = vmatmul.mubr.bf16.gmra.mxu0 %v2520
      %v2624 = vpop.f32.mrf.mxu0
      %v2625 = vadd.f32 0.0, %v2624
      %v2626 = vpop.f32.mrf.mxu0
      %v2627 = vpop.f32.mrf.mxu0
      %v2628 = vadd.f32 0.0, %v2627
      %v2629 = vpop.f32.mrf.mxu0
      %2630 = vmatprep.mubr.bf16.mxu0 0
      %2631 = vmatmul.mubr.bf16.gmra.mxu0 %v2523
      %v2632 = vpop.f32.mrf.mxu0
      %v2633 = vadd.f32 0.0, %v2632
      %v2634 = vpop.f32.mrf.mxu0
      %v2635 = vpop.f32.mrf.mxu0
      %v2636 = vadd.f32 0.0, %v2635
      %v2637 = vpop.f32.mrf.mxu0
      %2638 = vmatprep.mubr.bf16.mxu0 0
      %2639 = vmatmul.mubr.bf16.gmra.mxu0 %v2526
      %v2640 = vpop.f32.mrf.mxu0
      %v2641 = vadd.f32 0.0, %v2640
      %v2642 = vpop.f32.mrf.mxu0
      %v2643 = vpop.f32.mrf.mxu0
      %v2644 = vadd.f32 0.0, %v2643
      %v2645 = vpop.f32.mrf.mxu0
      %2646 = vmatprep.mubr.bf16.mxu0 0
      %2647 = vmatmul.mubr.bf16.gmra.mxu0 %v2529
      %v2648 = vpop.f32.mrf.mxu0
      %v2649 = vadd.f32 0.0, %v2648
      %v2650 = vpop.f32.mrf.mxu0
      %v2651 = vpop.f32.mrf.mxu0
      %v2652 = vadd.f32 0.0, %v2651
      %v2653 = vpop.f32.mrf.mxu0
      %2654 = vmatprep.mubr.bf16.mxu0 0
      %2655 = vmatmul.mubr.bf16.gmra.mxu0 %v2532
      %v2656 = vpop.f32.mrf.mxu0
      %v2657 = vadd.f32 0.0, %v2656
      %v2658 = vpop.f32.mrf.mxu0
      %v2659 = vpop.f32.mrf.mxu0
      %v2660 = vadd.f32 0.0, %v2659
      %v2661 = vpop.f32.mrf.mxu0
      %2662 = vmatprep.mubr.bf16.mxu0 0
      %2663 = vmatmul.mubr.bf16.gmra.mxu0 %v2535
      %v2664 = vpop.f32.mrf.mxu0
      %v2665 = vadd.f32 0.0, %v2664
      %v2666 = vpop.f32.mrf.mxu0
      %v2667 = vpop.f32.mrf.mxu0
      %v2668 = vadd.f32 0.0, %v2667
      %v2669 = vpop.f32.mrf.mxu0
      %2670 = vmatprep.mubr.bf16.mxu0 0
      %2671 = vmatmul.mubr.bf16.gmra.mxu0 %v2538
      %v2672 = vpop.f32.mrf.mxu0
      %v2673 = vadd.f32 0.0, %v2672
      %v2674 = vpop.f32.mrf.mxu0
      %v2675 = vpop.f32.mrf.mxu0
      %v2676 = vadd.f32 0.0, %v2675
      %v2677 = vpop.f32.mrf.mxu0
      %2678 = vmatprep.mubr.bf16.mxu0 0
      %2679 = vmatmul.mubr.bf16.gmra.mxu0 %v2541
      %v2680 = vpop.f32.mrf.mxu0
      %v2681 = vadd.f32 0.0, %v2680
      %v2682 = vpop.f32.mrf.mxu0
      %v2683 = vpop.f32.mrf.mxu0
      %v2684 = vadd.f32 0.0, %v2683
      %v2685 = vpop.f32.mrf.mxu0
      %2686 = vmatprep.mubr.bf16.mxu0 0
      %2687 = vmatmul.mubr.bf16.gmra.mxu0 %v2544
      %v2688 = vpop.f32.mrf.mxu0
      %v2689 = vadd.f32 0.0, %v2688
      %v2690 = vpop.f32.mrf.mxu0
      %v2691 = vpop.f32.mrf.mxu0
      %v2692 = vadd.f32 0.0, %v2691
      %v2693 = vpop.f32.mrf.mxu0
      %2694 = vmatprep.mubr.bf16.mxu0 0
      %2695 = vmatmul.mubr.bf16.gmra.mxu0 %v2547
      %v2696 = vpop.f32.mrf.mxu0
      %v2697 = vadd.f32 0.0, %v2696
      %v2698 = vpop.f32.mrf.mxu0
      %v2699 = vpop.f32.mrf.mxu0
      %v2700 = vadd.f32 0.0, %v2699
      %v2701 = vpop.f32.mrf.mxu0
      %2702 = vmatprep.mubr.bf16.mxu0 0
      %2703 = vmatmul.mubr.bf16.gmra.mxu0 %v2550
      %v2704 = vpop.f32.mrf.mxu0
      %v2705 = vadd.f32 0.0, %v2704
      %v2706 = vpop.f32.mrf.mxu0
      %v2707 = vpop.f32.mrf.mxu0
      %v2708 = vadd.f32 0.0, %v2707
      %v2709 = vpop.f32.mrf.mxu0
      %2710 = vmatprep.mubr.bf16.mxu0 0
      %2711 = vmatmul.mubr.bf16.gmra.mxu0 %v2553
      %v2712 = vpop.f32.mrf.mxu0
      %v2713 = vadd.f32 0.0, %v2712
      %v2714 = vpop.f32.mrf.mxu0
      %v2715 = vpop.f32.mrf.mxu0
      %v2716 = vadd.f32 0.0, %v2715
      %v2717 = vpop.f32.mrf.mxu0
      %2718 = vmatprep.mubr.bf16.mxu0 0
      %2719 = vmatmul.mubr.bf16.gmra.mxu0 %v2556
      %v2720 = vpop.f32.mrf.mxu0
      %v2721 = vadd.f32 0.0, %v2720
      %v2722 = vpop.f32.mrf.mxu0
      %v2723 = vpop.f32.mrf.mxu0
      %v2724 = vadd.f32 0.0, %v2723
      %v2725 = vpop.f32.mrf.mxu0
      %2726 = vmatprep.mubr.bf16.mxu0 0
      %2727 = vmatmul.mubr.bf16.gmra.mxu0 %v2559
      %v2728 = vpop.f32.mrf.mxu0
      %v2729 = vadd.f32 0.0, %v2728
      %v2730 = vpop.f32.mrf.mxu0
      %v2731 = vpop.f32.mrf.mxu0
      %v2732 = vadd.f32 0.0, %v2731
      %v2733 = vpop.f32.mrf.mxu0
      %2734 = vmatprep.mubr.bf16.mxu0 0
      %2735 = vmatmul.mubr.bf16.gmra.mxu0 %v2562
      %v2736 = vpop.f32.mrf.mxu0
      %v2737 = vadd.f32 0.0, %v2736
      %v2738 = vpop.f32.mrf.mxu0
      %v2739 = vpop.f32.mrf.mxu0
      %v2740 = vadd.f32 0.0, %v2739
      %v2741 = vpop.f32.mrf.mxu0
      %2742 = vmatprep.mubr.bf16.mxu0 0
      %2743 = vmatmul.mubr.bf16.gmra.mxu0 %v2565
      %v2744 = vpop.f32.mrf.mxu0
      %v2745 = vadd.f32 0.0, %v2744
      %v2746 = vpop.f32.mrf.mxu0
      %v2747 = vpop.f32.mrf.mxu0
      %v2748 = vadd.f32 0.0, %v2747
      %v2749 = vpop.f32.mrf.mxu0
      %2750 = vmatprep.mubr.bf16.mxu0 0
      %2751 = vmatmul.mubr.bf16.gmra.mxu0 %v2568
      %v2752 = vpop.f32.mrf.mxu0
      %v2753 = vadd.f32 0.0, %v2752
      %v2754 = vpop.f32.mrf.mxu0
      %v2755 = vpop.f32.mrf.mxu0
      %v2756 = vadd.f32 0.0, %v2755
      %v2757 = vpop.f32.mrf.mxu0
      %2758 = vmatprep.mubr.bf16.mxu0 0
      %2759 = vmatmul.mubr.bf16.gmra.mxu0 %v2571
      %v2760 = vpop.f32.mrf.mxu0
      %v2761 = vadd.f32 0.0, %v2760
      %v2762 = vpop.f32.mrf.mxu0
      %v2763 = vpop.f32.mrf.mxu0
      %v2764 = vadd.f32 0.0, %v2763
      %v2765 = vpop.f32.mrf.mxu0
      %2766 = vmatprep.mubr.bf16.mxu0 0
      %2767 = vmatmul.mubr.bf16.gmra.mxu0 %v2574
      %v2768 = vpop.f32.mrf.mxu0
      %v2769 = vadd.f32 0.0, %v2768
      %v2770 = vpop.f32.mrf.mxu0
      %v2771 = vpop.f32.mrf.mxu0
      %v2772 = vadd.f32 0.0, %v2771
      %v2773 = vpop.f32.mrf.mxu0
      %2774 = vmatprep.mubr.bf16.mxu0 0
      %2775 = vmatmul.mubr.bf16.gmra.mxu0 %v2577
      %v2776 = vpop.f32.mrf.mxu0
      %v2777 = vadd.f32 0.0, %v2776
      %v2778 = vpop.f32.mrf.mxu0
      %v2779 = vpop.f32.mrf.mxu0
      %v2780 = vpop.f32.mrf.mxu0
      %2781 = vdwg.mxu0
      %v2782 = vadd.f32 %v2411, %v2617
      %v2783 = vadd.f32 %v2412, %v2620
      %v2784 = vadd.f32 %v2413, %v2625
      %v2785 = vadd.f32 %v2414, %v2628
      %v2786 = vadd.f32 %v2415, %v2633
      %v2787 = vadd.f32 %v2416, %v2636
      %v2788 = vadd.f32 %v2417, %v2641
      %v2789 = vadd.f32 %v2418, %v2644
      %v2790 = vadd.f32 %v2419, %v2649
      %v2791 = vadd.f32 %v2420, %v2652
      %v2792 = vadd.f32 %v2421, %v2657
      %v2793 = vadd.f32 %v2422, %v2660
      %v2794 = vadd.f32 %v2423, %v2665
      %v2795 = vadd.f32 %v2424, %v2668
      %v2796 = vadd.f32 %v2425, %v2673
      %v2797 = vadd.f32 %v2426, %v2676
      %v2798 = vadd.f32 %v2427, %v2681
      %v2799 = vadd.f32 %v2428, %v2684
      %v2800 = vadd.f32 %v2429, %v2689
      %v2801 = vadd.f32 %v2430, %v2692
      %v2802 = vadd.f32 %v2431, %v2697
      %v2803 = vadd.f32 %v2432, %v2700
      %v2804 = vadd.f32 %v2433, %v2705
      %v2805 = vadd.f32 %v2434, %v2708
      %v2806 = vadd.f32 %v2435, %v2713
      %v2807 = vadd.f32 %v2436, %v2716
      %v2808 = vadd.f32 %v2437, %v2721
      %v2809 = vadd.f32 %v2438, %v2724
      %v2810 = vadd.f32 %v2439, %v2729
      %v2811 = vadd.f32 %v2440, %v2732
      %v2812 = vadd.f32 %v2441, %v2737
      %v2813 = vadd.f32 %v2442, %v2740
      %v2814 = vadd.f32 %v2443, %v2745
      %v2815 = vadd.f32 %v2444, %v2748
      %v2816 = vadd.f32 %v2445, %v2753
      %v2817 = vadd.f32 %v2446, %v2756
      %v2818 = vadd.f32 %v2447, %v2761
      %v2819 = vadd.f32 %v2448, %v2764
      %v2820 = vadd.f32 %v2449, %v2769
      %v2821 = vadd.f32 %v2450, %v2772
      %v2822 = vadd.f32 %v2451, %v2777
      %v2823 = vld [vmem:[%s300 + $0x25] sm:$0xff]
      %v2824 = vld [vmem:[%s300 + $0x2d] sm:$0xff]
      %v2825 = vld [vmem:[%s300 + $0x35] sm:$0xff]
      %v2826 = vld [vmem:[%s300 + $0x3d] sm:$0xff]
      %v2827 = vld [vmem:[%s300 + $0x45] sm:$0xff]
      %v2828 = vld [vmem:[%s300 + $0x4d] sm:$0xff]
      %v2829 = vld [vmem:[%s300 + $0x55] sm:$0xff]
      %v2830 = vld [vmem:[%s300 + $0x5d] sm:$0xff]
      %v2831 = vld [vmem:[%s300 + $0x65] sm:$0xff]
      %v2832 = vld [vmem:[%s300 + $0x6d] sm:$0xff]
      %v2833 = vld [vmem:[%s300 + $0x75] sm:$0xff]
      %v2834 = vld [vmem:[%s300 + $0x7d] sm:$0xff]
      %v2835 = vld [vmem:[%s300 + $0x85] sm:$0xff]
      %v2836 = vld [vmem:[%s300 + $0x8d] sm:$0xff]
      %v2837 = vld [vmem:[%s300 + $0x95] sm:$0xff]
      %v2838 = vld [vmem:[%s300 + $0x9d] sm:$0xff]
      %v2839 = vld [vmem:[%s300 + $0xa5] sm:$0xff]
      %v2840 = vld [vmem:[%s300 + $0xad] sm:$0xff]
      %v2841 = vld [vmem:[%s300 + $0xb5] sm:$0xff]
      %v2842 = vld [vmem:[%s300 + $0xbd] sm:$0xff]
      %v2843 = vld [vmem:[%s300 + $0xc5] sm:$0xff]
      %v2844 = vld [vmem:[%s300 + $0xcd] sm:$0xff]
      %v2845 = vld [vmem:[%s300 + $0xd5] sm:$0xff]
      %v2846 = vld [vmem:[%s300 + $0xdd] sm:$0xff]
      %v2847 = vld [vmem:[%s300 + $0xe5] sm:$0xff]
      %v2848 = vld [vmem:[%s300 + $0xed] sm:$0xff]
      %v2849 = vld [vmem:[%s300 + $0xf5] sm:$0xff]
      %v2850 = vld [vmem:[%s300 + $0xfd] sm:$0xff]
      %v2851 = vld [vmem:[%s300 + $0x105] sm:$0xff]
      %v2852 = vld [vmem:[%s300 + $0x10d] sm:$0xff]
      %v2853 = vld [vmem:[%s300 + $0x115] sm:$0xff]
      %v2854 = vld [vmem:[%s300 + $0x11d] sm:$0xff]
      %v2855 = vld [vmem:[%s300 + $0x125] sm:$0xff]
      %v2856 = vld [vmem:[%s300 + $0x12d] sm:$0xff]
      %v2857 = vld [vmem:[%s300 + $0x135] sm:$0xff]
      %v2858 = vld [vmem:[%s300 + $0x13d] sm:$0xff]
      %v2859 = vld [vmem:[%s300 + $0x145] sm:$0xff]
      %v2860 = vld [vmem:[%s300 + $0x14d] sm:$0xff]
      %v2861 = vld [vmem:[%s300 + $0x155] sm:$0xff]
      %v2862 = vld [vmem:[%s300 + $0x15d] sm:$0xff]
      %v2863 = vld [vmem:[%s300 + $0x165] sm:$0xff]
      %v2864 = vpack.c.bf16 %v2824, %v2823
      %v2865 = vpack.c.bf16 %v2826, %v2825
      %v2866 = vpack.c.bf16 %v2828, %v2827
      %v2867 = vpack.c.bf16 %v2830, %v2829
      %v2868 = vpack.c.bf16 %v2832, %v2831
      %v2869 = vpack.c.bf16 %v2834, %v2833
      %v2870 = vpack.c.bf16 %v2836, %v2835
      %v2871 = vpack.c.bf16 %v2838, %v2837
      %v2872 = vpack.c.bf16 %v2840, %v2839
      %v2873 = vpack.c.bf16 %v2842, %v2841
      %v2874 = vpack.c.bf16 %v2844, %v2843
      %v2875 = vpack.c.bf16 %v2846, %v2845
      %v2876 = vpack.c.bf16 %v2848, %v2847
      %v2877 = vpack.c.bf16 %v2850, %v2849
      %v2878 = vpack.c.bf16 %v2852, %v2851
      %v2879 = vpack.c.bf16 %v2854, %v2853
      %v2880 = vpack.c.bf16 %v2856, %v2855
      %v2881 = vpack.c.bf16 %v2858, %v2857
      %v2882 = vpack.c.bf16 %v2860, %v2859
      %v2883 = vpack.c.bf16 %v2862, %v2861
      %v2884 = vpack.c.bf16 %v2863, %v2863
      %s2885 = scalar_lea.vmem %s1, 14
      %v2886 = vld [vmem:[%s2885] sm:$0x3]
      %v2888 = vsel %vm434, %v2864, 0
      %v2891 = vsel %vm434, %v2865, 0
      %v2894 = vsel %vm434, %v2866, 0
      %v2897 = vsel %vm434, %v2867, 0
      %v2900 = vsel %vm434, %v2868, 0
      %v2903 = vsel %vm434, %v2869, 0
      %v2906 = vsel %vm434, %v2870, 0
      %v2909 = vsel %vm434, %v2871, 0
      %v2912 = vsel %vm434, %v2872, 0
      %v2915 = vsel %vm434, %v2873, 0
      %v2918 = vsel %vm434, %v2874, 0
      %v2921 = vsel %vm434, %v2875, 0
      %v2924 = vsel %vm434, %v2876, 0
      %v2927 = vsel %vm434, %v2877, 0
      %v2930 = vsel %vm434, %v2878, 0
      %v2933 = vsel %vm434, %v2879, 0
      %v2936 = vsel %vm434, %v2880, 0
      %v2939 = vsel %vm434, %v2881, 0
      %v2942 = vsel %vm434, %v2882, 0
      %v2945 = vsel %vm434, %v2883, 0
      %v2948 = vsel %vm434, %v2884, 0
      %v2951 = vsel %vm498, %v2886, 0
      %2953 = vmatprep.subr.bf16.mxu0 0
      %2954 = vmatpush1.bf16.msra.mxu0 0
      %2955 = vmatprep.subr.bf16.mxu0 0
      %2956 = vmatpush1.bf16.msra.mxu0 0
      %2957 = vmatprep.subr.bf16.mxu0 0
      %2958 = vmatpush1.bf16.msra.mxu0 0
      %2959 = vmatprep.subr.bf16.mxu0 0
      %2960 = vmatpush1.bf16.msra.mxu0 0
      %2961 = vmatprep.subr.bf16.mxu0 0
      %2962 = vmatpush1.bf16.msra.mxu0 0
      %2963 = vmatprep.subr.bf16.mxu0 0
      %2964 = vmatpush1.bf16.msra.mxu0 0
      %2965 = vmatprep.subr.bf16.mxu0 0
      %2966 = vmatpush1.bf16.msra.mxu0 0
      %2967 = vmatprep.subr.bf16.mxu0 0
      %2968 = vmatpush1.bf16.msra.mxu0 %v2951
      %2969 = vmatprep.subr.bf16.mxu0 0
      %2970 = vmatpush2.bf16.msra.mxu0 0
      %2971 = vmatprep.subr.bf16.mxu0 0
      %2972 = vmatpush2.bf16.msra.mxu0 0
      %2973 = vmatprep.subr.bf16.mxu0 0
      %2974 = vmatpush2.bf16.msra.mxu0 0
      %2975 = vmatprep.subr.bf16.mxu0 0
      %2976 = vmatpush2.bf16.msra.mxu0 0
      %2977 = vmatprep.subr.bf16.mxu0 0
      %2978 = vmatpush2.bf16.msra.mxu0 0
      %2979 = vmatprep.subr.bf16.mxu0 0
      %2980 = vmatpush2.bf16.msra.mxu0 0
      %2981 = vmatprep.subr.bf16.mxu0 0
      %2982 = vmatpush2.bf16.msra.mxu0 0
      %2983 = vmatprep.subr.bf16.mxu0 0
      %2984 = vmatpush2.bf16.msra.mxu0 0
      %2985 = vmatprep.mubr.bf16.mxu0 0
      %2986 = vmatmul.mubr.bf16.gmra.mxu0 %v2888
      %v2987 = vpop.f32.mrf.mxu0
      %v2988 = vadd.f32 0.0, %v2987
      %v2989 = vpop.f32.mrf.mxu0
      %v2990 = vpop.f32.mrf.mxu0
      %v2991 = vadd.f32 0.0, %v2990
      %v2992 = vpop.f32.mrf.mxu0
      %2993 = vmatprep.mubr.bf16.mxu0 0
      %2994 = vmatmul.mubr.bf16.gmra.mxu0 %v2891
      %v2995 = vpop.f32.mrf.mxu0
      %v2996 = vadd.f32 0.0, %v2995
      %v2997 = vpop.f32.mrf.mxu0
      %v2998 = vpop.f32.mrf.mxu0
      %v2999 = vadd.f32 0.0, %v2998
      %v3000 = vpop.f32.mrf.mxu0
      %3001 = vmatprep.mubr.bf16.mxu0 0
      %3002 = vmatmul.mubr.bf16.gmra.mxu0 %v2894
      %v3003 = vpop.f32.mrf.mxu0
      %v3004 = vadd.f32 0.0, %v3003
      %v3005 = vpop.f32.mrf.mxu0
      %v3006 = vpop.f32.mrf.mxu0
      %v3007 = vadd.f32 0.0, %v3006
      %v3008 = vpop.f32.mrf.mxu0
      %3009 = vmatprep.mubr.bf16.mxu0 0
      %3010 = vmatmul.mubr.bf16.gmra.mxu0 %v2897
      %v3011 = vpop.f32.mrf.mxu0
      %v3012 = vadd.f32 0.0, %v3011
      %v3013 = vpop.f32.mrf.mxu0
      %v3014 = vpop.f32.mrf.mxu0
      %v3015 = vadd.f32 0.0, %v3014
      %v3016 = vpop.f32.mrf.mxu0
      %3017 = vmatprep.mubr.bf16.mxu0 0
      %3018 = vmatmul.mubr.bf16.gmra.mxu0 %v2900
      %v3019 = vpop.f32.mrf.mxu0
      %v3020 = vadd.f32 0.0, %v3019
      %v3021 = vpop.f32.mrf.mxu0
      %v3022 = vpop.f32.mrf.mxu0
      %v3023 = vadd.f32 0.0, %v3022
      %v3024 = vpop.f32.mrf.mxu0
      %3025 = vmatprep.mubr.bf16.mxu0 0
      %3026 = vmatmul.mubr.bf16.gmra.mxu0 %v2903
      %v3027 = vpop.f32.mrf.mxu0
      %v3028 = vadd.f32 0.0, %v3027
      %v3029 = vpop.f32.mrf.mxu0
      %v3030 = vpop.f32.mrf.mxu0
      %v3031 = vadd.f32 0.0, %v3030
      %v3032 = vpop.f32.mrf.mxu0
      %3033 = vmatprep.mubr.bf16.mxu0 0
      %3034 = vmatmul.mubr.bf16.gmra.mxu0 %v2906
      %v3035 = vpop.f32.mrf.mxu0
      %v3036 = vadd.f32 0.0, %v3035
      %v3037 = vpop.f32.mrf.mxu0
      %v3038 = vpop.f32.mrf.mxu0
      %v3039 = vadd.f32 0.0, %v3038
      %v3040 = vpop.f32.mrf.mxu0
      %3041 = vmatprep.mubr.bf16.mxu0 0
      %3042 = vmatmul.mubr.bf16.gmra.mxu0 %v2909
      %v3043 = vpop.f32.mrf.mxu0
      %v3044 = vadd.f32 0.0, %v3043
      %v3045 = vpop.f32.mrf.mxu0
      %v3046 = vpop.f32.mrf.mxu0
      %v3047 = vadd.f32 0.0, %v3046
      %v3048 = vpop.f32.mrf.mxu0
      %3049 = vmatprep.mubr.bf16.mxu0 0
      %3050 = vmatmul.mubr.bf16.gmra.mxu0 %v2912
      %v3051 = vpop.f32.mrf.mxu0
      %v3052 = vadd.f32 0.0, %v3051
      %v3053 = vpop.f32.mrf.mxu0
      %v3054 = vpop.f32.mrf.mxu0
      %v3055 = vadd.f32 0.0, %v3054
      %v3056 = vpop.f32.mrf.mxu0
      %3057 = vmatprep.mubr.bf16.mxu0 0
      %3058 = vmatmul.mubr.bf16.gmra.mxu0 %v2915
      %v3059 = vpop.f32.mrf.mxu0
      %v3060 = vadd.f32 0.0, %v3059
      %v3061 = vpop.f32.mrf.mxu0
      %v3062 = vpop.f32.mrf.mxu0
      %v3063 = vadd.f32 0.0, %v3062
      %v3064 = vpop.f32.mrf.mxu0
      %3065 = vmatprep.mubr.bf16.mxu0 0
      %3066 = vmatmul.mubr.bf16.gmra.mxu0 %v2918
      %v3067 = vpop.f32.mrf.mxu0
      %v3068 = vadd.f32 0.0, %v3067
      %v3069 = vpop.f32.mrf.mxu0
      %v3070 = vpop.f32.mrf.mxu0
      %v3071 = vadd.f32 0.0, %v3070
      %v3072 = vpop.f32.mrf.mxu0
      %3073 = vmatprep.mubr.bf16.mxu0 0
      %3074 = vmatmul.mubr.bf16.gmra.mxu0 %v2921
      %v3075 = vpop.f32.mrf.mxu0
      %v3076 = vadd.f32 0.0, %v3075
      %v3077 = vpop.f32.mrf.mxu0
      %v3078 = vpop.f32.mrf.mxu0
      %v3079 = vadd.f32 0.0, %v3078
      %v3080 = vpop.f32.mrf.mxu0
      %3081 = vmatprep.mubr.bf16.mxu0 0
      %3082 = vmatmul.mubr.bf16.gmra.mxu0 %v2924
      %v3083 = vpop.f32.mrf.mxu0
      %v3084 = vadd.f32 0.0, %v3083
      %v3085 = vpop.f32.mrf.mxu0
      %v3086 = vpop.f32.mrf.mxu0
      %v3087 = vadd.f32 0.0, %v3086
      %v3088 = vpop.f32.mrf.mxu0
      %3089 = vmatprep.mubr.bf16.mxu0 0
      %3090 = vmatmul.mubr.bf16.gmra.mxu0 %v2927
      %v3091 = vpop.f32.mrf.mxu0
      %v3092 = vadd.f32 0.0, %v3091
      %v3093 = vpop.f32.mrf.mxu0
      %v3094 = vpop.f32.mrf.mxu0
      %v3095 = vadd.f32 0.0, %v3094
      %v3096 = vpop.f32.mrf.mxu0
      %3097 = vmatprep.mubr.bf16.mxu0 0
      %3098 = vmatmul.mubr.bf16.gmra.mxu0 %v2930
      %v3099 = vpop.f32.mrf.mxu0
      %v3100 = vadd.f32 0.0, %v3099
      %v3101 = vpop.f32.mrf.mxu0
      %v3102 = vpop.f32.mrf.mxu0
      %v3103 = vadd.f32 0.0, %v3102
      %v3104 = vpop.f32.mrf.mxu0
      %3105 = vmatprep.mubr.bf16.mxu0 0
      %3106 = vmatmul.mubr.bf16.gmra.mxu0 %v2933
      %v3107 = vpop.f32.mrf.mxu0
      %v3108 = vadd.f32 0.0, %v3107
      %v3109 = vpop.f32.mrf.mxu0
      %v3110 = vpop.f32.mrf.mxu0
      %v3111 = vadd.f32 0.0, %v3110
      %v3112 = vpop.f32.mrf.mxu0
      %3113 = vmatprep.mubr.bf16.mxu0 0
      %3114 = vmatmul.mubr.bf16.gmra.mxu0 %v2936
      %v3115 = vpop.f32.mrf.mxu0
      %v3116 = vadd.f32 0.0, %v3115
      %v3117 = vpop.f32.mrf.mxu0
      %v3118 = vpop.f32.mrf.mxu0
      %v3119 = vadd.f32 0.0, %v3118
      %v3120 = vpop.f32.mrf.mxu0
      %3121 = vmatprep.mubr.bf16.mxu0 0
      %3122 = vmatmul.mubr.bf16.gmra.mxu0 %v2939
      %v3123 = vpop.f32.mrf.mxu0
      %v3124 = vadd.f32 0.0, %v3123
      %v3125 = vpop.f32.mrf.mxu0
      %v3126 = vpop.f32.mrf.mxu0
      %v3127 = vadd.f32 0.0, %v3126
      %v3128 = vpop.f32.mrf.mxu0
      %3129 = vmatprep.mubr.bf16.mxu0 0
      %3130 = vmatmul.mubr.bf16.gmra.mxu0 %v2942
      %v3131 = vpop.f32.mrf.mxu0
      %v3132 = vadd.f32 0.0, %v3131
      %v3133 = vpop.f32.mrf.mxu0
      %v3134 = vpop.f32.mrf.mxu0
      %v3135 = vadd.f32 0.0, %v3134
      %v3136 = vpop.f32.mrf.mxu0
      %3137 = vmatprep.mubr.bf16.mxu0 0
      %3138 = vmatmul.mubr.bf16.gmra.mxu0 %v2945
      %v3139 = vpop.f32.mrf.mxu0
      %v3140 = vadd.f32 0.0, %v3139
      %v3141 = vpop.f32.mrf.mxu0
      %v3142 = vpop.f32.mrf.mxu0
      %v3143 = vadd.f32 0.0, %v3142
      %v3144 = vpop.f32.mrf.mxu0
      %3145 = vmatprep.mubr.bf16.mxu0 0
      %3146 = vmatmul.mubr.bf16.gmra.mxu0 %v2948
      %v3147 = vpop.f32.mrf.mxu0
      %v3148 = vadd.f32 0.0, %v3147
      %v3149 = vpop.f32.mrf.mxu0
      %v3150 = vpop.f32.mrf.mxu0
      %v3151 = vpop.f32.mrf.mxu0
      %3152 = vdwg.mxu0
      %v3153 = vadd.f32 %v2782, %v2988
      %v3154 = vadd.f32 %v2783, %v2991
      %v3155 = vadd.f32 %v2784, %v2996
      %v3156 = vadd.f32 %v2785, %v2999
      %v3157 = vadd.f32 %v2786, %v3004
      %v3158 = vadd.f32 %v2787, %v3007
      %v3159 = vadd.f32 %v2788, %v3012
      %v3160 = vadd.f32 %v2789, %v3015
      %v3161 = vadd.f32 %v2790, %v3020
      %v3162 = vadd.f32 %v2791, %v3023
      %v3163 = vadd.f32 %v2792, %v3028
      %v3164 = vadd.f32 %v2793, %v3031
      %v3165 = vadd.f32 %v2794, %v3036
      %v3166 = vadd.f32 %v2795, %v3039
      %v3167 = vadd.f32 %v2796, %v3044
      %v3168 = vadd.f32 %v2797, %v3047
      %v3169 = vadd.f32 %v2798, %v3052
      %v3170 = vadd.f32 %v2799, %v3055
      %v3171 = vadd.f32 %v2800, %v3060
      %v3172 = vadd.f32 %v2801, %v3063
      %v3173 = vadd.f32 %v2802, %v3068
      %v3174 = vadd.f32 %v2803, %v3071
      %v3175 = vadd.f32 %v2804, %v3076
      %v3176 = vadd.f32 %v2805, %v3079
      %v3177 = vadd.f32 %v2806, %v3084
      %v3178 = vadd.f32 %v2807, %v3087
      %v3179 = vadd.f32 %v2808, %v3092
      %v3180 = vadd.f32 %v2809, %v3095
      %v3181 = vadd.f32 %v2810, %v3100
      %v3182 = vadd.f32 %v2811, %v3103
      %v3183 = vadd.f32 %v2812, %v3108
      %v3184 = vadd.f32 %v2813, %v3111
      %v3185 = vadd.f32 %v2814, %v3116
      %v3186 = vadd.f32 %v2815, %v3119
      %v3187 = vadd.f32 %v2816, %v3124
      %v3188 = vadd.f32 %v2817, %v3127
      %v3189 = vadd.f32 %v2818, %v3132
      %v3190 = vadd.f32 %v2819, %v3135
      %v3191 = vadd.f32 %v2820, %v3140
      %v3192 = vadd.f32 %v2821, %v3143
      %v3193 = vadd.f32 %v2822, %v3148
      %v3194 = vld [vmem:[%s300 + $0x26] sm:$0xff]
      %v3195 = vld [vmem:[%s300 + $0x2e] sm:$0xff]
      %v3196 = vld [vmem:[%s300 + $0x36] sm:$0xff]
      %v3197 = vld [vmem:[%s300 + $0x3e] sm:$0xff]
      %v3198 = vld [vmem:[%s300 + $0x46] sm:$0xff]
      %v3199 = vld [vmem:[%s300 + $0x4e] sm:$0xff]
      %v3200 = vld [vmem:[%s300 + $0x56] sm:$0xff]
      %v3201 = vld [vmem:[%s300 + $0x5e] sm:$0xff]
      %v3202 = vld [vmem:[%s300 + $0x66] sm:$0xff]
      %v3203 = vld [vmem:[%s300 + $0x6e] sm:$0xff]
      %v3204 = vld [vmem:[%s300 + $0x76] sm:$0xff]
      %v3205 = vld [vmem:[%s300 + $0x7e] sm:$0xff]
      %v3206 = vld [vmem:[%s300 + $0x86] sm:$0xff]
      %v3207 = vld [vmem:[%s300 + $0x8e] sm:$0xff]
      %v3208 = vld [vmem:[%s300 + $0x96] sm:$0xff]
      %v3209 = vld [vmem:[%s300 + $0x9e] sm:$0xff]
      %v3210 = vld [vmem:[%s300 + $0xa6] sm:$0xff]
      %v3211 = vld [vmem:[%s300 + $0xae] sm:$0xff]
      %v3212 = vld [vmem:[%s300 + $0xb6] sm:$0xff]
      %v3213 = vld [vmem:[%s300 + $0xbe] sm:$0xff]
      %v3214 = vld [vmem:[%s300 + $0xc6] sm:$0xff]
      %v3215 = vld [vmem:[%s300 + $0xce] sm:$0xff]
      %v3216 = vld [vmem:[%s300 + $0xd6] sm:$0xff]
      %v3217 = vld [vmem:[%s300 + $0xde] sm:$0xff]
      %v3218 = vld [vmem:[%s300 + $0xe6] sm:$0xff]
      %v3219 = vld [vmem:[%s300 + $0xee] sm:$0xff]
      %v3220 = vld [vmem:[%s300 + $0xf6] sm:$0xff]
      %v3221 = vld [vmem:[%s300 + $0xfe] sm:$0xff]
      %v3222 = vld [vmem:[%s300 + $0x106] sm:$0xff]
      %v3223 = vld [vmem:[%s300 + $0x10e] sm:$0xff]
      %v3224 = vld [vmem:[%s300 + $0x116] sm:$0xff]
      %v3225 = vld [vmem:[%s300 + $0x11e] sm:$0xff]
      %v3226 = vld [vmem:[%s300 + $0x126] sm:$0xff]
      %v3227 = vld [vmem:[%s300 + $0x12e] sm:$0xff]
      %v3228 = vld [vmem:[%s300 + $0x136] sm:$0xff]
      %v3229 = vld [vmem:[%s300 + $0x13e] sm:$0xff]
      %v3230 = vld [vmem:[%s300 + $0x146] sm:$0xff]
      %v3231 = vld [vmem:[%s300 + $0x14e] sm:$0xff]
      %v3232 = vld [vmem:[%s300 + $0x156] sm:$0xff]
      %v3233 = vld [vmem:[%s300 + $0x15e] sm:$0xff]
      %v3234 = vld [vmem:[%s300 + $0x166] sm:$0xff]
      %v3235 = vpack.c.bf16 %v3195, %v3194
      %v3236 = vpack.c.bf16 %v3197, %v3196
      %v3237 = vpack.c.bf16 %v3199, %v3198
      %v3238 = vpack.c.bf16 %v3201, %v3200
      %v3239 = vpack.c.bf16 %v3203, %v3202
      %v3240 = vpack.c.bf16 %v3205, %v3204
      %v3241 = vpack.c.bf16 %v3207, %v3206
      %v3242 = vpack.c.bf16 %v3209, %v3208
      %v3243 = vpack.c.bf16 %v3211, %v3210
      %v3244 = vpack.c.bf16 %v3213, %v3212
      %v3245 = vpack.c.bf16 %v3215, %v3214
      %v3246 = vpack.c.bf16 %v3217, %v3216
      %v3247 = vpack.c.bf16 %v3219, %v3218
      %v3248 = vpack.c.bf16 %v3221, %v3220
      %v3249 = vpack.c.bf16 %v3223, %v3222
      %v3250 = vpack.c.bf16 %v3225, %v3224
      %v3251 = vpack.c.bf16 %v3227, %v3226
      %v3252 = vpack.c.bf16 %v3229, %v3228
      %v3253 = vpack.c.bf16 %v3231, %v3230
      %v3254 = vpack.c.bf16 %v3233, %v3232
      %v3255 = vpack.c.bf16 %v3234, %v3234
      %s3256 = scalar_lea.vmem %s1, 16
      %v3257 = vld [vmem:[%s3256] sm:$0x3]
      %v3259 = vsel %vm434, %v3235, 0
      %v3262 = vsel %vm434, %v3236, 0
      %v3265 = vsel %vm434, %v3237, 0
      %v3268 = vsel %vm434, %v3238, 0
      %v3271 = vsel %vm434, %v3239, 0
      %v3274 = vsel %vm434, %v3240, 0
      %v3277 = vsel %vm434, %v3241, 0
      %v3280 = vsel %vm434, %v3242, 0
      %v3283 = vsel %vm434, %v3243, 0
      %v3286 = vsel %vm434, %v3244, 0
      %v3289 = vsel %vm434, %v3245, 0
      %v3292 = vsel %vm434, %v3246, 0
      %v3295 = vsel %vm434, %v3247, 0
      %v3298 = vsel %vm434, %v3248, 0
      %v3301 = vsel %vm434, %v3249, 0
      %v3304 = vsel %vm434, %v3250, 0
      %v3307 = vsel %vm434, %v3251, 0
      %v3310 = vsel %vm434, %v3252, 0
      %v3313 = vsel %vm434, %v3253, 0
      %v3316 = vsel %vm434, %v3254, 0
      %v3319 = vsel %vm434, %v3255, 0
      %v3322 = vsel %vm498, %v3257, 0
      %3324 = vmatprep.subr.bf16.mxu0 0
      %3325 = vmatpush1.bf16.msra.mxu0 0
      %3326 = vmatprep.subr.bf16.mxu0 0
      %3327 = vmatpush1.bf16.msra.mxu0 0
      %3328 = vmatprep.subr.bf16.mxu0 0
      %3329 = vmatpush1.bf16.msra.mxu0 0
      %3330 = vmatprep.subr.bf16.mxu0 0
      %3331 = vmatpush1.bf16.msra.mxu0 0
      %3332 = vmatprep.subr.bf16.mxu0 0
      %3333 = vmatpush1.bf16.msra.mxu0 0
      %3334 = vmatprep.subr.bf16.mxu0 0
      %3335 = vmatpush1.bf16.msra.mxu0 0
      %3336 = vmatprep.subr.bf16.mxu0 0
      %3337 = vmatpush1.bf16.msra.mxu0 0
      %3338 = vmatprep.subr.bf16.mxu0 0
      %3339 = vmatpush1.bf16.msra.mxu0 %v3322
      %3340 = vmatprep.subr.bf16.mxu0 0
      %3341 = vmatpush2.bf16.msra.mxu0 0
      %3342 = vmatprep.subr.bf16.mxu0 0
      %3343 = vmatpush2.bf16.msra.mxu0 0
      %3344 = vmatprep.subr.bf16.mxu0 0
      %3345 = vmatpush2.bf16.msra.mxu0 0
      %3346 = vmatprep.subr.bf16.mxu0 0
      %3347 = vmatpush2.bf16.msra.mxu0 0
      %3348 = vmatprep.subr.bf16.mxu0 0
      %3349 = vmatpush2.bf16.msra.mxu0 0
      %3350 = vmatprep.subr.bf16.mxu0 0
      %3351 = vmatpush2.bf16.msra.mxu0 0
      %3352 = vmatprep.subr.bf16.mxu0 0
      %3353 = vmatpush2.bf16.msra.mxu0 0
      %3354 = vmatprep.subr.bf16.mxu0 0
      %3355 = vmatpush2.bf16.msra.mxu0 0
      %3356 = vmatprep.mubr.bf16.mxu0 0
      %3357 = vmatmul.mubr.bf16.gmra.mxu0 %v3259
      %v3358 = vpop.f32.mrf.mxu0
      %v3359 = vadd.f32 0.0, %v3358
      %v3360 = vpop.f32.mrf.mxu0
      %v3361 = vpop.f32.mrf.mxu0
      %v3362 = vadd.f32 0.0, %v3361
      %v3363 = vpop.f32.mrf.mxu0
      %3364 = vmatprep.mubr.bf16.mxu0 0
      %3365 = vmatmul.mubr.bf16.gmra.mxu0 %v3262
      %v3366 = vpop.f32.mrf.mxu0
      %v3367 = vadd.f32 0.0, %v3366
      %v3368 = vpop.f32.mrf.mxu0
      %v3369 = vpop.f32.mrf.mxu0
      %v3370 = vadd.f32 0.0, %v3369
      %v3371 = vpop.f32.mrf.mxu0
      %3372 = vmatprep.mubr.bf16.mxu0 0
      %3373 = vmatmul.mubr.bf16.gmra.mxu0 %v3265
      %v3374 = vpop.f32.mrf.mxu0
      %v3375 = vadd.f32 0.0, %v3374
      %v3376 = vpop.f32.mrf.mxu0
      %v3377 = vpop.f32.mrf.mxu0
      %v3378 = vadd.f32 0.0, %v3377
      %v3379 = vpop.f32.mrf.mxu0
      %3380 = vmatprep.mubr.bf16.mxu0 0
      %3381 = vmatmul.mubr.bf16.gmra.mxu0 %v3268
      %v3382 = vpop.f32.mrf.mxu0
      %v3383 = vadd.f32 0.0, %v3382
      %v3384 = vpop.f32.mrf.mxu0
      %v3385 = vpop.f32.mrf.mxu0
      %v3386 = vadd.f32 0.0, %v3385
      %v3387 = vpop.f32.mrf.mxu0
      %3388 = vmatprep.mubr.bf16.mxu0 0
      %3389 = vmatmul.mubr.bf16.gmra.mxu0 %v3271
      %v3390 = vpop.f32.mrf.mxu0
      %v3391 = vadd.f32 0.0, %v3390
      %v3392 = vpop.f32.mrf.mxu0
      %v3393 = vpop.f32.mrf.mxu0
      %v3394 = vadd.f32 0.0, %v3393
      %v3395 = vpop.f32.mrf.mxu0
      %3396 = vmatprep.mubr.bf16.mxu0 0
      %3397 = vmatmul.mubr.bf16.gmra.mxu0 %v3274
      %v3398 = vpop.f32.mrf.mxu0
      %v3399 = vadd.f32 0.0, %v3398
      %v3400 = vpop.f32.mrf.mxu0
      %v3401 = vpop.f32.mrf.mxu0
      %v3402 = vadd.f32 0.0, %v3401
      %v3403 = vpop.f32.mrf.mxu0
      %3404 = vmatprep.mubr.bf16.mxu0 0
      %3405 = vmatmul.mubr.bf16.gmra.mxu0 %v3277
      %v3406 = vpop.f32.mrf.mxu0
      %v3407 = vadd.f32 0.0, %v3406
      %v3408 = vpop.f32.mrf.mxu0
      %v3409 = vpop.f32.mrf.mxu0
      %v3410 = vadd.f32 0.0, %v3409
      %v3411 = vpop.f32.mrf.mxu0
      %3412 = vmatprep.mubr.bf16.mxu0 0
      %3413 = vmatmul.mubr.bf16.gmra.mxu0 %v3280
      %v3414 = vpop.f32.mrf.mxu0
      %v3415 = vadd.f32 0.0, %v3414
      %v3416 = vpop.f32.mrf.mxu0
      %v3417 = vpop.f32.mrf.mxu0
      %v3418 = vadd.f32 0.0, %v3417
      %v3419 = vpop.f32.mrf.mxu0
      %3420 = vmatprep.mubr.bf16.mxu0 0
      %3421 = vmatmul.mubr.bf16.gmra.mxu0 %v3283
      %v3422 = vpop.f32.mrf.mxu0
      %v3423 = vadd.f32 0.0, %v3422
      %v3424 = vpop.f32.mrf.mxu0
      %v3425 = vpop.f32.mrf.mxu0
      %v3426 = vadd.f32 0.0, %v3425
      %v3427 = vpop.f32.mrf.mxu0
      %3428 = vmatprep.mubr.bf16.mxu0 0
      %3429 = vmatmul.mubr.bf16.gmra.mxu0 %v3286
      %v3430 = vpop.f32.mrf.mxu0
      %v3431 = vadd.f32 0.0, %v3430
      %v3432 = vpop.f32.mrf.mxu0
      %v3433 = vpop.f32.mrf.mxu0
      %v3434 = vadd.f32 0.0, %v3433
      %v3435 = vpop.f32.mrf.mxu0
      %3436 = vmatprep.mubr.bf16.mxu0 0
      %3437 = vmatmul.mubr.bf16.gmra.mxu0 %v3289
      %v3438 = vpop.f32.mrf.mxu0
      %v3439 = vadd.f32 0.0, %v3438
      %v3440 = vpop.f32.mrf.mxu0
      %v3441 = vpop.f32.mrf.mxu0
      %v3442 = vadd.f32 0.0, %v3441
      %v3443 = vpop.f32.mrf.mxu0
      %3444 = vmatprep.mubr.bf16.mxu0 0
      %3445 = vmatmul.mubr.bf16.gmra.mxu0 %v3292
      %v3446 = vpop.f32.mrf.mxu0
      %v3447 = vadd.f32 0.0, %v3446
      %v3448 = vpop.f32.mrf.mxu0
      %v3449 = vpop.f32.mrf.mxu0
      %v3450 = vadd.f32 0.0, %v3449
      %v3451 = vpop.f32.mrf.mxu0
      %3452 = vmatprep.mubr.bf16.mxu0 0
      %3453 = vmatmul.mubr.bf16.gmra.mxu0 %v3295
      %v3454 = vpop.f32.mrf.mxu0
      %v3455 = vadd.f32 0.0, %v3454
      %v3456 = vpop.f32.mrf.mxu0
      %v3457 = vpop.f32.mrf.mxu0
      %v3458 = vadd.f32 0.0, %v3457
      %v3459 = vpop.f32.mrf.mxu0
      %3460 = vmatprep.mubr.bf16.mxu0 0
      %3461 = vmatmul.mubr.bf16.gmra.mxu0 %v3298
      %v3462 = vpop.f32.mrf.mxu0
      %v3463 = vadd.f32 0.0, %v3462
      %v3464 = vpop.f32.mrf.mxu0
      %v3465 = vpop.f32.mrf.mxu0
      %v3466 = vadd.f32 0.0, %v3465
      %v3467 = vpop.f32.mrf.mxu0
      %3468 = vmatprep.mubr.bf16.mxu0 0
      %3469 = vmatmul.mubr.bf16.gmra.mxu0 %v3301
      %v3470 = vpop.f32.mrf.mxu0
      %v3471 = vadd.f32 0.0, %v3470
      %v3472 = vpop.f32.mrf.mxu0
      %v3473 = vpop.f32.mrf.mxu0
      %v3474 = vadd.f32 0.0, %v3473
      %v3475 = vpop.f32.mrf.mxu0
      %3476 = vmatprep.mubr.bf16.mxu0 0
      %3477 = vmatmul.mubr.bf16.gmra.mxu0 %v3304
      %v3478 = vpop.f32.mrf.mxu0
      %v3479 = vadd.f32 0.0, %v3478
      %v3480 = vpop.f32.mrf.mxu0
      %v3481 = vpop.f32.mrf.mxu0
      %v3482 = vadd.f32 0.0, %v3481
      %v3483 = vpop.f32.mrf.mxu0
      %3484 = vmatprep.mubr.bf16.mxu0 0
      %3485 = vmatmul.mubr.bf16.gmra.mxu0 %v3307
      %v3486 = vpop.f32.mrf.mxu0
      %v3487 = vadd.f32 0.0, %v3486
      %v3488 = vpop.f32.mrf.mxu0
      %v3489 = vpop.f32.mrf.mxu0
      %v3490 = vadd.f32 0.0, %v3489
      %v3491 = vpop.f32.mrf.mxu0
      %3492 = vmatprep.mubr.bf16.mxu0 0
      %3493 = vmatmul.mubr.bf16.gmra.mxu0 %v3310
      %v3494 = vpop.f32.mrf.mxu0
      %v3495 = vadd.f32 0.0, %v3494
      %v3496 = vpop.f32.mrf.mxu0
      %v3497 = vpop.f32.mrf.mxu0
      %v3498 = vadd.f32 0.0, %v3497
      %v3499 = vpop.f32.mrf.mxu0
      %3500 = vmatprep.mubr.bf16.mxu0 0
      %3501 = vmatmul.mubr.bf16.gmra.mxu0 %v3313
      %v3502 = vpop.f32.mrf.mxu0
      %v3503 = vadd.f32 0.0, %v3502
      %v3504 = vpop.f32.mrf.mxu0
      %v3505 = vpop.f32.mrf.mxu0
      %v3506 = vadd.f32 0.0, %v3505
      %v3507 = vpop.f32.mrf.mxu0
      %3508 = vmatprep.mubr.bf16.mxu0 0
      %3509 = vmatmul.mubr.bf16.gmra.mxu0 %v3316
      %v3510 = vpop.f32.mrf.mxu0
      %v3511 = vadd.f32 0.0, %v3510
      %v3512 = vpop.f32.mrf.mxu0
      %v3513 = vpop.f32.mrf.mxu0
      %v3514 = vadd.f32 0.0, %v3513
      %v3515 = vpop.f32.mrf.mxu0
      %3516 = vmatprep.mubr.bf16.mxu0 0
      %3517 = vmatmul.mubr.bf16.gmra.mxu0 %v3319
      %v3518 = vpop.f32.mrf.mxu0
      %v3519 = vadd.f32 0.0, %v3518
      %v3520 = vpop.f32.mrf.mxu0
      %v3521 = vpop.f32.mrf.mxu0
      %v3522 = vpop.f32.mrf.mxu0
      %3523 = vdwg.mxu0
      %v3524 = vadd.f32 %v3153, %v3359
      %v3525 = vadd.f32 %v3154, %v3362
      %v3526 = vadd.f32 %v3155, %v3367
      %v3527 = vadd.f32 %v3156, %v3370
      %v3528 = vadd.f32 %v3157, %v3375
      %v3529 = vadd.f32 %v3158, %v3378
      %v3530 = vadd.f32 %v3159, %v3383
      %v3531 = vadd.f32 %v3160, %v3386
      %v3532 = vadd.f32 %v3161, %v3391
      %v3533 = vadd.f32 %v3162, %v3394
      %v3534 = vadd.f32 %v3163, %v3399
      %v3535 = vadd.f32 %v3164, %v3402
      %v3536 = vadd.f32 %v3165, %v3407
      %v3537 = vadd.f32 %v3166, %v3410
      %v3538 = vadd.f32 %v3167, %v3415
      %v3539 = vadd.f32 %v3168, %v3418
      %v3540 = vadd.f32 %v3169, %v3423
      %v3541 = vadd.f32 %v3170, %v3426
      %v3542 = vadd.f32 %v3171, %v3431
      %v3543 = vadd.f32 %v3172, %v3434
      %v3544 = vadd.f32 %v3173, %v3439
      %v3545 = vadd.f32 %v3174, %v3442
      %v3546 = vadd.f32 %v3175, %v3447
      %v3547 = vadd.f32 %v3176, %v3450
      %v3548 = vadd.f32 %v3177, %v3455
      %v3549 = vadd.f32 %v3178, %v3458
      %v3550 = vadd.f32 %v3179, %v3463
      %v3551 = vadd.f32 %v3180, %v3466
      %v3552 = vadd.f32 %v3181, %v3471
      %v3553 = vadd.f32 %v3182, %v3474
      %v3554 = vadd.f32 %v3183, %v3479
      %v3555 = vadd.f32 %v3184, %v3482
      %v3556 = vadd.f32 %v3185, %v3487
      %v3557 = vadd.f32 %v3186, %v3490
      %v3558 = vadd.f32 %v3187, %v3495
      %v3559 = vadd.f32 %v3188, %v3498
      %v3560 = vadd.f32 %v3189, %v3503
      %v3561 = vadd.f32 %v3190, %v3506
      %v3562 = vadd.f32 %v3191, %v3511
      %v3563 = vadd.f32 %v3192, %v3514
      %v3564 = vadd.f32 %v3193, %v3519
      %v3565 = vld [vmem:[%s2] sm:$0x1]
      %v3567 = vlaneseq
      %v3568 = vshrl.u32 %v3567, 7
      %v3569 = vsub.s32 0, %v3568
      %v3570 = vrot.slane %v3565, %v3569
      %v3572 = vmul.f32 %v3524, %v3570
      %v3573 = vmul.f32 %v3525, %v3570
      %v3574 = vmul.f32 %v3526, %v3570
      %v3575 = vmul.f32 %v3527, %v3570
      %v3576 = vmul.f32 %v3528, %v3570
      %v3577 = vmul.f32 %v3529, %v3570
      %v3578 = vmul.f32 %v3530, %v3570
      %v3579 = vmul.f32 %v3531, %v3570
      %v3580 = vmul.f32 %v3532, %v3570
      %v3581 = vmul.f32 %v3533, %v3570
      %v3582 = vmul.f32 %v3534, %v3570
      %v3583 = vmul.f32 %v3535, %v3570
      %v3584 = vmul.f32 %v3536, %v3570
      %v3585 = vmul.f32 %v3537, %v3570
      %v3586 = vmul.f32 %v3538, %v3570
      %v3587 = vmul.f32 %v3539, %v3570
      %v3588 = vmul.f32 %v3540, %v3570
      %v3589 = vmul.f32 %v3541, %v3570
      %v3590 = vmul.f32 %v3542, %v3570
      %v3591 = vmul.f32 %v3543, %v3570
      %v3592 = vmul.f32 %v3544, %v3570
      %v3593 = vmul.f32 %v3545, %v3570
      %v3594 = vmul.f32 %v3546, %v3570
      %v3595 = vmul.f32 %v3547, %v3570
      %v3596 = vmul.f32 %v3548, %v3570
      %v3597 = vmul.f32 %v3549, %v3570
      %v3598 = vmul.f32 %v3550, %v3570
      %v3599 = vmul.f32 %v3551, %v3570
      %v3600 = vmul.f32 %v3552, %v3570
      %v3601 = vmul.f32 %v3553, %v3570
      %v3602 = vmul.f32 %v3554, %v3570
      %v3603 = vmul.f32 %v3555, %v3570
      %v3604 = vmul.f32 %v3556, %v3570
      %v3605 = vmul.f32 %v3557, %v3570
      %v3606 = vmul.f32 %v3558, %v3570
      %v3607 = vmul.f32 %v3559, %v3570
      %v3608 = vmul.f32 %v3560, %v3570
      %v3609 = vmul.f32 %v3561, %v3570
      %v3610 = vmul.f32 %v3562, %v3570
      %v3611 = vmul.f32 %v3563, %v3570
      %v3612 = vmul.f32 %v3564, %v3570
      %v3613 = vld [vmem:[%s3] sm:$0x1]
      %v3615 = vlaneseq
      %v3616 = vshrl.u32 %v3615, 7
      %v3617 = vsub.s32 0, %v3616
      %v3618 = vrot.slane %v3613, %v3617
      %v3620 = vadd.f32 %v3572, %v3618
      %v3621 = vadd.f32 %v3573, %v3618
      %v3622 = vadd.f32 %v3574, %v3618
      %v3623 = vadd.f32 %v3575, %v3618
      %v3624 = vadd.f32 %v3576, %v3618
      %v3625 = vadd.f32 %v3577, %v3618
      %v3626 = vadd.f32 %v3578, %v3618
      %v3627 = vadd.f32 %v3579, %v3618
      %v3628 = vadd.f32 %v3580, %v3618
      %v3629 = vadd.f32 %v3581, %v3618
      %v3630 = vadd.f32 %v3582, %v3618
      %v3631 = vadd.f32 %v3583, %v3618
      %v3632 = vadd.f32 %v3584, %v3618
      %v3633 = vadd.f32 %v3585, %v3618
      %v3634 = vadd.f32 %v3586, %v3618
      %v3635 = vadd.f32 %v3587, %v3618
      %v3636 = vadd.f32 %v3588, %v3618
      %v3637 = vadd.f32 %v3589, %v3618
      %v3638 = vadd.f32 %v3590, %v3618
      %v3639 = vadd.f32 %v3591, %v3618
      %v3640 = vadd.f32 %v3592, %v3618
      %v3641 = vadd.f32 %v3593, %v3618
      %v3642 = vadd.f32 %v3594, %v3618
      %v3643 = vadd.f32 %v3595, %v3618
      %v3644 = vadd.f32 %v3596, %v3618
      %v3645 = vadd.f32 %v3597, %v3618
      %v3646 = vadd.f32 %v3598, %v3618
      %v3647 = vadd.f32 %v3599, %v3618
      %v3648 = vadd.f32 %v3600, %v3618
      %v3649 = vadd.f32 %v3601, %v3618
      %v3650 = vadd.f32 %v3602, %v3618
      %v3651 = vadd.f32 %v3603, %v3618
      %v3652 = vadd.f32 %v3604, %v3618
      %v3653 = vadd.f32 %v3605, %v3618
      %v3654 = vadd.f32 %v3606, %v3618
      %v3655 = vadd.f32 %v3607, %v3618
      %v3656 = vadd.f32 %v3608, %v3618
      %v3657 = vadd.f32 %v3609, %v3618
      %v3658 = vadd.f32 %v3610, %v3618
      %v3659 = vadd.f32 %v3611, %v3618
      %v3660 = vadd.f32 %v3612, %v3618
      %v3661 = vmax.f32 %v3620, 0.0
      %v3662 = vmax.f32 %v3621, 0.0
      %v3663 = vmax.f32 %v3622, 0.0
      %v3664 = vmax.f32 %v3623, 0.0
      %v3665 = vmax.f32 %v3624, 0.0
      %v3666 = vmax.f32 %v3625, 0.0
      %v3667 = vmax.f32 %v3626, 0.0
      %v3668 = vmax.f32 %v3627, 0.0
      %v3669 = vmax.f32 %v3628, 0.0
      %v3670 = vmax.f32 %v3629, 0.0
      %v3671 = vmax.f32 %v3630, 0.0
      %v3672 = vmax.f32 %v3631, 0.0
      %v3673 = vmax.f32 %v3632, 0.0
      %v3674 = vmax.f32 %v3633, 0.0
      %v3675 = vmax.f32 %v3634, 0.0
      %v3676 = vmax.f32 %v3635, 0.0
      %v3677 = vmax.f32 %v3636, 0.0
      %v3678 = vmax.f32 %v3637, 0.0
      %v3679 = vmax.f32 %v3638, 0.0
      %v3680 = vmax.f32 %v3639, 0.0
      %v3681 = vmax.f32 %v3640, 0.0
      %v3682 = vmax.f32 %v3641, 0.0
      %v3683 = vmax.f32 %v3642, 0.0
      %v3684 = vmax.f32 %v3643, 0.0
      %v3685 = vmax.f32 %v3644, 0.0
      %v3686 = vmax.f32 %v3645, 0.0
      %v3687 = vmax.f32 %v3646, 0.0
      %v3688 = vmax.f32 %v3647, 0.0
      %v3689 = vmax.f32 %v3648, 0.0
      %v3690 = vmax.f32 %v3649, 0.0
      %v3691 = vmax.f32 %v3650, 0.0
      %v3692 = vmax.f32 %v3651, 0.0
      %v3693 = vmax.f32 %v3652, 0.0
      %v3694 = vmax.f32 %v3653, 0.0
      %v3695 = vmax.f32 %v3654, 0.0
      %v3696 = vmax.f32 %v3655, 0.0
      %v3697 = vmax.f32 %v3656, 0.0
      %v3698 = vmax.f32 %v3657, 0.0
      %v3699 = vmax.f32 %v3658, 0.0
      %v3700 = vmax.f32 %v3659, 0.0
      %v3701 = vmax.f32 %v3660, 0.0
      %v3702 = vld [vmem:[%s7] sm:$0xff]
      %v3703 = vld [vmem:[%s7 + $0x8] sm:$0xff]
      %v3704 = vld [vmem:[%s7 + $0x10] sm:$0xff]
      %v3705 = vld [vmem:[%s7 + $0x18] sm:$0xff]
      %v3706 = vld [vmem:[%s7 + $0x20] sm:$0xff]
      %v3707 = vld [vmem:[%s7 + $0x28] sm:$0xff]
      %v3708 = vld [vmem:[%s7 + $0x30] sm:$0xff]
      %v3709 = vld [vmem:[%s7 + $0x38] sm:$0xff]
      %v3710 = vld [vmem:[%s7 + $0x40] sm:$0xff]
      %v3711 = vld [vmem:[%s7 + $0x48] sm:$0xff]
      %v3712 = vld [vmem:[%s7 + $0x50] sm:$0xff]
      %v3713 = vld [vmem:[%s7 + $0x58] sm:$0xff]
      %v3714 = vld [vmem:[%s7 + $0x60] sm:$0xff]
      %v3715 = vld [vmem:[%s7 + $0x68] sm:$0xff]
      %v3716 = vld [vmem:[%s7 + $0x70] sm:$0xff]
      %v3717 = vld [vmem:[%s7 + $0x78] sm:$0xff]
      %v3718 = vld [vmem:[%s7 + $0x80] sm:$0xff]
      %v3719 = vld [vmem:[%s7 + $0x88] sm:$0xff]
      %v3720 = vld [vmem:[%s7 + $0x90] sm:$0xff]
      %v3721 = vld [vmem:[%s7 + $0x98] sm:$0xff]
      %v3722 = vld [vmem:[%s7 + $0xa0] sm:$0xff]
      %v3723 = vld [vmem:[%s7 + $0xa8] sm:$0xff]
      %v3724 = vld [vmem:[%s7 + $0xb0] sm:$0xff]
      %v3725 = vld [vmem:[%s7 + $0xb8] sm:$0xff]
      %v3726 = vld [vmem:[%s7 + $0xc0] sm:$0xff]
      %v3727 = vld [vmem:[%s7 + $0xc8] sm:$0xff]
      %v3728 = vld [vmem:[%s7 + $0xd0] sm:$0xff]
      %v3729 = vld [vmem:[%s7 + $0xd8] sm:$0xff]
      %v3730 = vld [vmem:[%s7 + $0xe0] sm:$0xff]
      %v3731 = vld [vmem:[%s7 + $0xe8] sm:$0xff]
      %v3732 = vld [vmem:[%s7 + $0xf0] sm:$0xff]
      %v3733 = vld [vmem:[%s7 + $0xf8] sm:$0xff]
      %v3734 = vld [vmem:[%s7 + $0x100] sm:$0xff]
      %v3735 = vld [vmem:[%s7 + $0x108] sm:$0xff]
      %v3736 = vld [vmem:[%s7 + $0x110] sm:$0xff]
      %v3737 = vld [vmem:[%s7 + $0x118] sm:$0xff]
      %v3738 = vld [vmem:[%s7 + $0x120] sm:$0xff]
      %v3739 = vld [vmem:[%s7 + $0x128] sm:$0xff]
      %v3740 = vld [vmem:[%s7 + $0x130] sm:$0xff]
      %v3741 = vld [vmem:[%s7 + $0x138] sm:$0xff]
      %v3742 = vld [vmem:[%s7 + $0x140] sm:$0xff]
      %3744 = vset.pattern.permute.xlu0 0
      %3745 = vperm.xlu0 %3744, %v3702
      %v3746 = vpop.permute.xlu0 %3745
      %3749 = vset.pattern.permute.xlu0 0
      %3750 = vperm.xlu0 %3749, %v3703
      %v3751 = vpop.permute.xlu0 %3750
      %3754 = vset.pattern.permute.xlu0 0
      %3755 = vperm.xlu0 %3754, %v3704
      %v3756 = vpop.permute.xlu0 %3755
      %3759 = vset.pattern.permute.xlu0 0
      %3760 = vperm.xlu0 %3759, %v3705
      %v3761 = vpop.permute.xlu0 %3760
      %3764 = vset.pattern.permute.xlu0 0
      %3765 = vperm.xlu0 %3764, %v3706
      %v3766 = vpop.permute.xlu0 %3765
      %3769 = vset.pattern.permute.xlu0 0
      %3770 = vperm.xlu0 %3769, %v3707
      %v3771 = vpop.permute.xlu0 %3770
      %3774 = vset.pattern.permute.xlu0 0
      %3775 = vperm.xlu0 %3774, %v3708
      %v3776 = vpop.permute.xlu0 %3775
      %3779 = vset.pattern.permute.xlu0 0
      %3780 = vperm.xlu0 %3779, %v3709
      %v3781 = vpop.permute.xlu0 %3780
      %3784 = vset.pattern.permute.xlu0 0
      %3785 = vperm.xlu0 %3784, %v3710
      %v3786 = vpop.permute.xlu0 %3785
      %3789 = vset.pattern.permute.xlu0 0
      %3790 = vperm.xlu0 %3789, %v3711
      %v3791 = vpop.permute.xlu0 %3790
      %3794 = vset.pattern.permute.xlu0 0
      %3795 = vperm.xlu0 %3794, %v3712
      %v3796 = vpop.permute.xlu0 %3795
      %3799 = vset.pattern.permute.xlu0 0
      %3800 = vperm.xlu0 %3799, %v3713
      %v3801 = vpop.permute.xlu0 %3800
      %3804 = vset.pattern.permute.xlu0 0
      %3805 = vperm.xlu0 %3804, %v3714
      %v3806 = vpop.permute.xlu0 %3805
      %3809 = vset.pattern.permute.xlu0 0
      %3810 = vperm.xlu0 %3809, %v3715
      %v3811 = vpop.permute.xlu0 %3810
      %3814 = vset.pattern.permute.xlu0 0
      %3815 = vperm.xlu0 %3814, %v3716
      %v3816 = vpop.permute.xlu0 %3815
      %3819 = vset.pattern.permute.xlu0 0
      %3820 = vperm.xlu0 %3819, %v3717
      %v3821 = vpop.permute.xlu0 %3820
      %3824 = vset.pattern.permute.xlu0 0
      %3825 = vperm.xlu0 %3824, %v3718
      %v3826 = vpop.permute.xlu0 %3825
      %3829 = vset.pattern.permute.xlu0 0
      %3830 = vperm.xlu0 %3829, %v3719
      %v3831 = vpop.permute.xlu0 %3830
      %3834 = vset.pattern.permute.xlu0 0
      %3835 = vperm.xlu0 %3834, %v3720
      %v3836 = vpop.permute.xlu0 %3835
      %3839 = vset.pattern.permute.xlu0 0
      %3840 = vperm.xlu0 %3839, %v3721
      %v3841 = vpop.permute.xlu0 %3840
      %3844 = vset.pattern.permute.xlu0 0
      %3845 = vperm.xlu0 %3844, %v3722
      %v3846 = vpop.permute.xlu0 %3845
      %3849 = vset.pattern.permute.xlu0 0
      %3850 = vperm.xlu0 %3849, %v3723
      %v3851 = vpop.permute.xlu0 %3850
      %3854 = vset.pattern.permute.xlu0 0
      %3855 = vperm.xlu0 %3854, %v3724
      %v3856 = vpop.permute.xlu0 %3855
      %3859 = vset.pattern.permute.xlu0 0
      %3860 = vperm.xlu0 %3859, %v3725
      %v3861 = vpop.permute.xlu0 %3860
      %3864 = vset.pattern.permute.xlu0 0
      %3865 = vperm.xlu0 %3864, %v3726
      %v3866 = vpop.permute.xlu0 %3865
      %3869 = vset.pattern.permute.xlu0 0
      %3870 = vperm.xlu0 %3869, %v3727
      %v3871 = vpop.permute.xlu0 %3870
      %3874 = vset.pattern.permute.xlu0 0
      %3875 = vperm.xlu0 %3874, %v3728
      %v3876 = vpop.permute.xlu0 %3875
      %3879 = vset.pattern.permute.xlu0 0
      %3880 = vperm.xlu0 %3879, %v3729
      %v3881 = vpop.permute.xlu0 %3880
      %3884 = vset.pattern.permute.xlu0 0
      %3885 = vperm.xlu0 %3884, %v3730
      %v3886 = vpop.permute.xlu0 %3885
      %3889 = vset.pattern.permute.xlu0 0
      %3890 = vperm.xlu0 %3889, %v3731
      %v3891 = vpop.permute.xlu0 %3890
      %3894 = vset.pattern.permute.xlu0 0
      %3895 = vperm.xlu0 %3894, %v3732
      %v3896 = vpop.permute.xlu0 %3895
      %3899 = vset.pattern.permute.xlu0 0
      %3900 = vperm.xlu0 %3899, %v3733
      %v3901 = vpop.permute.xlu0 %3900
      %3904 = vset.pattern.permute.xlu0 0
      %3905 = vperm.xlu0 %3904, %v3734
      %v3906 = vpop.permute.xlu0 %3905
      %3909 = vset.pattern.permute.xlu0 0
      %3910 = vperm.xlu0 %3909, %v3735
      %v3911 = vpop.permute.xlu0 %3910
      %3914 = vset.pattern.permute.xlu0 0
      %3915 = vperm.xlu0 %3914, %v3736
      %v3916 = vpop.permute.xlu0 %3915
      %3919 = vset.pattern.permute.xlu0 0
      %3920 = vperm.xlu0 %3919, %v3737
      %v3921 = vpop.permute.xlu0 %3920
      %3924 = vset.pattern.permute.xlu0 0
      %3925 = vperm.xlu0 %3924, %v3738
      %v3926 = vpop.permute.xlu0 %3925
      %3929 = vset.pattern.permute.xlu0 0
      %3930 = vperm.xlu0 %3929, %v3739
      %v3931 = vpop.permute.xlu0 %3930
      %3934 = vset.pattern.permute.xlu0 0
      %3935 = vperm.xlu0 %3934, %v3740
      %v3936 = vpop.permute.xlu0 %3935
      %3939 = vset.pattern.permute.xlu0 0
      %3940 = vperm.xlu0 %3939, %v3741
      %v3941 = vpop.permute.xlu0 %3940
      %3944 = vset.pattern.permute.xlu0 0
      %3945 = vperm.xlu0 %3944, %v3742
      %v3946 = vpop.permute.xlu0 %3945
      %v3948 = vmul.f32 %v3661, %v3746
      %v3949 = vmul.f32 %v3662, %v3751
      %v3950 = vmul.f32 %v3663, %v3756
      %v3951 = vmul.f32 %v3664, %v3761
      %v3952 = vmul.f32 %v3665, %v3766
      %v3953 = vmul.f32 %v3666, %v3771
      %v3954 = vmul.f32 %v3667, %v3776
      %v3955 = vmul.f32 %v3668, %v3781
      %v3956 = vmul.f32 %v3669, %v3786
      %v3957 = vmul.f32 %v3670, %v3791
      %v3958 = vmul.f32 %v3671, %v3796
      %v3959 = vmul.f32 %v3672, %v3801
      %v3960 = vmul.f32 %v3673, %v3806
      %v3961 = vmul.f32 %v3674, %v3811
      %v3962 = vmul.f32 %v3675, %v3816
      %v3963 = vmul.f32 %v3676, %v3821
      %v3964 = vmul.f32 %v3677, %v3826
      %v3965 = vmul.f32 %v3678, %v3831
      %v3966 = vmul.f32 %v3679, %v3836
      %v3967 = vmul.f32 %v3680, %v3841
      %v3968 = vmul.f32 %v3681, %v3846
      %v3969 = vmul.f32 %v3682, %v3851
      %v3970 = vmul.f32 %v3683, %v3856
      %v3971 = vmul.f32 %v3684, %v3861
      %v3972 = vmul.f32 %v3685, %v3866
      %v3973 = vmul.f32 %v3686, %v3871
      %v3974 = vmul.f32 %v3687, %v3876
      %v3975 = vmul.f32 %v3688, %v3881
      %v3976 = vmul.f32 %v3689, %v3886
      %v3977 = vmul.f32 %v3690, %v3891
      %v3978 = vmul.f32 %v3691, %v3896
      %v3979 = vmul.f32 %v3692, %v3901
      %v3980 = vmul.f32 %v3693, %v3906
      %v3981 = vmul.f32 %v3694, %v3911
      %v3982 = vmul.f32 %v3695, %v3916
      %v3983 = vmul.f32 %v3696, %v3921
      %v3984 = vmul.f32 %v3697, %v3926
      %v3985 = vmul.f32 %v3698, %v3931
      %v3986 = vmul.f32 %v3699, %v3936
      %v3987 = vmul.f32 %v3700, %v3941
      %v3988 = vmul.f32 %v3701, %v3946
      %v3989 = vpack.c.bf16 %v3949, %v3948
      %v3990 = vpack.c.bf16 %v3951, %v3950
      %v3991 = vpack.c.bf16 %v3953, %v3952
      %v3992 = vpack.c.bf16 %v3955, %v3954
      %v3993 = vpack.c.bf16 %v3957, %v3956
      %v3994 = vpack.c.bf16 %v3959, %v3958
      %v3995 = vpack.c.bf16 %v3961, %v3960
      %v3996 = vpack.c.bf16 %v3963, %v3962
      %v3997 = vpack.c.bf16 %v3965, %v3964
      %v3998 = vpack.c.bf16 %v3967, %v3966
      %v3999 = vpack.c.bf16 %v3969, %v3968
      %v4000 = vpack.c.bf16 %v3971, %v3970
      %v4001 = vpack.c.bf16 %v3973, %v3972
      %v4002 = vpack.c.bf16 %v3975, %v3974
      %v4003 = vpack.c.bf16 %v3977, %v3976
      %v4004 = vpack.c.bf16 %v3979, %v3978
      %v4005 = vpack.c.bf16 %v3981, %v3980
      %v4006 = vpack.c.bf16 %v3983, %v3982
      %v4007 = vpack.c.bf16 %v3985, %v3984
      %v4008 = vpack.c.bf16 %v3987, %v3986
      %v4009 = vpack.c.bf16 %v3988, %v3988
      %v4010 = vld [vmem:[%s4] sm:$0x3]
      %s4011 = scalar_lea.vmem %s4, 2
      %v4012 = vld [vmem:[%s4011] sm:$0x3]
      %vm4013 = vsmask.f32 7424
      %v4015 = vshrl.u32 %v3989, 16
      %v4017 = vshll.u32 %v3989, 16
      %v4019 = vrot.slane %v4017, 1
      %v4020 = vor.u32 %v4015, %v4019
      %v4022 = vshll.u32 %v3990, 16
      %v4024 = vrot.slane %v4022, 1
      %v4025 = vsel %vm4013, %v4020, %v4024
      %v4026 = vshrl.u32 %v3990, 16
      %v4028 = vor.u32 %v4026, %v4024
      %v4030 = vshll.u32 %v3991, 16
      %v4032 = vrot.slane %v4030, 1
      %v4033 = vsel %vm4013, %v4028, %v4032
      %v4034 = vshrl.u32 %v3991, 16
      %v4036 = vor.u32 %v4034, %v4032
      %v4038 = vshll.u32 %v3992, 16
      %v4040 = vrot.slane %v4038, 1
      %v4041 = vsel %vm4013, %v4036, %v4040
      %v4042 = vshrl.u32 %v3992, 16
      %v4044 = vor.u32 %v4042, %v4040
      %v4046 = vshll.u32 %v3993, 16
      %v4048 = vrot.slane %v4046, 1
      %v4049 = vsel %vm4013, %v4044, %v4048
      %v4050 = vshrl.u32 %v3993, 16
      %v4052 = vor.u32 %v4050, %v4048
      %v4054 = vshll.u32 %v3994, 16
      %v4056 = vrot.slane %v4054, 1
      %v4057 = vsel %vm4013, %v4052, %v4056
      %v4058 = vshrl.u32 %v3994, 16
      %v4060 = vor.u32 %v4058, %v4056
      %v4062 = vshll.u32 %v3995, 16
      %v4064 = vrot.slane %v4062, 1
      %v4065 = vsel %vm4013, %v4060, %v4064
      %v4066 = vshrl.u32 %v3995, 16
      %v4068 = vor.u32 %v4066, %v4064
      %v4070 = vshll.u32 %v3996, 16
      %v4072 = vrot.slane %v4070, 1
      %v4073 = vsel %vm4013, %v4068, %v4072
      %v4074 = vshrl.u32 %v3996, 16
      %v4076 = vor.u32 %v4074, %v4072
      %v4078 = vshll.u32 %v3997, 16
      %v4080 = vrot.slane %v4078, 1
      %v4081 = vsel %vm4013, %v4076, %v4080
      %v4082 = vshrl.u32 %v3997, 16
      %v4084 = vor.u32 %v4082, %v4080
      %v4086 = vshll.u32 %v3998, 16
      %v4088 = vrot.slane %v4086, 1
      %v4089 = vsel %vm4013, %v4084, %v4088
      %v4090 = vshrl.u32 %v3998, 16
      %v4092 = vor.u32 %v4090, %v4088
      %v4094 = vshll.u32 %v3999, 16
      %v4096 = vrot.slane %v4094, 1
      %v4097 = vsel %vm4013, %v4092, %v4096
      %v4098 = vshrl.u32 %v3999, 16
      %v4100 = vor.u32 %v4098, %v4096
      %v4102 = vshll.u32 %v4000, 16
      %v4104 = vrot.slane %v4102, 1
      %v4105 = vsel %vm4013, %v4100, %v4104
      %v4106 = vshrl.u32 %v4000, 16
      %v4108 = vor.u32 %v4106, %v4104
      %v4110 = vshll.u32 %v4001, 16
      %v4112 = vrot.slane %v4110, 1
      %v4113 = vsel %vm4013, %v4108, %v4112
      %v4114 = vshrl.u32 %v4001, 16
      %v4116 = vor.u32 %v4114, %v4112
      %v4118 = vshll.u32 %v4002, 16
      %v4120 = vrot.slane %v4118, 1
      %v4121 = vsel %vm4013, %v4116, %v4120
      %v4122 = vshrl.u32 %v4002, 16
      %v4124 = vor.u32 %v4122, %v4120
      %v4126 = vshll.u32 %v4003, 16
      %v4128 = vrot.slane %v4126, 1
      %v4129 = vsel %vm4013, %v4124, %v4128
      %v4130 = vshrl.u32 %v4003, 16
      %v4132 = vor.u32 %v4130, %v4128
      %v4134 = vshll.u32 %v4004, 16
      %v4136 = vrot.slane %v4134, 1
      %v4137 = vsel %vm4013, %v4132, %v4136
      %v4138 = vshrl.u32 %v4004, 16
      %v4140 = vor.u32 %v4138, %v4136
      %v4142 = vshll.u32 %v4005, 16
      %v4144 = vrot.slane %v4142, 1
      %v4145 = vsel %vm4013, %v4140, %v4144
      %v4146 = vshrl.u32 %v4005, 16
      %v4148 = vor.u32 %v4146, %v4144
      %v4150 = vshll.u32 %v4006, 16
      %v4152 = vrot.slane %v4150, 1
      %v4153 = vsel %vm4013, %v4148, %v4152
      %v4154 = vshrl.u32 %v4006, 16
      %v4156 = vor.u32 %v4154, %v4152
      %v4158 = vshll.u32 %v4007, 16
      %v4160 = vrot.slane %v4158, 1
      %v4161 = vsel %vm4013, %v4156, %v4160
      %v4163 = vsel %vm434, %v4025, 0
      %v4166 = vsel %vm434, %v4033, 0
      %v4169 = vsel %vm434, %v4041, 0
      %v4172 = vsel %vm434, %v4049, 0
      %v4175 = vsel %vm434, %v4057, 0
      %v4178 = vsel %vm434, %v4065, 0
      %v4181 = vsel %vm434, %v4073, 0
      %v4184 = vsel %vm434, %v4081, 0
      %v4187 = vsel %vm434, %v4089, 0
      %v4190 = vsel %vm434, %v4097, 0
      %v4193 = vsel %vm434, %v4105, 0
      %v4196 = vsel %vm434, %v4113, 0
      %v4199 = vsel %vm434, %v4121, 0
      %v4202 = vsel %vm434, %v4129, 0
      %v4205 = vsel %vm434, %v4137, 0
      %v4208 = vsel %vm434, %v4145, 0
      %v4211 = vsel %vm434, %v4153, 0
      %v4214 = vsel %vm434, %v4161, 0
      %v4217 = vsel %vm498, %v4012, 0
      %4219 = vmatprep.subr.bf16.mxu0 0
      %4220 = vmatpush1.bf16.msra.mxu0 0
      %4221 = vmatprep.subr.bf16.mxu0 0
      %4222 = vmatpush1.bf16.msra.mxu0 0
      %4223 = vmatprep.subr.bf16.mxu0 0
      %4224 = vmatpush1.bf16.msra.mxu0 0
      %4225 = vmatprep.subr.bf16.mxu0 0
      %4226 = vmatpush1.bf16.msra.mxu0 0
      %4227 = vmatprep.subr.bf16.mxu0 0
      %4228 = vmatpush1.bf16.msra.mxu0 0
      %4229 = vmatprep.subr.bf16.mxu0 0
      %4230 = vmatpush1.bf16.msra.mxu0 0
      %4231 = vmatprep.subr.bf16.mxu0 0
      %4232 = vmatpush1.bf16.msra.mxu0 0
      %4233 = vmatprep.subr.bf16.mxu0 0
      %4234 = vmatpush1.bf16.msra.mxu0 %v4217
      %4235 = vmatprep.subr.bf16.mxu0 0
      %4236 = vmatpush2.bf16.msra.mxu0 0
      %4237 = vmatprep.subr.bf16.mxu0 0
      %4238 = vmatpush2.bf16.msra.mxu0 0
      %4239 = vmatprep.subr.bf16.mxu0 0
      %4240 = vmatpush2.bf16.msra.mxu0 0
      %4241 = vmatprep.subr.bf16.mxu0 0
      %4242 = vmatpush2.bf16.msra.mxu0 0
      %4243 = vmatprep.subr.bf16.mxu0 0
      %4244 = vmatpush2.bf16.msra.mxu0 0
      %4245 = vmatprep.subr.bf16.mxu0 0
      %4246 = vmatpush2.bf16.msra.mxu0 0
      %4247 = vmatprep.subr.bf16.mxu0 0
      %4248 = vmatpush2.bf16.msra.mxu0 0
      %4249 = vmatprep.subr.bf16.mxu0 0
      %4250 = vmatpush2.bf16.msra.mxu0 0
      %4251 = vmatprep.mubr.bf16.mxu0 0
      %4252 = vmatmul.mubr.bf16.gmra.mxu0 %v4163
      %v4253 = vpop.f32.mrf.mxu0
      %v4254 = vadd.f32 0.0, %v4253
      %v4255 = vpop.f32.mrf.mxu0
      %v4256 = vpop.f32.mrf.mxu0
      %v4257 = vadd.f32 0.0, %v4256
      %v4258 = vpop.f32.mrf.mxu0
      %4259 = vmatprep.mubr.bf16.mxu0 0
      %4260 = vmatmul.mubr.bf16.gmra.mxu0 %v4166
      %v4261 = vpop.f32.mrf.mxu0
      %v4262 = vadd.f32 0.0, %v4261
      %v4263 = vpop.f32.mrf.mxu0
      %v4264 = vpop.f32.mrf.mxu0
      %v4265 = vadd.f32 0.0, %v4264
      %v4266 = vpop.f32.mrf.mxu0
      %4267 = vmatprep.mubr.bf16.mxu0 0
      %4268 = vmatmul.mubr.bf16.gmra.mxu0 %v4169
      %v4269 = vpop.f32.mrf.mxu0
      %v4270 = vadd.f32 0.0, %v4269
      %v4271 = vpop.f32.mrf.mxu0
      %v4272 = vpop.f32.mrf.mxu0
      %v4273 = vadd.f32 0.0, %v4272
      %v4274 = vpop.f32.mrf.mxu0
      %4275 = vmatprep.mubr.bf16.mxu0 0
      %4276 = vmatmul.mubr.bf16.gmra.mxu0 %v4172
      %v4277 = vpop.f32.mrf.mxu0
      %v4278 = vadd.f32 0.0, %v4277
      %v4279 = vpop.f32.mrf.mxu0
      %v4280 = vpop.f32.mrf.mxu0
      %v4281 = vadd.f32 0.0, %v4280
      %v4282 = vpop.f32.mrf.mxu0
      %4283 = vmatprep.mubr.bf16.mxu0 0
      %4284 = vmatmul.mubr.bf16.gmra.mxu0 %v4175
      %v4285 = vpop.f32.mrf.mxu0
      %v4286 = vadd.f32 0.0, %v4285
      %v4287 = vpop.f32.mrf.mxu0
      %v4288 = vpop.f32.mrf.mxu0
      %v4289 = vadd.f32 0.0, %v4288
      %v4290 = vpop.f32.mrf.mxu0
      %4291 = vmatprep.mubr.bf16.mxu0 0
      %4292 = vmatmul.mubr.bf16.gmra.mxu0 %v4178
      %v4293 = vpop.f32.mrf.mxu0
      %v4294 = vadd.f32 0.0, %v4293
      %v4295 = vpop.f32.mrf.mxu0
      %v4296 = vpop.f32.mrf.mxu0
      %v4297 = vadd.f32 0.0, %v4296
      %v4298 = vpop.f32.mrf.mxu0
      %4299 = vmatprep.mubr.bf16.mxu0 0
      %4300 = vmatmul.mubr.bf16.gmra.mxu0 %v4181
      %v4301 = vpop.f32.mrf.mxu0
      %v4302 = vadd.f32 0.0, %v4301
      %v4303 = vpop.f32.mrf.mxu0
      %v4304 = vpop.f32.mrf.mxu0
      %v4305 = vadd.f32 0.0, %v4304
      %v4306 = vpop.f32.mrf.mxu0
      %4307 = vmatprep.mubr.bf16.mxu0 0
      %4308 = vmatmul.mubr.bf16.gmra.mxu0 %v4184
      %v4309 = vpop.f32.mrf.mxu0
      %v4310 = vadd.f32 0.0, %v4309
      %v4311 = vpop.f32.mrf.mxu0
      %v4312 = vpop.f32.mrf.mxu0
      %v4313 = vadd.f32 0.0, %v4312
      %v4314 = vpop.f32.mrf.mxu0
      %4315 = vmatprep.mubr.bf16.mxu0 0
      %4316 = vmatmul.mubr.bf16.gmra.mxu0 %v4187
      %v4317 = vpop.f32.mrf.mxu0
      %v4318 = vadd.f32 0.0, %v4317
      %v4319 = vpop.f32.mrf.mxu0
      %v4320 = vpop.f32.mrf.mxu0
      %v4321 = vadd.f32 0.0, %v4320
      %v4322 = vpop.f32.mrf.mxu0
      %4323 = vmatprep.mubr.bf16.mxu0 0
      %4324 = vmatmul.mubr.bf16.gmra.mxu0 %v4190
      %v4325 = vpop.f32.mrf.mxu0
      %v4326 = vadd.f32 0.0, %v4325
      %v4327 = vpop.f32.mrf.mxu0
      %v4328 = vpop.f32.mrf.mxu0
      %v4329 = vadd.f32 0.0, %v4328
      %v4330 = vpop.f32.mrf.mxu0
      %4331 = vmatprep.mubr.bf16.mxu0 0
      %4332 = vmatmul.mubr.bf16.gmra.mxu0 %v4193
      %v4333 = vpop.f32.mrf.mxu0
      %v4334 = vadd.f32 0.0, %v4333
      %v4335 = vpop.f32.mrf.mxu0
      %v4336 = vpop.f32.mrf.mxu0
      %v4337 = vadd.f32 0.0, %v4336
      %v4338 = vpop.f32.mrf.mxu0
      %4339 = vmatprep.mubr.bf16.mxu0 0
      %4340 = vmatmul.mubr.bf16.gmra.mxu0 %v4196
      %v4341 = vpop.f32.mrf.mxu0
      %v4342 = vadd.f32 0.0, %v4341
      %v4343 = vpop.f32.mrf.mxu0
      %v4344 = vpop.f32.mrf.mxu0
      %v4345 = vadd.f32 0.0, %v4344
      %v4346 = vpop.f32.mrf.mxu0
      %4347 = vmatprep.mubr.bf16.mxu0 0
      %4348 = vmatmul.mubr.bf16.gmra.mxu0 %v4199
      %v4349 = vpop.f32.mrf.mxu0
      %v4350 = vadd.f32 0.0, %v4349
      %v4351 = vpop.f32.mrf.mxu0
      %v4352 = vpop.f32.mrf.mxu0
      %v4353 = vadd.f32 0.0, %v4352
      %v4354 = vpop.f32.mrf.mxu0
      %4355 = vmatprep.mubr.bf16.mxu0 0
      %4356 = vmatmul.mubr.bf16.gmra.mxu0 %v4202
      %v4357 = vpop.f32.mrf.mxu0
      %v4358 = vadd.f32 0.0, %v4357
      %v4359 = vpop.f32.mrf.mxu0
      %v4360 = vpop.f32.mrf.mxu0
      %v4361 = vadd.f32 0.0, %v4360
      %v4362 = vpop.f32.mrf.mxu0
      %4363 = vmatprep.mubr.bf16.mxu0 0
      %4364 = vmatmul.mubr.bf16.gmra.mxu0 %v4205
      %v4365 = vpop.f32.mrf.mxu0
      %v4366 = vadd.f32 0.0, %v4365
      %v4367 = vpop.f32.mrf.mxu0
      %v4368 = vpop.f32.mrf.mxu0
      %v4369 = vadd.f32 0.0, %v4368
      %v4370 = vpop.f32.mrf.mxu0
      %4371 = vmatprep.mubr.bf16.mxu0 0
      %4372 = vmatmul.mubr.bf16.gmra.mxu0 %v4208
      %v4373 = vpop.f32.mrf.mxu0
      %v4374 = vadd.f32 0.0, %v4373
      %v4375 = vpop.f32.mrf.mxu0
      %v4376 = vpop.f32.mrf.mxu0
      %v4377 = vadd.f32 0.0, %v4376
      %v4378 = vpop.f32.mrf.mxu0
      %4379 = vmatprep.mubr.bf16.mxu0 0
      %4380 = vmatmul.mubr.bf16.gmra.mxu0 %v4211
      %v4381 = vpop.f32.mrf.mxu0
      %v4382 = vadd.f32 0.0, %v4381
      %v4383 = vpop.f32.mrf.mxu0
      %v4384 = vpop.f32.mrf.mxu0
      %v4385 = vadd.f32 0.0, %v4384
      %v4386 = vpop.f32.mrf.mxu0
      %4387 = vmatprep.mubr.bf16.mxu0 0
      %4388 = vmatmul.mubr.bf16.gmra.mxu0 %v4214
      %v4389 = vpop.f32.mrf.mxu0
      %v4390 = vadd.f32 0.0, %v4389
      %v4391 = vpop.f32.mrf.mxu0
      %v4392 = vpop.f32.mrf.mxu0
      %v4393 = vadd.f32 0.0, %v4392
      %v4394 = vpop.f32.mrf.mxu0
      %4395 = vdwg.mxu0
      %v4396 = vsel %vm434, %v3989, 0
      %v4398 = vsel %vm434, %v3990, 0
      %v4400 = vsel %vm434, %v3991, 0
      %v4402 = vsel %vm434, %v3992, 0
      %v4404 = vsel %vm434, %v3993, 0
      %v4406 = vsel %vm434, %v3994, 0
      %v4408 = vsel %vm434, %v3995, 0
      %v4410 = vsel %vm434, %v3996, 0
      %v4412 = vsel %vm434, %v3997, 0
      %v4414 = vsel %vm434, %v3998, 0
      %v4416 = vsel %vm434, %v3999, 0
      %v4418 = vsel %vm434, %v4000, 0
      %v4420 = vsel %vm434, %v4001, 0
      %v4422 = vsel %vm434, %v4002, 0
      %v4424 = vsel %vm434, %v4003, 0
      %v4426 = vsel %vm434, %v4004, 0
      %v4428 = vsel %vm434, %v4005, 0
      %v4430 = vsel %vm434, %v4006, 0
      %v4433 = vsel %vm498, %v4010, 0
      %4435 = vmatprep.subr.bf16.mxu0 0
      %4436 = vmatpush1.bf16.msra.mxu0 0
      %4437 = vmatprep.subr.bf16.mxu0 0
      %4438 = vmatpush1.bf16.msra.mxu0 0
      %4439 = vmatprep.subr.bf16.mxu0 0
      %4440 = vmatpush1.bf16.msra.mxu0 0
      %4441 = vmatprep.subr.bf16.mxu0 0
      %4442 = vmatpush1.bf16.msra.mxu0 0
      %4443 = vmatprep.subr.bf16.mxu0 0
      %4444 = vmatpush1.bf16.msra.mxu0 0
      %4445 = vmatprep.subr.bf16.mxu0 0
      %4446 = vmatpush1.bf16.msra.mxu0 0
      %4447 = vmatprep.subr.bf16.mxu0 0
      %4448 = vmatpush1.bf16.msra.mxu0 0
      %4449 = vmatprep.subr.bf16.mxu0 0
      %4450 = vmatpush1.bf16.msra.mxu0 %v4433
      %4451 = vmatprep.subr.bf16.mxu0 0
      %4452 = vmatpush2.bf16.msra.mxu0 0
      %4453 = vmatprep.subr.bf16.mxu0 0
      %4454 = vmatpush2.bf16.msra.mxu0 0
      %4455 = vmatprep.subr.bf16.mxu0 0
      %4456 = vmatpush2.bf16.msra.mxu0 0
      %4457 = vmatprep.subr.bf16.mxu0 0
      %4458 = vmatpush2.bf16.msra.mxu0 0
      %4459 = vmatprep.subr.bf16.mxu0 0
      %4460 = vmatpush2.bf16.msra.mxu0 0
      %4461 = vmatprep.subr.bf16.mxu0 0
      %4462 = vmatpush2.bf16.msra.mxu0 0
      %4463 = vmatprep.subr.bf16.mxu0 0
      %4464 = vmatpush2.bf16.msra.mxu0 0
      %4465 = vmatprep.subr.bf16.mxu0 0
      %4466 = vmatpush2.bf16.msra.mxu0 0
      %4467 = vmatprep.mubr.bf16.mxu0 0
      %4468 = vmatmul.mubr.bf16.gmra.mxu0 %v4396
      %v4469 = vpop.f32.mrf.mxu0
      %v4470 = vadd.f32 %v4254, %v4469
      %v4471 = vpop.f32.mrf.mxu0
      %v4472 = vpop.f32.mrf.mxu0
      %v4473 = vadd.f32 %v4257, %v4472
      %v4474 = vpop.f32.mrf.mxu0
      %4475 = vmatprep.mubr.bf16.mxu0 0
      %4476 = vmatmul.mubr.bf16.gmra.mxu0 %v4398
      %v4477 = vpop.f32.mrf.mxu0
      %v4478 = vadd.f32 %v4262, %v4477
      %v4479 = vpop.f32.mrf.mxu0
      %v4480 = vpop.f32.mrf.mxu0
      %v4481 = vadd.f32 %v4265, %v4480
      %v4482 = vpop.f32.mrf.mxu0
      %4483 = vmatprep.mubr.bf16.mxu0 0
      %4484 = vmatmul.mubr.bf16.gmra.mxu0 %v4400
      %v4485 = vpop.f32.mrf.mxu0
      %v4486 = vadd.f32 %v4270, %v4485
      %v4487 = vpop.f32.mrf.mxu0
      %v4488 = vpop.f32.mrf.mxu0
      %v4489 = vadd.f32 %v4273, %v4488
      %v4490 = vpop.f32.mrf.mxu0
      %4491 = vmatprep.mubr.bf16.mxu0 0
      %4492 = vmatmul.mubr.bf16.gmra.mxu0 %v4402
      %v4493 = vpop.f32.mrf.mxu0
      %v4494 = vadd.f32 %v4278, %v4493
      %v4495 = vpop.f32.mrf.mxu0
      %v4496 = vpop.f32.mrf.mxu0
      %v4497 = vadd.f32 %v4281, %v4496
      %v4498 = vpop.f32.mrf.mxu0
      %4499 = vmatprep.mubr.bf16.mxu0 0
      %4500 = vmatmul.mubr.bf16.gmra.mxu0 %v4404
      %v4501 = vpop.f32.mrf.mxu0
      %v4502 = vadd.f32 %v4286, %v4501
      %v4503 = vpop.f32.mrf.mxu0
      %v4504 = vpop.f32.mrf.mxu0
      %v4505 = vadd.f32 %v4289, %v4504
      %v4506 = vpop.f32.mrf.mxu0
      %4507 = vmatprep.mubr.bf16.mxu0 0
      %4508 = vmatmul.mubr.bf16.gmra.mxu0 %v4406
      %v4509 = vpop.f32.mrf.mxu0
      %v4510 = vadd.f32 %v4294, %v4509
      %v4511 = vpop.f32.mrf.mxu0
      %v4512 = vpop.f32.mrf.mxu0
      %v4513 = vadd.f32 %v4297, %v4512
      %v4514 = vpop.f32.mrf.mxu0
      %4515 = vmatprep.mubr.bf16.mxu0 0
      %4516 = vmatmul.mubr.bf16.gmra.mxu0 %v4408
      %v4517 = vpop.f32.mrf.mxu0
      %v4518 = vadd.f32 %v4302, %v4517
      %v4519 = vpop.f32.mrf.mxu0
      %v4520 = vpop.f32.mrf.mxu0
      %v4521 = vadd.f32 %v4305, %v4520
      %v4522 = vpop.f32.mrf.mxu0
      %4523 = vmatprep.mubr.bf16.mxu0 0
      %4524 = vmatmul.mubr.bf16.gmra.mxu0 %v4410
      %v4525 = vpop.f32.mrf.mxu0
      %v4526 = vadd.f32 %v4310, %v4525
      %v4527 = vpop.f32.mrf.mxu0
      %v4528 = vpop.f32.mrf.mxu0
      %v4529 = vadd.f32 %v4313, %v4528
      %v4530 = vpop.f32.mrf.mxu0
      %4531 = vmatprep.mubr.bf16.mxu0 0
      %4532 = vmatmul.mubr.bf16.gmra.mxu0 %v4412
      %v4533 = vpop.f32.mrf.mxu0
      %v4534 = vadd.f32 %v4318, %v4533
      %v4535 = vpop.f32.mrf.mxu0
      %v4536 = vpop.f32.mrf.mxu0
      %v4537 = vadd.f32 %v4321, %v4536
      %v4538 = vpop.f32.mrf.mxu0
      %4539 = vmatprep.mubr.bf16.mxu0 0
      %4540 = vmatmul.mubr.bf16.gmra.mxu0 %v4414
      %v4541 = vpop.f32.mrf.mxu0
      %v4542 = vadd.f32 %v4326, %v4541
      %v4543 = vpop.f32.mrf.mxu0
      %v4544 = vpop.f32.mrf.mxu0
      %v4545 = vadd.f32 %v4329, %v4544
      %v4546 = vpop.f32.mrf.mxu0
      %4547 = vmatprep.mubr.bf16.mxu0 0
      %4548 = vmatmul.mubr.bf16.gmra.mxu0 %v4416
      %v4549 = vpop.f32.mrf.mxu0
      %v4550 = vadd.f32 %v4334, %v4549
      %v4551 = vpop.f32.mrf.mxu0
      %v4552 = vpop.f32.mrf.mxu0
      %v4553 = vadd.f32 %v4337, %v4552
      %v4554 = vpop.f32.mrf.mxu0
      %4555 = vmatprep.mubr.bf16.mxu0 0
      %4556 = vmatmul.mubr.bf16.gmra.mxu0 %v4418
      %v4557 = vpop.f32.mrf.mxu0
      %v4558 = vadd.f32 %v4342, %v4557
      %v4559 = vpop.f32.mrf.mxu0
      %v4560 = vpop.f32.mrf.mxu0
      %v4561 = vadd.f32 %v4345, %v4560
      %v4562 = vpop.f32.mrf.mxu0
      %4563 = vmatprep.mubr.bf16.mxu0 0
      %4564 = vmatmul.mubr.bf16.gmra.mxu0 %v4420
      %v4565 = vpop.f32.mrf.mxu0
      %v4566 = vadd.f32 %v4350, %v4565
      %v4567 = vpop.f32.mrf.mxu0
      %v4568 = vpop.f32.mrf.mxu0
      %v4569 = vadd.f32 %v4353, %v4568
      %v4570 = vpop.f32.mrf.mxu0
      %4571 = vmatprep.mubr.bf16.mxu0 0
      %4572 = vmatmul.mubr.bf16.gmra.mxu0 %v4422
      %v4573 = vpop.f32.mrf.mxu0
      %v4574 = vadd.f32 %v4358, %v4573
      %v4575 = vpop.f32.mrf.mxu0
      %v4576 = vpop.f32.mrf.mxu0
      %v4577 = vadd.f32 %v4361, %v4576
      %v4578 = vpop.f32.mrf.mxu0
      %4579 = vmatprep.mubr.bf16.mxu0 0
      %4580 = vmatmul.mubr.bf16.gmra.mxu0 %v4424
      %v4581 = vpop.f32.mrf.mxu0
      %v4582 = vadd.f32 %v4366, %v4581
      %v4583 = vpop.f32.mrf.mxu0
      %v4584 = vpop.f32.mrf.mxu0
      %v4585 = vadd.f32 %v4369, %v4584
      %v4586 = vpop.f32.mrf.mxu0
      %4587 = vmatprep.mubr.bf16.mxu0 0
      %4588 = vmatmul.mubr.bf16.gmra.mxu0 %v4426
      %v4589 = vpop.f32.mrf.mxu0
      %v4590 = vadd.f32 %v4374, %v4589
      %v4591 = vpop.f32.mrf.mxu0
      %v4592 = vpop.f32.mrf.mxu0
      %v4593 = vadd.f32 %v4377, %v4592
      %v4594 = vpop.f32.mrf.mxu0
      %4595 = vmatprep.mubr.bf16.mxu0 0
      %4596 = vmatmul.mubr.bf16.gmra.mxu0 %v4428
      %v4597 = vpop.f32.mrf.mxu0
      %v4598 = vadd.f32 %v4382, %v4597
      %v4599 = vpop.f32.mrf.mxu0
      %v4600 = vpop.f32.mrf.mxu0
      %v4601 = vadd.f32 %v4385, %v4600
      %v4602 = vpop.f32.mrf.mxu0
      %4603 = vmatprep.mubr.bf16.mxu0 0
      %4604 = vmatmul.mubr.bf16.gmra.mxu0 %v4430
      %v4605 = vpop.f32.mrf.mxu0
      %v4606 = vadd.f32 %v4390, %v4605
      %v4607 = vpop.f32.mrf.mxu0
      %v4608 = vpop.f32.mrf.mxu0
      %v4609 = vadd.f32 %v4393, %v4608
      %v4610 = vpop.f32.mrf.mxu0
      %4611 = vdwg.mxu0
      %s4612 = scalar_lea.vmem %s4, 4
      %v4613 = vld [vmem:[%s4612] sm:$0x3]
      %vm4633 = vcmask 1046528
      %v4634 = vrot.slane %v3989, 1
      %v4635 = vrot.slane %v3990, 1
      %v4636 = vsel %vm4633, %v4634, %v4635
      %v4637 = vrot.slane %v3991, 1
      %v4638 = vsel %vm4633, %v4635, %v4637
      %v4639 = vrot.slane %v3992, 1
      %v4640 = vsel %vm4633, %v4637, %v4639
      %v4641 = vrot.slane %v3993, 1
      %v4642 = vsel %vm4633, %v4639, %v4641
      %v4643 = vrot.slane %v3994, 1
      %v4644 = vsel %vm4633, %v4641, %v4643
      %v4645 = vrot.slane %v3995, 1
      %v4646 = vsel %vm4633, %v4643, %v4645
      %v4647 = vrot.slane %v3996, 1
      %v4648 = vsel %vm4633, %v4645, %v4647
      %v4649 = vrot.slane %v3997, 1
      %v4650 = vsel %vm4633, %v4647, %v4649
      %v4651 = vrot.slane %v3998, 1
      %v4652 = vsel %vm4633, %v4649, %v4651
      %v4653 = vrot.slane %v3999, 1
      %v4654 = vsel %vm4633, %v4651, %v4653
      %v4655 = vrot.slane %v4000, 1
      %v4656 = vsel %vm4633, %v4653, %v4655
      %v4657 = vrot.slane %v4001, 1
      %v4658 = vsel %vm4633, %v4655, %v4657
      %v4659 = vrot.slane %v4002, 1
      %v4660 = vsel %vm4633, %v4657, %v4659
      %v4661 = vrot.slane %v4003, 1
      %v4662 = vsel %vm4633, %v4659, %v4661
      %v4663 = vrot.slane %v4004, 1
      %v4664 = vsel %vm4633, %v4661, %v4663
      %v4665 = vrot.slane %v4005, 1
      %v4666 = vsel %vm4633, %v4663, %v4665
      %v4667 = vrot.slane %v4006, 1
      %v4668 = vsel %vm4633, %v4665, %v4667
      %v4669 = vrot.slane %v4007, 1
      %v4670 = vsel %vm4633, %v4667, %v4669
      %v4672 = vsel %vm434, %v4636, 0
      %v4675 = vsel %vm434, %v4638, 0
      %v4678 = vsel %vm434, %v4640, 0
      %v4681 = vsel %vm434, %v4642, 0
      %v4684 = vsel %vm434, %v4644, 0
      %v4687 = vsel %vm434, %v4646, 0
      %v4690 = vsel %vm434, %v4648, 0
      %v4693 = vsel %vm434, %v4650, 0
      %v4696 = vsel %vm434, %v4652, 0
      %v4699 = vsel %vm434, %v4654, 0
      %v4702 = vsel %vm434, %v4656, 0
      %v4705 = vsel %vm434, %v4658, 0
      %v4708 = vsel %vm434, %v4660, 0
      %v4711 = vsel %vm434, %v4662, 0
      %v4714 = vsel %vm434, %v4664, 0
      %v4717 = vsel %vm434, %v4666, 0
      %v4720 = vsel %vm434, %v4668, 0
      %v4723 = vsel %vm434, %v4670, 0
      %v4726 = vsel %vm498, %v4613, 0
      %4728 = vmatprep.subr.bf16.mxu0 0
      %4729 = vmatpush1.bf16.msra.mxu0 0
      %4730 = vmatprep.subr.bf16.mxu0 0
      %4731 = vmatpush1.bf16.msra.mxu0 0
      %4732 = vmatprep.subr.bf16.mxu0 0
      %4733 = vmatpush1.bf16.msra.mxu0 0
      %4734 = vmatprep.subr.bf16.mxu0 0
      %4735 = vmatpush1.bf16.msra.mxu0 0
      %4736 = vmatprep.subr.bf16.mxu0 0
      %4737 = vmatpush1.bf16.msra.mxu0 0
      %4738 = vmatprep.subr.bf16.mxu0 0
      %4739 = vmatpush1.bf16.msra.mxu0 0
      %4740 = vmatprep.subr.bf16.mxu0 0
      %4741 = vmatpush1.bf16.msra.mxu0 0
      %4742 = vmatprep.subr.bf16.mxu0 0
      %4743 = vmatpush1.bf16.msra.mxu0 %v4726
      %4744 = vmatprep.subr.bf16.mxu0 0
      %4745 = vmatpush2.bf16.msra.mxu0 0
      %4746 = vmatprep.subr.bf16.mxu0 0
      %4747 = vmatpush2.bf16.msra.mxu0 0
      %4748 = vmatprep.subr.bf16.mxu0 0
      %4749 = vmatpush2.bf16.msra.mxu0 0
      %4750 = vmatprep.subr.bf16.mxu0 0
      %4751 = vmatpush2.bf16.msra.mxu0 0
      %4752 = vmatprep.subr.bf16.mxu0 0
      %4753 = vmatpush2.bf16.msra.mxu0 0
      %4754 = vmatprep.subr.bf16.mxu0 0
      %4755 = vmatpush2.bf16.msra.mxu0 0
      %4756 = vmatprep.subr.bf16.mxu0 0
      %4757 = vmatpush2.bf16.msra.mxu0 0
      %4758 = vmatprep.subr.bf16.mxu0 0
      %4759 = vmatpush2.bf16.msra.mxu0 0
      %4760 = vmatprep.mubr.bf16.mxu0 0
      %4761 = vmatmul.mubr.bf16.gmra.mxu0 %v4672
      %v4762 = vpop.f32.mrf.mxu0
      %v4763 = vadd.f32 0.0, %v4762
      %v4764 = vpop.f32.mrf.mxu0
      %v4765 = vpop.f32.mrf.mxu0
      %v4766 = vadd.f32 0.0, %v4765
      %v4767 = vpop.f32.mrf.mxu0
      %4768 = vmatprep.mubr.bf16.mxu0 0
      %4769 = vmatmul.mubr.bf16.gmra.mxu0 %v4675
      %v4770 = vpop.f32.mrf.mxu0
      %v4771 = vadd.f32 0.0, %v4770
      %v4772 = vpop.f32.mrf.mxu0
      %v4773 = vpop.f32.mrf.mxu0
      %v4774 = vadd.f32 0.0, %v4773
      %v4775 = vpop.f32.mrf.mxu0
      %4776 = vmatprep.mubr.bf16.mxu0 0
      %4777 = vmatmul.mubr.bf16.gmra.mxu0 %v4678
      %v4778 = vpop.f32.mrf.mxu0
      %v4779 = vadd.f32 0.0, %v4778
      %v4780 = vpop.f32.mrf.mxu0
      %v4781 = vpop.f32.mrf.mxu0
      %v4782 = vadd.f32 0.0, %v4781
      %v4783 = vpop.f32.mrf.mxu0
      %4784 = vmatprep.mubr.bf16.mxu0 0
      %4785 = vmatmul.mubr.bf16.gmra.mxu0 %v4681
      %v4786 = vpop.f32.mrf.mxu0
      %v4787 = vadd.f32 0.0, %v4786
      %v4788 = vpop.f32.mrf.mxu0
      %v4789 = vpop.f32.mrf.mxu0
      %v4790 = vadd.f32 0.0, %v4789
      %v4791 = vpop.f32.mrf.mxu0
      %4792 = vmatprep.mubr.bf16.mxu0 0
      %4793 = vmatmul.mubr.bf16.gmra.mxu0 %v4684
      %v4794 = vpop.f32.mrf.mxu0
      %v4795 = vadd.f32 0.0, %v4794
      %v4796 = vpop.f32.mrf.mxu0
      %v4797 = vpop.f32.mrf.mxu0
      %v4798 = vadd.f32 0.0, %v4797
      %v4799 = vpop.f32.mrf.mxu0
      %4800 = vmatprep.mubr.bf16.mxu0 0
      %4801 = vmatmul.mubr.bf16.gmra.mxu0 %v4687
      %v4802 = vpop.f32.mrf.mxu0
      %v4803 = vadd.f32 0.0, %v4802
      %v4804 = vpop.f32.mrf.mxu0
      %v4805 = vpop.f32.mrf.mxu0
      %v4806 = vadd.f32 0.0, %v4805
      %v4807 = vpop.f32.mrf.mxu0
      %4808 = vmatprep.mubr.bf16.mxu0 0
      %4809 = vmatmul.mubr.bf16.gmra.mxu0 %v4690
      %v4810 = vpop.f32.mrf.mxu0
      %v4811 = vadd.f32 0.0, %v4810
      %v4812 = vpop.f32.mrf.mxu0
      %v4813 = vpop.f32.mrf.mxu0
      %v4814 = vadd.f32 0.0, %v4813
      %v4815 = vpop.f32.mrf.mxu0
      %4816 = vmatprep.mubr.bf16.mxu0 0
      %4817 = vmatmul.mubr.bf16.gmra.mxu0 %v4693
      %v4818 = vpop.f32.mrf.mxu0
      %v4819 = vadd.f32 0.0, %v4818
      %v4820 = vpop.f32.mrf.mxu0
      %v4821 = vpop.f32.mrf.mxu0
      %v4822 = vadd.f32 0.0, %v4821
      %v4823 = vpop.f32.mrf.mxu0
      %4824 = vmatprep.mubr.bf16.mxu0 0
      %4825 = vmatmul.mubr.bf16.gmra.mxu0 %v4696
      %v4826 = vpop.f32.mrf.mxu0
      %v4827 = vadd.f32 0.0, %v4826
      %v4828 = vpop.f32.mrf.mxu0
      %v4829 = vpop.f32.mrf.mxu0
      %v4830 = vadd.f32 0.0, %v4829
      %v4831 = vpop.f32.mrf.mxu0
      %4832 = vmatprep.mubr.bf16.mxu0 0
      %4833 = vmatmul.mubr.bf16.gmra.mxu0 %v4699
      %v4834 = vpop.f32.mrf.mxu0
      %v4835 = vadd.f32 0.0, %v4834
      %v4836 = vpop.f32.mrf.mxu0
      %v4837 = vpop.f32.mrf.mxu0
      %v4838 = vadd.f32 0.0, %v4837
      %v4839 = vpop.f32.mrf.mxu0
      %4840 = vmatprep.mubr.bf16.mxu0 0
      %4841 = vmatmul.mubr.bf16.gmra.mxu0 %v4702
      %v4842 = vpop.f32.mrf.mxu0
      %v4843 = vadd.f32 0.0, %v4842
      %v4844 = vpop.f32.mrf.mxu0
      %v4845 = vpop.f32.mrf.mxu0
      %v4846 = vadd.f32 0.0, %v4845
      %v4847 = vpop.f32.mrf.mxu0
      %4848 = vmatprep.mubr.bf16.mxu0 0
      %4849 = vmatmul.mubr.bf16.gmra.mxu0 %v4705
      %v4850 = vpop.f32.mrf.mxu0
      %v4851 = vadd.f32 0.0, %v4850
      %v4852 = vpop.f32.mrf.mxu0
      %v4853 = vpop.f32.mrf.mxu0
      %v4854 = vadd.f32 0.0, %v4853
      %v4855 = vpop.f32.mrf.mxu0
      %4856 = vmatprep.mubr.bf16.mxu0 0
      %4857 = vmatmul.mubr.bf16.gmra.mxu0 %v4708
      %v4858 = vpop.f32.mrf.mxu0
      %v4859 = vadd.f32 0.0, %v4858
      %v4860 = vpop.f32.mrf.mxu0
      %v4861 = vpop.f32.mrf.mxu0
      %v4862 = vadd.f32 0.0, %v4861
      %v4863 = vpop.f32.mrf.mxu0
      %4864 = vmatprep.mubr.bf16.mxu0 0
      %4865 = vmatmul.mubr.bf16.gmra.mxu0 %v4711
      %v4866 = vpop.f32.mrf.mxu0
      %v4867 = vadd.f32 0.0, %v4866
      %v4868 = vpop.f32.mrf.mxu0
      %v4869 = vpop.f32.mrf.mxu0
      %v4870 = vadd.f32 0.0, %v4869
      %v4871 = vpop.f32.mrf.mxu0
      %4872 = vmatprep.mubr.bf16.mxu0 0
      %4873 = vmatmul.mubr.bf16.gmra.mxu0 %v4714
      %v4874 = vpop.f32.mrf.mxu0
      %v4875 = vadd.f32 0.0, %v4874
      %v4876 = vpop.f32.mrf.mxu0
      %v4877 = vpop.f32.mrf.mxu0
      %v4878 = vadd.f32 0.0, %v4877
      %v4879 = vpop.f32.mrf.mxu0
      %4880 = vmatprep.mubr.bf16.mxu0 0
      %4881 = vmatmul.mubr.bf16.gmra.mxu0 %v4717
      %v4882 = vpop.f32.mrf.mxu0
      %v4883 = vadd.f32 0.0, %v4882
      %v4884 = vpop.f32.mrf.mxu0
      %v4885 = vpop.f32.mrf.mxu0
      %v4886 = vadd.f32 0.0, %v4885
      %v4887 = vpop.f32.mrf.mxu0
      %4888 = vmatprep.mubr.bf16.mxu0 0
      %4889 = vmatmul.mubr.bf16.gmra.mxu0 %v4720
      %v4890 = vpop.f32.mrf.mxu0
      %v4891 = vadd.f32 0.0, %v4890
      %v4892 = vpop.f32.mrf.mxu0
      %v4893 = vpop.f32.mrf.mxu0
      %v4894 = vadd.f32 0.0, %v4893
      %v4895 = vpop.f32.mrf.mxu0
      %4896 = vmatprep.mubr.bf16.mxu0 0
      %4897 = vmatmul.mubr.bf16.gmra.mxu0 %v4723
      %v4898 = vpop.f32.mrf.mxu0
      %v4899 = vadd.f32 0.0, %v4898
      %v4900 = vpop.f32.mrf.mxu0
      %v4901 = vpop.f32.mrf.mxu0
      %v4902 = vadd.f32 0.0, %v4901
      %v4903 = vpop.f32.mrf.mxu0
      %4904 = vdwg.mxu0
      %v4905 = vadd.f32 %v4470, %v4763
      %v4906 = vadd.f32 %v4473, %v4766
      %v4907 = vadd.f32 %v4478, %v4771
      %v4908 = vadd.f32 %v4481, %v4774
      %v4909 = vadd.f32 %v4486, %v4779
      %v4910 = vadd.f32 %v4489, %v4782
      %v4911 = vadd.f32 %v4494, %v4787
      %v4912 = vadd.f32 %v4497, %v4790
      %v4913 = vadd.f32 %v4502, %v4795
      %v4914 = vadd.f32 %v4505, %v4798
      %v4915 = vadd.f32 %v4510, %v4803
      %v4916 = vadd.f32 %v4513, %v4806
      %v4917 = vadd.f32 %v4518, %v4811
      %v4918 = vadd.f32 %v4521, %v4814
      %v4919 = vadd.f32 %v4526, %v4819
      %v4920 = vadd.f32 %v4529, %v4822
      %v4921 = vadd.f32 %v4534, %v4827
      %v4922 = vadd.f32 %v4537, %v4830
      %v4923 = vadd.f32 %v4542, %v4835
      %v4924 = vadd.f32 %v4545, %v4838
      %v4925 = vadd.f32 %v4550, %v4843
      %v4926 = vadd.f32 %v4553, %v4846
      %v4927 = vadd.f32 %v4558, %v4851
      %v4928 = vadd.f32 %v4561, %v4854
      %v4929 = vadd.f32 %v4566, %v4859
      %v4930 = vadd.f32 %v4569, %v4862
      %v4931 = vadd.f32 %v4574, %v4867
      %v4932 = vadd.f32 %v4577, %v4870
      %v4933 = vadd.f32 %v4582, %v4875
      %v4934 = vadd.f32 %v4585, %v4878
      %v4935 = vadd.f32 %v4590, %v4883
      %v4936 = vadd.f32 %v4593, %v4886
      %v4937 = vadd.f32 %v4598, %v4891
      %v4938 = vadd.f32 %v4601, %v4894
      %v4939 = vadd.f32 %v4606, %v4899
      %v4940 = vadd.f32 %v4609, %v4902
      %s4941 = scalar_lea.vmem %s4, 6
      %v4942 = vld [vmem:[%s4941] sm:$0x3]
      %v4944 = vrot.slane %v4008, 1
      %v4945 = vsel %vm4633, %v4669, %v4944
      %v4947 = vsel %vm434, %v4945, 0
      %v4950 = vsel %vm498, %v4942, 0
      %4952 = vmatprep.subr.bf16.mxu0 0
      %4953 = vmatpush1.bf16.msra.mxu0 0
      %4954 = vmatprep.subr.bf16.mxu0 0
      %4955 = vmatpush1.bf16.msra.mxu0 0
      %4956 = vmatprep.subr.bf16.mxu0 0
      %4957 = vmatpush1.bf16.msra.mxu0 0
      %4958 = vmatprep.subr.bf16.mxu0 0
      %4959 = vmatpush1.bf16.msra.mxu0 0
      %4960 = vmatprep.subr.bf16.mxu0 0
      %4961 = vmatpush1.bf16.msra.mxu0 0
      %4962 = vmatprep.subr.bf16.mxu0 0
      %4963 = vmatpush1.bf16.msra.mxu0 0
      %4964 = vmatprep.subr.bf16.mxu0 0
      %4965 = vmatpush1.bf16.msra.mxu0 0
      %4966 = vmatprep.subr.bf16.mxu0 0
      %4967 = vmatpush1.bf16.msra.mxu0 %v4950
      %4968 = vmatprep.subr.bf16.mxu0 0
      %4969 = vmatpush2.bf16.msra.mxu0 0
      %4970 = vmatprep.subr.bf16.mxu0 0
      %4971 = vmatpush2.bf16.msra.mxu0 0
      %4972 = vmatprep.subr.bf16.mxu0 0
      %4973 = vmatpush2.bf16.msra.mxu0 0
      %4974 = vmatprep.subr.bf16.mxu0 0
      %4975 = vmatpush2.bf16.msra.mxu0 0
      %4976 = vmatprep.subr.bf16.mxu0 0
      %4977 = vmatpush2.bf16.msra.mxu0 0
      %4978 = vmatprep.subr.bf16.mxu0 0
      %4979 = vmatpush2.bf16.msra.mxu0 0
      %4980 = vmatprep.subr.bf16.mxu0 0
      %4981 = vmatpush2.bf16.msra.mxu0 0
      %4982 = vmatprep.subr.bf16.mxu0 0
      %4983 = vmatpush2.bf16.msra.mxu0 0
      %4984 = vmatprep.mubr.bf16.mxu0 0
      %4985 = vmatmul.mubr.bf16.gmra.mxu0 %v4675
      %v4986 = vpop.f32.mrf.mxu0
      %v4987 = vadd.f32 0.0, %v4986
      %v4988 = vpop.f32.mrf.mxu0
      %v4989 = vpop.f32.mrf.mxu0
      %v4990 = vadd.f32 0.0, %v4989
      %v4991 = vpop.f32.mrf.mxu0
      %4992 = vmatprep.mubr.bf16.mxu0 0
      %4993 = vmatmul.mubr.bf16.gmra.mxu0 %v4678
      %v4994 = vpop.f32.mrf.mxu0
      %v4995 = vadd.f32 0.0, %v4994
      %v4996 = vpop.f32.mrf.mxu0
      %v4997 = vpop.f32.mrf.mxu0
      %v4998 = vadd.f32 0.0, %v4997
      %v4999 = vpop.f32.mrf.mxu0
      %5000 = vmatprep.mubr.bf16.mxu0 0
      %5001 = vmatmul.mubr.bf16.gmra.mxu0 %v4681
      %v5002 = vpop.f32.mrf.mxu0
      %v5003 = vadd.f32 0.0, %v5002
      %v5004 = vpop.f32.mrf.mxu0
      %v5005 = vpop.f32.mrf.mxu0
      %v5006 = vadd.f32 0.0, %v5005
      %v5007 = vpop.f32.mrf.mxu0
      %5008 = vmatprep.mubr.bf16.mxu0 0
      %5009 = vmatmul.mubr.bf16.gmra.mxu0 %v4684
      %v5010 = vpop.f32.mrf.mxu0
      %v5011 = vadd.f32 0.0, %v5010
      %v5012 = vpop.f32.mrf.mxu0
      %v5013 = vpop.f32.mrf.mxu0
      %v5014 = vadd.f32 0.0, %v5013
      %v5015 = vpop.f32.mrf.mxu0
      %5016 = vmatprep.mubr.bf16.mxu0 0
      %5017 = vmatmul.mubr.bf16.gmra.mxu0 %v4687
      %v5018 = vpop.f32.mrf.mxu0
      %v5019 = vadd.f32 0.0, %v5018
      %v5020 = vpop.f32.mrf.mxu0
      %v5021 = vpop.f32.mrf.mxu0
      %v5022 = vadd.f32 0.0, %v5021
      %v5023 = vpop.f32.mrf.mxu0
      %5024 = vmatprep.mubr.bf16.mxu0 0
      %5025 = vmatmul.mubr.bf16.gmra.mxu0 %v4690
      %v5026 = vpop.f32.mrf.mxu0
      %v5027 = vadd.f32 0.0, %v5026
      %v5028 = vpop.f32.mrf.mxu0
      %v5029 = vpop.f32.mrf.mxu0
      %v5030 = vadd.f32 0.0, %v5029
      %v5031 = vpop.f32.mrf.mxu0
      %5032 = vmatprep.mubr.bf16.mxu0 0
      %5033 = vmatmul.mubr.bf16.gmra.mxu0 %v4693
      %v5034 = vpop.f32.mrf.mxu0
      %v5035 = vadd.f32 0.0, %v5034
      %v5036 = vpop.f32.mrf.mxu0
      %v5037 = vpop.f32.mrf.mxu0
      %v5038 = vadd.f32 0.0, %v5037
      %v5039 = vpop.f32.mrf.mxu0
      %5040 = vmatprep.mubr.bf16.mxu0 0
      %5041 = vmatmul.mubr.bf16.gmra.mxu0 %v4696
      %v5042 = vpop.f32.mrf.mxu0
      %v5043 = vadd.f32 0.0, %v5042
      %v5044 = vpop.f32.mrf.mxu0
      %v5045 = vpop.f32.mrf.mxu0
      %v5046 = vadd.f32 0.0, %v5045
      %v5047 = vpop.f32.mrf.mxu0
      %5048 = vmatprep.mubr.bf16.mxu0 0
      %5049 = vmatmul.mubr.bf16.gmra.mxu0 %v4699
      %v5050 = vpop.f32.mrf.mxu0
      %v5051 = vadd.f32 0.0, %v5050
      %v5052 = vpop.f32.mrf.mxu0
      %v5053 = vpop.f32.mrf.mxu0
      %v5054 = vadd.f32 0.0, %v5053
      %v5055 = vpop.f32.mrf.mxu0
      %5056 = vmatprep.mubr.bf16.mxu0 0
      %5057 = vmatmul.mubr.bf16.gmra.mxu0 %v4702
      %v5058 = vpop.f32.mrf.mxu0
      %v5059 = vadd.f32 0.0, %v5058
      %v5060 = vpop.f32.mrf.mxu0
      %v5061 = vpop.f32.mrf.mxu0
      %v5062 = vadd.f32 0.0, %v5061
      %v5063 = vpop.f32.mrf.mxu0
      %5064 = vmatprep.mubr.bf16.mxu0 0
      %5065 = vmatmul.mubr.bf16.gmra.mxu0 %v4705
      %v5066 = vpop.f32.mrf.mxu0
      %v5067 = vadd.f32 0.0, %v5066
      %v5068 = vpop.f32.mrf.mxu0
      %v5069 = vpop.f32.mrf.mxu0
      %v5070 = vadd.f32 0.0, %v5069
      %v5071 = vpop.f32.mrf.mxu0
      %5072 = vmatprep.mubr.bf16.mxu0 0
      %5073 = vmatmul.mubr.bf16.gmra.mxu0 %v4708
      %v5074 = vpop.f32.mrf.mxu0
      %v5075 = vadd.f32 0.0, %v5074
      %v5076 = vpop.f32.mrf.mxu0
      %v5077 = vpop.f32.mrf.mxu0
      %v5078 = vadd.f32 0.0, %v5077
      %v5079 = vpop.f32.mrf.mxu0
      %5080 = vmatprep.mubr.bf16.mxu0 0
      %5081 = vmatmul.mubr.bf16.gmra.mxu0 %v4711
      %v5082 = vpop.f32.mrf.mxu0
      %v5083 = vadd.f32 0.0, %v5082
      %v5084 = vpop.f32.mrf.mxu0
      %v5085 = vpop.f32.mrf.mxu0
      %v5086 = vadd.f32 0.0, %v5085
      %v5087 = vpop.f32.mrf.mxu0
      %5088 = vmatprep.mubr.bf16.mxu0 0
      %5089 = vmatmul.mubr.bf16.gmra.mxu0 %v4714
      %v5090 = vpop.f32.mrf.mxu0
      %v5091 = vadd.f32 0.0, %v5090
      %v5092 = vpop.f32.mrf.mxu0
      %v5093 = vpop.f32.mrf.mxu0
      %v5094 = vadd.f32 0.0, %v5093
      %v5095 = vpop.f32.mrf.mxu0
      %5096 = vmatprep.mubr.bf16.mxu0 0
      %5097 = vmatmul.mubr.bf16.gmra.mxu0 %v4717
      %v5098 = vpop.f32.mrf.mxu0
      %v5099 = vadd.f32 0.0, %v5098
      %v5100 = vpop.f32.mrf.mxu0
      %v5101 = vpop.f32.mrf.mxu0
      %v5102 = vadd.f32 0.0, %v5101
      %v5103 = vpop.f32.mrf.mxu0
      %5104 = vmatprep.mubr.bf16.mxu0 0
      %5105 = vmatmul.mubr.bf16.gmra.mxu0 %v4720
      %v5106 = vpop.f32.mrf.mxu0
      %v5107 = vadd.f32 0.0, %v5106
      %v5108 = vpop.f32.mrf.mxu0
      %v5109 = vpop.f32.mrf.mxu0
      %v5110 = vadd.f32 0.0, %v5109
      %v5111 = vpop.f32.mrf.mxu0
      %5112 = vmatprep.mubr.bf16.mxu0 0
      %5113 = vmatmul.mubr.bf16.gmra.mxu0 %v4723
      %v5114 = vpop.f32.mrf.mxu0
      %v5115 = vadd.f32 0.0, %v5114
      %v5116 = vpop.f32.mrf.mxu0
      %v5117 = vpop.f32.mrf.mxu0
      %v5118 = vadd.f32 0.0, %v5117
      %v5119 = vpop.f32.mrf.mxu0
      %5120 = vmatprep.mubr.bf16.mxu0 0
      %5121 = vmatmul.mubr.bf16.gmra.mxu0 %v4947
      %v5122 = vpop.f32.mrf.mxu0
      %v5123 = vadd.f32 0.0, %v5122
      %v5124 = vpop.f32.mrf.mxu0
      %v5125 = vpop.f32.mrf.mxu0
      %v5126 = vadd.f32 0.0, %v5125
      %v5127 = vpop.f32.mrf.mxu0
      %5128 = vdwg.mxu0
      %v5129 = vadd.f32 %v4905, %v4987
      %v5130 = vadd.f32 %v4906, %v4990
      %v5131 = vadd.f32 %v4907, %v4995
      %v5132 = vadd.f32 %v4908, %v4998
      %v5133 = vadd.f32 %v4909, %v5003
      %v5134 = vadd.f32 %v4910, %v5006
      %v5135 = vadd.f32 %v4911, %v5011
      %v5136 = vadd.f32 %v4912, %v5014
      %v5137 = vadd.f32 %v4913, %v5019
      %v5138 = vadd.f32 %v4914, %v5022
      %v5139 = vadd.f32 %v4915, %v5027
      %v5140 = vadd.f32 %v4916, %v5030
      %v5141 = vadd.f32 %v4917, %v5035
      %v5142 = vadd.f32 %v4918, %v5038
      %v5143 = vadd.f32 %v4919, %v5043
      %v5144 = vadd.f32 %v4920, %v5046
      %v5145 = vadd.f32 %v4921, %v5051
      %v5146 = vadd.f32 %v4922, %v5054
      %v5147 = vadd.f32 %v4923, %v5059
      %v5148 = vadd.f32 %v4924, %v5062
      %v5149 = vadd.f32 %v4925, %v5067
      %v5150 = vadd.f32 %v4926, %v5070
      %v5151 = vadd.f32 %v4927, %v5075
      %v5152 = vadd.f32 %v4928, %v5078
      %v5153 = vadd.f32 %v4929, %v5083
      %v5154 = vadd.f32 %v4930, %v5086
      %v5155 = vadd.f32 %v4931, %v5091
      %v5156 = vadd.f32 %v4932, %v5094
      %v5157 = vadd.f32 %v4933, %v5099
      %v5158 = vadd.f32 %v4934, %v5102
      %v5159 = vadd.f32 %v4935, %v5107
      %v5160 = vadd.f32 %v4936, %v5110
      %v5161 = vadd.f32 %v4937, %v5115
      %v5162 = vadd.f32 %v4938, %v5118
      %v5163 = vadd.f32 %v4939, %v5123
      %v5164 = vadd.f32 %v4940, %v5126
      %s5165 = scalar_lea.vmem %s4, 8
      %v5166 = vld [vmem:[%s5165] sm:$0x3]
      %vm5167 = vsmask.f32 6400
      %v5168 = vrot.slane %v4026, 1
      %v5169 = vrot.slane %v4022, 2
      %v5170 = vor.u32 %v5168, %v5169
      %v5171 = vrot.slane %v4034, 1
      %v5172 = vrot.slane %v4030, 2
      %v5173 = vor.u32 %v5171, %v5172
      %v5174 = vsel %vm5167, %v5170, %v5173
      %v5175 = vrot.slane %v4042, 1
      %v5176 = vrot.slane %v4038, 2
      %v5177 = vor.u32 %v5175, %v5176
      %v5178 = vsel %vm5167, %v5173, %v5177
      %v5179 = vrot.slane %v4050, 1
      %v5180 = vrot.slane %v4046, 2
      %v5181 = vor.u32 %v5179, %v5180
      %v5182 = vsel %vm5167, %v5177, %v5181
      %v5183 = vrot.slane %v4058, 1
      %v5184 = vrot.slane %v4054, 2
      %v5185 = vor.u32 %v5183, %v5184
      %v5186 = vsel %vm5167, %v5181, %v5185
      %v5187 = vrot.slane %v4066, 1
      %v5188 = vrot.slane %v4062, 2
      %v5189 = vor.u32 %v5187, %v5188
      %v5190 = vsel %vm5167, %v5185, %v5189
      %v5191 = vrot.slane %v4074, 1
      %v5192 = vrot.slane %v4070, 2
      %v5193 = vor.u32 %v5191, %v5192
      %v5194 = vsel %vm5167, %v5189, %v5193
      %v5195 = vrot.slane %v4082, 1
      %v5196 = vrot.slane %v4078, 2
      %v5197 = vor.u32 %v5195, %v5196
      %v5198 = vsel %vm5167, %v5193, %v5197
      %v5199 = vrot.slane %v4090, 1
      %v5200 = vrot.slane %v4086, 2
      %v5201 = vor.u32 %v5199, %v5200
      %v5202 = vsel %vm5167, %v5197, %v5201
      %v5203 = vrot.slane %v4098, 1
      %v5204 = vrot.slane %v4094, 2
      %v5205 = vor.u32 %v5203, %v5204
      %v5206 = vsel %vm5167, %v5201, %v5205
      %v5207 = vrot.slane %v4106, 1
      %v5208 = vrot.slane %v4102, 2
      %v5209 = vor.u32 %v5207, %v5208
      %v5210 = vsel %vm5167, %v5205, %v5209
      %v5211 = vrot.slane %v4114, 1
      %v5212 = vrot.slane %v4110, 2
      %v5213 = vor.u32 %v5211, %v5212
      %v5214 = vsel %vm5167, %v5209, %v5213
      %v5215 = vrot.slane %v4122, 1
      %v5216 = vrot.slane %v4118, 2
      %v5217 = vor.u32 %v5215, %v5216
      %v5218 = vsel %vm5167, %v5213, %v5217
      %v5219 = vrot.slane %v4130, 1
      %v5220 = vrot.slane %v4126, 2
      %v5221 = vor.u32 %v5219, %v5220
      %v5222 = vsel %vm5167, %v5217, %v5221
      %v5223 = vrot.slane %v4138, 1
      %v5224 = vrot.slane %v4134, 2
      %v5225 = vor.u32 %v5223, %v5224
      %v5226 = vsel %vm5167, %v5221, %v5225
      %v5227 = vrot.slane %v4146, 1
      %v5228 = vrot.slane %v4142, 2
      %v5229 = vor.u32 %v5227, %v5228
      %v5230 = vsel %vm5167, %v5225, %v5229
      %v5231 = vrot.slane %v4154, 1
      %v5232 = vrot.slane %v4150, 2
      %v5233 = vor.u32 %v5231, %v5232
      %v5234 = vsel %vm5167, %v5229, %v5233
      %v5235 = vshrl.u32 %v4007, 16
      %v5237 = vrot.slane %v5235, 1
      %v5238 = vrot.slane %v4158, 2
      %v5239 = vor.u32 %v5237, %v5238
      %v5240 = vsel %vm5167, %v5233, %v5239
      %v5242 = vshrl.u32 %v4008, 16
      %v5244 = vrot.slane %v5242, 1
      %v5245 = vshll.u32 %v4008, 16
      %v5247 = vrot.slane %v5245, 2
      %v5248 = vor.u32 %v5244, %v5247
      %v5249 = vsel %vm5167, %v5239, %v5248
      %v5251 = vsel %vm434, %v5174, 0
      %v5254 = vsel %vm434, %v5178, 0
      %v5257 = vsel %vm434, %v5182, 0
      %v5260 = vsel %vm434, %v5186, 0
      %v5263 = vsel %vm434, %v5190, 0
      %v5266 = vsel %vm434, %v5194, 0
      %v5269 = vsel %vm434, %v5198, 0
      %v5272 = vsel %vm434, %v5202, 0
      %v5275 = vsel %vm434, %v5206, 0
      %v5278 = vsel %vm434, %v5210, 0
      %v5281 = vsel %vm434, %v5214, 0
      %v5284 = vsel %vm434, %v5218, 0
      %v5287 = vsel %vm434, %v5222, 0
      %v5290 = vsel %vm434, %v5226, 0
      %v5293 = vsel %vm434, %v5230, 0
      %v5296 = vsel %vm434, %v5234, 0
      %v5299 = vsel %vm434, %v5240, 0
      %v5302 = vsel %vm434, %v5249, 0
      %v5305 = vsel %vm498, %v5166, 0
      %5307 = vmatprep.subr.bf16.mxu0 0
      %5308 = vmatpush1.bf16.msra.mxu0 0
      %5309 = vmatprep.subr.bf16.mxu0 0
      %5310 = vmatpush1.bf16.msra.mxu0 0
      %5311 = vmatprep.subr.bf16.mxu0 0
      %5312 = vmatpush1.bf16.msra.mxu0 0
      %5313 = vmatprep.subr.bf16.mxu0 0
      %5314 = vmatpush1.bf16.msra.mxu0 0
      %5315 = vmatprep.subr.bf16.mxu0 0
      %5316 = vmatpush1.bf16.msra.mxu0 0
      %5317 = vmatprep.subr.bf16.mxu0 0
      %5318 = vmatpush1.bf16.msra.mxu0 0
      %5319 = vmatprep.subr.bf16.mxu0 0
      %5320 = vmatpush1.bf16.msra.mxu0 0
      %5321 = vmatprep.subr.bf16.mxu0 0
      %5322 = vmatpush1.bf16.msra.mxu0 %v5305
      %5323 = vmatprep.subr.bf16.mxu0 0
      %5324 = vmatpush2.bf16.msra.mxu0 0
      %5325 = vmatprep.subr.bf16.mxu0 0
      %5326 = vmatpush2.bf16.msra.mxu0 0
      %5327 = vmatprep.subr.bf16.mxu0 0
      %5328 = vmatpush2.bf16.msra.mxu0 0
      %5329 = vmatprep.subr.bf16.mxu0 0
      %5330 = vmatpush2.bf16.msra.mxu0 0
      %5331 = vmatprep.subr.bf16.mxu0 0
      %5332 = vmatpush2.bf16.msra.mxu0 0
      %5333 = vmatprep.subr.bf16.mxu0 0
      %5334 = vmatpush2.bf16.msra.mxu0 0
      %5335 = vmatprep.subr.bf16.mxu0 0
      %5336 = vmatpush2.bf16.msra.mxu0 0
      %5337 = vmatprep.subr.bf16.mxu0 0
      %5338 = vmatpush2.bf16.msra.mxu0 0
      %5339 = vmatprep.mubr.bf16.mxu0 0
      %5340 = vmatmul.mubr.bf16.gmra.mxu0 %v5251
      %v5341 = vpop.f32.mrf.mxu0
      %v5342 = vadd.f32 0.0, %v5341
      %v5343 = vpop.f32.mrf.mxu0
      %v5344 = vpop.f32.mrf.mxu0
      %v5345 = vadd.f32 0.0, %v5344
      %v5346 = vpop.f32.mrf.mxu0
      %5347 = vmatprep.mubr.bf16.mxu0 0
      %5348 = vmatmul.mubr.bf16.gmra.mxu0 %v5254
      %v5349 = vpop.f32.mrf.mxu0
      %v5350 = vadd.f32 0.0, %v5349
      %v5351 = vpop.f32.mrf.mxu0
      %v5352 = vpop.f32.mrf.mxu0
      %v5353 = vadd.f32 0.0, %v5352
      %v5354 = vpop.f32.mrf.mxu0
      %5355 = vmatprep.mubr.bf16.mxu0 0
      %5356 = vmatmul.mubr.bf16.gmra.mxu0 %v5257
      %v5357 = vpop.f32.mrf.mxu0
      %v5358 = vadd.f32 0.0, %v5357
      %v5359 = vpop.f32.mrf.mxu0
      %v5360 = vpop.f32.mrf.mxu0
      %v5361 = vadd.f32 0.0, %v5360
      %v5362 = vpop.f32.mrf.mxu0
      %5363 = vmatprep.mubr.bf16.mxu0 0
      %5364 = vmatmul.mubr.bf16.gmra.mxu0 %v5260
      %v5365 = vpop.f32.mrf.mxu0
      %v5366 = vadd.f32 0.0, %v5365
      %v5367 = vpop.f32.mrf.mxu0
      %v5368 = vpop.f32.mrf.mxu0
      %v5369 = vadd.f32 0.0, %v5368
      %v5370 = vpop.f32.mrf.mxu0
      %5371 = vmatprep.mubr.bf16.mxu0 0
      %5372 = vmatmul.mubr.bf16.gmra.mxu0 %v5263
      %v5373 = vpop.f32.mrf.mxu0
      %v5374 = vadd.f32 0.0, %v5373
      %v5375 = vpop.f32.mrf.mxu0
      %v5376 = vpop.f32.mrf.mxu0
      %v5377 = vadd.f32 0.0, %v5376
      %v5378 = vpop.f32.mrf.mxu0
      %5379 = vmatprep.mubr.bf16.mxu0 0
      %5380 = vmatmul.mubr.bf16.gmra.mxu0 %v5266
      %v5381 = vpop.f32.mrf.mxu0
      %v5382 = vadd.f32 0.0, %v5381
      %v5383 = vpop.f32.mrf.mxu0
      %v5384 = vpop.f32.mrf.mxu0
      %v5385 = vadd.f32 0.0, %v5384
      %v5386 = vpop.f32.mrf.mxu0
      %5387 = vmatprep.mubr.bf16.mxu0 0
      %5388 = vmatmul.mubr.bf16.gmra.mxu0 %v5269
      %v5389 = vpop.f32.mrf.mxu0
      %v5390 = vadd.f32 0.0, %v5389
      %v5391 = vpop.f32.mrf.mxu0
      %v5392 = vpop.f32.mrf.mxu0
      %v5393 = vadd.f32 0.0, %v5392
      %v5394 = vpop.f32.mrf.mxu0
      %5395 = vmatprep.mubr.bf16.mxu0 0
      %5396 = vmatmul.mubr.bf16.gmra.mxu0 %v5272
      %v5397 = vpop.f32.mrf.mxu0
      %v5398 = vadd.f32 0.0, %v5397
      %v5399 = vpop.f32.mrf.mxu0
      %v5400 = vpop.f32.mrf.mxu0
      %v5401 = vadd.f32 0.0, %v5400
      %v5402 = vpop.f32.mrf.mxu0
      %5403 = vmatprep.mubr.bf16.mxu0 0
      %5404 = vmatmul.mubr.bf16.gmra.mxu0 %v5275
      %v5405 = vpop.f32.mrf.mxu0
      %v5406 = vadd.f32 0.0, %v5405
      %v5407 = vpop.f32.mrf.mxu0
      %v5408 = vpop.f32.mrf.mxu0
      %v5409 = vadd.f32 0.0, %v5408
      %v5410 = vpop.f32.mrf.mxu0
      %5411 = vmatprep.mubr.bf16.mxu0 0
      %5412 = vmatmul.mubr.bf16.gmra.mxu0 %v5278
      %v5413 = vpop.f32.mrf.mxu0
      %v5414 = vadd.f32 0.0, %v5413
      %v5415 = vpop.f32.mrf.mxu0
      %v5416 = vpop.f32.mrf.mxu0
      %v5417 = vadd.f32 0.0, %v5416
      %v5418 = vpop.f32.mrf.mxu0
      %5419 = vmatprep.mubr.bf16.mxu0 0
      %5420 = vmatmul.mubr.bf16.gmra.mxu0 %v5281
      %v5421 = vpop.f32.mrf.mxu0
      %v5422 = vadd.f32 0.0, %v5421
      %v5423 = vpop.f32.mrf.mxu0
      %v5424 = vpop.f32.mrf.mxu0
      %v5425 = vadd.f32 0.0, %v5424
      %v5426 = vpop.f32.mrf.mxu0
      %5427 = vmatprep.mubr.bf16.mxu0 0
      %5428 = vmatmul.mubr.bf16.gmra.mxu0 %v5284
      %v5429 = vpop.f32.mrf.mxu0
      %v5430 = vadd.f32 0.0, %v5429
      %v5431 = vpop.f32.mrf.mxu0
      %v5432 = vpop.f32.mrf.mxu0
      %v5433 = vadd.f32 0.0, %v5432
      %v5434 = vpop.f32.mrf.mxu0
      %5435 = vmatprep.mubr.bf16.mxu0 0
      %5436 = vmatmul.mubr.bf16.gmra.mxu0 %v5287
      %v5437 = vpop.f32.mrf.mxu0
      %v5438 = vadd.f32 0.0, %v5437
      %v5439 = vpop.f32.mrf.mxu0
      %v5440 = vpop.f32.mrf.mxu0
      %v5441 = vadd.f32 0.0, %v5440
      %v5442 = vpop.f32.mrf.mxu0
      %5443 = vmatprep.mubr.bf16.mxu0 0
      %5444 = vmatmul.mubr.bf16.gmra.mxu0 %v5290
      %v5445 = vpop.f32.mrf.mxu0
      %v5446 = vadd.f32 0.0, %v5445
      %v5447 = vpop.f32.mrf.mxu0
      %v5448 = vpop.f32.mrf.mxu0
      %v5449 = vadd.f32 0.0, %v5448
      %v5450 = vpop.f32.mrf.mxu0
      %5451 = vmatprep.mubr.bf16.mxu0 0
      %5452 = vmatmul.mubr.bf16.gmra.mxu0 %v5293
      %v5453 = vpop.f32.mrf.mxu0
      %v5454 = vadd.f32 0.0, %v5453
      %v5455 = vpop.f32.mrf.mxu0
      %v5456 = vpop.f32.mrf.mxu0
      %v5457 = vadd.f32 0.0, %v5456
      %v5458 = vpop.f32.mrf.mxu0
      %5459 = vmatprep.mubr.bf16.mxu0 0
      %5460 = vmatmul.mubr.bf16.gmra.mxu0 %v5296
      %v5461 = vpop.f32.mrf.mxu0
      %v5462 = vadd.f32 0.0, %v5461
      %v5463 = vpop.f32.mrf.mxu0
      %v5464 = vpop.f32.mrf.mxu0
      %v5465 = vadd.f32 0.0, %v5464
      %v5466 = vpop.f32.mrf.mxu0
      %5467 = vmatprep.mubr.bf16.mxu0 0
      %5468 = vmatmul.mubr.bf16.gmra.mxu0 %v5299
      %v5469 = vpop.f32.mrf.mxu0
      %v5470 = vadd.f32 0.0, %v5469
      %v5471 = vpop.f32.mrf.mxu0
      %v5472 = vpop.f32.mrf.mxu0
      %v5473 = vadd.f32 0.0, %v5472
      %v5474 = vpop.f32.mrf.mxu0
      %5475 = vmatprep.mubr.bf16.mxu0 0
      %5476 = vmatmul.mubr.bf16.gmra.mxu0 %v5302
      %v5477 = vpop.f32.mrf.mxu0
      %v5478 = vadd.f32 0.0, %v5477
      %v5479 = vpop.f32.mrf.mxu0
      %v5480 = vpop.f32.mrf.mxu0
      %v5481 = vadd.f32 0.0, %v5480
      %v5482 = vpop.f32.mrf.mxu0
      %5483 = vdwg.mxu0
      %v5484 = vadd.f32 %v5129, %v5342
      %v5485 = vadd.f32 %v5130, %v5345
      %v5486 = vadd.f32 %v5131, %v5350
      %v5487 = vadd.f32 %v5132, %v5353
      %v5488 = vadd.f32 %v5133, %v5358
      %v5489 = vadd.f32 %v5134, %v5361
      %v5490 = vadd.f32 %v5135, %v5366
      %v5491 = vadd.f32 %v5136, %v5369
      %v5492 = vadd.f32 %v5137, %v5374
      %v5493 = vadd.f32 %v5138, %v5377
      %v5494 = vadd.f32 %v5139, %v5382
      %v5495 = vadd.f32 %v5140, %v5385
      %v5496 = vadd.f32 %v5141, %v5390
      %v5497 = vadd.f32 %v5142, %v5393
      %v5498 = vadd.f32 %v5143, %v5398
      %v5499 = vadd.f32 %v5144, %v5401
      %v5500 = vadd.f32 %v5145, %v5406
      %v5501 = vadd.f32 %v5146, %v5409
      %v5502 = vadd.f32 %v5147, %v5414
      %v5503 = vadd.f32 %v5148, %v5417
      %v5504 = vadd.f32 %v5149, %v5422
      %v5505 = vadd.f32 %v5150, %v5425
      %v5506 = vadd.f32 %v5151, %v5430
      %v5507 = vadd.f32 %v5152, %v5433
      %v5508 = vadd.f32 %v5153, %v5438
      %v5509 = vadd.f32 %v5154, %v5441
      %v5510 = vadd.f32 %v5155, %v5446
      %v5511 = vadd.f32 %v5156, %v5449
      %v5512 = vadd.f32 %v5157, %v5454
      %v5513 = vadd.f32 %v5158, %v5457
      %v5514 = vadd.f32 %v5159, %v5462
      %v5515 = vadd.f32 %v5160, %v5465
      %v5516 = vadd.f32 %v5161, %v5470
      %v5517 = vadd.f32 %v5162, %v5473
      %v5518 = vadd.f32 %v5163, %v5478
      %v5519 = vadd.f32 %v5164, %v5481
      %s5520 = scalar_lea.vmem %s4, 10
      %v5521 = vld [vmem:[%s5520] sm:$0x3]
      %vm5522 = vcmask 1045504
      %v5523 = vrot.slane %v3990, 2
      %v5524 = vrot.slane %v3991, 2
      %v5525 = vsel %vm5522, %v5523, %v5524
      %v5526 = vrot.slane %v3992, 2
      %v5527 = vsel %vm5522, %v5524, %v5526
      %v5528 = vrot.slane %v3993, 2
      %v5529 = vsel %vm5522, %v5526, %v5528
      %v5530 = vrot.slane %v3994, 2
      %v5531 = vsel %vm5522, %v5528, %v5530
      %v5532 = vrot.slane %v3995, 2
      %v5533 = vsel %vm5522, %v5530, %v5532
      %v5534 = vrot.slane %v3996, 2
      %v5535 = vsel %vm5522, %v5532, %v5534
      %v5536 = vrot.slane %v3997, 2
      %v5537 = vsel %vm5522, %v5534, %v5536
      %v5538 = vrot.slane %v3998, 2
      %v5539 = vsel %vm5522, %v5536, %v5538
      %v5540 = vrot.slane %v3999, 2
      %v5541 = vsel %vm5522, %v5538, %v5540
      %v5542 = vrot.slane %v4000, 2
      %v5543 = vsel %vm5522, %v5540, %v5542
      %v5544 = vrot.slane %v4001, 2
      %v5545 = vsel %vm5522, %v5542, %v5544
      %v5546 = vrot.slane %v4002, 2
      %v5547 = vsel %vm5522, %v5544, %v5546
      %v5548 = vrot.slane %v4003, 2
      %v5549 = vsel %vm5522, %v5546, %v5548
      %v5550 = vrot.slane %v4004, 2
      %v5551 = vsel %vm5522, %v5548, %v5550
      %v5552 = vrot.slane %v4005, 2
      %v5553 = vsel %vm5522, %v5550, %v5552
      %v5554 = vrot.slane %v4006, 2
      %v5555 = vsel %vm5522, %v5552, %v5554
      %v5556 = vrot.slane %v4007, 2
      %v5557 = vsel %vm5522, %v5554, %v5556
      %v5558 = vrot.slane %v4008, 2
      %v5559 = vsel %vm5522, %v5556, %v5558
      %v5561 = vsel %vm434, %v5525, 0
      %v5564 = vsel %vm434, %v5527, 0
      %v5567 = vsel %vm434, %v5529, 0
      %v5570 = vsel %vm434, %v5531, 0
      %v5573 = vsel %vm434, %v5533, 0
      %v5576 = vsel %vm434, %v5535, 0
      %v5579 = vsel %vm434, %v5537, 0
      %v5582 = vsel %vm434, %v5539, 0
      %v5585 = vsel %vm434, %v5541, 0
      %v5588 = vsel %vm434, %v5543, 0
      %v5591 = vsel %vm434, %v5545, 0
      %v5594 = vsel %vm434, %v5547, 0
      %v5597 = vsel %vm434, %v5549, 0
      %v5600 = vsel %vm434, %v5551, 0
      %v5603 = vsel %vm434, %v5553, 0
      %v5606 = vsel %vm434, %v5555, 0
      %v5609 = vsel %vm434, %v5557, 0
      %v5612 = vsel %vm434, %v5559, 0
      %v5615 = vsel %vm498, %v5521, 0
      %5617 = vmatprep.subr.bf16.mxu0 0
      %5618 = vmatpush1.bf16.msra.mxu0 0
      %5619 = vmatprep.subr.bf16.mxu0 0
      %5620 = vmatpush1.bf16.msra.mxu0 0
      %5621 = vmatprep.subr.bf16.mxu0 0
      %5622 = vmatpush1.bf16.msra.mxu0 0
      %5623 = vmatprep.subr.bf16.mxu0 0
      %5624 = vmatpush1.bf16.msra.mxu0 0
      %5625 = vmatprep.subr.bf16.mxu0 0
      %5626 = vmatpush1.bf16.msra.mxu0 0
      %5627 = vmatprep.subr.bf16.mxu0 0
      %5628 = vmatpush1.bf16.msra.mxu0 0
      %5629 = vmatprep.subr.bf16.mxu0 0
      %5630 = vmatpush1.bf16.msra.mxu0 0
      %5631 = vmatprep.subr.bf16.mxu0 0
      %5632 = vmatpush1.bf16.msra.mxu0 %v5615
      %5633 = vmatprep.subr.bf16.mxu0 0
      %5634 = vmatpush2.bf16.msra.mxu0 0
      %5635 = vmatprep.subr.bf16.mxu0 0
      %5636 = vmatpush2.bf16.msra.mxu0 0
      %5637 = vmatprep.subr.bf16.mxu0 0
      %5638 = vmatpush2.bf16.msra.mxu0 0
      %5639 = vmatprep.subr.bf16.mxu0 0
      %5640 = vmatpush2.bf16.msra.mxu0 0
      %5641 = vmatprep.subr.bf16.mxu0 0
      %5642 = vmatpush2.bf16.msra.mxu0 0
      %5643 = vmatprep.subr.bf16.mxu0 0
      %5644 = vmatpush2.bf16.msra.mxu0 0
      %5645 = vmatprep.subr.bf16.mxu0 0
      %5646 = vmatpush2.bf16.msra.mxu0 0
      %5647 = vmatprep.subr.bf16.mxu0 0
      %5648 = vmatpush2.bf16.msra.mxu0 0
      %5649 = vmatprep.mubr.bf16.mxu0 0
      %5650 = vmatmul.mubr.bf16.gmra.mxu0 %v5561
      %v5651 = vpop.f32.mrf.mxu0
      %v5652 = vadd.f32 0.0, %v5651
      %v5653 = vpop.f32.mrf.mxu0
      %v5654 = vpop.f32.mrf.mxu0
      %v5655 = vadd.f32 0.0, %v5654
      %v5656 = vpop.f32.mrf.mxu0
      %5657 = vmatprep.mubr.bf16.mxu0 0
      %5658 = vmatmul.mubr.bf16.gmra.mxu0 %v5564
      %v5659 = vpop.f32.mrf.mxu0
      %v5660 = vadd.f32 0.0, %v5659
      %v5661 = vpop.f32.mrf.mxu0
      %v5662 = vpop.f32.mrf.mxu0
      %v5663 = vadd.f32 0.0, %v5662
      %v5664 = vpop.f32.mrf.mxu0
      %5665 = vmatprep.mubr.bf16.mxu0 0
      %5666 = vmatmul.mubr.bf16.gmra.mxu0 %v5567
      %v5667 = vpop.f32.mrf.mxu0
      %v5668 = vadd.f32 0.0, %v5667
      %v5669 = vpop.f32.mrf.mxu0
      %v5670 = vpop.f32.mrf.mxu0
      %v5671 = vadd.f32 0.0, %v5670
      %v5672 = vpop.f32.mrf.mxu0
      %5673 = vmatprep.mubr.bf16.mxu0 0
      %5674 = vmatmul.mubr.bf16.gmra.mxu0 %v5570
      %v5675 = vpop.f32.mrf.mxu0
      %v5676 = vadd.f32 0.0, %v5675
      %v5677 = vpop.f32.mrf.mxu0
      %v5678 = vpop.f32.mrf.mxu0
      %v5679 = vadd.f32 0.0, %v5678
      %v5680 = vpop.f32.mrf.mxu0
      %5681 = vmatprep.mubr.bf16.mxu0 0
      %5682 = vmatmul.mubr.bf16.gmra.mxu0 %v5573
      %v5683 = vpop.f32.mrf.mxu0
      %v5684 = vadd.f32 0.0, %v5683
      %v5685 = vpop.f32.mrf.mxu0
      %v5686 = vpop.f32.mrf.mxu0
      %v5687 = vadd.f32 0.0, %v5686
      %v5688 = vpop.f32.mrf.mxu0
      %5689 = vmatprep.mubr.bf16.mxu0 0
      %5690 = vmatmul.mubr.bf16.gmra.mxu0 %v5576
      %v5691 = vpop.f32.mrf.mxu0
      %v5692 = vadd.f32 0.0, %v5691
      %v5693 = vpop.f32.mrf.mxu0
      %v5694 = vpop.f32.mrf.mxu0
      %v5695 = vadd.f32 0.0, %v5694
      %v5696 = vpop.f32.mrf.mxu0
      %5697 = vmatprep.mubr.bf16.mxu0 0
      %5698 = vmatmul.mubr.bf16.gmra.mxu0 %v5579
      %v5699 = vpop.f32.mrf.mxu0
      %v5700 = vadd.f32 0.0, %v5699
      %v5701 = vpop.f32.mrf.mxu0
      %v5702 = vpop.f32.mrf.mxu0
      %v5703 = vadd.f32 0.0, %v5702
      %v5704 = vpop.f32.mrf.mxu0
      %5705 = vmatprep.mubr.bf16.mxu0 0
      %5706 = vmatmul.mubr.bf16.gmra.mxu0 %v5582
      %v5707 = vpop.f32.mrf.mxu0
      %v5708 = vadd.f32 0.0, %v5707
      %v5709 = vpop.f32.mrf.mxu0
      %v5710 = vpop.f32.mrf.mxu0
      %v5711 = vadd.f32 0.0, %v5710
      %v5712 = vpop.f32.mrf.mxu0
      %5713 = vmatprep.mubr.bf16.mxu0 0
      %5714 = vmatmul.mubr.bf16.gmra.mxu0 %v5585
      %v5715 = vpop.f32.mrf.mxu0
      %v5716 = vadd.f32 0.0, %v5715
      %v5717 = vpop.f32.mrf.mxu0
      %v5718 = vpop.f32.mrf.mxu0
      %v5719 = vadd.f32 0.0, %v5718
      %v5720 = vpop.f32.mrf.mxu0
      %5721 = vmatprep.mubr.bf16.mxu0 0
      %5722 = vmatmul.mubr.bf16.gmra.mxu0 %v5588
      %v5723 = vpop.f32.mrf.mxu0
      %v5724 = vadd.f32 0.0, %v5723
      %v5725 = vpop.f32.mrf.mxu0
      %v5726 = vpop.f32.mrf.mxu0
      %v5727 = vadd.f32 0.0, %v5726
      %v5728 = vpop.f32.mrf.mxu0
      %5729 = vmatprep.mubr.bf16.mxu0 0
      %5730 = vmatmul.mubr.bf16.gmra.mxu0 %v5591
      %v5731 = vpop.f32.mrf.mxu0
      %v5732 = vadd.f32 0.0, %v5731
      %v5733 = vpop.f32.mrf.mxu0
      %v5734 = vpop.f32.mrf.mxu0
      %v5735 = vadd.f32 0.0, %v5734
      %v5736 = vpop.f32.mrf.mxu0
      %5737 = vmatprep.mubr.bf16.mxu0 0
      %5738 = vmatmul.mubr.bf16.gmra.mxu0 %v5594
      %v5739 = vpop.f32.mrf.mxu0
      %v5740 = vadd.f32 0.0, %v5739
      %v5741 = vpop.f32.mrf.mxu0
      %v5742 = vpop.f32.mrf.mxu0
      %v5743 = vadd.f32 0.0, %v5742
      %v5744 = vpop.f32.mrf.mxu0
      %5745 = vmatprep.mubr.bf16.mxu0 0
      %5746 = vmatmul.mubr.bf16.gmra.mxu0 %v5597
      %v5747 = vpop.f32.mrf.mxu0
      %v5748 = vadd.f32 0.0, %v5747
      %v5749 = vpop.f32.mrf.mxu0
      %v5750 = vpop.f32.mrf.mxu0
      %v5751 = vadd.f32 0.0, %v5750
      %v5752 = vpop.f32.mrf.mxu0
      %5753 = vmatprep.mubr.bf16.mxu0 0
      %5754 = vmatmul.mubr.bf16.gmra.mxu0 %v5600
      %v5755 = vpop.f32.mrf.mxu0
      %v5756 = vadd.f32 0.0, %v5755
      %v5757 = vpop.f32.mrf.mxu0
      %v5758 = vpop.f32.mrf.mxu0
      %v5759 = vadd.f32 0.0, %v5758
      %v5760 = vpop.f32.mrf.mxu0
      %5761 = vmatprep.mubr.bf16.mxu0 0
      %5762 = vmatmul.mubr.bf16.gmra.mxu0 %v5603
      %v5763 = vpop.f32.mrf.mxu0
      %v5764 = vadd.f32 0.0, %v5763
      %v5765 = vpop.f32.mrf.mxu0
      %v5766 = vpop.f32.mrf.mxu0
      %v5767 = vadd.f32 0.0, %v5766
      %v5768 = vpop.f32.mrf.mxu0
      %5769 = vmatprep.mubr.bf16.mxu0 0
      %5770 = vmatmul.mubr.bf16.gmra.mxu0 %v5606
      %v5771 = vpop.f32.mrf.mxu0
      %v5772 = vadd.f32 0.0, %v5771
      %v5773 = vpop.f32.mrf.mxu0
      %v5774 = vpop.f32.mrf.mxu0
      %v5775 = vadd.f32 0.0, %v5774
      %v5776 = vpop.f32.mrf.mxu0
      %5777 = vmatprep.mubr.bf16.mxu0 0
      %5778 = vmatmul.mubr.bf16.gmra.mxu0 %v5609
      %v5779 = vpop.f32.mrf.mxu0
      %v5780 = vadd.f32 0.0, %v5779
      %v5781 = vpop.f32.mrf.mxu0
      %v5782 = vpop.f32.mrf.mxu0
      %v5783 = vadd.f32 0.0, %v5782
      %v5784 = vpop.f32.mrf.mxu0
      %5785 = vmatprep.mubr.bf16.mxu0 0
      %5786 = vmatmul.mubr.bf16.gmra.mxu0 %v5612
      %v5787 = vpop.f32.mrf.mxu0
      %v5788 = vadd.f32 0.0, %v5787
      %v5789 = vpop.f32.mrf.mxu0
      %v5790 = vpop.f32.mrf.mxu0
      %v5791 = vadd.f32 0.0, %v5790
      %v5792 = vpop.f32.mrf.mxu0
      %5793 = vdwg.mxu0
      %v5794 = vadd.f32 %v5484, %v5652
      %v5795 = vadd.f32 %v5485, %v5655
      %v5796 = vadd.f32 %v5486, %v5660
      %v5797 = vadd.f32 %v5487, %v5663
      %v5798 = vadd.f32 %v5488, %v5668
      %v5799 = vadd.f32 %v5489, %v5671
      %v5800 = vadd.f32 %v5490, %v5676
      %v5801 = vadd.f32 %v5491, %v5679
      %v5802 = vadd.f32 %v5492, %v5684
      %v5803 = vadd.f32 %v5493, %v5687
      %v5804 = vadd.f32 %v5494, %v5692
      %v5805 = vadd.f32 %v5495, %v5695
      %v5806 = vadd.f32 %v5496, %v5700
      %v5807 = vadd.f32 %v5497, %v5703
      %v5808 = vadd.f32 %v5498, %v5708
      %v5809 = vadd.f32 %v5499, %v5711
      %v5810 = vadd.f32 %v5500, %v5716
      %v5811 = vadd.f32 %v5501, %v5719
      %v5812 = vadd.f32 %v5502, %v5724
      %v5813 = vadd.f32 %v5503, %v5727
      %v5814 = vadd.f32 %v5504, %v5732
      %v5815 = vadd.f32 %v5505, %v5735
      %v5816 = vadd.f32 %v5506, %v5740
      %v5817 = vadd.f32 %v5507, %v5743
      %v5818 = vadd.f32 %v5508, %v5748
      %v5819 = vadd.f32 %v5509, %v5751
      %v5820 = vadd.f32 %v5510, %v5756
      %v5821 = vadd.f32 %v5511, %v5759
      %v5822 = vadd.f32 %v5512, %v5764
      %v5823 = vadd.f32 %v5513, %v5767
      %v5824 = vadd.f32 %v5514, %v5772
      %v5825 = vadd.f32 %v5515, %v5775
      %v5826 = vadd.f32 %v5516, %v5780
      %v5827 = vadd.f32 %v5517, %v5783
      %v5828 = vadd.f32 %v5518, %v5788
      %v5829 = vadd.f32 %v5519, %v5791
      %s5830 = scalar_lea.vmem %s4, 12
      %v5831 = vld [vmem:[%s5830] sm:$0x3]
      %v5833 = vrot.slane %v4009, 2
      %v5834 = vsel %vm5522, %v5558, %v5833
      %v5836 = vsel %vm434, %v5834, 0
      %v5839 = vsel %vm498, %v5831, 0
      %5841 = vmatprep.subr.bf16.mxu0 0
      %5842 = vmatpush1.bf16.msra.mxu0 0
      %5843 = vmatprep.subr.bf16.mxu0 0
      %5844 = vmatpush1.bf16.msra.mxu0 0
      %5845 = vmatprep.subr.bf16.mxu0 0
      %5846 = vmatpush1.bf16.msra.mxu0 0
      %5847 = vmatprep.subr.bf16.mxu0 0
      %5848 = vmatpush1.bf16.msra.mxu0 0
      %5849 = vmatprep.subr.bf16.mxu0 0
      %5850 = vmatpush1.bf16.msra.mxu0 0
      %5851 = vmatprep.subr.bf16.mxu0 0
      %5852 = vmatpush1.bf16.msra.mxu0 0
      %5853 = vmatprep.subr.bf16.mxu0 0
      %5854 = vmatpush1.bf16.msra.mxu0 0
      %5855 = vmatprep.subr.bf16.mxu0 0
      %5856 = vmatpush1.bf16.msra.mxu0 %v5839
      %5857 = vmatprep.subr.bf16.mxu0 0
      %5858 = vmatpush2.bf16.msra.mxu0 0
      %5859 = vmatprep.subr.bf16.mxu0 0
      %5860 = vmatpush2.bf16.msra.mxu0 0
      %5861 = vmatprep.subr.bf16.mxu0 0
      %5862 = vmatpush2.bf16.msra.mxu0 0
      %5863 = vmatprep.subr.bf16.mxu0 0
      %5864 = vmatpush2.bf16.msra.mxu0 0
      %5865 = vmatprep.subr.bf16.mxu0 0
      %5866 = vmatpush2.bf16.msra.mxu0 0
      %5867 = vmatprep.subr.bf16.mxu0 0
      %5868 = vmatpush2.bf16.msra.mxu0 0
      %5869 = vmatprep.subr.bf16.mxu0 0
      %5870 = vmatpush2.bf16.msra.mxu0 0
      %5871 = vmatprep.subr.bf16.mxu0 0
      %5872 = vmatpush2.bf16.msra.mxu0 0
      %5873 = vmatprep.mubr.bf16.mxu0 0
      %5874 = vmatmul.mubr.bf16.gmra.mxu0 %v5564
      %v5875 = vpop.f32.mrf.mxu0
      %v5876 = vadd.f32 0.0, %v5875
      %v5877 = vpop.f32.mrf.mxu0
      %v5878 = vpop.f32.mrf.mxu0
      %v5879 = vadd.f32 0.0, %v5878
      %v5880 = vpop.f32.mrf.mxu0
      %5881 = vmatprep.mubr.bf16.mxu0 0
      %5882 = vmatmul.mubr.bf16.gmra.mxu0 %v5567
      %v5883 = vpop.f32.mrf.mxu0
      %v5884 = vadd.f32 0.0, %v5883
      %v5885 = vpop.f32.mrf.mxu0
      %v5886 = vpop.f32.mrf.mxu0
      %v5887 = vadd.f32 0.0, %v5886
      %v5888 = vpop.f32.mrf.mxu0
      %5889 = vmatprep.mubr.bf16.mxu0 0
      %5890 = vmatmul.mubr.bf16.gmra.mxu0 %v5570
      %v5891 = vpop.f32.mrf.mxu0
      %v5892 = vadd.f32 0.0, %v5891
      %v5893 = vpop.f32.mrf.mxu0
      %v5894 = vpop.f32.mrf.mxu0
      %v5895 = vadd.f32 0.0, %v5894
      %v5896 = vpop.f32.mrf.mxu0
      %5897 = vmatprep.mubr.bf16.mxu0 0
      %5898 = vmatmul.mubr.bf16.gmra.mxu0 %v5573
      %v5899 = vpop.f32.mrf.mxu0
      %v5900 = vadd.f32 0.0, %v5899
      %v5901 = vpop.f32.mrf.mxu0
      %v5902 = vpop.f32.mrf.mxu0
      %v5903 = vadd.f32 0.0, %v5902
      %v5904 = vpop.f32.mrf.mxu0
      %5905 = vmatprep.mubr.bf16.mxu0 0
      %5906 = vmatmul.mubr.bf16.gmra.mxu0 %v5576
      %v5907 = vpop.f32.mrf.mxu0
      %v5908 = vadd.f32 0.0, %v5907
      %v5909 = vpop.f32.mrf.mxu0
      %v5910 = vpop.f32.mrf.mxu0
      %v5911 = vadd.f32 0.0, %v5910
      %v5912 = vpop.f32.mrf.mxu0
      %5913 = vmatprep.mubr.bf16.mxu0 0
      %5914 = vmatmul.mubr.bf16.gmra.mxu0 %v5579
      %v5915 = vpop.f32.mrf.mxu0
      %v5916 = vadd.f32 0.0, %v5915
      %v5917 = vpop.f32.mrf.mxu0
      %v5918 = vpop.f32.mrf.mxu0
      %v5919 = vadd.f32 0.0, %v5918
      %v5920 = vpop.f32.mrf.mxu0
      %5921 = vmatprep.mubr.bf16.mxu0 0
      %5922 = vmatmul.mubr.bf16.gmra.mxu0 %v5582
      %v5923 = vpop.f32.mrf.mxu0
      %v5924 = vadd.f32 0.0, %v5923
      %v5925 = vpop.f32.mrf.mxu0
      %v5926 = vpop.f32.mrf.mxu0
      %v5927 = vadd.f32 0.0, %v5926
      %v5928 = vpop.f32.mrf.mxu0
      %5929 = vmatprep.mubr.bf16.mxu0 0
      %5930 = vmatmul.mubr.bf16.gmra.mxu0 %v5585
      %v5931 = vpop.f32.mrf.mxu0
      %v5932 = vadd.f32 0.0, %v5931
      %v5933 = vpop.f32.mrf.mxu0
      %v5934 = vpop.f32.mrf.mxu0
      %v5935 = vadd.f32 0.0, %v5934
      %v5936 = vpop.f32.mrf.mxu0
      %5937 = vmatprep.mubr.bf16.mxu0 0
      %5938 = vmatmul.mubr.bf16.gmra.mxu0 %v5588
      %v5939 = vpop.f32.mrf.mxu0
      %v5940 = vadd.f32 0.0, %v5939
      %v5941 = vpop.f32.mrf.mxu0
      %v5942 = vpop.f32.mrf.mxu0
      %v5943 = vadd.f32 0.0, %v5942
      %v5944 = vpop.f32.mrf.mxu0
      %5945 = vmatprep.mubr.bf16.mxu0 0
      %5946 = vmatmul.mubr.bf16.gmra.mxu0 %v5591
      %v5947 = vpop.f32.mrf.mxu0
      %v5948 = vadd.f32 0.0, %v5947
      %v5949 = vpop.f32.mrf.mxu0
      %v5950 = vpop.f32.mrf.mxu0
      %v5951 = vadd.f32 0.0, %v5950
      %v5952 = vpop.f32.mrf.mxu0
      %5953 = vmatprep.mubr.bf16.mxu0 0
      %5954 = vmatmul.mubr.bf16.gmra.mxu0 %v5594
      %v5955 = vpop.f32.mrf.mxu0
      %v5956 = vadd.f32 0.0, %v5955
      %v5957 = vpop.f32.mrf.mxu0
      %v5958 = vpop.f32.mrf.mxu0
      %v5959 = vadd.f32 0.0, %v5958
      %v5960 = vpop.f32.mrf.mxu0
      %5961 = vmatprep.mubr.bf16.mxu0 0
      %5962 = vmatmul.mubr.bf16.gmra.mxu0 %v5597
      %v5963 = vpop.f32.mrf.mxu0
      %v5964 = vadd.f32 0.0, %v5963
      %v5965 = vpop.f32.mrf.mxu0
      %v5966 = vpop.f32.mrf.mxu0
      %v5967 = vadd.f32 0.0, %v5966
      %v5968 = vpop.f32.mrf.mxu0
      %5969 = vmatprep.mubr.bf16.mxu0 0
      %5970 = vmatmul.mubr.bf16.gmra.mxu0 %v5600
      %v5971 = vpop.f32.mrf.mxu0
      %v5972 = vadd.f32 0.0, %v5971
      %v5973 = vpop.f32.mrf.mxu0
      %v5974 = vpop.f32.mrf.mxu0
      %v5975 = vadd.f32 0.0, %v5974
      %v5976 = vpop.f32.mrf.mxu0
      %5977 = vmatprep.mubr.bf16.mxu0 0
      %5978 = vmatmul.mubr.bf16.gmra.mxu0 %v5603
      %v5979 = vpop.f32.mrf.mxu0
      %v5980 = vadd.f32 0.0, %v5979
      %v5981 = vpop.f32.mrf.mxu0
      %v5982 = vpop.f32.mrf.mxu0
      %v5983 = vadd.f32 0.0, %v5982
      %v5984 = vpop.f32.mrf.mxu0
      %5985 = vmatprep.mubr.bf16.mxu0 0
      %5986 = vmatmul.mubr.bf16.gmra.mxu0 %v5606
      %v5987 = vpop.f32.mrf.mxu0
      %v5988 = vadd.f32 0.0, %v5987
      %v5989 = vpop.f32.mrf.mxu0
      %v5990 = vpop.f32.mrf.mxu0
      %v5991 = vadd.f32 0.0, %v5990
      %v5992 = vpop.f32.mrf.mxu0
      %5993 = vmatprep.mubr.bf16.mxu0 0
      %5994 = vmatmul.mubr.bf16.gmra.mxu0 %v5609
      %v5995 = vpop.f32.mrf.mxu0
      %v5996 = vadd.f32 0.0, %v5995
      %v5997 = vpop.f32.mrf.mxu0
      %v5998 = vpop.f32.mrf.mxu0
      %v5999 = vadd.f32 0.0, %v5998
      %v6000 = vpop.f32.mrf.mxu0
      %6001 = vmatprep.mubr.bf16.mxu0 0
      %6002 = vmatmul.mubr.bf16.gmra.mxu0 %v5612
      %v6003 = vpop.f32.mrf.mxu0
      %v6004 = vadd.f32 0.0, %v6003
      %v6005 = vpop.f32.mrf.mxu0
      %v6006 = vpop.f32.mrf.mxu0
      %v6007 = vadd.f32 0.0, %v6006
      %v6008 = vpop.f32.mrf.mxu0
      %6009 = vmatprep.mubr.bf16.mxu0 0
      %6010 = vmatmul.mubr.bf16.gmra.mxu0 %v5836
      %v6011 = vpop.f32.mrf.mxu0
      %v6012 = vadd.f32 0.0, %v6011
      %v6013 = vpop.f32.mrf.mxu0
      %v6014 = vpop.f32.mrf.mxu0
      %v6015 = vadd.f32 0.0, %v6014
      %v6016 = vpop.f32.mrf.mxu0
      %6017 = vdwg.mxu0
      %v6018 = vadd.f32 %v5794, %v5876
      %v6019 = vadd.f32 %v5795, %v5879
      %v6020 = vadd.f32 %v5796, %v5884
      %v6021 = vadd.f32 %v5797, %v5887
      %v6022 = vadd.f32 %v5798, %v5892
      %v6023 = vadd.f32 %v5799, %v5895
      %v6024 = vadd.f32 %v5800, %v5900
      %v6025 = vadd.f32 %v5801, %v5903
      %v6026 = vadd.f32 %v5802, %v5908
      %v6027 = vadd.f32 %v5803, %v5911
      %v6028 = vadd.f32 %v5804, %v5916
      %v6029 = vadd.f32 %v5805, %v5919
      %v6030 = vadd.f32 %v5806, %v5924
      %v6031 = vadd.f32 %v5807, %v5927
      %v6032 = vadd.f32 %v5808, %v5932
      %v6033 = vadd.f32 %v5809, %v5935
      %v6034 = vadd.f32 %v5810, %v5940
      %v6035 = vadd.f32 %v5811, %v5943
      %v6036 = vadd.f32 %v5812, %v5948
      %v6037 = vadd.f32 %v5813, %v5951
      %v6038 = vadd.f32 %v5814, %v5956
      %v6039 = vadd.f32 %v5815, %v5959
      %v6040 = vadd.f32 %v5816, %v5964
      %v6041 = vadd.f32 %v5817, %v5967
      %v6042 = vadd.f32 %v5818, %v5972
      %v6043 = vadd.f32 %v5819, %v5975
      %v6044 = vadd.f32 %v5820, %v5980
      %v6045 = vadd.f32 %v5821, %v5983
      %v6046 = vadd.f32 %v5822, %v5988
      %v6047 = vadd.f32 %v5823, %v5991
      %v6048 = vadd.f32 %v5824, %v5996
      %v6049 = vadd.f32 %v5825, %v5999
      %v6050 = vadd.f32 %v5826, %v6004
      %v6051 = vadd.f32 %v5827, %v6007
      %v6052 = vadd.f32 %v5828, %v6012
      %v6053 = vadd.f32 %v5829, %v6015
      %s6054 = scalar_lea.vmem %s4, 14
      %v6055 = vld [vmem:[%s6054] sm:$0x3]
      %vm6056 = vsmask.f32 5376
      %v6057 = vrot.slane %v4034, 2
      %v6058 = vrot.slane %v4030, 3
      %v6059 = vor.u32 %v6057, %v6058
      %v6060 = vrot.slane %v4042, 2
      %v6061 = vrot.slane %v4038, 3
      %v6062 = vor.u32 %v6060, %v6061
      %v6063 = vsel %vm6056, %v6059, %v6062
      %v6064 = vrot.slane %v4050, 2
      %v6065 = vrot.slane %v4046, 3
      %v6066 = vor.u32 %v6064, %v6065
      %v6067 = vsel %vm6056, %v6062, %v6066
      %v6068 = vrot.slane %v4058, 2
      %v6069 = vrot.slane %v4054, 3
      %v6070 = vor.u32 %v6068, %v6069
      %v6071 = vsel %vm6056, %v6066, %v6070
      %v6072 = vrot.slane %v4066, 2
      %v6073 = vrot.slane %v4062, 3
      %v6074 = vor.u32 %v6072, %v6073
      %v6075 = vsel %vm6056, %v6070, %v6074
      %v6076 = vrot.slane %v4074, 2
      %v6077 = vrot.slane %v4070, 3
      %v6078 = vor.u32 %v6076, %v6077
      %v6079 = vsel %vm6056, %v6074, %v6078
      %v6080 = vrot.slane %v4082, 2
      %v6081 = vrot.slane %v4078, 3
      %v6082 = vor.u32 %v6080, %v6081
      %v6083 = vsel %vm6056, %v6078, %v6082
      %v6084 = vrot.slane %v4090, 2
      %v6085 = vrot.slane %v4086, 3
      %v6086 = vor.u32 %v6084, %v6085
      %v6087 = vsel %vm6056, %v6082, %v6086
      %v6088 = vrot.slane %v4098, 2
      %v6089 = vrot.slane %v4094, 3
      %v6090 = vor.u32 %v6088, %v6089
      %v6091 = vsel %vm6056, %v6086, %v6090
      %v6092 = vrot.slane %v4106, 2
      %v6093 = vrot.slane %v4102, 3
      %v6094 = vor.u32 %v6092, %v6093
      %v6095 = vsel %vm6056, %v6090, %v6094
      %v6096 = vrot.slane %v4114, 2
      %v6097 = vrot.slane %v4110, 3
      %v6098 = vor.u32 %v6096, %v6097
      %v6099 = vsel %vm6056, %v6094, %v6098
      %v6100 = vrot.slane %v4122, 2
      %v6101 = vrot.slane %v4118, 3
      %v6102 = vor.u32 %v6100, %v6101
      %v6103 = vsel %vm6056, %v6098, %v6102
      %v6104 = vrot.slane %v4130, 2
      %v6105 = vrot.slane %v4126, 3
      %v6106 = vor.u32 %v6104, %v6105
      %v6107 = vsel %vm6056, %v6102, %v6106
      %v6108 = vrot.slane %v4138, 2
      %v6109 = vrot.slane %v4134, 3
      %v6110 = vor.u32 %v6108, %v6109
      %v6111 = vsel %vm6056, %v6106, %v6110
      %v6112 = vrot.slane %v4146, 2
      %v6113 = vrot.slane %v4142, 3
      %v6114 = vor.u32 %v6112, %v6113
      %v6115 = vsel %vm6056, %v6110, %v6114
      %v6116 = vrot.slane %v4154, 2
      %v6117 = vrot.slane %v4150, 3
      %v6118 = vor.u32 %v6116, %v6117
      %v6119 = vsel %vm6056, %v6114, %v6118
      %v6120 = vrot.slane %v5235, 2
      %v6121 = vrot.slane %v4158, 3
      %v6122 = vor.u32 %v6120, %v6121
      %v6123 = vsel %vm6056, %v6118, %v6122
      %v6124 = vrot.slane %v5242, 2
      %v6125 = vrot.slane %v5245, 3
      %v6126 = vor.u32 %v6124, %v6125
      %v6127 = vsel %vm6056, %v6122, %v6126
      %v6129 = vshrl.u32 %v4009, 16
      %v6131 = vrot.slane %v6129, 2
      %v6132 = vshll.u32 %v4009, 16
      %v6134 = vrot.slane %v6132, 3
      %v6135 = vor.u32 %v6131, %v6134
      %v6136 = vsel %vm6056, %v6126, %v6135
      %v6138 = vsel %vm434, %v6063, 0
      %v6141 = vsel %vm434, %v6067, 0
      %v6144 = vsel %vm434, %v6071, 0
      %v6147 = vsel %vm434, %v6075, 0
      %v6150 = vsel %vm434, %v6079, 0
      %v6153 = vsel %vm434, %v6083, 0
      %v6156 = vsel %vm434, %v6087, 0
      %v6159 = vsel %vm434, %v6091, 0
      %v6162 = vsel %vm434, %v6095, 0
      %v6165 = vsel %vm434, %v6099, 0
      %v6168 = vsel %vm434, %v6103, 0
      %v6171 = vsel %vm434, %v6107, 0
      %v6174 = vsel %vm434, %v6111, 0
      %v6177 = vsel %vm434, %v6115, 0
      %v6180 = vsel %vm434, %v6119, 0
      %v6183 = vsel %vm434, %v6123, 0
      %v6186 = vsel %vm434, %v6127, 0
      %v6189 = vsel %vm434, %v6136, 0
      %v6192 = vsel %vm498, %v6055, 0
      %6194 = vmatprep.subr.bf16.mxu0 0
      %6195 = vmatpush1.bf16.msra.mxu0 0
      %6196 = vmatprep.subr.bf16.mxu0 0
      %6197 = vmatpush1.bf16.msra.mxu0 0
      %6198 = vmatprep.subr.bf16.mxu0 0
      %6199 = vmatpush1.bf16.msra.mxu0 0
      %6200 = vmatprep.subr.bf16.mxu0 0
      %6201 = vmatpush1.bf16.msra.mxu0 0
      %6202 = vmatprep.subr.bf16.mxu0 0
      %6203 = vmatpush1.bf16.msra.mxu0 0
      %6204 = vmatprep.subr.bf16.mxu0 0
      %6205 = vmatpush1.bf16.msra.mxu0 0
      %6206 = vmatprep.subr.bf16.mxu0 0
      %6207 = vmatpush1.bf16.msra.mxu0 0
      %6208 = vmatprep.subr.bf16.mxu0 0
      %6209 = vmatpush1.bf16.msra.mxu0 %v6192
      %6210 = vmatprep.subr.bf16.mxu0 0
      %6211 = vmatpush2.bf16.msra.mxu0 0
      %6212 = vmatprep.subr.bf16.mxu0 0
      %6213 = vmatpush2.bf16.msra.mxu0 0
      %6214 = vmatprep.subr.bf16.mxu0 0
      %6215 = vmatpush2.bf16.msra.mxu0 0
      %6216 = vmatprep.subr.bf16.mxu0 0
      %6217 = vmatpush2.bf16.msra.mxu0 0
      %6218 = vmatprep.subr.bf16.mxu0 0
      %6219 = vmatpush2.bf16.msra.mxu0 0
      %6220 = vmatprep.subr.bf16.mxu0 0
      %6221 = vmatpush2.bf16.msra.mxu0 0
      %6222 = vmatprep.subr.bf16.mxu0 0
      %6223 = vmatpush2.bf16.msra.mxu0 0
      %6224 = vmatprep.subr.bf16.mxu0 0
      %6225 = vmatpush2.bf16.msra.mxu0 0
      %6226 = vmatprep.mubr.bf16.mxu0 0
      %6227 = vmatmul.mubr.bf16.gmra.mxu0 %v6138
      %v6228 = vpop.f32.mrf.mxu0
      %v6229 = vadd.f32 0.0, %v6228
      %v6230 = vpop.f32.mrf.mxu0
      %v6231 = vpop.f32.mrf.mxu0
      %v6232 = vadd.f32 0.0, %v6231
      %v6233 = vpop.f32.mrf.mxu0
      %6234 = vmatprep.mubr.bf16.mxu0 0
      %6235 = vmatmul.mubr.bf16.gmra.mxu0 %v6141
      %v6236 = vpop.f32.mrf.mxu0
      %v6237 = vadd.f32 0.0, %v6236
      %v6238 = vpop.f32.mrf.mxu0
      %v6239 = vpop.f32.mrf.mxu0
      %v6240 = vadd.f32 0.0, %v6239
      %v6241 = vpop.f32.mrf.mxu0
      %6242 = vmatprep.mubr.bf16.mxu0 0
      %6243 = vmatmul.mubr.bf16.gmra.mxu0 %v6144
      %v6244 = vpop.f32.mrf.mxu0
      %v6245 = vadd.f32 0.0, %v6244
      %v6246 = vpop.f32.mrf.mxu0
      %v6247 = vpop.f32.mrf.mxu0
      %v6248 = vadd.f32 0.0, %v6247
      %v6249 = vpop.f32.mrf.mxu0
      %6250 = vmatprep.mubr.bf16.mxu0 0
      %6251 = vmatmul.mubr.bf16.gmra.mxu0 %v6147
      %v6252 = vpop.f32.mrf.mxu0
      %v6253 = vadd.f32 0.0, %v6252
      %v6254 = vpop.f32.mrf.mxu0
      %v6255 = vpop.f32.mrf.mxu0
      %v6256 = vadd.f32 0.0, %v6255
      %v6257 = vpop.f32.mrf.mxu0
      %6258 = vmatprep.mubr.bf16.mxu0 0
      %6259 = vmatmul.mubr.bf16.gmra.mxu0 %v6150
      %v6260 = vpop.f32.mrf.mxu0
      %v6261 = vadd.f32 0.0, %v6260
      %v6262 = vpop.f32.mrf.mxu0
      %v6263 = vpop.f32.mrf.mxu0
      %v6264 = vadd.f32 0.0, %v6263
      %v6265 = vpop.f32.mrf.mxu0
      %6266 = vmatprep.mubr.bf16.mxu0 0
      %6267 = vmatmul.mubr.bf16.gmra.mxu0 %v6153
      %v6268 = vpop.f32.mrf.mxu0
      %v6269 = vadd.f32 0.0, %v6268
      %v6270 = vpop.f32.mrf.mxu0
      %v6271 = vpop.f32.mrf.mxu0
      %v6272 = vadd.f32 0.0, %v6271
      %v6273 = vpop.f32.mrf.mxu0
      %6274 = vmatprep.mubr.bf16.mxu0 0
      %6275 = vmatmul.mubr.bf16.gmra.mxu0 %v6156
      %v6276 = vpop.f32.mrf.mxu0
      %v6277 = vadd.f32 0.0, %v6276
      %v6278 = vpop.f32.mrf.mxu0
      %v6279 = vpop.f32.mrf.mxu0
      %v6280 = vadd.f32 0.0, %v6279
      %v6281 = vpop.f32.mrf.mxu0
      %6282 = vmatprep.mubr.bf16.mxu0 0
      %6283 = vmatmul.mubr.bf16.gmra.mxu0 %v6159
      %v6284 = vpop.f32.mrf.mxu0
      %v6285 = vadd.f32 0.0, %v6284
      %v6286 = vpop.f32.mrf.mxu0
      %v6287 = vpop.f32.mrf.mxu0
      %v6288 = vadd.f32 0.0, %v6287
      %v6289 = vpop.f32.mrf.mxu0
      %6290 = vmatprep.mubr.bf16.mxu0 0
      %6291 = vmatmul.mubr.bf16.gmra.mxu0 %v6162
      %v6292 = vpop.f32.mrf.mxu0
      %v6293 = vadd.f32 0.0, %v6292
      %v6294 = vpop.f32.mrf.mxu0
      %v6295 = vpop.f32.mrf.mxu0
      %v6296 = vadd.f32 0.0, %v6295
      %v6297 = vpop.f32.mrf.mxu0
      %6298 = vmatprep.mubr.bf16.mxu0 0
      %6299 = vmatmul.mubr.bf16.gmra.mxu0 %v6165
      %v6300 = vpop.f32.mrf.mxu0
      %v6301 = vadd.f32 0.0, %v6300
      %v6302 = vpop.f32.mrf.mxu0
      %v6303 = vpop.f32.mrf.mxu0
      %v6304 = vadd.f32 0.0, %v6303
      %v6305 = vpop.f32.mrf.mxu0
      %6306 = vmatprep.mubr.bf16.mxu0 0
      %6307 = vmatmul.mubr.bf16.gmra.mxu0 %v6168
      %v6308 = vpop.f32.mrf.mxu0
      %v6309 = vadd.f32 0.0, %v6308
      %v6310 = vpop.f32.mrf.mxu0
      %v6311 = vpop.f32.mrf.mxu0
      %v6312 = vadd.f32 0.0, %v6311
      %v6313 = vpop.f32.mrf.mxu0
      %6314 = vmatprep.mubr.bf16.mxu0 0
      %6315 = vmatmul.mubr.bf16.gmra.mxu0 %v6171
      %v6316 = vpop.f32.mrf.mxu0
      %v6317 = vadd.f32 0.0, %v6316
      %v6318 = vpop.f32.mrf.mxu0
      %v6319 = vpop.f32.mrf.mxu0
      %v6320 = vadd.f32 0.0, %v6319
      %v6321 = vpop.f32.mrf.mxu0
      %6322 = vmatprep.mubr.bf16.mxu0 0
      %6323 = vmatmul.mubr.bf16.gmra.mxu0 %v6174
      %v6324 = vpop.f32.mrf.mxu0
      %v6325 = vadd.f32 0.0, %v6324
      %v6326 = vpop.f32.mrf.mxu0
      %v6327 = vpop.f32.mrf.mxu0
      %v6328 = vadd.f32 0.0, %v6327
      %v6329 = vpop.f32.mrf.mxu0
      %6330 = vmatprep.mubr.bf16.mxu0 0
      %6331 = vmatmul.mubr.bf16.gmra.mxu0 %v6177
      %v6332 = vpop.f32.mrf.mxu0
      %v6333 = vadd.f32 0.0, %v6332
      %v6334 = vpop.f32.mrf.mxu0
      %v6335 = vpop.f32.mrf.mxu0
      %v6336 = vadd.f32 0.0, %v6335
      %v6337 = vpop.f32.mrf.mxu0
      %6338 = vmatprep.mubr.bf16.mxu0 0
      %6339 = vmatmul.mubr.bf16.gmra.mxu0 %v6180
      %v6340 = vpop.f32.mrf.mxu0
      %v6341 = vadd.f32 0.0, %v6340
      %v6342 = vpop.f32.mrf.mxu0
      %v6343 = vpop.f32.mrf.mxu0
      %v6344 = vadd.f32 0.0, %v6343
      %v6345 = vpop.f32.mrf.mxu0
      %6346 = vmatprep.mubr.bf16.mxu0 0
      %6347 = vmatmul.mubr.bf16.gmra.mxu0 %v6183
      %v6348 = vpop.f32.mrf.mxu0
      %v6349 = vadd.f32 0.0, %v6348
      %v6350 = vpop.f32.mrf.mxu0
      %v6351 = vpop.f32.mrf.mxu0
      %v6352 = vadd.f32 0.0, %v6351
      %v6353 = vpop.f32.mrf.mxu0
      %6354 = vmatprep.mubr.bf16.mxu0 0
      %6355 = vmatmul.mubr.bf16.gmra.mxu0 %v6186
      %v6356 = vpop.f32.mrf.mxu0
      %v6357 = vadd.f32 0.0, %v6356
      %v6358 = vpop.f32.mrf.mxu0
      %v6359 = vpop.f32.mrf.mxu0
      %v6360 = vadd.f32 0.0, %v6359
      %v6361 = vpop.f32.mrf.mxu0
      %6362 = vmatprep.mubr.bf16.mxu0 0
      %6363 = vmatmul.mubr.bf16.gmra.mxu0 %v6189
      %v6364 = vpop.f32.mrf.mxu0
      %v6365 = vadd.f32 0.0, %v6364
      %v6366 = vpop.f32.mrf.mxu0
      %v6367 = vpop.f32.mrf.mxu0
      %v6368 = vadd.f32 0.0, %v6367
      %v6369 = vpop.f32.mrf.mxu0
      %6370 = vdwg.mxu0
      %v6371 = vadd.f32 %v6018, %v6229
      %v6372 = vadd.f32 %v6019, %v6232
      %v6373 = vadd.f32 %v6020, %v6237
      %v6374 = vadd.f32 %v6021, %v6240
      %v6375 = vadd.f32 %v6022, %v6245
      %v6376 = vadd.f32 %v6023, %v6248
      %v6377 = vadd.f32 %v6024, %v6253
      %v6378 = vadd.f32 %v6025, %v6256
      %v6379 = vadd.f32 %v6026, %v6261
      %v6380 = vadd.f32 %v6027, %v6264
      %v6381 = vadd.f32 %v6028, %v6269
      %v6382 = vadd.f32 %v6029, %v6272
      %v6383 = vadd.f32 %v6030, %v6277
      %v6384 = vadd.f32 %v6031, %v6280
      %v6385 = vadd.f32 %v6032, %v6285
      %v6386 = vadd.f32 %v6033, %v6288
      %v6387 = vadd.f32 %v6034, %v6293
      %v6388 = vadd.f32 %v6035, %v6296
      %v6389 = vadd.f32 %v6036, %v6301
      %v6390 = vadd.f32 %v6037, %v6304
      %v6391 = vadd.f32 %v6038, %v6309
      %v6392 = vadd.f32 %v6039, %v6312
      %v6393 = vadd.f32 %v6040, %v6317
      %v6394 = vadd.f32 %v6041, %v6320
      %v6395 = vadd.f32 %v6042, %v6325
      %v6396 = vadd.f32 %v6043, %v6328
      %v6397 = vadd.f32 %v6044, %v6333
      %v6398 = vadd.f32 %v6045, %v6336
      %v6399 = vadd.f32 %v6046, %v6341
      %v6400 = vadd.f32 %v6047, %v6344
      %v6401 = vadd.f32 %v6048, %v6349
      %v6402 = vadd.f32 %v6049, %v6352
      %v6403 = vadd.f32 %v6050, %v6357
      %v6404 = vadd.f32 %v6051, %v6360
      %v6405 = vadd.f32 %v6052, %v6365
      %v6406 = vadd.f32 %v6053, %v6368
      %s6407 = scalar_lea.vmem %s4, 16
      %v6408 = vld [vmem:[%s6407] sm:$0x3]
      %vm6409 = vcmask 1044480
      %v6410 = vrot.slane %v3991, 3
      %v6411 = vrot.slane %v3992, 3
      %v6412 = vsel %vm6409, %v6410, %v6411
      %v6413 = vrot.slane %v3993, 3
      %v6414 = vsel %vm6409, %v6411, %v6413
      %v6415 = vrot.slane %v3994, 3
      %v6416 = vsel %vm6409, %v6413, %v6415
      %v6417 = vrot.slane %v3995, 3
      %v6418 = vsel %vm6409, %v6415, %v6417
      %v6419 = vrot.slane %v3996, 3
      %v6420 = vsel %vm6409, %v6417, %v6419
      %v6421 = vrot.slane %v3997, 3
      %v6422 = vsel %vm6409, %v6419, %v6421
      %v6423 = vrot.slane %v3998, 3
      %v6424 = vsel %vm6409, %v6421, %v6423
      %v6425 = vrot.slane %v3999, 3
      %v6426 = vsel %vm6409, %v6423, %v6425
      %v6427 = vrot.slane %v4000, 3
      %v6428 = vsel %vm6409, %v6425, %v6427
      %v6429 = vrot.slane %v4001, 3
      %v6430 = vsel %vm6409, %v6427, %v6429
      %v6431 = vrot.slane %v4002, 3
      %v6432 = vsel %vm6409, %v6429, %v6431
      %v6433 = vrot.slane %v4003, 3
      %v6434 = vsel %vm6409, %v6431, %v6433
      %v6435 = vrot.slane %v4004, 3
      %v6436 = vsel %vm6409, %v6433, %v6435
      %v6437 = vrot.slane %v4005, 3
      %v6438 = vsel %vm6409, %v6435, %v6437
      %v6439 = vrot.slane %v4006, 3
      %v6440 = vsel %vm6409, %v6437, %v6439
      %v6441 = vrot.slane %v4007, 3
      %v6442 = vsel %vm6409, %v6439, %v6441
      %v6443 = vrot.slane %v4008, 3
      %v6444 = vsel %vm6409, %v6441, %v6443
      %v6445 = vrot.slane %v4009, 3
      %v6446 = vsel %vm6409, %v6443, %v6445
      %v6448 = vsel %vm434, %v6412, 0
      %v6451 = vsel %vm434, %v6414, 0
      %v6454 = vsel %vm434, %v6416, 0
      %v6457 = vsel %vm434, %v6418, 0
      %v6460 = vsel %vm434, %v6420, 0
      %v6463 = vsel %vm434, %v6422, 0
      %v6466 = vsel %vm434, %v6424, 0
      %v6469 = vsel %vm434, %v6426, 0
      %v6472 = vsel %vm434, %v6428, 0
      %v6475 = vsel %vm434, %v6430, 0
      %v6478 = vsel %vm434, %v6432, 0
      %v6481 = vsel %vm434, %v6434, 0
      %v6484 = vsel %vm434, %v6436, 0
      %v6487 = vsel %vm434, %v6438, 0
      %v6490 = vsel %vm434, %v6440, 0
      %v6493 = vsel %vm434, %v6442, 0
      %v6496 = vsel %vm434, %v6444, 0
      %v6499 = vsel %vm434, %v6446, 0
      %v6502 = vsel %vm498, %v6408, 0
      %6504 = vmatprep.subr.bf16.mxu0 0
      %6505 = vmatpush1.bf16.msra.mxu0 0
      %6506 = vmatprep.subr.bf16.mxu0 0
      %6507 = vmatpush1.bf16.msra.mxu0 0
      %6508 = vmatprep.subr.bf16.mxu0 0
      %6509 = vmatpush1.bf16.msra.mxu0 0
      %6510 = vmatprep.subr.bf16.mxu0 0
      %6511 = vmatpush1.bf16.msra.mxu0 0
      %6512 = vmatprep.subr.bf16.mxu0 0
      %6513 = vmatpush1.bf16.msra.mxu0 0
      %6514 = vmatprep.subr.bf16.mxu0 0
      %6515 = vmatpush1.bf16.msra.mxu0 0
      %6516 = vmatprep.subr.bf16.mxu0 0
      %6517 = vmatpush1.bf16.msra.mxu0 0
      %6518 = vmatprep.subr.bf16.mxu0 0
      %6519 = vmatpush1.bf16.msra.mxu0 %v6502
      %6520 = vmatprep.subr.bf16.mxu0 0
      %6521 = vmatpush2.bf16.msra.mxu0 0
      %6522 = vmatprep.subr.bf16.mxu0 0
      %6523 = vmatpush2.bf16.msra.mxu0 0
      %6524 = vmatprep.subr.bf16.mxu0 0
      %6525 = vmatpush2.bf16.msra.mxu0 0
      %6526 = vmatprep.subr.bf16.mxu0 0
      %6527 = vmatpush2.bf16.msra.mxu0 0
      %6528 = vmatprep.subr.bf16.mxu0 0
      %6529 = vmatpush2.bf16.msra.mxu0 0
      %6530 = vmatprep.subr.bf16.mxu0 0
      %6531 = vmatpush2.bf16.msra.mxu0 0
      %6532 = vmatprep.subr.bf16.mxu0 0
      %6533 = vmatpush2.bf16.msra.mxu0 0
      %6534 = vmatprep.subr.bf16.mxu0 0
      %6535 = vmatpush2.bf16.msra.mxu0 0
      %6536 = vmatprep.mubr.bf16.mxu0 0
      %6537 = vmatmul.mubr.bf16.gmra.mxu0 %v6448
      %v6538 = vpop.f32.mrf.mxu0
      %v6539 = vadd.f32 0.0, %v6538
      %v6540 = vpop.f32.mrf.mxu0
      %v6541 = vpop.f32.mrf.mxu0
      %v6542 = vadd.f32 0.0, %v6541
      %v6543 = vpop.f32.mrf.mxu0
      %6544 = vmatprep.mubr.bf16.mxu0 0
      %6545 = vmatmul.mubr.bf16.gmra.mxu0 %v6451
      %v6546 = vpop.f32.mrf.mxu0
      %v6547 = vadd.f32 0.0, %v6546
      %v6548 = vpop.f32.mrf.mxu0
      %v6549 = vpop.f32.mrf.mxu0
      %v6550 = vadd.f32 0.0, %v6549
      %v6551 = vpop.f32.mrf.mxu0
      %6552 = vmatprep.mubr.bf16.mxu0 0
      %6553 = vmatmul.mubr.bf16.gmra.mxu0 %v6454
      %v6554 = vpop.f32.mrf.mxu0
      %v6555 = vadd.f32 0.0, %v6554
      %v6556 = vpop.f32.mrf.mxu0
      %v6557 = vpop.f32.mrf.mxu0
      %v6558 = vadd.f32 0.0, %v6557
      %v6559 = vpop.f32.mrf.mxu0
      %6560 = vmatprep.mubr.bf16.mxu0 0
      %6561 = vmatmul.mubr.bf16.gmra.mxu0 %v6457
      %v6562 = vpop.f32.mrf.mxu0
      %v6563 = vadd.f32 0.0, %v6562
      %v6564 = vpop.f32.mrf.mxu0
      %v6565 = vpop.f32.mrf.mxu0
      %v6566 = vadd.f32 0.0, %v6565
      %v6567 = vpop.f32.mrf.mxu0
      %6568 = vmatprep.mubr.bf16.mxu0 0
      %6569 = vmatmul.mubr.bf16.gmra.mxu0 %v6460
      %v6570 = vpop.f32.mrf.mxu0
      %v6571 = vadd.f32 0.0, %v6570
      %v6572 = vpop.f32.mrf.mxu0
      %v6573 = vpop.f32.mrf.mxu0
      %v6574 = vadd.f32 0.0, %v6573
      %v6575 = vpop.f32.mrf.mxu0
      %6576 = vmatprep.mubr.bf16.mxu0 0
      %6577 = vmatmul.mubr.bf16.gmra.mxu0 %v6463
      %v6578 = vpop.f32.mrf.mxu0
      %v6579 = vadd.f32 0.0, %v6578
      %v6580 = vpop.f32.mrf.mxu0
      %v6581 = vpop.f32.mrf.mxu0
      %v6582 = vadd.f32 0.0, %v6581
      %v6583 = vpop.f32.mrf.mxu0
      %6584 = vmatprep.mubr.bf16.mxu0 0
      %6585 = vmatmul.mubr.bf16.gmra.mxu0 %v6466
      %v6586 = vpop.f32.mrf.mxu0
      %v6587 = vadd.f32 0.0, %v6586
      %v6588 = vpop.f32.mrf.mxu0
      %v6589 = vpop.f32.mrf.mxu0
      %v6590 = vadd.f32 0.0, %v6589
      %v6591 = vpop.f32.mrf.mxu0
      %6592 = vmatprep.mubr.bf16.mxu0 0
      %6593 = vmatmul.mubr.bf16.gmra.mxu0 %v6469
      %v6594 = vpop.f32.mrf.mxu0
      %v6595 = vadd.f32 0.0, %v6594
      %v6596 = vpop.f32.mrf.mxu0
      %v6597 = vpop.f32.mrf.mxu0
      %v6598 = vadd.f32 0.0, %v6597
      %v6599 = vpop.f32.mrf.mxu0
      %6600 = vmatprep.mubr.bf16.mxu0 0
      %6601 = vmatmul.mubr.bf16.gmra.mxu0 %v6472
      %v6602 = vpop.f32.mrf.mxu0
      %v6603 = vadd.f32 0.0, %v6602
      %v6604 = vpop.f32.mrf.mxu0
      %v6605 = vpop.f32.mrf.mxu0
      %v6606 = vadd.f32 0.0, %v6605
      %v6607 = vpop.f32.mrf.mxu0
      %6608 = vmatprep.mubr.bf16.mxu0 0
      %6609 = vmatmul.mubr.bf16.gmra.mxu0 %v6475
      %v6610 = vpop.f32.mrf.mxu0
      %v6611 = vadd.f32 0.0, %v6610
      %v6612 = vpop.f32.mrf.mxu0
      %v6613 = vpop.f32.mrf.mxu0
      %v6614 = vadd.f32 0.0, %v6613
      %v6615 = vpop.f32.mrf.mxu0
      %6616 = vmatprep.mubr.bf16.mxu0 0
      %6617 = vmatmul.mubr.bf16.gmra.mxu0 %v6478
      %v6618 = vpop.f32.mrf.mxu0
      %v6619 = vadd.f32 0.0, %v6618
      %v6620 = vpop.f32.mrf.mxu0
      %v6621 = vpop.f32.mrf.mxu0
      %v6622 = vadd.f32 0.0, %v6621
      %v6623 = vpop.f32.mrf.mxu0
      %6624 = vmatprep.mubr.bf16.mxu0 0
      %6625 = vmatmul.mubr.bf16.gmra.mxu0 %v6481
      %v6626 = vpop.f32.mrf.mxu0
      %v6627 = vadd.f32 0.0, %v6626
      %v6628 = vpop.f32.mrf.mxu0
      %v6629 = vpop.f32.mrf.mxu0
      %v6630 = vadd.f32 0.0, %v6629
      %v6631 = vpop.f32.mrf.mxu0
      %6632 = vmatprep.mubr.bf16.mxu0 0
      %6633 = vmatmul.mubr.bf16.gmra.mxu0 %v6484
      %v6634 = vpop.f32.mrf.mxu0
      %v6635 = vadd.f32 0.0, %v6634
      %v6636 = vpop.f32.mrf.mxu0
      %v6637 = vpop.f32.mrf.mxu0
      %v6638 = vadd.f32 0.0, %v6637
      %v6639 = vpop.f32.mrf.mxu0
      %6640 = vmatprep.mubr.bf16.mxu0 0
      %6641 = vmatmul.mubr.bf16.gmra.mxu0 %v6487
      %v6642 = vpop.f32.mrf.mxu0
      %v6643 = vadd.f32 0.0, %v6642
      %v6644 = vpop.f32.mrf.mxu0
      %v6645 = vpop.f32.mrf.mxu0
      %v6646 = vadd.f32 0.0, %v6645
      %v6647 = vpop.f32.mrf.mxu0
      %6648 = vmatprep.mubr.bf16.mxu0 0
      %6649 = vmatmul.mubr.bf16.gmra.mxu0 %v6490
      %v6650 = vpop.f32.mrf.mxu0
      %v6651 = vadd.f32 0.0, %v6650
      %v6652 = vpop.f32.mrf.mxu0
      %v6653 = vpop.f32.mrf.mxu0
      %v6654 = vadd.f32 0.0, %v6653
      %v6655 = vpop.f32.mrf.mxu0
      %6656 = vmatprep.mubr.bf16.mxu0 0
      %6657 = vmatmul.mubr.bf16.gmra.mxu0 %v6493
      %v6658 = vpop.f32.mrf.mxu0
      %v6659 = vadd.f32 0.0, %v6658
      %v6660 = vpop.f32.mrf.mxu0
      %v6661 = vpop.f32.mrf.mxu0
      %v6662 = vadd.f32 0.0, %v6661
      %v6663 = vpop.f32.mrf.mxu0
      %6664 = vmatprep.mubr.bf16.mxu0 0
      %6665 = vmatmul.mubr.bf16.gmra.mxu0 %v6496
      %v6666 = vpop.f32.mrf.mxu0
      %v6667 = vadd.f32 0.0, %v6666
      %v6668 = vpop.f32.mrf.mxu0
      %v6669 = vpop.f32.mrf.mxu0
      %v6670 = vadd.f32 0.0, %v6669
      %v6671 = vpop.f32.mrf.mxu0
      %6672 = vmatprep.mubr.bf16.mxu0 0
      %6673 = vmatmul.mubr.bf16.gmra.mxu0 %v6499
      %v6674 = vpop.f32.mrf.mxu0
      %v6675 = vadd.f32 0.0, %v6674
      %v6676 = vpop.f32.mrf.mxu0
      %v6677 = vpop.f32.mrf.mxu0
      %v6678 = vadd.f32 0.0, %v6677
      %v6679 = vpop.f32.mrf.mxu0
      %6680 = vdwg.mxu0
      %v6681 = vadd.f32 %v6371, %v6539
      %v6682 = vadd.f32 %v6372, %v6542
      %v6683 = vadd.f32 %v6373, %v6547
      %v6684 = vadd.f32 %v6374, %v6550
      %v6685 = vadd.f32 %v6375, %v6555
      %v6686 = vadd.f32 %v6376, %v6558
      %v6687 = vadd.f32 %v6377, %v6563
      %v6688 = vadd.f32 %v6378, %v6566
      %v6689 = vadd.f32 %v6379, %v6571
      %v6690 = vadd.f32 %v6380, %v6574
      %v6691 = vadd.f32 %v6381, %v6579
      %v6692 = vadd.f32 %v6382, %v6582
      %v6693 = vadd.f32 %v6383, %v6587
      %v6694 = vadd.f32 %v6384, %v6590
      %v6695 = vadd.f32 %v6385, %v6595
      %v6696 = vadd.f32 %v6386, %v6598
      %v6697 = vadd.f32 %v6387, %v6603
      %v6698 = vadd.f32 %v6388, %v6606
      %v6699 = vadd.f32 %v6389, %v6611
      %v6700 = vadd.f32 %v6390, %v6614
      %v6701 = vadd.f32 %v6391, %v6619
      %v6702 = vadd.f32 %v6392, %v6622
      %v6703 = vadd.f32 %v6393, %v6627
      %v6704 = vadd.f32 %v6394, %v6630
      %v6705 = vadd.f32 %v6395, %v6635
      %v6706 = vadd.f32 %v6396, %v6638
      %v6707 = vadd.f32 %v6397, %v6643
      %v6708 = vadd.f32 %v6398, %v6646
      %v6709 = vadd.f32 %v6399, %v6651
      %v6710 = vadd.f32 %v6400, %v6654
      %v6711 = vadd.f32 %v6401, %v6659
      %v6712 = vadd.f32 %v6402, %v6662
      %v6713 = vadd.f32 %v6403, %v6667
      %v6714 = vadd.f32 %v6404, %v6670
      %v6715 = vadd.f32 %v6405, %v6675
      %v6716 = vadd.f32 %v6406, %v6678
      %v6717 = vld [vmem:[%s5] sm:$0x1]
      %v6719 = vlaneseq
      %v6720 = vshrl.u32 %v6719, 7
      %v6721 = vsub.s32 0, %v6720
      %v6722 = vrot.slane %v6717, %v6721
      %v6724 = vmul.f32 %v6681, %v6722
      %v6725 = vmul.f32 %v6682, %v6722
      %v6726 = vmul.f32 %v6683, %v6722
      %v6727 = vmul.f32 %v6684, %v6722
      %v6728 = vmul.f32 %v6685, %v6722
      %v6729 = vmul.f32 %v6686, %v6722
      %v6730 = vmul.f32 %v6687, %v6722
      %v6731 = vmul.f32 %v6688, %v6722
      %v6732 = vmul.f32 %v6689, %v6722
      %v6733 = vmul.f32 %v6690, %v6722
      %v6734 = vmul.f32 %v6691, %v6722
      %v6735 = vmul.f32 %v6692, %v6722
      %v6736 = vmul.f32 %v6693, %v6722
      %v6737 = vmul.f32 %v6694, %v6722
      %v6738 = vmul.f32 %v6695, %v6722
      %v6739 = vmul.f32 %v6696, %v6722
      %v6740 = vmul.f32 %v6697, %v6722
      %v6741 = vmul.f32 %v6698, %v6722
      %v6742 = vmul.f32 %v6699, %v6722
      %v6743 = vmul.f32 %v6700, %v6722
      %v6744 = vmul.f32 %v6701, %v6722
      %v6745 = vmul.f32 %v6702, %v6722
      %v6746 = vmul.f32 %v6703, %v6722
      %v6747 = vmul.f32 %v6704, %v6722
      %v6748 = vmul.f32 %v6705, %v6722
      %v6749 = vmul.f32 %v6706, %v6722
      %v6750 = vmul.f32 %v6707, %v6722
      %v6751 = vmul.f32 %v6708, %v6722
      %v6752 = vmul.f32 %v6709, %v6722
      %v6753 = vmul.f32 %v6710, %v6722
      %v6754 = vmul.f32 %v6711, %v6722
      %v6755 = vmul.f32 %v6712, %v6722
      %v6756 = vmul.f32 %v6713, %v6722
      %v6757 = vmul.f32 %v6714, %v6722
      %v6758 = vmul.f32 %v6715, %v6722
      %v6759 = vmul.f32 %v6716, %v6722
      %v6760 = vld [vmem:[%s6] sm:$0x1]
      %v6762 = vlaneseq
      %v6763 = vshrl.u32 %v6762, 7
      %v6764 = vsub.s32 0, %v6763
      %v6765 = vrot.slane %v6760, %v6764
      %v6767 = vadd.f32 %v6724, %v6765
      %v6768 = vadd.f32 %v6725, %v6765
      %v6769 = vadd.f32 %v6726, %v6765
      %v6770 = vadd.f32 %v6727, %v6765
      %v6771 = vadd.f32 %v6728, %v6765
      %v6772 = vadd.f32 %v6729, %v6765
      %v6773 = vadd.f32 %v6730, %v6765
      %v6774 = vadd.f32 %v6731, %v6765
      %v6775 = vadd.f32 %v6732, %v6765
      %v6776 = vadd.f32 %v6733, %v6765
      %v6777 = vadd.f32 %v6734, %v6765
      %v6778 = vadd.f32 %v6735, %v6765
      %v6779 = vadd.f32 %v6736, %v6765
      %v6780 = vadd.f32 %v6737, %v6765
      %v6781 = vadd.f32 %v6738, %v6765
      %v6782 = vadd.f32 %v6739, %v6765
      %v6783 = vadd.f32 %v6740, %v6765
      %v6784 = vadd.f32 %v6741, %v6765
      %v6785 = vadd.f32 %v6742, %v6765
      %v6786 = vadd.f32 %v6743, %v6765
      %v6787 = vadd.f32 %v6744, %v6765
      %v6788 = vadd.f32 %v6745, %v6765
      %v6789 = vadd.f32 %v6746, %v6765
      %v6790 = vadd.f32 %v6747, %v6765
      %v6791 = vadd.f32 %v6748, %v6765
      %v6792 = vadd.f32 %v6749, %v6765
      %v6793 = vadd.f32 %v6750, %v6765
      %v6794 = vadd.f32 %v6751, %v6765
      %v6795 = vadd.f32 %v6752, %v6765
      %v6796 = vadd.f32 %v6753, %v6765
      %v6797 = vadd.f32 %v6754, %v6765
      %v6798 = vadd.f32 %v6755, %v6765
      %v6799 = vadd.f32 %v6756, %v6765
      %v6800 = vadd.f32 %v6757, %v6765
      %v6801 = vadd.f32 %v6758, %v6765
      %v6802 = vadd.f32 %v6759, %v6765
      %v6803 = vld [vmem:[%s300 + $0x26] sm:$0xff]
      %v6804 = vld [vmem:[%s300 + $0x2e] sm:$0xff]
      %v6805 = vld [vmem:[%s300 + $0x36] sm:$0xff]
      %v6806 = vld [vmem:[%s300 + $0x3e] sm:$0xff]
      %v6807 = vld [vmem:[%s300 + $0x46] sm:$0xff]
      %v6808 = vld [vmem:[%s300 + $0x4e] sm:$0xff]
      %v6809 = vld [vmem:[%s300 + $0x56] sm:$0xff]
      %v6810 = vld [vmem:[%s300 + $0x5e] sm:$0xff]
      %v6811 = vld [vmem:[%s300 + $0x66] sm:$0xff]
      %v6812 = vld [vmem:[%s300 + $0x6e] sm:$0xff]
      %v6813 = vld [vmem:[%s300 + $0x76] sm:$0xff]
      %v6814 = vld [vmem:[%s300 + $0x7e] sm:$0xff]
      %v6815 = vld [vmem:[%s300 + $0x86] sm:$0xff]
      %v6816 = vld [vmem:[%s300 + $0x8e] sm:$0xff]
      %v6817 = vld [vmem:[%s300 + $0x96] sm:$0xff]
      %v6818 = vld [vmem:[%s300 + $0x9e] sm:$0xff]
      %v6819 = vld [vmem:[%s300 + $0xa6] sm:$0xff]
      %v6820 = vld [vmem:[%s300 + $0xae] sm:$0xff]
      %v6821 = vld [vmem:[%s300 + $0xb6] sm:$0xff]
      %v6822 = vld [vmem:[%s300 + $0xbe] sm:$0xff]
      %v6823 = vld [vmem:[%s300 + $0xc6] sm:$0xff]
      %v6824 = vld [vmem:[%s300 + $0xce] sm:$0xff]
      %v6825 = vld [vmem:[%s300 + $0xd6] sm:$0xff]
      %v6826 = vld [vmem:[%s300 + $0xde] sm:$0xff]
      %v6827 = vld [vmem:[%s300 + $0xe6] sm:$0xff]
      %v6828 = vld [vmem:[%s300 + $0xee] sm:$0xff]
      %v6829 = vld [vmem:[%s300 + $0xf6] sm:$0xff]
      %v6830 = vld [vmem:[%s300 + $0xfe] sm:$0xff]
      %v6831 = vld [vmem:[%s300 + $0x106] sm:$0xff]
      %v6832 = vld [vmem:[%s300 + $0x10e] sm:$0xff]
      %v6833 = vld [vmem:[%s300 + $0x116] sm:$0xff]
      %v6834 = vld [vmem:[%s300 + $0x11e] sm:$0xff]
      %v6835 = vld [vmem:[%s300 + $0x126] sm:$0xff]
      %v6836 = vld [vmem:[%s300 + $0x12e] sm:$0xff]
      %v6837 = vld [vmem:[%s300 + $0x136] sm:$0xff]
      %v6838 = vld [vmem:[%s300 + $0x13e] sm:$0xff]
      %v6839 = vadd.f32 %v6767, %v6803
      %v6840 = vadd.f32 %v6768, %v6804
      %v6841 = vadd.f32 %v6769, %v6805
      %v6842 = vadd.f32 %v6770, %v6806
      %v6843 = vadd.f32 %v6771, %v6807
      %v6844 = vadd.f32 %v6772, %v6808
      %v6845 = vadd.f32 %v6773, %v6809
      %v6846 = vadd.f32 %v6774, %v6810
      %v6847 = vadd.f32 %v6775, %v6811
      %v6848 = vadd.f32 %v6776, %v6812
      %v6849 = vadd.f32 %v6777, %v6813
      %v6850 = vadd.f32 %v6778, %v6814
      %v6851 = vadd.f32 %v6779, %v6815
      %v6852 = vadd.f32 %v6780, %v6816
      %v6853 = vadd.f32 %v6781, %v6817
      %v6854 = vadd.f32 %v6782, %v6818
      %v6855 = vadd.f32 %v6783, %v6819
      %v6856 = vadd.f32 %v6784, %v6820
      %v6857 = vadd.f32 %v6785, %v6821
      %v6858 = vadd.f32 %v6786, %v6822
      %v6859 = vadd.f32 %v6787, %v6823
      %v6860 = vadd.f32 %v6788, %v6824
      %v6861 = vadd.f32 %v6789, %v6825
      %v6862 = vadd.f32 %v6790, %v6826
      %v6863 = vadd.f32 %v6791, %v6827
      %v6864 = vadd.f32 %v6792, %v6828
      %v6865 = vadd.f32 %v6793, %v6829
      %v6866 = vadd.f32 %v6794, %v6830
      %v6867 = vadd.f32 %v6795, %v6831
      %v6868 = vadd.f32 %v6796, %v6832
      %v6869 = vadd.f32 %v6797, %v6833
      %v6870 = vadd.f32 %v6798, %v6834
      %v6871 = vadd.f32 %v6799, %v6835
      %v6872 = vadd.f32 %v6800, %v6836
      %v6873 = vadd.f32 %v6801, %v6837
      %v6874 = vadd.f32 %v6802, %v6838
      %v6875 = vmax.f32 %v6839, 0.0
      %v6876 = vmax.f32 %v6840, 0.0
      %v6877 = vmax.f32 %v6841, 0.0
      %v6878 = vmax.f32 %v6842, 0.0
      %v6879 = vmax.f32 %v6843, 0.0
      %v6880 = vmax.f32 %v6844, 0.0
      %v6881 = vmax.f32 %v6845, 0.0
      %v6882 = vmax.f32 %v6846, 0.0
      %v6883 = vmax.f32 %v6847, 0.0
      %v6884 = vmax.f32 %v6848, 0.0
      %v6885 = vmax.f32 %v6849, 0.0
      %v6886 = vmax.f32 %v6850, 0.0
      %v6887 = vmax.f32 %v6851, 0.0
      %v6888 = vmax.f32 %v6852, 0.0
      %v6889 = vmax.f32 %v6853, 0.0
      %v6890 = vmax.f32 %v6854, 0.0
      %v6891 = vmax.f32 %v6855, 0.0
      %v6892 = vmax.f32 %v6856, 0.0
      %v6893 = vmax.f32 %v6857, 0.0
      %v6894 = vmax.f32 %v6858, 0.0
      %v6895 = vmax.f32 %v6859, 0.0
      %v6896 = vmax.f32 %v6860, 0.0
      %v6897 = vmax.f32 %v6861, 0.0
      %v6898 = vmax.f32 %v6862, 0.0
      %v6899 = vmax.f32 %v6863, 0.0
      %v6900 = vmax.f32 %v6864, 0.0
      %v6901 = vmax.f32 %v6865, 0.0
      %v6902 = vmax.f32 %v6866, 0.0
      %v6903 = vmax.f32 %v6867, 0.0
      %v6904 = vmax.f32 %v6868, 0.0
      %v6905 = vmax.f32 %v6869, 0.0
      %v6906 = vmax.f32 %v6870, 0.0
      %v6907 = vmax.f32 %v6871, 0.0
      %v6908 = vmax.f32 %v6872, 0.0
      %v6909 = vmax.f32 %v6873, 0.0
      %v6910 = vmax.f32 %v6874, 0.0
      %6911 = vst.msk [vmem:[%s305] sm:$0xff] %vm434, %v6875
      %6912 = vst.msk [vmem:[%s305 + $0x8] sm:$0xff] %vm434, %v6876
      %6913 = vst.msk [vmem:[%s305 + $0x10] sm:$0xff] %vm434, %v6877
      %6914 = vst.msk [vmem:[%s305 + $0x18] sm:$0xff] %vm434, %v6878
      %6915 = vst.msk [vmem:[%s305 + $0x20] sm:$0xff] %vm434, %v6879
      %6916 = vst.msk [vmem:[%s305 + $0x28] sm:$0xff] %vm434, %v6880
      %6917 = vst.msk [vmem:[%s305 + $0x30] sm:$0xff] %vm434, %v6881
      %6918 = vst.msk [vmem:[%s305 + $0x38] sm:$0xff] %vm434, %v6882
      %6919 = vst.msk [vmem:[%s305 + $0x40] sm:$0xff] %vm434, %v6883
      %6920 = vst.msk [vmem:[%s305 + $0x48] sm:$0xff] %vm434, %v6884
      %6921 = vst.msk [vmem:[%s305 + $0x50] sm:$0xff] %vm434, %v6885
      %6922 = vst.msk [vmem:[%s305 + $0x58] sm:$0xff] %vm434, %v6886
      %6923 = vst.msk [vmem:[%s305 + $0x60] sm:$0xff] %vm434, %v6887
      %6924 = vst.msk [vmem:[%s305 + $0x68] sm:$0xff] %vm434, %v6888
      %6925 = vst.msk [vmem:[%s305 + $0x70] sm:$0xff] %vm434, %v6889
      %6926 = vst.msk [vmem:[%s305 + $0x78] sm:$0xff] %vm434, %v6890
      %6927 = vst.msk [vmem:[%s305 + $0x80] sm:$0xff] %vm434, %v6891
      %6928 = vst.msk [vmem:[%s305 + $0x88] sm:$0xff] %vm434, %v6892
      %6929 = vst.msk [vmem:[%s305 + $0x90] sm:$0xff] %vm434, %v6893
      %6930 = vst.msk [vmem:[%s305 + $0x98] sm:$0xff] %vm434, %v6894
      %6931 = vst.msk [vmem:[%s305 + $0xa0] sm:$0xff] %vm434, %v6895
      %6932 = vst.msk [vmem:[%s305 + $0xa8] sm:$0xff] %vm434, %v6896
      %6933 = vst.msk [vmem:[%s305 + $0xb0] sm:$0xff] %vm434, %v6897
      %6934 = vst.msk [vmem:[%s305 + $0xb8] sm:$0xff] %vm434, %v6898
      %6935 = vst.msk [vmem:[%s305 + $0xc0] sm:$0xff] %vm434, %v6899
      %6936 = vst.msk [vmem:[%s305 + $0xc8] sm:$0xff] %vm434, %v6900
      %6937 = vst.msk [vmem:[%s305 + $0xd0] sm:$0xff] %vm434, %v6901
      %6938 = vst.msk [vmem:[%s305 + $0xd8] sm:$0xff] %vm434, %v6902
      %6939 = vst.msk [vmem:[%s305 + $0xe0] sm:$0xff] %vm434, %v6903
      %6940 = vst.msk [vmem:[%s305 + $0xe8] sm:$0xff] %vm434, %v6904
      %6941 = vst.msk [vmem:[%s305 + $0xf0] sm:$0xff] %vm434, %v6905
      %6942 = vst.msk [vmem:[%s305 + $0xf8] sm:$0xff] %vm434, %v6906
      %6943 = vst.msk [vmem:[%s305 + $0x100] sm:$0xff] %vm434, %v6907
      %6944 = vst.msk [vmem:[%s305 + $0x108] sm:$0xff] %vm434, %v6908
      %6945 = vst.msk [vmem:[%s305 + $0x110] sm:$0xff] %vm434, %v6909
      %6946 = vst.msk [vmem:[%s305 + $0x118] sm:$0xff] %vm434, %v6910
      %p6947 = scmp.lt.s32.totalorder %s19, 1
      %s6948 = scalar_select %p6947, %s19, 1
      %s6949 = smul.addr %s6948, 36
      %s6950 = smul.addr %s6949, 8
      %s6951 = scalar_lea.vmem %s8, %s6950
      // Predicated region
      $region53: #{tpu_custom_call.1} parent=51 // pred_check
        %p6952 = pneg %p210
      $region54: #{tpu_custom_call.1} parent=51 // pred_check_branch
        %6954 = sbr.rel (%p6952) target = $region56
      $region55: #{tpu_custom_call.1} parent=51 // pred_region
        _
      $region56: #{tpu_custom_call.1} parent=51 // pred_fallthru
        _
    $region52: #{tpu_custom_call.1} parent=5 // pred_fallthru
      _
    %p6955 = scmp.le.s32.totalorder 2, %s14
    // Predicated region
    $region57: #{tpu_custom_call.1} parent=5 // pred_check
      %p6956 = pneg %p6955
    $region58: #{tpu_custom_call.1} parent=5 // pred_check_branch
      %6958 = sbr.rel (%p6956) target = $region60
    $region59: #{tpu_custom_call.1} parent=5 // pred_region
      %s6959 = ssub.s32 %s14, 2
      // Predicated region
      $region61: #{tpu_custom_call.1} parent=59 // pred_check
        %p6960 = pneg %p216
      $region62: #{tpu_custom_call.1} parent=59 // pred_check_branch
        %6962 = sbr.rel (%p6960) target = $region64
      $region63: #{tpu_custom_call.1} parent=59 // pred_region
        %p6963 = scmp.lt.s32.totalorder %s20, 1
        %s6964 = scalar_select %p6963, %s20, 1
        %s6965 = smul.addr %s6964, 36
        %s6966 = smul.addr %s6965, 8
        %s6967 = scalar_lea.vmem %s8, %s6966
      $region64: #{tpu_custom_call.1} parent=59 // pred_fallthru
        _
    $region60: #{tpu_custom_call.1} parent=5 // pred_fallthru
      _
  $region6: #{tpu_custom_call.1} parent=0 // loop_footer
    %s18 = sadd.s32 1, %s14
  $region7: #{tpu_custom_call.1} parent=0 // loop_footer_branch
    %13 = sbr.rel target = $region3
  $region8: #{tpu_custom_call.1} parent=0 // loop_exit
    _

</llo_original>
